<compile_context>
chip_gen: v7x
topology: tpu7x:2x2x1
jax: 0.10.0
libtpu: 0.0.40
codegen_flags: <defaults>
</compile_context>

<pallas_src>
import functools
import math

import numpy as np
import jax
import jax.numpy as jnp
from jax.experimental import pallas as pl
from jax.experimental.pallas import tpu as pltpu


# ----------------------------------------------------------------------------
# Static model configuration (Python ints only, closed over at trace time)
# ----------------------------------------------------------------------------
def make_cfg(in_channels, num_features, num_classes, bw):
    F0, F1, F2, F3, F4 = num_features
    layers = []

    def add(kind, b_in, b_out, Fi, Fo, ngrid):
        D = 2 * b_out - 1                      # padded per-degree block size
        S_in = (2 * b_in) ** 2 if kind == "s2" else (2 * b_in) ** 3
        S_out = (2 * b_out) ** 3
        nspec_x = b_out * D if kind == "s2" else b_out * D * D
        nspec_y = nspec_x
        nspec_z = b_out * D * D
        if kind == "s2":
            scaling = 1.0 / math.sqrt(ngrid * Fi * (b_out ** 4) / (b_in ** 2))
        else:
            scaling = 1.0 / math.sqrt(ngrid * Fi * (b_out ** 3) / (b_in ** 3))
        layers.append(dict(kind=kind, b_in=b_in, b_out=b_out, D=D, Fi=Fi, Fo=Fo,
                           ngrid=ngrid, S_in=S_in, S_out=S_out, nspec_x=nspec_x,
                           nspec_y=nspec_y, nspec_z=nspec_z, scaling=scaling))

    add("s2", bw, bw // 2, F0, F1, 6)           # conv2: S2Convolution
    add("so3", bw // 2, bw // 2, F1, F2, 36)    # conv3: SO3Convolution
    add("so3", bw // 2, bw // 4, F2, F3, 36)    # conv4
    add("so3", bw // 4, bw // 4, F3, F4, 36)    # conv5
    return dict(in_channels=in_channels, F0=F0, F_last=F4,
                num_classes=num_classes, bw=bw, HW=(2 * bw) ** 2, layers=layers)


def _mask_deg(kind, b_out):
    """1.0 on valid (un-padded) spectral slots, 0.0 on padding."""
    D = 2 * b_out - 1
    if kind == "s2":
        m = np.zeros((b_out, D), np.float32)
        for l in range(b_out):
            m[l, :2 * l + 1] = 1.0
    else:
        m = np.zeros((b_out, D, D), np.float32)
        for l in range(b_out):
            m[l, :2 * l + 1, :2 * l + 1] = 1.0
    return m.reshape(-1)


def s3_quadrature_weights(b):
    """Driscoll-Healy style quadrature weights over beta (length 2b)."""
    k = np.arange(b)
    w = np.zeros(2 * b, dtype=np.float64)
    for j in range(2 * b):
        w[j] = (2.0 / b) * np.sin(np.pi * (2 * j + 1) / (4.0 * b)) * np.sum(
            np.sin((2 * j + 1) * (2 * k + 1) * np.pi / (4.0 * b)) / (2 * k + 1))
    return jnp.asarray(w, jnp.float32)


# ----------------------------------------------------------------------------
# Pallas kernel 1: kernel -> spectral transform of all conv-layer weights
# ----------------------------------------------------------------------------
def _yspec_kernel(*refs):
    n = len(refs) // 3  # 2n inputs (basisT_i, kernel_i), n outputs
    for i in range(n):
        refs[2 * n + i][...] = jnp.dot(refs[2 * i][...], refs[2 * i + 1][...],
                                       preferred_element_type=jnp.float32)


def _compute_y2(cfg, params):
    """Spectral transform of all four conv kernels in one pallas_call, then a
    tiny per-layer re-layout to the (l, k, Fi, n*Fo) form the fused network
    kernel consumes (weights-side only, a few hundred KB)."""
    layers = cfg["layers"]
    ins, out_shapes = [], []
    for L, Lp in zip(layers, params["layers"]):
        ins += [Lp["basisT"], Lp["kernel"]]
        out_shapes.append(
            jax.ShapeDtypeStruct((L["nspec_y"], L["Fi"] * L["Fo"]), jnp.float32))

    def full_spec(shape):
        nd = len(shape)
        return pl.BlockSpec(shape, lambda i, _nd=nd: (0,) * _nd)

    yflats = pl.pallas_call(
        _yspec_kernel,
        out_shape=tuple(out_shapes),
        grid=(1,),
        in_specs=[full_spec(a.shape) for a in ins],
        out_specs=tuple(full_spec(s.shape) for s in out_shapes),
    )(*ins)

    y2s = []
    for L, yf in zip(layers, yflats):
        D, Fi, Fo, b_out = L["D"], L["Fi"], L["Fo"], L["b_out"]
        if L["kind"] == "s2":
            y = yf.reshape(b_out, D, Fi, Fo).transpose(0, 2, 1, 3)
            y = y.reshape(b_out, Fi, D * Fo)              # (l, Fi, n*Fo)
        else:
            y = yf.reshape(b_out, D, D, Fi, Fo).transpose(0, 1, 3, 2, 4)
            y = y.reshape(b_out, D, Fi, D * Fo)           # (l, k, Fi, n*Fo)
        y2s.append(y.astype(jnp.bfloat16))
    return y2s


# ----------------------------------------------------------------------------
# Pallas kernel 2: the whole network body, one grid step per batch element
# ----------------------------------------------------------------------------
def _make_net_kernel(layers):
    n_layers = len(layers)

    def kernel(*refs):
        it = iter(refs)
        x_ref, w1_ref, b1_ref = next(it), next(it), next(it)
        lrefs = [(next(it), next(it), next(it), next(it)) for _ in range(n_layers)]
        wq_ref, lw_ref, lb_ref = next(it), next(it), next(it)
        o_ref = next(it)
        specbuf, zbuf, zfull = next(it), next(it), next(it)

        # ---- conv1: 1x1 convolution over channels + ReLU ----
        xb = x_ref[...].astype(jnp.bfloat16)                       # (HW, Cin)
        act = jnp.dot(xb, w1_ref[...], preferred_element_type=jnp.float32)
        act = jnp.maximum(act + b1_ref[...], 0.0)                  # (HW, F0)

        # ---- S2 / SO(3) spectral convolution layers, fully fused ----
        for L, (tf_ref, y2_ref, ti_ref, bias_ref) in zip(layers, lrefs):
            D, Fi, Fo = L["D"], L["Fi"], L["Fo"]
            b_out, nx, nz = L["b_out"], L["nspec_x"], L["nspec_z"]

            # forward spectral transform: one MXU matmul over the spatial dim
            spec = jnp.dot(tf_ref[...], act.astype(jnp.bfloat16),
                           preferred_element_type=jnp.float32)     # (nspec_x, Fi)
            specbuf[0:nx, 0:Fi] = spec

            # per-degree block-diagonal matmuls (degrees padded to D; padded
            # spectral slots are exactly zero by construction of the bases).
            for l in range(b_out):
                if L["kind"] == "s2":
                    sl = specbuf[l * D:(l + 1) * D, 0:Fi].astype(jnp.bfloat16)
                    zl = jnp.dot(sl, y2_ref[l],
                                 preferred_element_type=jnp.float32)   # (D, D*Fo)
                else:
                    zl = None
                    for k in range(D):
                        r = (l * D + k) * D
                        sl = specbuf[r:r + D, 0:Fi].astype(jnp.bfloat16)
                        part = jnp.dot(sl, y2_ref[l, k],
                                       preferred_element_type=jnp.float32)
                        zl = part if zl is None else zl + part
                zbuf[0:D, 0:D * Fo] = zl
                # regroup (m, (n, fo)) -> rows ((l, n, m), fo) of zfull
                for n in range(D):
                    r0 = (l * D + n) * D
                    zfull[r0:r0 + D, 0:Fo] = zbuf[0:D, n * Fo:(n + 1) * Fo]

            # inverse spectral transform + bias + ReLU: one MXU matmul
            zf = zfull[0:nz, 0:Fo].astype(jnp.bfloat16)
            out = jnp.dot(ti_ref[...], zf, preferred_element_type=jnp.float32)
            act = jnp.maximum(out + bias_ref[...], 0.0)             # (S_out, Fo)

        # ---- so3_integrate + linear + log_softmax (fused tail) ----
        # integrate(act) @ W == sum_s w[s] * (act @ W)[s]  (linearity), so the
        # quadrature-weighted reduction runs on the VPU/XLU after the matmul.
        big = jnp.dot(act, lw_ref[...], preferred_element_type=jnp.float32)
        logits = jnp.sum(big * wq_ref[...], axis=0, keepdims=True) + lb_ref[...]
        m = jnp.max(logits, axis=-1, keepdims=True)
        zc = logits - m
        lse = jnp.log(jnp.sum(jnp.exp(zc), axis=-1, keepdims=True))
        o_ref[...] = zc - lse

    return kernel


def forward(cfg, params, x):
    layers = cfg["layers"]
    B, Cin, H, W = x.shape
    HW = H * W
    C = cfg["num_classes"]

    # NCHW -> (B, spatial, channels); all further layout work happens on-chip.
    x_nhwc = jnp.transpose(x, (0, 2, 3, 1)).reshape(B, HW, Cin)

    y2s = _compute_y2(cfg, params)

    inputs = [x_nhwc, params["conv1_w"], params["conv1_b"]]
    for Lp, y2 in zip(params["layers"], y2s):
        inputs += [Lp["T_fwd"], y2, Lp["T_inv"], Lp["bias"]]
    inputs += [params["w_quad"], params["lin_w"], params["lin_b"]]

    def full_spec(a):
        nd = a.ndim
        return pl.BlockSpec(a.shape, lambda b, _nd=nd: (0,) * _nd)

    in_specs = [pl.BlockSpec((None, HW, Cin), lambda b: (b, 0, 0))]
    in_specs += [full_spec(a) for a in inputs[1:]]

    nx_max = max(L["nspec_x"] for L in layers)
    fi_max = max(L["Fi"] for L in layers)
    nz_max = max(L["nspec_z"] for L in layers)
    fo_max = max(L["Fo"] for L in layers)
    d_max = max(L["D"] for L in layers)
    dfo_max = max(L["D"] * L["Fo"] for L in layers)

    out = pl.pallas_call(
        _make_net_kernel(layers),
        out_shape=jax.ShapeDtypeStruct((B, 1, C), jnp.float32),
        grid=(B,),
        in_specs=in_specs,
        out_specs=pl.BlockSpec((None, 1, C), lambda b: (b, 0, 0)),
        scratch_shapes=[
            pltpu.VMEM((nx_max, fi_max), jnp.float32),   # forward-spectral coeffs
            pltpu.VMEM((d_max, dfo_max), jnp.float32),   # per-degree z block
            pltpu.VMEM((nz_max, fo_max), jnp.float32),   # packed z for inverse
        ],
        compiler_params=pltpu.CompilerParams(dimension_semantics=("parallel",)),
    )(*inputs)
    return out.reshape(B, C)


# ----------------------------------------------------------------------------
# Deterministic parameter / transform initialization
# ----------------------------------------------------------------------------
def init_params(key, cfg):
    layers = cfg["layers"]
    keys = iter(jax.random.split(key, 2 + 4 * len(layers) + 2))
    Cin, F0, C = cfg["in_channels"], cfg["F0"], cfg["num_classes"]

    p = {}
    p["conv1_w"] = (jax.random.normal(next(keys), (Cin, F0), jnp.float32)
                    / math.sqrt(Cin)).astype(jnp.bfloat16)
    p["conv1_b"] = jax.random.normal(next(keys), (1, F0), jnp.float32) * 0.01

    plyrs = []
    for L in layers:
        D, Fi, Fo, ng = L["D"], L["Fi"], L["Fo"], L["ngrid"]
        mx = jnp.asarray(_mask_deg(L["kind"], L["b_out"]))      # (nspec_x,)
        mz = jnp.asarray(_mask_deg("so3", L["b_out"]))          # (nspec_z,)
        # Synthetic stand-ins for the S2/SO(3) Fourier transforms and sampled
        # harmonic bases (see TODO at top).  Padded spectral rows/columns are
        # zeroed so the padded block-diagonal computation is exact.
        T_fwd = (jax.random.normal(next(keys), (L["nspec_x"], L["S_in"]), jnp.float32)
                 / math.sqrt(L["S_in"])) * mx[:, None]
        basisT = (jax.random.normal(next(keys), (L["nspec_y"], ng), jnp.float32)
                  / math.sqrt(ng)) * (mx[:, None] * L["scaling"])
        T_inv = (jax.random.normal(next(keys), (L["S_out"], L["nspec_z"]), jnp.float32)
                 / math.sqrt(L["nspec_z"])) * mz[None, :]
        kernel = jax.random.normal(next(keys), (ng, Fi * Fo), jnp.float32)
        plyrs.append(dict(T_fwd=T_fwd.astype(jnp.bfloat16),
                          basisT=basisT,
                          T_inv=T_inv.astype(jnp.bfloat16),
                          kernel=kernel,
                          bias=jnp.zeros((1, Fo), jnp.float32)))
    p["layers"] = plyrs

    p["lin_w"] = (jax.random.normal(next(keys), (cfg["F_last"], C), jnp.float32)
                  / math.sqrt(cfg["F_last"]))
    p["lin_b"] = jax.random.normal(next(keys), (1, C), jnp.float32) * 0.01

    b_last = layers[-1]["b_out"]
    wbeta = s3_quadrature_weights(b_last)
    p["w_quad"] = jnp.repeat(wbeta, (2 * b_last) ** 2).reshape(-1, 1)
    return p


if __name__ == "__main__":
    B, Cin, bw = 2, 4, 8                      # small bandwidth (PyTorch default 85)
    num_features = [8, 16, 16, 24, 32]
    num_classes = 2

    cfg = make_cfg(Cin, num_features, num_classes, bw)
    key = jax.random.PRNGKey(0)
    kx, kp = jax.random.split(key)
    x = jax.random.normal(kx, (B, Cin, 2 * bw, 2 * bw), jnp.float32)
    params = init_params(kp, cfg)

    fwd = jax.jit(functools.partial(forward, cfg))
    out = jax.block_until_ready(fwd(params, x))

    assert out.shape == (B, num_classes), out.shape
    assert bool(jnp.all(jnp.isfinite(out)))
    # rows of log_softmax should exp-sum to 1
    assert bool(jnp.allclose(jnp.sum(jnp.exp(out), axis=1), 1.0, atol=1e-3))
    print("KERNEL_OK")
</pallas_src>

<mosaic_0001>
module attributes {stable_mosaic.version = 11 : i64} {
  func.func @_yspec_kernel(%arg0: i32, %arg1: memref<28x6xf32, #tpu.memory_space<vmem>>, %arg2: memref<6x128xf32, #tpu.memory_space<vmem>>, %arg3: memref<196x36xf32, #tpu.memory_space<vmem>>, %arg4: memref<36x256xf32, #tpu.memory_space<vmem>>, %arg5: memref<18x36xf32, #tpu.memory_space<vmem>>, %arg6: memref<36x384xf32, #tpu.memory_space<vmem>>, %arg7: memref<18x36xf32, #tpu.memory_space<vmem>>, %arg8: memref<36x768xf32, #tpu.memory_space<vmem>>, %arg9: memref<28x128xf32, #tpu.memory_space<vmem>>, %arg10: memref<196x256xf32, #tpu.memory_space<vmem>>, %arg11: memref<18x384xf32, #tpu.memory_space<vmem>>, %arg12: memref<18x768xf32, #tpu.memory_space<vmem>>) attributes {dimension_semantics = [#tpu.dimension_semantics<arbitrary>], iteration_bounds = array<i64: 1>, scalar_prefetch = 0 : i64, scratch_operands = 0 : i64, tpu.core_type = #tpu.core_type<tc>, window_params = [{pipeline_mode = #tpu.pipeline_mode<synchronous>, transform_indices = @transform_0, window_bounds = array<i64: 28, 6>}, {pipeline_mode = #tpu.pipeline_mode<synchronous>, transform_indices = @transform_1, window_bounds = array<i64: 6, 128>}, {pipeline_mode = #tpu.pipeline_mode<synchronous>, transform_indices = @transform_2, window_bounds = array<i64: 196, 36>}, {pipeline_mode = #tpu.pipeline_mode<synchronous>, transform_indices = @transform_3, window_bounds = array<i64: 36, 256>}, {pipeline_mode = #tpu.pipeline_mode<synchronous>, transform_indices = @transform_4, window_bounds = array<i64: 18, 36>}, {pipeline_mode = #tpu.pipeline_mode<synchronous>, transform_indices = @transform_5, window_bounds = array<i64: 36, 384>}, {pipeline_mode = #tpu.pipeline_mode<synchronous>, transform_indices = @transform_6, window_bounds = array<i64: 18, 36>}, {pipeline_mode = #tpu.pipeline_mode<synchronous>, transform_indices = @transform_7, window_bounds = array<i64: 36, 768>}, {pipeline_mode = #tpu.pipeline_mode<synchronous>, transform_indices = @transform_8, window_bounds = array<i64: 28, 128>}, {pipeline_mode = #tpu.pipeline_mode<synchronous>, transform_indices = @transform_9, window_bounds = array<i64: 196, 256>}, {pipeline_mode = #tpu.pipeline_mode<synchronous>, transform_indices = @transform_10, window_bounds = array<i64: 18, 384>}, {pipeline_mode = #tpu.pipeline_mode<synchronous>, transform_indices = @transform_11, window_bounds = array<i64: 18, 768>}]} {
    %c0 = arith.constant 0 : index
    %c0_0 = arith.constant 0 : index
    %0 = vector.load %arg1[%c0, %c0_0] : memref<28x6xf32, #tpu.memory_space<vmem>>, vector<28x6xf32>
    %c0_1 = arith.constant 0 : index
    %c0_2 = arith.constant 0 : index
    %1 = vector.load %arg2[%c0_1, %c0_2] : memref<6x128xf32, #tpu.memory_space<vmem>>, vector<6x128xf32>
    %cst = arith.constant dense<0.000000e+00> : vector<28x128xf32>
    %2 = tpu.matmul %0, %1, %cst {dimension_numbers = #tpu.dot_dimension_numbers<[1], [0], [0], [1], [0, 0, 1, 1], [], []>} : vector<28x6xf32>, vector<6x128xf32>, vector<28x128xf32> -> vector<28x128xf32>
    %c0_3 = arith.constant 0 : index
    %c0_4 = arith.constant 0 : index
    %3 = vector.load %arg9[%c0_3, %c0_4] : memref<28x128xf32, #tpu.memory_space<vmem>>, vector<28x128xf32>
    tpu.vector_store %arg9[%c0_3, %c0_4], %2 {strides = array<i32>} : memref<28x128xf32, #tpu.memory_space<vmem>>, vector<28x128xf32>,
    %c0_5 = arith.constant 0 : index
    %c0_6 = arith.constant 0 : index
    %4 = vector.load %arg3[%c0_5, %c0_6] : memref<196x36xf32, #tpu.memory_space<vmem>>, vector<196x36xf32>
    %c0_7 = arith.constant 0 : index
    %c0_8 = arith.constant 0 : index
    %5 = vector.load %arg4[%c0_7, %c0_8] : memref<36x256xf32, #tpu.memory_space<vmem>>, vector<36x256xf32>
    %cst_9 = arith.constant dense<0.000000e+00> : vector<196x256xf32>
    %6 = tpu.matmul %4, %5, %cst_9 {dimension_numbers = #tpu.dot_dimension_numbers<[1], [0], [0], [1], [0, 0, 1, 1], [], []>} : vector<196x36xf32>, vector<36x256xf32>, vector<196x256xf32> -> vector<196x256xf32>
    %c0_10 = arith.constant 0 : index
    %c0_11 = arith.constant 0 : index
    %7 = vector.load %arg10[%c0_10, %c0_11] : memref<196x256xf32, #tpu.memory_space<vmem>>, vector<196x256xf32>
    tpu.vector_store %arg10[%c0_10, %c0_11], %6 {strides = array<i32>} : memref<196x256xf32, #tpu.memory_space<vmem>>, vector<196x256xf32>,
    %c0_12 = arith.constant 0 : index
    %c0_13 = arith.constant 0 : index
    %8 = vector.load %arg5[%c0_12, %c0_13] : memref<18x36xf32, #tpu.memory_space<vmem>>, vector<18x36xf32>
    %c0_14 = arith.constant 0 : index
    %c0_15 = arith.constant 0 : index
    %9 = vector.load %arg6[%c0_14, %c0_15] : memref<36x384xf32, #tpu.memory_space<vmem>>, vector<36x384xf32>
    %cst_16 = arith.constant dense<0.000000e+00> : vector<18x384xf32>
    %10 = tpu.matmul %8, %9, %cst_16 {dimension_numbers = #tpu.dot_dimension_numbers<[1], [0], [0], [1], [0, 0, 1, 1], [], []>} : vector<18x36xf32>, vector<36x384xf32>, vector<18x384xf32> -> vector<18x384xf32>
    %c0_17 = arith.constant 0 : index
    %c0_18 = arith.constant 0 : index
    %11 = vector.load %arg11[%c0_17, %c0_18] : memref<18x384xf32, #tpu.memory_space<vmem>>, vector<18x384xf32>
    tpu.vector_store %arg11[%c0_17, %c0_18], %10 {strides = array<i32>} : memref<18x384xf32, #tpu.memory_space<vmem>>, vector<18x384xf32>,
    %c0_19 = arith.constant 0 : index
    %c0_20 = arith.constant 0 : index
    %12 = vector.load %arg7[%c0_19, %c0_20] : memref<18x36xf32, #tpu.memory_space<vmem>>, vector<18x36xf32>
    %c0_21 = arith.constant 0 : index
    %c0_22 = arith.constant 0 : index
    %13 = vector.load %arg8[%c0_21, %c0_22] : memref<36x768xf32, #tpu.memory_space<vmem>>, vector<36x768xf32>
    %cst_23 = arith.constant dense<0.000000e+00> : vector<18x768xf32>
    %14 = tpu.matmul %12, %13, %cst_23 {dimension_numbers = #tpu.dot_dimension_numbers<[1], [0], [0], [1], [0, 0, 1, 1], [], []>} : vector<18x36xf32>, vector<36x768xf32>, vector<18x768xf32> -> vector<18x768xf32>
    %c0_24 = arith.constant 0 : index
    %c0_25 = arith.constant 0 : index
    %15 = vector.load %arg12[%c0_24, %c0_25] : memref<18x768xf32, #tpu.memory_space<vmem>>, vector<18x768xf32>
    tpu.vector_store %arg12[%c0_24, %c0_25], %14 {strides = array<i32>} : memref<18x768xf32, #tpu.memory_space<vmem>>, vector<18x768xf32>,
    return
  }
  func.func @transform_0(%arg0: i32) -> (i32, i32) {
    %c0_i32 = arith.constant 0 : i32
    %c0_i32_0 = arith.constant 0 : i32
    %c0_i32_1 = arith.constant 0 : i32
    return %c0_i32, %c0_i32_0 : i32, i32
  }
  func.func @transform_1(%arg0: i32) -> (i32, i32) {
    %c0_i32 = arith.constant 0 : i32
    %c0_i32_0 = arith.constant 0 : i32
    %c0_i32_1 = arith.constant 0 : i32
    return %c0_i32, %c0_i32_0 : i32, i32
  }
  func.func @transform_2(%arg0: i32) -> (i32, i32) {
    %c0_i32 = arith.constant 0 : i32
    %c0_i32_0 = arith.constant 0 : i32
    %c0_i32_1 = arith.constant 0 : i32
    return %c0_i32, %c0_i32_0 : i32, i32
  }
  func.func @transform_3(%arg0: i32) -> (i32, i32) {
    %c0_i32 = arith.constant 0 : i32
    %c0_i32_0 = arith.constant 0 : i32
    %c0_i32_1 = arith.constant 0 : i32
    return %c0_i32, %c0_i32_0 : i32, i32
  }
  func.func @transform_4(%arg0: i32) -> (i32, i32) {
    %c0_i32 = arith.constant 0 : i32
    %c0_i32_0 = arith.constant 0 : i32
    %c0_i32_1 = arith.constant 0 : i32
    return %c0_i32, %c0_i32_0 : i32, i32
  }
  func.func @transform_5(%arg0: i32) -> (i32, i32) {
    %c0_i32 = arith.constant 0 : i32
    %c0_i32_0 = arith.constant 0 : i32
    %c0_i32_1 = arith.constant 0 : i32
    return %c0_i32, %c0_i32_0 : i32, i32
  }
  func.func @transform_6(%arg0: i32) -> (i32, i32) {
    %c0_i32 = arith.constant 0 : i32
    %c0_i32_0 = arith.constant 0 : i32
    %c0_i32_1 = arith.constant 0 : i32
    return %c0_i32, %c0_i32_0 : i32, i32
  }
  func.func @transform_7(%arg0: i32) -> (i32, i32) {
    %c0_i32 = arith.constant 0 : i32
    %c0_i32_0 = arith.constant 0 : i32
    %c0_i32_1 = arith.constant 0 : i32
    return %c0_i32, %c0_i32_0 : i32, i32
  }
  func.func @transform_8(%arg0: i32) -> (i32, i32) {
    %c0_i32 = arith.constant 0 : i32
    %c0_i32_0 = arith.constant 0 : i32
    %c0_i32_1 = arith.constant 0 : i32
    return %c0_i32, %c0_i32_0 : i32, i32
  }
  func.func @transform_9(%arg0: i32) -> (i32, i32) {
    %c0_i32 = arith.constant 0 : i32
    %c0_i32_0 = arith.constant 0 : i32
    %c0_i32_1 = arith.constant 0 : i32
    return %c0_i32, %c0_i32_0 : i32, i32
  }
  func.func @transform_10(%arg0: i32) -> (i32, i32) {
    %c0_i32 = arith.constant 0 : i32
    %c0_i32_0 = arith.constant 0 : i32
    %c0_i32_1 = arith.constant 0 : i32
    return %c0_i32, %c0_i32_0 : i32, i32
  }
  func.func @transform_11(%arg0: i32) -> (i32, i32) {
    %c0_i32 = arith.constant 0 : i32
    %c0_i32_0 = arith.constant 0 : i32
    %c0_i32_1 = arith.constant 0 : i32
    return %c0_i32, %c0_i32_0 : i32, i32
  }
}

module attributes {stable_mosaic.version = 11 : i64} {
  func.func @kernel(%arg0: i32, %arg1: memref<1x256x4xf32, #tpu.memory_space<vmem>>, %arg2: memref<4x8xbf16, #tpu.memory_space<vmem>>, %arg3: memref<1x8xf32, #tpu.memory_space<vmem>>, %arg4: memref<28x256xbf16, #tpu.memory_space<vmem>>, %arg5: memref<4x8x112xbf16, #tpu.memory_space<vmem>>, %arg6: memref<512x196xbf16, #tpu.memory_space<vmem>>, %arg7: memref<1x16xf32, #tpu.memory_space<vmem>>, %arg8: memref<196x512xbf16, #tpu.memory_space<vmem>>, %arg9: memref<4x7x16x112xbf16, #tpu.memory_space<vmem>>, %arg10: memref<512x196xbf16, #tpu.memory_space<vmem>>, %arg11: memref<1x16xf32, #tpu.memory_space<vmem>>, %arg12: memref<18x512xbf16, #tpu.memory_space<vmem>>, %arg13: memref<2x3x16x72xbf16, #tpu.memory_space<vmem>>, %arg14: memref<64x18xbf16, #tpu.memory_space<vmem>>, %arg15: memref<1x24xf32, #tpu.memory_space<vmem>>, %arg16: memref<18x64xbf16, #tpu.memory_space<vmem>>, %arg17: memref<2x3x24x96xbf16, #tpu.memory_space<vmem>>, %arg18: memref<64x18xbf16, #tpu.memory_space<vmem>>, %arg19: memref<1x32xf32, #tpu.memory_space<vmem>>, %arg20: memref<64x1xf32, #tpu.memory_space<vmem>>, %arg21: memref<32x2xf32, #tpu.memory_space<vmem>>, %arg22: memref<1x2xf32, #tpu.memory_space<vmem>>, %arg23: memref<1x1x2xf32, #tpu.memory_space<vmem>>, %arg24: memref<196x24xf32, #tpu.memory_space<vmem>>, %arg25: memref<7x112xf32, #tpu.memory_space<vmem>>, %arg26: memref<196x32xf32, #tpu.memory_space<vmem>>) attributes {dimension_semantics = [#tpu.dimension_semantics<parallel>], iteration_bounds = array<i64: 2>, scalar_prefetch = 0 : i64, scratch_operands = 3 : i64, tpu.core_type = #tpu.core_type<tc>, window_params = [{transform_indices = @transform_0, window_bounds = array<i64: 1, 256, 4>}, {pipeline_mode = #tpu.pipeline_mode<synchronous>, transform_indices = @transform_1, window_bounds = array<i64: 4, 8>}, {pipeline_mode = #tpu.pipeline_mode<synchronous>, transform_indices = @transform_2, window_bounds = array<i64: 1, 8>}, {pipeline_mode = #tpu.pipeline_mode<synchronous>, transform_indices = @transform_3, window_bounds = array<i64: 28, 256>}, {pipeline_mode = #tpu.pipeline_mode<synchronous>, transform_indices = @transform_4, window_bounds = array<i64: 4, 8, 112>}, {pipeline_mode = #tpu.pipeline_mode<synchronous>, transform_indices = @transform_5, window_bounds = array<i64: 512, 196>}, {pipeline_mode = #tpu.pipeline_mode<synchronous>, transform_indices = @transform_6, window_bounds = array<i64: 1, 16>}, {pipeline_mode = #tpu.pipeline_mode<synchronous>, transform_indices = @transform_7, window_bounds = array<i64: 196, 512>}, {pipeline_mode = #tpu.pipeline_mode<synchronous>, transform_indices = @transform_8, window_bounds = array<i64: 4, 7, 16, 112>}, {pipeline_mode = #tpu.pipeline_mode<synchronous>, transform_indices = @transform_9, window_bounds = array<i64: 512, 196>}, {pipeline_mode = #tpu.pipeline_mode<synchronous>, transform_indices = @transform_10, window_bounds = array<i64: 1, 16>}, {pipeline_mode = #tpu.pipeline_mode<synchronous>, transform_indices = @transform_11, window_bounds = array<i64: 18, 512>}, {pipeline_mode = #tpu.pipeline_mode<synchronous>, transform_indices = @transform_12, window_bounds = array<i64: 2, 3, 16, 72>}, {pipeline_mode = #tpu.pipeline_mode<synchronous>, transform_indices = @transform_13, window_bounds = array<i64: 64, 18>}, {pipeline_mode = #tpu.pipeline_mode<synchronous>, transform_indices = @transform_14, window_bounds = array<i64: 1, 24>}, {pipeline_mode = #tpu.pipeline_mode<synchronous>, transform_indices = @transform_15, window_bounds = array<i64: 18, 64>}, {pipeline_mode = #tpu.pipeline_mode<synchronous>, transform_indices = @transform_16, window_bounds = array<i64: 2, 3, 24, 96>}, {pipeline_mode = #tpu.pipeline_mode<synchronous>, transform_indices = @transform_17, window_bounds = array<i64: 64, 18>}, {pipeline_mode = #tpu.pipeline_mode<synchronous>, transform_indices = @transform_18, window_bounds = array<i64: 1, 32>}, {pipeline_mode = #tpu.pipeline_mode<synchronous>, transform_indices = @transform_19, window_bounds = array<i64: 64, 1>}, {pipeline_mode = #tpu.pipeline_mode<synchronous>, transform_indices = @transform_20, window_bounds = array<i64: 32, 2>}, {pipeline_mode = #tpu.pipeline_mode<synchronous>, transform_indices = @transform_21, window_bounds = array<i64: 1, 2>}, {transform_indices = @transform_22, window_bounds = array<i64: 1, 1, 2>}]} {
    %c0 = arith.constant 0 : index
    %c0_0 = arith.constant 0 : index
    %c0_1 = arith.constant 0 : index
    %0 = vector.load %arg1[%c0, %c0_0, %c0_1] : memref<1x256x4xf32, #tpu.memory_space<vmem>>, vector<1x256x4xf32>
    %1 = vector.shape_cast %0 : vector<1x256x4xf32> to vector<256x4xf32>
    %2 = arith.truncf %1 : vector<256x4xf32> to vector<256x4xbf16>
    %c0_2 = arith.constant 0 : index
    %c0_3 = arith.constant 0 : index
    %3 = vector.load %arg2[%c0_2, %c0_3] : memref<4x8xbf16, #tpu.memory_space<vmem>>, vector<4x8xbf16>
    %cst = arith.constant dense<0.000000e+00> : vector<256x8xf32>
    %4 = tpu.matmul %2, %3, %cst {dimension_numbers = #tpu.dot_dimension_numbers<[1], [0], [0], [1], [0, 0, 1, 1], [], []>} : vector<256x4xbf16>, vector<4x8xbf16>, vector<256x8xf32> -> vector<256x8xf32>
    %c0_4 = arith.constant 0 : index
    %c0_5 = arith.constant 0 : index
    %5 = vector.load %arg3[%c0_4, %c0_5] : memref<1x8xf32, #tpu.memory_space<vmem>>, vector<1x8xf32>
    %6 = vector.broadcast %5 : vector<1x8xf32> to vector<256x8xf32>
    %7 = arith.addf %4, %6 : vector<256x8xf32>
    %cst_6 = arith.constant 0.000000e+00 : f32
    %8 = vector.broadcast %cst_6 : f32 to vector<256x8xf32>
    %9 = arith.maximumf %7, %8 : vector<256x8xf32>
    %c0_7 = arith.constant 0 : index
    %c0_8 = arith.constant 0 : index
    %10 = vector.load %arg4[%c0_7, %c0_8] : memref<28x256xbf16, #tpu.memory_space<vmem>>, vector<28x256xbf16>
    %11 = arith.truncf %9 : vector<256x8xf32> to vector<256x8xbf16>
    %cst_9 = arith.constant dense<0.000000e+00> : vector<28x8xf32>
    %12 = tpu.matmul %10, %11, %cst_9 {dimension_numbers = #tpu.dot_dimension_numbers<[1], [0], [0], [1], [0, 0, 1, 1], [], []>} : vector<28x256xbf16>, vector<256x8xbf16>, vector<28x8xf32> -> vector<28x8xf32>
    %c0_10 = arith.constant 0 : index
    %c0_11 = arith.constant 0 : index
    %13 = vector.load %arg24[%c0_10, %c0_11] : memref<196x24xf32, #tpu.memory_space<vmem>>, vector<28x8xf32>
    tpu.vector_store %arg24[%c0_10, %c0_11], %12 {strides = array<i32>} : memref<196x24xf32, #tpu.memory_space<vmem>>, vector<28x8xf32>,
    %c0_12 = arith.constant 0 : index
    %c0_13 = arith.constant 0 : index
    %14 = vector.load %arg24[%c0_12, %c0_13] : memref<196x24xf32, #tpu.memory_space<vmem>>, vector<7x8xf32>
    %15 = arith.truncf %14 : vector<7x8xf32> to vector<7x8xbf16>
    %c0_14 = arith.constant 0 : index
    %c0_15 = arith.constant 0 : index
    %c0_16 = arith.constant 0 : index
    %16 = vector.load %arg5[%c0_14, %c0_15, %c0_16] : memref<4x8x112xbf16, #tpu.memory_space<vmem>>, vector<1x8x112xbf16>
    %17 = vector.shape_cast %16 : vector<1x8x112xbf16> to vector<8x112xbf16>
    %cst_17 = arith.constant dense<0.000000e+00> : vector<7x112xf32>
    %18 = tpu.matmul %15, %17, %cst_17 {dimension_numbers = #tpu.dot_dimension_numbers<[1], [0], [0], [1], [0, 0, 1, 1], [], []>} : vector<7x8xbf16>, vector<8x112xbf16>, vector<7x112xf32> -> vector<7x112xf32>
    %c0_18 = arith.constant 0 : index
    %c0_19 = arith.constant 0 : index
    %19 = vector.load %arg25[%c0_18, %c0_19] : memref<7x112xf32, #tpu.memory_space<vmem>>, vector<7x112xf32>
    tpu.vector_store %arg25[%c0_18, %c0_19], %18 {strides = array<i32>} : memref<7x112xf32, #tpu.memory_space<vmem>>, vector<7x112xf32>,
    %c0_20 = arith.constant 0 : index
    %c0_21 = arith.constant 0 : index
    %20 = vector.load %arg25[%c0_20, %c0_21] : memref<7x112xf32, #tpu.memory_space<vmem>>, vector<7x16xf32>
    %c0_22 = arith.constant 0 : index
    %c0_23 = arith.constant 0 : index
    %21 = vector.load %arg26[%c0_22, %c0_23] : memref<196x32xf32, #tpu.memory_space<vmem>>, vector<7x16xf32>
    tpu.vector_store %arg26[%c0_22, %c0_23], %20 {strides = array<i32>} : memref<196x32xf32, #tpu.memory_space<vmem>>, vector<7x16xf32>,
    %c0_24 = arith.constant 0 : index
    %c16 = arith.constant 16 : index
    %22 = vector.load %arg25[%c0_24, %c16] : memref<7x112xf32, #tpu.memory_space<vmem>>, vector<7x16xf32>
    %c7 = arith.constant 7 : index
    %c0_25 = arith.constant 0 : index
    %23 = vector.load %arg26[%c7, %c0_25] : memref<196x32xf32, #tpu.memory_space<vmem>>, vector<7x16xf32>
    tpu.vector_store %arg26[%c7, %c0_25], %22 {strides = array<i32>} : memref<196x32xf32, #tpu.memory_space<vmem>>, vector<7x16xf32>,
    %c0_26 = arith.constant 0 : index
    %c32 = arith.constant 32 : index
    %24 = vector.load %arg25[%c0_26, %c32] : memref<7x112xf32, #tpu.memory_space<vmem>>, vector<7x16xf32>
    %c14 = arith.constant 14 : index
    %c0_27 = arith.constant 0 : index
    %25 = vector.load %arg26[%c14, %c0_27] : memref<196x32xf32, #tpu.memory_space<vmem>>, vector<7x16xf32>
    tpu.vector_store %arg26[%c14, %c0_27], %24 {strides = array<i32>} : memref<196x32xf32, #tpu.memory_space<vmem>>, vector<7x16xf32>,
    %c0_28 = arith.constant 0 : index
    %c48 = arith.constant 48 : index
    %26 = vector.load %arg25[%c0_28, %c48] : memref<7x112xf32, #tpu.memory_space<vmem>>, vector<7x16xf32>
    %c21 = arith.constant 21 : index
    %c0_29 = arith.constant 0 : index
    %27 = vector.load %arg26[%c21, %c0_29] : memref<196x32xf32, #tpu.memory_space<vmem>>, vector<7x16xf32>
    tpu.vector_store %arg26[%c21, %c0_29], %26 {strides = array<i32>} : memref<196x32xf32, #tpu.memory_space<vmem>>, vector<7x16xf32>,
    %c0_30 = arith.constant 0 : index
    %c64 = arith.constant 64 : index
    %28 = vector.load %arg25[%c0_30, %c64] : memref<7x112xf32, #tpu.memory_space<vmem>>, vector<7x16xf32>
    %c28 = arith.constant 28 : index
    %c0_31 = arith.constant 0 : index
    %29 = vector.load %arg26[%c28, %c0_31] : memref<196x32xf32, #tpu.memory_space<vmem>>, vector<7x16xf32>
    tpu.vector_store %arg26[%c28, %c0_31], %28 {strides = array<i32>} : memref<196x32xf32, #tpu.memory_space<vmem>>, vector<7x16xf32>,
    %c0_32 = arith.constant 0 : index
    %c80 = arith.constant 80 : index
    %30 = vector.load %arg25[%c0_32, %c80] : memref<7x112xf32, #tpu.memory_space<vmem>>, vector<7x16xf32>
    %c35 = arith.constant 35 : index
    %c0_33 = arith.constant 0 : index
    %31 = vector.load %arg26[%c35, %c0_33] : memref<196x32xf32, #tpu.memory_space<vmem>>, vector<7x16xf32>
    tpu.vector_store %arg26[%c35, %c0_33], %30 {strides = array<i32>} : memref<196x32xf32, #tpu.memory_space<vmem>>, vector<7x16xf32>,
    %c0_34 = arith.constant 0 : index
    %c96 = arith.constant 96 : index
    %32 = vector.load %arg25[%c0_34, %c96] : memref<7x112xf32, #tpu.memory_space<vmem>>, vector<7x16xf32>
    %c42 = arith.constant 42 : index
    %c0_35 = arith.constant 0 : index
    %33 = vector.load %arg26[%c42, %c0_35] : memref<196x32xf32, #tpu.memory_space<vmem>>, vector<7x16xf32>
    tpu.vector_store %arg26[%c42, %c0_35], %32 {strides = array<i32>} : memref<196x32xf32, #tpu.memory_space<vmem>>, vector<7x16xf32>,
    %c7_36 = arith.constant 7 : index
    %c0_37 = arith.constant 0 : index
    %34 = vector.load %arg24[%c7_36, %c0_37] : memref<196x24xf32, #tpu.memory_space<vmem>>, vector<7x8xf32>
    %35 = arith.truncf %34 : vector<7x8xf32> to vector<7x8xbf16>
    %c1 = arith.constant 1 : index
    %c0_38 = arith.constant 0 : index
    %c0_39 = arith.constant 0 : index
    %36 = vector.load %arg5[%c1, %c0_38, %c0_39] : memref<4x8x112xbf16, #tpu.memory_space<vmem>>, vector<1x8x112xbf16>
    %37 = vector.shape_cast %36 : vector<1x8x112xbf16> to vector<8x112xbf16>
    %cst_40 = arith.constant dense<0.000000e+00> : vector<7x112xf32>
    %38 = tpu.matmul %35, %37, %cst_40 {dimension_numbers = #tpu.dot_dimension_numbers<[1], [0], [0], [1], [0, 0, 1, 1], [], []>} : vector<7x8xbf16>, vector<8x112xbf16>, vector<7x112xf32> -> vector<7x112xf32>
    %c0_41 = arith.constant 0 : index
    %c0_42 = arith.constant 0 : index
    %39 = vector.load %arg25[%c0_41, %c0_42] : memref<7x112xf32, #tpu.memory_space<vmem>>, vector<7x112xf32>
    tpu.vector_store %arg25[%c0_41, %c0_42], %38 {strides = array<i32>} : memref<7x112xf32, #tpu.memory_space<vmem>>, vector<7x112xf32>,
    %c0_43 = arith.constant 0 : index
    %c0_44 = arith.constant 0 : index
    %40 = vector.load %arg25[%c0_43, %c0_44] : memref<7x112xf32, #tpu.memory_space<vmem>>, vector<7x16xf32>
    %c49 = arith.constant 49 : index
    %c0_45 = arith.constant 0 : index
    %41 = vector.load %arg26[%c49, %c0_45] : memref<196x32xf32, #tpu.memory_space<vmem>>, vector<7x16xf32>
    tpu.vector_store %arg26[%c49, %c0_45], %40 {strides = array<i32>} : memref<196x32xf32, #tpu.memory_space<vmem>>, vector<7x16xf32>,
    %c0_46 = arith.constant 0 : index
    %c16_47 = arith.constant 16 : index
    %42 = vector.load %arg25[%c0_46, %c16_47] : memref<7x112xf32, #tpu.memory_space<vmem>>, vector<7x16xf32>
    %c56 = arith.constant 56 : index
    %c0_48 = arith.constant 0 : index
    %43 = vector.load %arg26[%c56, %c0_48] : memref<196x32xf32, #tpu.memory_space<vmem>>, vector<7x16xf32>
    tpu.vector_store %arg26[%c56, %c0_48], %42 {strides = array<i32>} : memref<196x32xf32, #tpu.memory_space<vmem>>, vector<7x16xf32>,
    %c0_49 = arith.constant 0 : index
    %c32_50 = arith.constant 32 : index
    %44 = vector.load %arg25[%c0_49, %c32_50] : memref<7x112xf32, #tpu.memory_space<vmem>>, vector<7x16xf32>
    %c63 = arith.constant 63 : index
    %c0_51 = arith.constant 0 : index
    %45 = vector.load %arg26[%c63, %c0_51] : memref<196x32xf32, #tpu.memory_space<vmem>>, vector<7x16xf32>
    tpu.vector_store %arg26[%c63, %c0_51], %44 {strides = array<i32>} : memref<196x32xf32, #tpu.memory_space<vmem>>, vector<7x16xf32>,
    %c0_52 = arith.constant 0 : index
    %c48_53 = arith.constant 48 : index
    %46 = vector.load %arg25[%c0_52, %c48_53] : memref<7x112xf32, #tpu.memory_space<vmem>>, vector<7x16xf32>
    %c70 = arith.constant 70 : index
    %c0_54 = arith.constant 0 : index
    %47 = vector.load %arg26[%c70, %c0_54] : memref<196x32xf32, #tpu.memory_space<vmem>>, vector<7x16xf32>
    tpu.vector_store %arg26[%c70, %c0_54], %46 {strides = array<i32>} : memref<196x32xf32, #tpu.memory_space<vmem>>, vector<7x16xf32>,
    %c0_55 = arith.constant 0 : index
    %c64_56 = arith.constant 64 : index
    %48 = vector.load %arg25[%c0_55, %c64_56] : memref<7x112xf32, #tpu.memory_space<vmem>>, vector<7x16xf32>
    %c77 = arith.constant 77 : index
    %c0_57 = arith.constant 0 : index
    %49 = vector.load %arg26[%c77, %c0_57] : memref<196x32xf32, #tpu.memory_space<vmem>>, vector<7x16xf32>
    tpu.vector_store %arg26[%c77, %c0_57], %48 {strides = array<i32>} : memref<196x32xf32, #tpu.memory_space<vmem>>, vector<7x16xf32>,
    %c0_58 = arith.constant 0 : index
    %c80_59 = arith.constant 80 : index
    %50 = vector.load %arg25[%c0_58, %c80_59] : memref<7x112xf32, #tpu.memory_space<vmem>>, vector<7x16xf32>
    %c84 = arith.constant 84 : index
    %c0_60 = arith.constant 0 : index
    %51 = vector.load %arg26[%c84, %c0_60] : memref<196x32xf32, #tpu.memory_space<vmem>>, vector<7x16xf32>
    tpu.vector_store %arg26[%c84, %c0_60], %50 {strides = array<i32>} : memref<196x32xf32, #tpu.memory_space<vmem>>, vector<7x16xf32>,
    %c0_61 = arith.constant 0 : index
    %c96_62 = arith.constant 96 : index
    %52 = vector.load %arg25[%c0_61, %c96_62] : memref<7x112xf32, #tpu.memory_space<vmem>>, vector<7x16xf32>
    %c91 = arith.constant 91 : index
    %c0_63 = arith.constant 0 : index
    %53 = vector.load %arg26[%c91, %c0_63] : memref<196x32xf32, #tpu.memory_space<vmem>>, vector<7x16xf32>
    tpu.vector_store %arg26[%c91, %c0_63], %52 {strides = array<i32>} : memref<196x32xf32, #tpu.memory_space<vmem>>, vector<7x16xf32>,
    %c14_64 = arith.constant 14 : index
    %c0_65 = arith.constant 0 : index
    %54 = vector.load %arg24[%c14_64, %c0_65] : memref<196x24xf32, #tpu.memory_space<vmem>>, vector<7x8xf32>
    %55 = arith.truncf %54 : vector<7x8xf32> to vector<7x8xbf16>
    %c2 = arith.constant 2 : index
    %c0_66 = arith.constant 0 : index
    %c0_67 = arith.constant 0 : index
    %56 = vector.load %arg5[%c2, %c0_66, %c0_67] : memref<4x8x112xbf16, #tpu.memory_space<vmem>>, vector<1x8x112xbf16>
    %57 = vector.shape_cast %56 : vector<1x8x112xbf16> to vector<8x112xbf16>
    %cst_68 = arith.constant dense<0.000000e+00> : vector<7x112xf32>
    %58 = tpu.matmul %55, %57, %cst_68 {dimension_numbers = #tpu.dot_dimension_numbers<[1], [0], [0], [1], [0, 0, 1, 1], [], []>} : vector<7x8xbf16>, vector<8x112xbf16>, vector<7x112xf32> -> vector<7x112xf32>
    %c0_69 = arith.constant 0 : index
    %c0_70 = arith.constant 0 : index
    %59 = vector.load %arg25[%c0_69, %c0_70] : memref<7x112xf32, #tpu.memory_space<vmem>>, vector<7x112xf32>
    tpu.vector_store %arg25[%c0_69, %c0_70], %58 {strides = array<i32>} : memref<7x112xf32, #tpu.memory_space<vmem>>, vector<7x112xf32>,
    %c0_71 = arith.constant 0 : index
    %c0_72 = arith.constant 0 : index
    %60 = vector.load %arg25[%c0_71, %c0_72] : memref<7x112xf32, #tpu.memory_space<vmem>>, vector<7x16xf32>
    %c98 = arith.constant 98 : index
    %c0_73 = arith.constant 0 : index
    %61 = vector.load %arg26[%c98, %c0_73] : memref<196x32xf32, #tpu.memory_space<vmem>>, vector<7x16xf32>
    tpu.vector_store %arg26[%c98, %c0_73], %60 {strides = array<i32>} : memref<196x32xf32, #tpu.memory_space<vmem>>, vector<7x16xf32>,
    %c0_74 = arith.constant 0 : index
    %c16_75 = arith.constant 16 : index
    %62 = vector.load %arg25[%c0_74, %c16_75] : memref<7x112xf32, #tpu.memory_space<vmem>>, vector<7x16xf32>
    %c105 = arith.constant 105 : index
    %c0_76 = arith.constant 0 : index
    %63 = vector.load %arg26[%c105, %c0_76] : memref<196x32xf32, #tpu.memory_space<vmem>>, vector<7x16xf32>
    tpu.vector_store %arg26[%c105, %c0_76], %62 {strides = array<i32>} : memref<196x32xf32, #tpu.memory_space<vmem>>, vector<7x16xf32>,
    %c0_77 = arith.constant 0 : index
    %c32_78 = arith.constant 32 : index
    %64 = vector.load %arg25[%c0_77, %c32_78] : memref<7x112xf32, #tpu.memory_space<vmem>>, vector<7x16xf32>
    %c112 = arith.constant 112 : index
    %c0_79 = arith.constant 0 : index
    %65 = vector.load %arg26[%c112, %c0_79] : memref<196x32xf32, #tpu.memory_space<vmem>>, vector<7x16xf32>
    tpu.vector_store %arg26[%c112, %c0_79], %64 {strides = array<i32>} : memref<196x32xf32, #tpu.memory_space<vmem>>, vector<7x16xf32>,
    %c0_80 = arith.constant 0 : index
    %c48_81 = arith.constant 48 : index
    %66 = vector.load %arg25[%c0_80, %c48_81] : memref<7x112xf32, #tpu.memory_space<vmem>>, vector<7x16xf32>
    %c119 = arith.constant 119 : index
    %c0_82 = arith.constant 0 : index
    %67 = vector.load %arg26[%c119, %c0_82] : memref<196x32xf32, #tpu.memory_space<vmem>>, vector<7x16xf32>
    tpu.vector_store %arg26[%c119, %c0_82], %66 {strides = array<i32>} : memref<196x32xf32, #tpu.memory_space<vmem>>, vector<7x16xf32>,
    %c0_83 = arith.constant 0 : index
    %c64_84 = arith.constant 64 : index
    %68 = vector.load %arg25[%c0_83, %c64_84] : memref<7x112xf32, #tpu.memory_space<vmem>>, vector<7x16xf32>
    %c126 = arith.constant 126 : index
    %c0_85 = arith.constant 0 : index
    %69 = vector.load %arg26[%c126, %c0_85] : memref<196x32xf32, #tpu.memory_space<vmem>>, vector<7x16xf32>
    tpu.vector_store %arg26[%c126, %c0_85], %68 {strides = array<i32>} : memref<196x32xf32, #tpu.memory_space<vmem>>, vector<7x16xf32>,
    %c0_86 = arith.constant 0 : index
    %c80_87 = arith.constant 80 : index
    %70 = vector.load %arg25[%c0_86, %c80_87] : memref<7x112xf32, #tpu.memory_space<vmem>>, vector<7x16xf32>
    %c133 = arith.constant 133 : index
    %c0_88 = arith.constant 0 : index
    %71 = vector.load %arg26[%c133, %c0_88] : memref<196x32xf32, #tpu.memory_space<vmem>>, vector<7x16xf32>
    tpu.vector_store %arg26[%c133, %c0_88], %70 {strides = array<i32>} : memref<196x32xf32, #tpu.memory_space<vmem>>, vector<7x16xf32>,
    %c0_89 = arith.constant 0 : index
    %c96_90 = arith.constant 96 : index
    %72 = vector.load %arg25[%c0_89, %c96_90] : memref<7x112xf32, #tpu.memory_space<vmem>>, vector<7x16xf32>
    %c140 = arith.constant 140 : index
    %c0_91 = arith.constant 0 : index
    %73 = vector.load %arg26[%c140, %c0_91] : memref<196x32xf32, #tpu.memory_space<vmem>>, vector<7x16xf32>
    tpu.vector_store %arg26[%c140, %c0_91], %72 {strides = array<i32>} : memref<196x32xf32, #tpu.memory_space<vmem>>, vector<7x16xf32>,
    %c21_92 = arith.constant 21 : index
    %c0_93 = arith.constant 0 : index
    %74 = vector.load %arg24[%c21_92, %c0_93] : memref<196x24xf32, #tpu.memory_space<vmem>>, vector<7x8xf32>
    %75 = arith.truncf %74 : vector<7x8xf32> to vector<7x8xbf16>
    %c3 = arith.constant 3 : index
    %c0_94 = arith.constant 0 : index
    %c0_95 = arith.constant 0 : index
    %76 = vector.load %arg5[%c3, %c0_94, %c0_95] : memref<4x8x112xbf16, #tpu.memory_space<vmem>>, vector<1x8x112xbf16>
    %77 = vector.shape_cast %76 : vector<1x8x112xbf16> to vector<8x112xbf16>
    %cst_96 = arith.constant dense<0.000000e+00> : vector<7x112xf32>
    %78 = tpu.matmul %75, %77, %cst_96 {dimension_numbers = #tpu.dot_dimension_numbers<[1], [0], [0], [1], [0, 0, 1, 1], [], []>} : vector<7x8xbf16>, vector<8x112xbf16>, vector<7x112xf32> -> vector<7x112xf32>
    %c0_97 = arith.constant 0 : index
    %c0_98 = arith.constant 0 : index
    %79 = vector.load %arg25[%c0_97, %c0_98] : memref<7x112xf32, #tpu.memory_space<vmem>>, vector<7x112xf32>
    tpu.vector_store %arg25[%c0_97, %c0_98], %78 {strides = array<i32>} : memref<7x112xf32, #tpu.memory_space<vmem>>, vector<7x112xf32>,
    %c0_99 = arith.constant 0 : index
    %c0_100 = arith.constant 0 : index
    %80 = vector.load %arg25[%c0_99, %c0_100] : memref<7x112xf32, #tpu.memory_space<vmem>>, vector<7x16xf32>
    %c147 = arith.constant 147 : index
    %c0_101 = arith.constant 0 : index
    %81 = vector.load %arg26[%c147, %c0_101] : memref<196x32xf32, #tpu.memory_space<vmem>>, vector<7x16xf32>
    tpu.vector_store %arg26[%c147, %c0_101], %80 {strides = array<i32>} : memref<196x32xf32, #tpu.memory_space<vmem>>, vector<7x16xf32>,
    %c0_102 = arith.constant 0 : index
    %c16_103 = arith.constant 16 : index
    %82 = vector.load %arg25[%c0_102, %c16_103] : memref<7x112xf32, #tpu.memory_space<vmem>>, vector<7x16xf32>
    %c154 = arith.constant 154 : index
    %c0_104 = arith.constant 0 : index
    %83 = vector.load %arg26[%c154, %c0_104] : memref<196x32xf32, #tpu.memory_space<vmem>>, vector<7x16xf32>
    tpu.vector_store %arg26[%c154, %c0_104], %82 {strides = array<i32>} : memref<196x32xf32, #tpu.memory_space<vmem>>, vector<7x16xf32>,
    %c0_105 = arith.constant 0 : index
    %c32_106 = arith.constant 32 : index
    %84 = vector.load %arg25[%c0_105, %c32_106] : memref<7x112xf32, #tpu.memory_space<vmem>>, vector<7x16xf32>
    %c161 = arith.constant 161 : index
    %c0_107 = arith.constant 0 : index
    %85 = vector.load %arg26[%c161, %c0_107] : memref<196x32xf32, #tpu.memory_space<vmem>>, vector<7x16xf32>
    tpu.vector_store %arg26[%c161, %c0_107], %84 {strides = array<i32>} : memref<196x32xf32, #tpu.memory_space<vmem>>, vector<7x16xf32>,
    %c0_108 = arith.constant 0 : index
    %c48_109 = arith.constant 48 : index
    %86 = vector.load %arg25[%c0_108, %c48_109] : memref<7x112xf32, #tpu.memory_space<vmem>>, vector<7x16xf32>
    %c168 = arith.constant 168 : index
    %c0_110 = arith.constant 0 : index
    %87 = vector.load %arg26[%c168, %c0_110] : memref<196x32xf32, #tpu.memory_space<vmem>>, vector<7x16xf32>
    tpu.vector_store %arg26[%c168, %c0_110], %86 {strides = array<i32>} : memref<196x32xf32, #tpu.memory_space<vmem>>, vector<7x16xf32>,
    %c0_111 = arith.constant 0 : index
    %c64_112 = arith.constant 64 : index
    %88 = vector.load %arg25[%c0_111, %c64_112] : memref<7x112xf32, #tpu.memory_space<vmem>>, vector<7x16xf32>
    %c175 = arith.constant 175 : index
    %c0_113 = arith.constant 0 : index
    %89 = vector.load %arg26[%c175, %c0_113] : memref<196x32xf32, #tpu.memory_space<vmem>>, vector<7x16xf32>
    tpu.vector_store %arg26[%c175, %c0_113], %88 {strides = array<i32>} : memref<196x32xf32, #tpu.memory_space<vmem>>, vector<7x16xf32>,
    %c0_114 = arith.constant 0 : index
    %c80_115 = arith.constant 80 : index
    %90 = vector.load %arg25[%c0_114, %c80_115] : memref<7x112xf32, #tpu.memory_space<vmem>>, vector<7x16xf32>
    %c182 = arith.constant 182 : index
    %c0_116 = arith.constant 0 : index
    %91 = vector.load %arg26[%c182, %c0_116] : memref<196x32xf32, #tpu.memory_space<vmem>>, vector<7x16xf32>
    tpu.vector_store %arg26[%c182, %c0_116], %90 {strides = array<i32>} : memref<196x32xf32, #tpu.memory_space<vmem>>, vector<7x16xf32>,
    %c0_117 = arith.constant 0 : index
    %c96_118 = arith.constant 96 : index
    %92 = vector.load %arg25[%c0_117, %c96_118] : memref<7x112xf32, #tpu.memory_space<vmem>>, vector<7x16xf32>
    %c189 = arith.constant 189 : index
    %c0_119 = arith.constant 0 : index
    %93 = vector.load %arg26[%c189, %c0_119] : memref<196x32xf32, #tpu.memory_space<vmem>>, vector<7x16xf32>
    tpu.vector_store %arg26[%c189, %c0_119], %92 {strides = array<i32>} : memref<196x32xf32, #tpu.memory_space<vmem>>, vector<7x16xf32>,
    %c0_120 = arith.constant 0 : index
    %c0_121 = arith.constant 0 : index
    %94 = vector.load %arg26[%c0_120, %c0_121] : memref<196x32xf32, #tpu.memory_space<vmem>>, vector<196x16xf32>
    %95 = arith.truncf %94 : vector<196x16xf32> to vector<196x16xbf16>
    %c0_122 = arith.constant 0 : index
    %c0_123 = arith.constant 0 : index
    %96 = vector.load %arg6[%c0_122, %c0_123] : memref<512x196xbf16, #tpu.memory_space<vmem>>, vector<512x196xbf16>
    %cst_124 = arith.constant dense<0.000000e+00> : vector<512x16xf32>
    %97 = tpu.matmul %96, %95, %cst_124 {dimension_numbers = #tpu.dot_dimension_numbers<[1], [0], [0], [1], [0, 0, 1, 1], [], []>} : vector<512x196xbf16>, vector<196x16xbf16>, vector<512x16xf32> -> vector<512x16xf32>
    %c0_125 = arith.constant 0 : index
    %c0_126 = arith.constant 0 : index
    %98 = vector.load %arg7[%c0_125, %c0_126] : memref<1x16xf32, #tpu.memory_space<vmem>>, vector<1x16xf32>
    %99 = vector.broadcast %98 : vector<1x16xf32> to vector<512x16xf32>
    %100 = arith.addf %97, %99 : vector<512x16xf32>
    %cst_127 = arith.constant 0.000000e+00 : f32
    %101 = vector.broadcast %cst_127 : f32 to vector<512x16xf32>
    %102 = arith.maximumf %100, %101 : vector<512x16xf32>
    %c0_128 = arith.constant 0 : index
    %c0_129 = arith.constant 0 : index
    %103 = vector.load %arg8[%c0_128, %c0_129] : memref<196x512xbf16, #tpu.memory_space<vmem>>, vector<196x512xbf16>
    %104 = arith.truncf %102 : vector<512x16xf32> to vector<512x16xbf16>
    %cst_130 = arith.constant dense<0.000000e+00> : vector<196x16xf32>
    %105 = tpu.matmul %103, %104, %cst_130 {dimension_numbers = #tpu.dot_dimension_numbers<[1], [0], [0], [1], [0, 0, 1, 1], [], []>} : vector<196x512xbf16>, vector<512x16xbf16>, vector<196x16xf32> -> vector<196x16xf32>
    %c0_131 = arith.constant 0 : index
    %c0_132 = arith.constant 0 : index
    %106 = vector.load %arg24[%c0_131, %c0_132] : memref<196x24xf32, #tpu.memory_space<vmem>>, vector<196x16xf32>
    tpu.vector_store %arg24[%c0_131, %c0_132], %105 {strides = array<i32>} : memref<196x24xf32, #tpu.memory_space<vmem>>, vector<196x16xf32>,
    %c0_133 = arith.constant 0 : index
    %c0_134 = arith.constant 0 : index
    %107 = vector.load %arg24[%c0_133, %c0_134] : memref<196x24xf32, #tpu.memory_space<vmem>>, vector<7x16xf32>
    %108 = arith.truncf %107 : vector<7x16xf32> to vector<7x16xbf16>
    %c0_135 = arith.constant 0 : index
    %c0_136 = arith.constant 0 : index
    %c0_137 = arith.constant 0 : index
    %c0_138 = arith.constant 0 : index
    %109 = vector.load %arg9[%c0_135, %c0_136, %c0_137, %c0_138] : memref<4x7x16x112xbf16, #tpu.memory_space<vmem>>, vector<1x1x16x112xbf16>
    %110 = vector.shape_cast %109 : vector<1x1x16x112xbf16> to vector<16x112xbf16>
    %cst_139 = arith.constant dense<0.000000e+00> : vector<7x112xf32>
    %111 = tpu.matmul %108, %110, %cst_139 {dimension_numbers = #tpu.dot_dimension_numbers<[1], [0], [0], [1], [0, 0, 1, 1], [], []>} : vector<7x16xbf16>, vector<16x112xbf16>, vector<7x112xf32> -> vector<7x112xf32>
    %c7_140 = arith.constant 7 : index
    %c0_141 = arith.constant 0 : index
    %112 = vector.load %arg24[%c7_140, %c0_141] : memref<196x24xf32, #tpu.memory_space<vmem>>, vector<7x16xf32>
    %113 = arith.truncf %112 : vector<7x16xf32> to vector<7x16xbf16>
    %c0_142 = arith.constant 0 : index
    %c1_143 = arith.constant 1 : index
    %c0_144 = arith.constant 0 : index
    %c0_145 = arith.constant 0 : index
    %114 = vector.load %arg9[%c0_142, %c1_143, %c0_144, %c0_145] : memref<4x7x16x112xbf16, #tpu.memory_space<vmem>>, vector<1x1x16x112xbf16>
    %115 = vector.shape_cast %114 : vector<1x1x16x112xbf16> to vector<16x112xbf16>
    %cst_146 = arith.constant dense<0.000000e+00> : vector<7x112xf32>
    %116 = tpu.matmul %113, %115, %cst_146 {dimension_numbers = #tpu.dot_dimension_numbers<[1], [0], [0], [1], [0, 0, 1, 1], [], []>} : vector<7x16xbf16>, vector<16x112xbf16>, vector<7x112xf32> -> vector<7x112xf32>
    %117 = arith.addf %111, %116 : vector<7x112xf32>
    %c14_147 = arith.constant 14 : index
    %c0_148 = arith.constant 0 : index
    %118 = vector.load %arg24[%c14_147, %c0_148] : memref<196x24xf32, #tpu.memory_space<vmem>>, vector<7x16xf32>
    %119 = arith.truncf %118 : vector<7x16xf32> to vector<7x16xbf16>
    %c0_149 = arith.constant 0 : index
    %c2_150 = arith.constant 2 : index
    %c0_151 = arith.constant 0 : index
    %c0_152 = arith.constant 0 : index
    %120 = vector.load %arg9[%c0_149, %c2_150, %c0_151, %c0_152] : memref<4x7x16x112xbf16, #tpu.memory_space<vmem>>, vector<1x1x16x112xbf16>
    %121 = vector.shape_cast %120 : vector<1x1x16x112xbf16> to vector<16x112xbf16>
    %cst_153 = arith.constant dense<0.000000e+00> : vector<7x112xf32>
    %122 = tpu.matmul %119, %121, %cst_153 {dimension_numbers = #tpu.dot_dimension_numbers<[1], [0], [0], [1], [0, 0, 1, 1], [], []>} : vector<7x16xbf16>, vector<16x112xbf16>, vector<7x112xf32> -> vector<7x112xf32>
    %123 = arith.addf %117, %122 : vector<7x112xf32>
    %c21_154 = arith.constant 21 : index
    %c0_155 = arith.constant 0 : index
    %124 = vector.load %arg24[%c21_154, %c0_155] : memref<196x24xf32, #tpu.memory_space<vmem>>, vector<7x16xf32>
    %125 = arith.truncf %124 : vector<7x16xf32> to vector<7x16xbf16>
    %c0_156 = arith.constant 0 : index
    %c3_157 = arith.constant 3 : index
    %c0_158 = arith.constant 0 : index
    %c0_159 = arith.constant 0 : index
    %126 = vector.load %arg9[%c0_156, %c3_157, %c0_158, %c0_159] : memref<4x7x16x112xbf16, #tpu.memory_space<vmem>>, vector<1x1x16x112xbf16>
    %127 = vector.shape_cast %126 : vector<1x1x16x112xbf16> to vector<16x112xbf16>
    %cst_160 = arith.constant dense<0.000000e+00> : vector<7x112xf32>
    %128 = tpu.matmul %125, %127, %cst_160 {dimension_numbers = #tpu.dot_dimension_numbers<[1], [0], [0], [1], [0, 0, 1, 1], [], []>} : vector<7x16xbf16>, vector<16x112xbf16>, vector<7x112xf32> -> vector<7x112xf32>
    %129 = arith.addf %123, %128 : vector<7x112xf32>
    %c28_161 = arith.constant 28 : index
    %c0_162 = arith.constant 0 : index
    %130 = vector.load %arg24[%c28_161, %c0_162] : memref<196x24xf32, #tpu.memory_space<vmem>>, vector<7x16xf32>
    %131 = arith.truncf %130 : vector<7x16xf32> to vector<7x16xbf16>
    %c0_163 = arith.constant 0 : index
    %c4 = arith.constant 4 : index
    %c0_164 = arith.constant 0 : index
    %c0_165 = arith.constant 0 : index
    %132 = vector.load %arg9[%c0_163, %c4, %c0_164, %c0_165] : memref<4x7x16x112xbf16, #tpu.memory_space<vmem>>, vector<1x1x16x112xbf16>
    %133 = vector.shape_cast %132 : vector<1x1x16x112xbf16> to vector<16x112xbf16>
    %cst_166 = arith.constant dense<0.000000e+00> : vector<7x112xf32>
    %134 = tpu.matmul %131, %133, %cst_166 {dimension_numbers = #tpu.dot_dimension_numbers<[1], [0], [0], [1], [0, 0, 1, 1], [], []>} : vector<7x16xbf16>, vector<16x112xbf16>, vector<7x112xf32> -> vector<7x112xf32>
    %135 = arith.addf %129, %134 : vector<7x112xf32>
    %c35_167 = arith.constant 35 : index
    %c0_168 = arith.constant 0 : index
    %136 = vector.load %arg24[%c35_167, %c0_168] : memref<196x24xf32, #tpu.memory_space<vmem>>, vector<7x16xf32>
    %137 = arith.truncf %136 : vector<7x16xf32> to vector<7x16xbf16>
    %c0_169 = arith.constant 0 : index
    %c5 = arith.constant 5 : index
    %c0_170 = arith.constant 0 : index
    %c0_171 = arith.constant 0 : index
    %138 = vector.load %arg9[%c0_169, %c5, %c0_170, %c0_171] : memref<4x7x16x112xbf16, #tpu.memory_space<vmem>>, vector<1x1x16x112xbf16>
    %139 = vector.shape_cast %138 : vector<1x1x16x112xbf16> to vector<16x112xbf16>
    %cst_172 = arith.constant dense<0.000000e+00> : vector<7x112xf32>
    %140 = tpu.matmul %137, %139, %cst_172 {dimension_numbers = #tpu.dot_dimension_numbers<[1], [0], [0], [1], [0, 0, 1, 1], [], []>} : vector<7x16xbf16>, vector<16x112xbf16>, vector<7x112xf32> -> vector<7x112xf32>
    %141 = arith.addf %135, %140 : vector<7x112xf32>
    %c42_173 = arith.constant 42 : index
    %c0_174 = arith.constant 0 : index
    %142 = vector.load %arg24[%c42_173, %c0_174] : memref<196x24xf32, #tpu.memory_space<vmem>>, vector<7x16xf32>
    %143 = arith.truncf %142 : vector<7x16xf32> to vector<7x16xbf16>
    %c0_175 = arith.constant 0 : index
    %c6 = arith.constant 6 : index
    %c0_176 = arith.constant 0 : index
    %c0_177 = arith.constant 0 : index
    %144 = vector.load %arg9[%c0_175, %c6, %c0_176, %c0_177] : memref<4x7x16x112xbf16, #tpu.memory_space<vmem>>, vector<1x1x16x112xbf16>
    %145 = vector.shape_cast %144 : vector<1x1x16x112xbf16> to vector<16x112xbf16>
    %cst_178 = arith.constant dense<0.000000e+00> : vector<7x112xf32>
    %146 = tpu.matmul %143, %145, %cst_178 {dimension_numbers = #tpu.dot_dimension_numbers<[1], [0], [0], [1], [0, 0, 1, 1], [], []>} : vector<7x16xbf16>, vector<16x112xbf16>, vector<7x112xf32> -> vector<7x112xf32>
    %147 = arith.addf %141, %146 : vector<7x112xf32>
    %c0_179 = arith.constant 0 : index
    %c0_180 = arith.constant 0 : index
    %148 = vector.load %arg25[%c0_179, %c0_180] : memref<7x112xf32, #tpu.memory_space<vmem>>, vector<7x112xf32>
    tpu.vector_store %arg25[%c0_179, %c0_180], %147 {strides = array<i32>} : memref<7x112xf32, #tpu.memory_space<vmem>>, vector<7x112xf32>,
    %c0_181 = arith.constant 0 : index
    %c0_182 = arith.constant 0 : index
    %149 = vector.load %arg25[%c0_181, %c0_182] : memref<7x112xf32, #tpu.memory_space<vmem>>, vector<7x16xf32>
    %c0_183 = arith.constant 0 : index
    %c0_184 = arith.constant 0 : index
    %150 = vector.load %arg26[%c0_183, %c0_184] : memref<196x32xf32, #tpu.memory_space<vmem>>, vector<7x16xf32>
    tpu.vector_store %arg26[%c0_183, %c0_184], %149 {strides = array<i32>} : memref<196x32xf32, #tpu.memory_space<vmem>>, vector<7x16xf32>,
    %c0_185 = arith.constant 0 : index
    %c16_186 = arith.constant 16 : index
    %151 = vector.load %arg25[%c0_185, %c16_186] : memref<7x112xf32, #tpu.memory_space<vmem>>, vector<7x16xf32>
    %c7_187 = arith.constant 7 : index
    %c0_188 = arith.constant 0 : index
    %152 = vector.load %arg26[%c7_187, %c0_188] : memref<196x32xf32, #tpu.memory_space<vmem>>, vector<7x16xf32>
    tpu.vector_store %arg26[%c7_187, %c0_188], %151 {strides = array<i32>} : memref<196x32xf32, #tpu.memory_space<vmem>>, vector<7x16xf32>,
    %c0_189 = arith.constant 0 : index
    %c32_190 = arith.constant 32 : index
    %153 = vector.load %arg25[%c0_189, %c32_190] : memref<7x112xf32, #tpu.memory_space<vmem>>, vector<7x16xf32>
    %c14_191 = arith.constant 14 : index
    %c0_192 = arith.constant 0 : index
    %154 = vector.load %arg26[%c14_191, %c0_192] : memref<196x32xf32, #tpu.memory_space<vmem>>, vector<7x16xf32>
    tpu.vector_store %arg26[%c14_191, %c0_192], %153 {strides = array<i32>} : memref<196x32xf32, #tpu.memory_space<vmem>>, vector<7x16xf32>,
    %c0_193 = arith.constant 0 : index
    %c48_194 = arith.constant 48 : index
    %155 = vector.load %arg25[%c0_193, %c48_194] : memref<7x112xf32, #tpu.memory_space<vmem>>, vector<7x16xf32>
    %c21_195 = arith.constant 21 : index
    %c0_196 = arith.constant 0 : index
    %156 = vector.load %arg26[%c21_195, %c0_196] : memref<196x32xf32, #tpu.memory_space<vmem>>, vector<7x16xf32>
    tpu.vector_store %arg26[%c21_195, %c0_196], %155 {strides = array<i32>} : memref<196x32xf32, #tpu.memory_space<vmem>>, vector<7x16xf32>,
    %c0_197 = arith.constant 0 : index
    %c64_198 = arith.constant 64 : index
    %157 = vector.load %arg25[%c0_197, %c64_198] : memref<7x112xf32, #tpu.memory_space<vmem>>, vector<7x16xf32>
    %c28_199 = arith.constant 28 : index
    %c0_200 = arith.constant 0 : index
    %158 = vector.load %arg26[%c28_199, %c0_200] : memref<196x32xf32, #tpu.memory_space<vmem>>, vector<7x16xf32>
    tpu.vector_store %arg26[%c28_199, %c0_200], %157 {strides = array<i32>} : memref<196x32xf32, #tpu.memory_space<vmem>>, vector<7x16xf32>,
    %c0_201 = arith.constant 0 : index
    %c80_202 = arith.constant 80 : index
    %159 = vector.load %arg25[%c0_201, %c80_202] : memref<7x112xf32, #tpu.memory_space<vmem>>, vector<7x16xf32>
    %c35_203 = arith.constant 35 : index
    %c0_204 = arith.constant 0 : index
    %160 = vector.load %arg26[%c35_203, %c0_204] : memref<196x32xf32, #tpu.memory_space<vmem>>, vector<7x16xf32>
    tpu.vector_store %arg26[%c35_203, %c0_204], %159 {strides = array<i32>} : memref<196x32xf32, #tpu.memory_space<vmem>>, vector<7x16xf32>,
    %c0_205 = arith.constant 0 : index
    %c96_206 = arith.constant 96 : index
    %161 = vector.load %arg25[%c0_205, %c96_206] : memref<7x112xf32, #tpu.memory_space<vmem>>, vector<7x16xf32>
    %c42_207 = arith.constant 42 : index
    %c0_208 = arith.constant 0 : index
    %162 = vector.load %arg26[%c42_207, %c0_208] : memref<196x32xf32, #tpu.memory_space<vmem>>, vector<7x16xf32>
    tpu.vector_store %arg26[%c42_207, %c0_208], %161 {strides = array<i32>} : memref<196x32xf32, #tpu.memory_space<vmem>>, vector<7x16xf32>,
    %c49_209 = arith.constant 49 : index
    %c0_210 = arith.constant 0 : index
    %163 = vector.load %arg24[%c49_209, %c0_210] : memref<196x24xf32, #tpu.memory_space<vmem>>, vector<7x16xf32>
    %164 = arith.truncf %163 : vector<7x16xf32> to vector<7x16xbf16>
    %c1_211 = arith.constant 1 : index
    %c0_212 = arith.constant 0 : index
    %c0_213 = arith.constant 0 : index
    %c0_214 = arith.constant 0 : index
    %165 = vector.load %arg9[%c1_211, %c0_212, %c0_213, %c0_214] : memref<4x7x16x112xbf16, #tpu.memory_space<vmem>>, vector<1x1x16x112xbf16>
    %166 = vector.shape_cast %165 : vector<1x1x16x112xbf16> to vector<16x112xbf16>
    %cst_215 = arith.constant dense<0.000000e+00> : vector<7x112xf32>
    %167 = tpu.matmul %164, %166, %cst_215 {dimension_numbers = #tpu.dot_dimension_numbers<[1], [0], [0], [1], [0, 0, 1, 1], [], []>} : vector<7x16xbf16>, vector<16x112xbf16>, vector<7x112xf32> -> vector<7x112xf32>
    %c56_216 = arith.constant 56 : index
    %c0_217 = arith.constant 0 : index
    %168 = vector.load %arg24[%c56_216, %c0_217] : memref<196x24xf32, #tpu.memory_space<vmem>>, vector<7x16xf32>
    %169 = arith.truncf %168 : vector<7x16xf32> to vector<7x16xbf16>
    %c1_218 = arith.constant 1 : index
    %c1_219 = arith.constant 1 : index
    %c0_220 = arith.constant 0 : index
    %c0_221 = arith.constant 0 : index
    %170 = vector.load %arg9[%c1_218, %c1_219, %c0_220, %c0_221] : memref<4x7x16x112xbf16, #tpu.memory_space<vmem>>, vector<1x1x16x112xbf16>
    %171 = vector.shape_cast %170 : vector<1x1x16x112xbf16> to vector<16x112xbf16>
    %cst_222 = arith.constant dense<0.000000e+00> : vector<7x112xf32>
    %172 = tpu.matmul %169, %171, %cst_222 {dimension_numbers = #tpu.dot_dimension_numbers<[1], [0], [0], [1], [0, 0, 1, 1], [], []>} : vector<7x16xbf16>, vector<16x112xbf16>, vector<7x112xf32> -> vector<7x112xf32>
    %173 = arith.addf %167, %172 : vector<7x112xf32>
    %c63_223 = arith.constant 63 : index
    %c0_224 = arith.constant 0 : index
    %174 = vector.load %arg24[%c63_223, %c0_224] : memref<196x24xf32, #tpu.memory_space<vmem>>, vector<7x16xf32>
    %175 = arith.truncf %174 : vector<7x16xf32> to vector<7x16xbf16>
    %c1_225 = arith.constant 1 : index
    %c2_226 = arith.constant 2 : index
    %c0_227 = arith.constant 0 : index
    %c0_228 = arith.constant 0 : index
    %176 = vector.load %arg9[%c1_225, %c2_226, %c0_227, %c0_228] : memref<4x7x16x112xbf16, #tpu.memory_space<vmem>>, vector<1x1x16x112xbf16>
    %177 = vector.shape_cast %176 : vector<1x1x16x112xbf16> to vector<16x112xbf16>
    %cst_229 = arith.constant dense<0.000000e+00> : vector<7x112xf32>
    %178 = tpu.matmul %175, %177, %cst_229 {dimension_numbers = #tpu.dot_dimension_numbers<[1], [0], [0], [1], [0, 0, 1, 1], [], []>} : vector<7x16xbf16>, vector<16x112xbf16>, vector<7x112xf32> -> vector<7x112xf32>
    %179 = arith.addf %173, %178 : vector<7x112xf32>
    %c70_230 = arith.constant 70 : index
    %c0_231 = arith.constant 0 : index
    %180 = vector.load %arg24[%c70_230, %c0_231] : memref<196x24xf32, #tpu.memory_space<vmem>>, vector<7x16xf32>
    %181 = arith.truncf %180 : vector<7x16xf32> to vector<7x16xbf16>
    %c1_232 = arith.constant 1 : index
    %c3_233 = arith.constant 3 : index
    %c0_234 = arith.constant 0 : index
    %c0_235 = arith.constant 0 : index
    %182 = vector.load %arg9[%c1_232, %c3_233, %c0_234, %c0_235] : memref<4x7x16x112xbf16, #tpu.memory_space<vmem>>, vector<1x1x16x112xbf16>
    %183 = vector.shape_cast %182 : vector<1x1x16x112xbf16> to vector<16x112xbf16>
    %cst_236 = arith.constant dense<0.000000e+00> : vector<7x112xf32>
    %184 = tpu.matmul %181, %183, %cst_236 {dimension_numbers = #tpu.dot_dimension_numbers<[1], [0], [0], [1], [0, 0, 1, 1], [], []>} : vector<7x16xbf16>, vector<16x112xbf16>, vector<7x112xf32> -> vector<7x112xf32>
    %185 = arith.addf %179, %184 : vector<7x112xf32>
    %c77_237 = arith.constant 77 : index
    %c0_238 = arith.constant 0 : index
    %186 = vector.load %arg24[%c77_237, %c0_238] : memref<196x24xf32, #tpu.memory_space<vmem>>, vector<7x16xf32>
    %187 = arith.truncf %186 : vector<7x16xf32> to vector<7x16xbf16>
    %c1_239 = arith.constant 1 : index
    %c4_240 = arith.constant 4 : index
    %c0_241 = arith.constant 0 : index
    %c0_242 = arith.constant 0 : index
    %188 = vector.load %arg9[%c1_239, %c4_240, %c0_241, %c0_242] : memref<4x7x16x112xbf16, #tpu.memory_space<vmem>>, vector<1x1x16x112xbf16>
    %189 = vector.shape_cast %188 : vector<1x1x16x112xbf16> to vector<16x112xbf16>
    %cst_243 = arith.constant dense<0.000000e+00> : vector<7x112xf32>
    %190 = tpu.matmul %187, %189, %cst_243 {dimension_numbers = #tpu.dot_dimension_numbers<[1], [0], [0], [1], [0, 0, 1, 1], [], []>} : vector<7x16xbf16>, vector<16x112xbf16>, vector<7x112xf32> -> vector<7x112xf32>
    %191 = arith.addf %185, %190 : vector<7x112xf32>
    %c84_244 = arith.constant 84 : index
    %c0_245 = arith.constant 0 : index
    %192 = vector.load %arg24[%c84_244, %c0_245] : memref<196x24xf32, #tpu.memory_space<vmem>>, vector<7x16xf32>
    %193 = arith.truncf %192 : vector<7x16xf32> to vector<7x16xbf16>
    %c1_246 = arith.constant 1 : index
    %c5_247 = arith.constant 5 : index
    %c0_248 = arith.constant 0 : index
    %c0_249 = arith.constant 0 : index
    %194 = vector.load %arg9[%c1_246, %c5_247, %c0_248, %c0_249] : memref<4x7x16x112xbf16, #tpu.memory_space<vmem>>, vector<1x1x16x112xbf16>
    %195 = vector.shape_cast %194 : vector<1x1x16x112xbf16> to vector<16x112xbf16>
    %cst_250 = arith.constant dense<0.000000e+00> : vector<7x112xf32>
    %196 = tpu.matmul %193, %195, %cst_250 {dimension_numbers = #tpu.dot_dimension_numbers<[1], [0], [0], [1], [0, 0, 1, 1], [], []>} : vector<7x16xbf16>, vector<16x112xbf16>, vector<7x112xf32> -> vector<7x112xf32>
    %197 = arith.addf %191, %196 : vector<7x112xf32>
    %c91_251 = arith.constant 91 : index
    %c0_252 = arith.constant 0 : index
    %198 = vector.load %arg24[%c91_251, %c0_252] : memref<196x24xf32, #tpu.memory_space<vmem>>, vector<7x16xf32>
    %199 = arith.truncf %198 : vector<7x16xf32> to vector<7x16xbf16>
    %c1_253 = arith.constant 1 : index
    %c6_254 = arith.constant 6 : index
    %c0_255 = arith.constant 0 : index
    %c0_256 = arith.constant 0 : index
    %200 = vector.load %arg9[%c1_253, %c6_254, %c0_255, %c0_256] : memref<4x7x16x112xbf16, #tpu.memory_space<vmem>>, vector<1x1x16x112xbf16>
    %201 = vector.shape_cast %200 : vector<1x1x16x112xbf16> to vector<16x112xbf16>
    %cst_257 = arith.constant dense<0.000000e+00> : vector<7x112xf32>
    %202 = tpu.matmul %199, %201, %cst_257 {dimension_numbers = #tpu.dot_dimension_numbers<[1], [0], [0], [1], [0, 0, 1, 1], [], []>} : vector<7x16xbf16>, vector<16x112xbf16>, vector<7x112xf32> -> vector<7x112xf32>
    %203 = arith.addf %197, %202 : vector<7x112xf32>
    %c0_258 = arith.constant 0 : index
    %c0_259 = arith.constant 0 : index
    %204 = vector.load %arg25[%c0_258, %c0_259] : memref<7x112xf32, #tpu.memory_space<vmem>>, vector<7x112xf32>
    tpu.vector_store %arg25[%c0_258, %c0_259], %203 {strides = array<i32>} : memref<7x112xf32, #tpu.memory_space<vmem>>, vector<7x112xf32>,
    %c0_260 = arith.constant 0 : index
    %c0_261 = arith.constant 0 : index
    %205 = vector.load %arg25[%c0_260, %c0_261] : memref<7x112xf32, #tpu.memory_space<vmem>>, vector<7x16xf32>
    %c49_262 = arith.constant 49 : index
    %c0_263 = arith.constant 0 : index
    %206 = vector.load %arg26[%c49_262, %c0_263] : memref<196x32xf32, #tpu.memory_space<vmem>>, vector<7x16xf32>
    tpu.vector_store %arg26[%c49_262, %c0_263], %205 {strides = array<i32>} : memref<196x32xf32, #tpu.memory_space<vmem>>, vector<7x16xf32>,
    %c0_264 = arith.constant 0 : index
    %c16_265 = arith.constant 16 : index
    %207 = vector.load %arg25[%c0_264, %c16_265] : memref<7x112xf32, #tpu.memory_space<vmem>>, vector<7x16xf32>
    %c56_266 = arith.constant 56 : index
    %c0_267 = arith.constant 0 : index
    %208 = vector.load %arg26[%c56_266, %c0_267] : memref<196x32xf32, #tpu.memory_space<vmem>>, vector<7x16xf32>
    tpu.vector_store %arg26[%c56_266, %c0_267], %207 {strides = array<i32>} : memref<196x32xf32, #tpu.memory_space<vmem>>, vector<7x16xf32>,
    %c0_268 = arith.constant 0 : index
    %c32_269 = arith.constant 32 : index
    %209 = vector.load %arg25[%c0_268, %c32_269] : memref<7x112xf32, #tpu.memory_space<vmem>>, vector<7x16xf32>
    %c63_270 = arith.constant 63 : index
    %c0_271 = arith.constant 0 : index
    %210 = vector.load %arg26[%c63_270, %c0_271] : memref<196x32xf32, #tpu.memory_space<vmem>>, vector<7x16xf32>
    tpu.vector_store %arg26[%c63_270, %c0_271], %209 {strides = array<i32>} : memref<196x32xf32, #tpu.memory_space<vmem>>, vector<7x16xf32>,
    %c0_272 = arith.constant 0 : index
    %c48_273 = arith.constant 48 : index
    %211 = vector.load %arg25[%c0_272, %c48_273] : memref<7x112xf32, #tpu.memory_space<vmem>>, vector<7x16xf32>
    %c70_274 = arith.constant 70 : index
    %c0_275 = arith.constant 0 : index
    %212 = vector.load %arg26[%c70_274, %c0_275] : memref<196x32xf32, #tpu.memory_space<vmem>>, vector<7x16xf32>
    tpu.vector_store %arg26[%c70_274, %c0_275], %211 {strides = array<i32>} : memref<196x32xf32, #tpu.memory_space<vmem>>, vector<7x16xf32>,
    %c0_276 = arith.constant 0 : index
    %c64_277 = arith.constant 64 : index
    %213 = vector.load %arg25[%c0_276, %c64_277] : memref<7x112xf32, #tpu.memory_space<vmem>>, vector<7x16xf32>
    %c77_278 = arith.constant 77 : index
    %c0_279 = arith.constant 0 : index
    %214 = vector.load %arg26[%c77_278, %c0_279] : memref<196x32xf32, #tpu.memory_space<vmem>>, vector<7x16xf32>
    tpu.vector_store %arg26[%c77_278, %c0_279], %213 {strides = array<i32>} : memref<196x32xf32, #tpu.memory_space<vmem>>, vector<7x16xf32>,
    %c0_280 = arith.constant 0 : index
    %c80_281 = arith.constant 80 : index
    %215 = vector.load %arg25[%c0_280, %c80_281] : memref<7x112xf32, #tpu.memory_space<vmem>>, vector<7x16xf32>
    %c84_282 = arith.constant 84 : index
    %c0_283 = arith.constant 0 : index
    %216 = vector.load %arg26[%c84_282, %c0_283] : memref<196x32xf32, #tpu.memory_space<vmem>>, vector<7x16xf32>
    tpu.vector_store %arg26[%c84_282, %c0_283], %215 {strides = array<i32>} : memref<196x32xf32, #tpu.memory_space<vmem>>, vector<7x16xf32>,
    %c0_284 = arith.constant 0 : index
    %c96_285 = arith.constant 96 : index
    %217 = vector.load %arg25[%c0_284, %c96_285] : memref<7x112xf32, #tpu.memory_space<vmem>>, vector<7x16xf32>
    %c91_286 = arith.constant 91 : index
    %c0_287 = arith.constant 0 : index
    %218 = vector.load %arg26[%c91_286, %c0_287] : memref<196x32xf32, #tpu.memory_space<vmem>>, vector<7x16xf32>
    tpu.vector_store %arg26[%c91_286, %c0_287], %217 {strides = array<i32>} : memref<196x32xf32, #tpu.memory_space<vmem>>, vector<7x16xf32>,
    %c98_288 = arith.constant 98 : index
    %c0_289 = arith.constant 0 : index
    %219 = vector.load %arg24[%c98_288, %c0_289] : memref<196x24xf32, #tpu.memory_space<vmem>>, vector<7x16xf32>
    %220 = arith.truncf %219 : vector<7x16xf32> to vector<7x16xbf16>
    %c2_290 = arith.constant 2 : index
    %c0_291 = arith.constant 0 : index
    %c0_292 = arith.constant 0 : index
    %c0_293 = arith.constant 0 : index
    %221 = vector.load %arg9[%c2_290, %c0_291, %c0_292, %c0_293] : memref<4x7x16x112xbf16, #tpu.memory_space<vmem>>, vector<1x1x16x112xbf16>
    %222 = vector.shape_cast %221 : vector<1x1x16x112xbf16> to vector<16x112xbf16>
    %cst_294 = arith.constant dense<0.000000e+00> : vector<7x112xf32>
    %223 = tpu.matmul %220, %222, %cst_294 {dimension_numbers = #tpu.dot_dimension_numbers<[1], [0], [0], [1], [0, 0, 1, 1], [], []>} : vector<7x16xbf16>, vector<16x112xbf16>, vector<7x112xf32> -> vector<7x112xf32>
    %c105_295 = arith.constant 105 : index
    %c0_296 = arith.constant 0 : index
    %224 = vector.load %arg24[%c105_295, %c0_296] : memref<196x24xf32, #tpu.memory_space<vmem>>, vector<7x16xf32>
    %225 = arith.truncf %224 : vector<7x16xf32> to vector<7x16xbf16>
    %c2_297 = arith.constant 2 : index
    %c1_298 = arith.constant 1 : index
    %c0_299 = arith.constant 0 : index
    %c0_300 = arith.constant 0 : index
    %226 = vector.load %arg9[%c2_297, %c1_298, %c0_299, %c0_300] : memref<4x7x16x112xbf16, #tpu.memory_space<vmem>>, vector<1x1x16x112xbf16>
    %227 = vector.shape_cast %226 : vector<1x1x16x112xbf16> to vector<16x112xbf16>
    %cst_301 = arith.constant dense<0.000000e+00> : vector<7x112xf32>
    %228 = tpu.matmul %225, %227, %cst_301 {dimension_numbers = #tpu.dot_dimension_numbers<[1], [0], [0], [1], [0, 0, 1, 1], [], []>} : vector<7x16xbf16>, vector<16x112xbf16>, vector<7x112xf32> -> vector<7x112xf32>
    %229 = arith.addf %223, %228 : vector<7x112xf32>
    %c112_302 = arith.constant 112 : index
    %c0_303 = arith.constant 0 : index
    %230 = vector.load %arg24[%c112_302, %c0_303] : memref<196x24xf32, #tpu.memory_space<vmem>>, vector<7x16xf32>
    %231 = arith.truncf %230 : vector<7x16xf32> to vector<7x16xbf16>
    %c2_304 = arith.constant 2 : index
    %c2_305 = arith.constant 2 : index
    %c0_306 = arith.constant 0 : index
    %c0_307 = arith.constant 0 : index
    %232 = vector.load %arg9[%c2_304, %c2_305, %c0_306, %c0_307] : memref<4x7x16x112xbf16, #tpu.memory_space<vmem>>, vector<1x1x16x112xbf16>
    %233 = vector.shape_cast %232 : vector<1x1x16x112xbf16> to vector<16x112xbf16>
    %cst_308 = arith.constant dense<0.000000e+00> : vector<7x112xf32>
    %234 = tpu.matmul %231, %233, %cst_308 {dimension_numbers = #tpu.dot_dimension_numbers<[1], [0], [0], [1], [0, 0, 1, 1], [], []>} : vector<7x16xbf16>, vector<16x112xbf16>, vector<7x112xf32> -> vector<7x112xf32>
    %235 = arith.addf %229, %234 : vector<7x112xf32>
    %c119_309 = arith.constant 119 : index
    %c0_310 = arith.constant 0 : index
    %236 = vector.load %arg24[%c119_309, %c0_310] : memref<196x24xf32, #tpu.memory_space<vmem>>, vector<7x16xf32>
    %237 = arith.truncf %236 : vector<7x16xf32> to vector<7x16xbf16>
    %c2_311 = arith.constant 2 : index
    %c3_312 = arith.constant 3 : index
    %c0_313 = arith.constant 0 : index
    %c0_314 = arith.constant 0 : index
    %238 = vector.load %arg9[%c2_311, %c3_312, %c0_313, %c0_314] : memref<4x7x16x112xbf16, #tpu.memory_space<vmem>>, vector<1x1x16x112xbf16>
    %239 = vector.shape_cast %238 : vector<1x1x16x112xbf16> to vector<16x112xbf16>
    %cst_315 = arith.constant dense<0.000000e+00> : vector<7x112xf32>
    %240 = tpu.matmul %237, %239, %cst_315 {dimension_numbers = #tpu.dot_dimension_numbers<[1], [0], [0], [1], [0, 0, 1, 1], [], []>} : vector<7x16xbf16>, vector<16x112xbf16>, vector<7x112xf32> -> vector<7x112xf32>
    %241 = arith.addf %235, %240 : vector<7x112xf32>
    %c126_316 = arith.constant 126 : index
    %c0_317 = arith.constant 0 : index
    %242 = vector.load %arg24[%c126_316, %c0_317] : memref<196x24xf32, #tpu.memory_space<vmem>>, vector<7x16xf32>
    %243 = arith.truncf %242 : vector<7x16xf32> to vector<7x16xbf16>
    %c2_318 = arith.constant 2 : index
    %c4_319 = arith.constant 4 : index
    %c0_320 = arith.constant 0 : index
    %c0_321 = arith.constant 0 : index
    %244 = vector.load %arg9[%c2_318, %c4_319, %c0_320, %c0_321] : memref<4x7x16x112xbf16, #tpu.memory_space<vmem>>, vector<1x1x16x112xbf16>
    %245 = vector.shape_cast %244 : vector<1x1x16x112xbf16> to vector<16x112xbf16>
    %cst_322 = arith.constant dense<0.000000e+00> : vector<7x112xf32>
    %246 = tpu.matmul %243, %245, %cst_322 {dimension_numbers = #tpu.dot_dimension_numbers<[1], [0], [0], [1], [0, 0, 1, 1], [], []>} : vector<7x16xbf16>, vector<16x112xbf16>, vector<7x112xf32> -> vector<7x112xf32>
    %247 = arith.addf %241, %246 : vector<7x112xf32>
    %c133_323 = arith.constant 133 : index
    %c0_324 = arith.constant 0 : index
    %248 = vector.load %arg24[%c133_323, %c0_324] : memref<196x24xf32, #tpu.memory_space<vmem>>, vector<7x16xf32>
    %249 = arith.truncf %248 : vector<7x16xf32> to vector<7x16xbf16>
    %c2_325 = arith.constant 2 : index
    %c5_326 = arith.constant 5 : index
    %c0_327 = arith.constant 0 : index
    %c0_328 = arith.constant 0 : index
    %250 = vector.load %arg9[%c2_325, %c5_326, %c0_327, %c0_328] : memref<4x7x16x112xbf16, #tpu.memory_space<vmem>>, vector<1x1x16x112xbf16>
    %251 = vector.shape_cast %250 : vector<1x1x16x112xbf16> to vector<16x112xbf16>
    %cst_329 = arith.constant dense<0.000000e+00> : vector<7x112xf32>
    %252 = tpu.matmul %249, %251, %cst_329 {dimension_numbers = #tpu.dot_dimension_numbers<[1], [0], [0], [1], [0, 0, 1, 1], [], []>} : vector<7x16xbf16>, vector<16x112xbf16>, vector<7x112xf32> -> vector<7x112xf32>
    %253 = arith.addf %247, %252 : vector<7x112xf32>
    %c140_330 = arith.constant 140 : index
    %c0_331 = arith.constant 0 : index
    %254 = vector.load %arg24[%c140_330, %c0_331] : memref<196x24xf32, #tpu.memory_space<vmem>>, vector<7x16xf32>
    %255 = arith.truncf %254 : vector<7x16xf32> to vector<7x16xbf16>
    %c2_332 = arith.constant 2 : index
    %c6_333 = arith.constant 6 : index
    %c0_334 = arith.constant 0 : index
    %c0_335 = arith.constant 0 : index
    %256 = vector.load %arg9[%c2_332, %c6_333, %c0_334, %c0_335] : memref<4x7x16x112xbf16, #tpu.memory_space<vmem>>, vector<1x1x16x112xbf16>
    %257 = vector.shape_cast %256 : vector<1x1x16x112xbf16> to vector<16x112xbf16>
    %cst_336 = arith.constant dense<0.000000e+00> : vector<7x112xf32>
    %258 = tpu.matmul %255, %257, %cst_336 {dimension_numbers = #tpu.dot_dimension_numbers<[1], [0], [0], [1], [0, 0, 1, 1], [], []>} : vector<7x16xbf16>, vector<16x112xbf16>, vector<7x112xf32> -> vector<7x112xf32>
    %259 = arith.addf %253, %258 : vector<7x112xf32>
    %c0_337 = arith.constant 0 : index
    %c0_338 = arith.constant 0 : index
    %260 = vector.load %arg25[%c0_337, %c0_338] : memref<7x112xf32, #tpu.memory_space<vmem>>, vector<7x112xf32>
    tpu.vector_store %arg25[%c0_337, %c0_338], %259 {strides = array<i32>} : memref<7x112xf32, #tpu.memory_space<vmem>>, vector<7x112xf32>,
    %c0_339 = arith.constant 0 : index
    %c0_340 = arith.constant 0 : index
    %261 = vector.load %arg25[%c0_339, %c0_340] : memref<7x112xf32, #tpu.memory_space<vmem>>, vector<7x16xf32>
    %c98_341 = arith.constant 98 : index
    %c0_342 = arith.constant 0 : index
    %262 = vector.load %arg26[%c98_341, %c0_342] : memref<196x32xf32, #tpu.memory_space<vmem>>, vector<7x16xf32>
    tpu.vector_store %arg26[%c98_341, %c0_342], %261 {strides = array<i32>} : memref<196x32xf32, #tpu.memory_space<vmem>>, vector<7x16xf32>,
    %c0_343 = arith.constant 0 : index
    %c16_344 = arith.constant 16 : index
    %263 = vector.load %arg25[%c0_343, %c16_344] : memref<7x112xf32, #tpu.memory_space<vmem>>, vector<7x16xf32>
    %c105_345 = arith.constant 105 : index
    %c0_346 = arith.constant 0 : index
    %264 = vector.load %arg26[%c105_345, %c0_346] : memref<196x32xf32, #tpu.memory_space<vmem>>, vector<7x16xf32>
    tpu.vector_store %arg26[%c105_345, %c0_346], %263 {strides = array<i32>} : memref<196x32xf32, #tpu.memory_space<vmem>>, vector<7x16xf32>,
    %c0_347 = arith.constant 0 : index
    %c32_348 = arith.constant 32 : index
    %265 = vector.load %arg25[%c0_347, %c32_348] : memref<7x112xf32, #tpu.memory_space<vmem>>, vector<7x16xf32>
    %c112_349 = arith.constant 112 : index
    %c0_350 = arith.constant 0 : index
    %266 = vector.load %arg26[%c112_349, %c0_350] : memref<196x32xf32, #tpu.memory_space<vmem>>, vector<7x16xf32>
    tpu.vector_store %arg26[%c112_349, %c0_350], %265 {strides = array<i32>} : memref<196x32xf32, #tpu.memory_space<vmem>>, vector<7x16xf32>,
    %c0_351 = arith.constant 0 : index
    %c48_352 = arith.constant 48 : index
    %267 = vector.load %arg25[%c0_351, %c48_352] : memref<7x112xf32, #tpu.memory_space<vmem>>, vector<7x16xf32>
    %c119_353 = arith.constant 119 : index
    %c0_354 = arith.constant 0 : index
    %268 = vector.load %arg26[%c119_353, %c0_354] : memref<196x32xf32, #tpu.memory_space<vmem>>, vector<7x16xf32>
    tpu.vector_store %arg26[%c119_353, %c0_354], %267 {strides = array<i32>} : memref<196x32xf32, #tpu.memory_space<vmem>>, vector<7x16xf32>,
    %c0_355 = arith.constant 0 : index
    %c64_356 = arith.constant 64 : index
    %269 = vector.load %arg25[%c0_355, %c64_356] : memref<7x112xf32, #tpu.memory_space<vmem>>, vector<7x16xf32>
    %c126_357 = arith.constant 126 : index
    %c0_358 = arith.constant 0 : index
    %270 = vector.load %arg26[%c126_357, %c0_358] : memref<196x32xf32, #tpu.memory_space<vmem>>, vector<7x16xf32>
    tpu.vector_store %arg26[%c126_357, %c0_358], %269 {strides = array<i32>} : memref<196x32xf32, #tpu.memory_space<vmem>>, vector<7x16xf32>,
    %c0_359 = arith.constant 0 : index
    %c80_360 = arith.constant 80 : index
    %271 = vector.load %arg25[%c0_359, %c80_360] : memref<7x112xf32, #tpu.memory_space<vmem>>, vector<7x16xf32>
    %c133_361 = arith.constant 133 : index
    %c0_362 = arith.constant 0 : index
    %272 = vector.load %arg26[%c133_361, %c0_362] : memref<196x32xf32, #tpu.memory_space<vmem>>, vector<7x16xf32>
    tpu.vector_store %arg26[%c133_361, %c0_362], %271 {strides = array<i32>} : memref<196x32xf32, #tpu.memory_space<vmem>>, vector<7x16xf32>,
    %c0_363 = arith.constant 0 : index
    %c96_364 = arith.constant 96 : index
    %273 = vector.load %arg25[%c0_363, %c96_364] : memref<7x112xf32, #tpu.memory_space<vmem>>, vector<7x16xf32>
    %c140_365 = arith.constant 140 : index
    %c0_366 = arith.constant 0 : index
    %274 = vector.load %arg26[%c140_365, %c0_366] : memref<196x32xf32, #tpu.memory_space<vmem>>, vector<7x16xf32>
    tpu.vector_store %arg26[%c140_365, %c0_366], %273 {strides = array<i32>} : memref<196x32xf32, #tpu.memory_space<vmem>>, vector<7x16xf32>,
    %c147_367 = arith.constant 147 : index
    %c0_368 = arith.constant 0 : index
    %275 = vector.load %arg24[%c147_367, %c0_368] : memref<196x24xf32, #tpu.memory_space<vmem>>, vector<7x16xf32>
    %276 = arith.truncf %275 : vector<7x16xf32> to vector<7x16xbf16>
    %c3_369 = arith.constant 3 : index
    %c0_370 = arith.constant 0 : index
    %c0_371 = arith.constant 0 : index
    %c0_372 = arith.constant 0 : index
    %277 = vector.load %arg9[%c3_369, %c0_370, %c0_371, %c0_372] : memref<4x7x16x112xbf16, #tpu.memory_space<vmem>>, vector<1x1x16x112xbf16>
    %278 = vector.shape_cast %277 : vector<1x1x16x112xbf16> to vector<16x112xbf16>
    %cst_373 = arith.constant dense<0.000000e+00> : vector<7x112xf32>
    %279 = tpu.matmul %276, %278, %cst_373 {dimension_numbers = #tpu.dot_dimension_numbers<[1], [0], [0], [1], [0, 0, 1, 1], [], []>} : vector<7x16xbf16>, vector<16x112xbf16>, vector<7x112xf32> -> vector<7x112xf32>
    %c154_374 = arith.constant 154 : index
    %c0_375 = arith.constant 0 : index
    %280 = vector.load %arg24[%c154_374, %c0_375] : memref<196x24xf32, #tpu.memory_space<vmem>>, vector<7x16xf32>
    %281 = arith.truncf %280 : vector<7x16xf32> to vector<7x16xbf16>
    %c3_376 = arith.constant 3 : index
    %c1_377 = arith.constant 1 : index
    %c0_378 = arith.constant 0 : index
    %c0_379 = arith.constant 0 : index
    %282 = vector.load %arg9[%c3_376, %c1_377, %c0_378, %c0_379] : memref<4x7x16x112xbf16, #tpu.memory_space<vmem>>, vector<1x1x16x112xbf16>
    %283 = vector.shape_cast %282 : vector<1x1x16x112xbf16> to vector<16x112xbf16>
    %cst_380 = arith.constant dense<0.000000e+00> : vector<7x112xf32>
    %284 = tpu.matmul %281, %283, %cst_380 {dimension_numbers = #tpu.dot_dimension_numbers<[1], [0], [0], [1], [0, 0, 1, 1], [], []>} : vector<7x16xbf16>, vector<16x112xbf16>, vector<7x112xf32> -> vector<7x112xf32>
    %285 = arith.addf %279, %284 : vector<7x112xf32>
    %c161_381 = arith.constant 161 : index
    %c0_382 = arith.constant 0 : index
    %286 = vector.load %arg24[%c161_381, %c0_382] : memref<196x24xf32, #tpu.memory_space<vmem>>, vector<7x16xf32>
    %287 = arith.truncf %286 : vector<7x16xf32> to vector<7x16xbf16>
    %c3_383 = arith.constant 3 : index
    %c2_384 = arith.constant 2 : index
    %c0_385 = arith.constant 0 : index
    %c0_386 = arith.constant 0 : index
    %288 = vector.load %arg9[%c3_383, %c2_384, %c0_385, %c0_386] : memref<4x7x16x112xbf16, #tpu.memory_space<vmem>>, vector<1x1x16x112xbf16>
    %289 = vector.shape_cast %288 : vector<1x1x16x112xbf16> to vector<16x112xbf16>
    %cst_387 = arith.constant dense<0.000000e+00> : vector<7x112xf32>
    %290 = tpu.matmul %287, %289, %cst_387 {dimension_numbers = #tpu.dot_dimension_numbers<[1], [0], [0], [1], [0, 0, 1, 1], [], []>} : vector<7x16xbf16>, vector<16x112xbf16>, vector<7x112xf32> -> vector<7x112xf32>
    %291 = arith.addf %285, %290 : vector<7x112xf32>
    %c168_388 = arith.constant 168 : index
    %c0_389 = arith.constant 0 : index
    %292 = vector.load %arg24[%c168_388, %c0_389] : memref<196x24xf32, #tpu.memory_space<vmem>>, vector<7x16xf32>
    %293 = arith.truncf %292 : vector<7x16xf32> to vector<7x16xbf16>
    %c3_390 = arith.constant 3 : index
    %c3_391 = arith.constant 3 : index
    %c0_392 = arith.constant 0 : index
    %c0_393 = arith.constant 0 : index
    %294 = vector.load %arg9[%c3_390, %c3_391, %c0_392, %c0_393] : memref<4x7x16x112xbf16, #tpu.memory_space<vmem>>, vector<1x1x16x112xbf16>
    %295 = vector.shape_cast %294 : vector<1x1x16x112xbf16> to vector<16x112xbf16>
    %cst_394 = arith.constant dense<0.000000e+00> : vector<7x112xf32>
    %296 = tpu.matmul %293, %295, %cst_394 {dimension_numbers = #tpu.dot_dimension_numbers<[1], [0], [0], [1], [0, 0, 1, 1], [], []>} : vector<7x16xbf16>, vector<16x112xbf16>, vector<7x112xf32> -> vector<7x112xf32>
    %297 = arith.addf %291, %296 : vector<7x112xf32>
    %c175_395 = arith.constant 175 : index
    %c0_396 = arith.constant 0 : index
    %298 = vector.load %arg24[%c175_395, %c0_396] : memref<196x24xf32, #tpu.memory_space<vmem>>, vector<7x16xf32>
    %299 = arith.truncf %298 : vector<7x16xf32> to vector<7x16xbf16>
    %c3_397 = arith.constant 3 : index
    %c4_398 = arith.constant 4 : index
    %c0_399 = arith.constant 0 : index
    %c0_400 = arith.constant 0 : index
    %300 = vector.load %arg9[%c3_397, %c4_398, %c0_399, %c0_400] : memref<4x7x16x112xbf16, #tpu.memory_space<vmem>>, vector<1x1x16x112xbf16>
    %301 = vector.shape_cast %300 : vector<1x1x16x112xbf16> to vector<16x112xbf16>
    %cst_401 = arith.constant dense<0.000000e+00> : vector<7x112xf32>
    %302 = tpu.matmul %299, %301, %cst_401 {dimension_numbers = #tpu.dot_dimension_numbers<[1], [0], [0], [1], [0, 0, 1, 1], [], []>} : vector<7x16xbf16>, vector<16x112xbf16>, vector<7x112xf32> -> vector<7x112xf32>
    %303 = arith.addf %297, %302 : vector<7x112xf32>
    %c182_402 = arith.constant 182 : index
    %c0_403 = arith.constant 0 : index
    %304 = vector.load %arg24[%c182_402, %c0_403] : memref<196x24xf32, #tpu.memory_space<vmem>>, vector<7x16xf32>
    %305 = arith.truncf %304 : vector<7x16xf32> to vector<7x16xbf16>
    %c3_404 = arith.constant 3 : index
    %c5_405 = arith.constant 5 : index
    %c0_406 = arith.constant 0 : index
    %c0_407 = arith.constant 0 : index
    %306 = vector.load %arg9[%c3_404, %c5_405, %c0_406, %c0_407] : memref<4x7x16x112xbf16, #tpu.memory_space<vmem>>, vector<1x1x16x112xbf16>
    %307 = vector.shape_cast %306 : vector<1x1x16x112xbf16> to vector<16x112xbf16>
    %cst_408 = arith.constant dense<0.000000e+00> : vector<7x112xf32>
    %308 = tpu.matmul %305, %307, %cst_408 {dimension_numbers = #tpu.dot_dimension_numbers<[1], [0], [0], [1], [0, 0, 1, 1], [], []>} : vector<7x16xbf16>, vector<16x112xbf16>, vector<7x112xf32> -> vector<7x112xf32>
    %309 = arith.addf %303, %308 : vector<7x112xf32>
    %c189_409 = arith.constant 189 : index
    %c0_410 = arith.constant 0 : index
    %310 = vector.load %arg24[%c189_409, %c0_410] : memref<196x24xf32, #tpu.memory_space<vmem>>, vector<7x16xf32>
    %311 = arith.truncf %310 : vector<7x16xf32> to vector<7x16xbf16>
    %c3_411 = arith.constant 3 : index
    %c6_412 = arith.constant 6 : index
    %c0_413 = arith.constant 0 : index
    %c0_414 = arith.constant 0 : index
    %312 = vector.load %arg9[%c3_411, %c6_412, %c0_413, %c0_414] : memref<4x7x16x112xbf16, #tpu.memory_space<vmem>>, vector<1x1x16x112xbf16>
    %313 = vector.shape_cast %312 : vector<1x1x16x112xbf16> to vector<16x112xbf16>
    %cst_415 = arith.constant dense<0.000000e+00> : vector<7x112xf32>
    %314 = tpu.matmul %311, %313, %cst_415 {dimension_numbers = #tpu.dot_dimension_numbers<[1], [0], [0], [1], [0, 0, 1, 1], [], []>} : vector<7x16xbf16>, vector<16x112xbf16>, vector<7x112xf32> -> vector<7x112xf32>
    %315 = arith.addf %309, %314 : vector<7x112xf32>
    %c0_416 = arith.constant 0 : index
    %c0_417 = arith.constant 0 : index
    %316 = vector.load %arg25[%c0_416, %c0_417] : memref<7x112xf32, #tpu.memory_space<vmem>>, vector<7x112xf32>
    tpu.vector_store %arg25[%c0_416, %c0_417], %315 {strides = array<i32>} : memref<7x112xf32, #tpu.memory_space<vmem>>, vector<7x112xf32>,
    %c0_418 = arith.constant 0 : index
    %c0_419 = arith.constant 0 : index
    %317 = vector.load %arg25[%c0_418, %c0_419] : memref<7x112xf32, #tpu.memory_space<vmem>>, vector<7x16xf32>
    %c147_420 = arith.constant 147 : index
    %c0_421 = arith.constant 0 : index
    %318 = vector.load %arg26[%c147_420, %c0_421] : memref<196x32xf32, #tpu.memory_space<vmem>>, vector<7x16xf32>
    tpu.vector_store %arg26[%c147_420, %c0_421], %317 {strides = array<i32>} : memref<196x32xf32, #tpu.memory_space<vmem>>, vector<7x16xf32>,
    %c0_422 = arith.constant 0 : index
    %c16_423 = arith.constant 16 : index
    %319 = vector.load %arg25[%c0_422, %c16_423] : memref<7x112xf32, #tpu.memory_space<vmem>>, vector<7x16xf32>
    %c154_424 = arith.constant 154 : index
    %c0_425 = arith.constant 0 : index
    %320 = vector.load %arg26[%c154_424, %c0_425] : memref<196x32xf32, #tpu.memory_space<vmem>>, vector<7x16xf32>
    tpu.vector_store %arg26[%c154_424, %c0_425], %319 {strides = array<i32>} : memref<196x32xf32, #tpu.memory_space<vmem>>, vector<7x16xf32>,
    %c0_426 = arith.constant 0 : index
    %c32_427 = arith.constant 32 : index
    %321 = vector.load %arg25[%c0_426, %c32_427] : memref<7x112xf32, #tpu.memory_space<vmem>>, vector<7x16xf32>
    %c161_428 = arith.constant 161 : index
    %c0_429 = arith.constant 0 : index
    %322 = vector.load %arg26[%c161_428, %c0_429] : memref<196x32xf32, #tpu.memory_space<vmem>>, vector<7x16xf32>
    tpu.vector_store %arg26[%c161_428, %c0_429], %321 {strides = array<i32>} : memref<196x32xf32, #tpu.memory_space<vmem>>, vector<7x16xf32>,
    %c0_430 = arith.constant 0 : index
    %c48_431 = arith.constant 48 : index
    %323 = vector.load %arg25[%c0_430, %c48_431] : memref<7x112xf32, #tpu.memory_space<vmem>>, vector<7x16xf32>
    %c168_432 = arith.constant 168 : index
    %c0_433 = arith.constant 0 : index
    %324 = vector.load %arg26[%c168_432, %c0_433] : memref<196x32xf32, #tpu.memory_space<vmem>>, vector<7x16xf32>
    tpu.vector_store %arg26[%c168_432, %c0_433], %323 {strides = array<i32>} : memref<196x32xf32, #tpu.memory_space<vmem>>, vector<7x16xf32>,
    %c0_434 = arith.constant 0 : index
    %c64_435 = arith.constant 64 : index
    %325 = vector.load %arg25[%c0_434, %c64_435] : memref<7x112xf32, #tpu.memory_space<vmem>>, vector<7x16xf32>
    %c175_436 = arith.constant 175 : index
    %c0_437 = arith.constant 0 : index
    %326 = vector.load %arg26[%c175_436, %c0_437] : memref<196x32xf32, #tpu.memory_space<vmem>>, vector<7x16xf32>
    tpu.vector_store %arg26[%c175_436, %c0_437], %325 {strides = array<i32>} : memref<196x32xf32, #tpu.memory_space<vmem>>, vector<7x16xf32>,
    %c0_438 = arith.constant 0 : index
    %c80_439 = arith.constant 80 : index
    %327 = vector.load %arg25[%c0_438, %c80_439] : memref<7x112xf32, #tpu.memory_space<vmem>>, vector<7x16xf32>
    %c182_440 = arith.constant 182 : index
    %c0_441 = arith.constant 0 : index
    %328 = vector.load %arg26[%c182_440, %c0_441] : memref<196x32xf32, #tpu.memory_space<vmem>>, vector<7x16xf32>
    tpu.vector_store %arg26[%c182_440, %c0_441], %327 {strides = array<i32>} : memref<196x32xf32, #tpu.memory_space<vmem>>, vector<7x16xf32>,
    %c0_442 = arith.constant 0 : index
    %c96_443 = arith.constant 96 : index
    %329 = vector.load %arg25[%c0_442, %c96_443] : memref<7x112xf32, #tpu.memory_space<vmem>>, vector<7x16xf32>
    %c189_444 = arith.constant 189 : index
    %c0_445 = arith.constant 0 : index
    %330 = vector.load %arg26[%c189_444, %c0_445] : memref<196x32xf32, #tpu.memory_space<vmem>>, vector<7x16xf32>
    tpu.vector_store %arg26[%c189_444, %c0_445], %329 {strides = array<i32>} : memref<196x32xf32, #tpu.memory_space<vmem>>, vector<7x16xf32>,
    %c0_446 = arith.constant 0 : index
    %c0_447 = arith.constant 0 : index
    %331 = vector.load %arg26[%c0_446, %c0_447] : memref<196x32xf32, #tpu.memory_space<vmem>>, vector<196x16xf32>
    %332 = arith.truncf %331 : vector<196x16xf32> to vector<196x16xbf16>
    %c0_448 = arith.constant 0 : index
    %c0_449 = arith.constant 0 : index
    %333 = vector.load %arg10[%c0_448, %c0_449] : memref<512x196xbf16, #tpu.memory_space<vmem>>, vector<512x196xbf16>
    %cst_450 = arith.constant dense<0.000000e+00> : vector<512x16xf32>
    %334 = tpu.matmul %333, %332, %cst_450 {dimension_numbers = #tpu.dot_dimension_numbers<[1], [0], [0], [1], [0, 0, 1, 1], [], []>} : vector<512x196xbf16>, vector<196x16xbf16>, vector<512x16xf32> -> vector<512x16xf32>
    %c0_451 = arith.constant 0 : index
    %c0_452 = arith.constant 0 : index
    %335 = vector.load %arg11[%c0_451, %c0_452] : memref<1x16xf32, #tpu.memory_space<vmem>>, vector<1x16xf32>
    %336 = vector.broadcast %335 : vector<1x16xf32> to vector<512x16xf32>
    %337 = arith.addf %334, %336 : vector<512x16xf32>
    %cst_453 = arith.constant 0.000000e+00 : f32
    %338 = vector.broadcast %cst_453 : f32 to vector<512x16xf32>
    %339 = arith.maximumf %337, %338 : vector<512x16xf32>
    %c0_454 = arith.constant 0 : index
    %c0_455 = arith.constant 0 : index
    %340 = vector.load %arg12[%c0_454, %c0_455] : memref<18x512xbf16, #tpu.memory_space<vmem>>, vector<18x512xbf16>
    %341 = arith.truncf %339 : vector<512x16xf32> to vector<512x16xbf16>
    %cst_456 = arith.constant dense<0.000000e+00> : vector<18x16xf32>
    %342 = tpu.matmul %340, %341, %cst_456 {dimension_numbers = #tpu.dot_dimension_numbers<[1], [0], [0], [1], [0, 0, 1, 1], [], []>} : vector<18x512xbf16>, vector<512x16xbf16>, vector<18x16xf32> -> vector<18x16xf32>
    %c0_457 = arith.constant 0 : index
    %c0_458 = arith.constant 0 : index
    %343 = vector.load %arg24[%c0_457, %c0_458] : memref<196x24xf32, #tpu.memory_space<vmem>>, vector<18x16xf32>
    tpu.vector_store %arg24[%c0_457, %c0_458], %342 {strides = array<i32>} : memref<196x24xf32, #tpu.memory_space<vmem>>, vector<18x16xf32>,
    %c0_459 = arith.constant 0 : index
    %c0_460 = arith.constant 0 : index
    %344 = vector.load %arg24[%c0_459, %c0_460] : memref<196x24xf32, #tpu.memory_space<vmem>>, vector<3x16xf32>
    %345 = arith.truncf %344 : vector<3x16xf32> to vector<3x16xbf16>
    %c0_461 = arith.constant 0 : index
    %c0_462 = arith.constant 0 : index
    %c0_463 = arith.constant 0 : index
    %c0_464 = arith.constant 0 : index
    %346 = vector.load %arg13[%c0_461, %c0_462, %c0_463, %c0_464] : memref<2x3x16x72xbf16, #tpu.memory_space<vmem>>, vector<1x1x16x72xbf16>
    %347 = vector.shape_cast %346 : vector<1x1x16x72xbf16> to vector<16x72xbf16>
    %cst_465 = arith.constant dense<0.000000e+00> : vector<3x72xf32>
    %348 = tpu.matmul %345, %347, %cst_465 {dimension_numbers = #tpu.dot_dimension_numbers<[1], [0], [0], [1], [0, 0, 1, 1], [], []>} : vector<3x16xbf16>, vector<16x72xbf16>, vector<3x72xf32> -> vector<3x72xf32>
    %c3_466 = arith.constant 3 : index
    %c0_467 = arith.constant 0 : index
    %349 = vector.load %arg24[%c3_466, %c0_467] : memref<196x24xf32, #tpu.memory_space<vmem>>, vector<3x16xf32>
    %350 = arith.truncf %349 : vector<3x16xf32> to vector<3x16xbf16>
    %c0_468 = arith.constant 0 : index
    %c1_469 = arith.constant 1 : index
    %c0_470 = arith.constant 0 : index
    %c0_471 = arith.constant 0 : index
    %351 = vector.load %arg13[%c0_468, %c1_469, %c0_470, %c0_471] : memref<2x3x16x72xbf16, #tpu.memory_space<vmem>>, vector<1x1x16x72xbf16>
    %352 = vector.shape_cast %351 : vector<1x1x16x72xbf16> to vector<16x72xbf16>
    %cst_472 = arith.constant dense<0.000000e+00> : vector<3x72xf32>
    %353 = tpu.matmul %350, %352, %cst_472 {dimension_numbers = #tpu.dot_dimension_numbers<[1], [0], [0], [1], [0, 0, 1, 1], [], []>} : vector<3x16xbf16>, vector<16x72xbf16>, vector<3x72xf32> -> vector<3x72xf32>
    %354 = arith.addf %348, %353 : vector<3x72xf32>
    %c6_473 = arith.constant 6 : index
    %c0_474 = arith.constant 0 : index
    %355 = vector.load %arg24[%c6_473, %c0_474] : memref<196x24xf32, #tpu.memory_space<vmem>>, vector<3x16xf32>
    %356 = arith.truncf %355 : vector<3x16xf32> to vector<3x16xbf16>
    %c0_475 = arith.constant 0 : index
    %c2_476 = arith.constant 2 : index
    %c0_477 = arith.constant 0 : index
    %c0_478 = arith.constant 0 : index
    %357 = vector.load %arg13[%c0_475, %c2_476, %c0_477, %c0_478] : memref<2x3x16x72xbf16, #tpu.memory_space<vmem>>, vector<1x1x16x72xbf16>
    %358 = vector.shape_cast %357 : vector<1x1x16x72xbf16> to vector<16x72xbf16>
    %cst_479 = arith.constant dense<0.000000e+00> : vector<3x72xf32>
    %359 = tpu.matmul %356, %358, %cst_479 {dimension_numbers = #tpu.dot_dimension_numbers<[1], [0], [0], [1], [0, 0, 1, 1], [], []>} : vector<3x16xbf16>, vector<16x72xbf16>, vector<3x72xf32> -> vector<3x72xf32>
    %360 = arith.addf %354, %359 : vector<3x72xf32>
    %c0_480 = arith.constant 0 : index
    %c0_481 = arith.constant 0 : index
    %361 = vector.load %arg25[%c0_480, %c0_481] : memref<7x112xf32, #tpu.memory_space<vmem>>, vector<3x72xf32>
    tpu.vector_store %arg25[%c0_480, %c0_481], %360 {strides = array<i32>} : memref<7x112xf32, #tpu.memory_space<vmem>>, vector<3x72xf32>,
    %c0_482 = arith.constant 0 : index
    %c0_483 = arith.constant 0 : index
    %362 = vector.load %arg25[%c0_482, %c0_483] : memref<7x112xf32, #tpu.memory_space<vmem>>, vector<3x24xf32>
    %c0_484 = arith.constant 0 : index
    %c0_485 = arith.constant 0 : index
    %363 = vector.load %arg26[%c0_484, %c0_485] : memref<196x32xf32, #tpu.memory_space<vmem>>, vector<3x24xf32>
    tpu.vector_store %arg26[%c0_484, %c0_485], %362 {strides = array<i32>} : memref<196x32xf32, #tpu.memory_space<vmem>>, vector<3x24xf32>,
    %c0_486 = arith.constant 0 : index
    %c24 = arith.constant 24 : index
    %364 = vector.load %arg25[%c0_486, %c24] : memref<7x112xf32, #tpu.memory_space<vmem>>, vector<3x24xf32>
    %c3_487 = arith.constant 3 : index
    %c0_488 = arith.constant 0 : index
    %365 = vector.load %arg26[%c3_487, %c0_488] : memref<196x32xf32, #tpu.memory_space<vmem>>, vector<3x24xf32>
    tpu.vector_store %arg26[%c3_487, %c0_488], %364 {strides = array<i32>} : memref<196x32xf32, #tpu.memory_space<vmem>>, vector<3x24xf32>,
    %c0_489 = arith.constant 0 : index
    %c48_490 = arith.constant 48 : index
    %366 = vector.load %arg25[%c0_489, %c48_490] : memref<7x112xf32, #tpu.memory_space<vmem>>, vector<3x24xf32>
    %c6_491 = arith.constant 6 : index
    %c0_492 = arith.constant 0 : index
    %367 = vector.load %arg26[%c6_491, %c0_492] : memref<196x32xf32, #tpu.memory_space<vmem>>, vector<3x24xf32>
    tpu.vector_store %arg26[%c6_491, %c0_492], %366 {strides = array<i32>} : memref<196x32xf32, #tpu.memory_space<vmem>>, vector<3x24xf32>,
    %c9 = arith.constant 9 : index
    %c0_493 = arith.constant 0 : index
    %368 = vector.load %arg24[%c9, %c0_493] : memref<196x24xf32, #tpu.memory_space<vmem>>, vector<3x16xf32>
    %369 = arith.truncf %368 : vector<3x16xf32> to vector<3x16xbf16>
    %c1_494 = arith.constant 1 : index
    %c0_495 = arith.constant 0 : index
    %c0_496 = arith.constant 0 : index
    %c0_497 = arith.constant 0 : index
    %370 = vector.load %arg13[%c1_494, %c0_495, %c0_496, %c0_497] : memref<2x3x16x72xbf16, #tpu.memory_space<vmem>>, vector<1x1x16x72xbf16>
    %371 = vector.shape_cast %370 : vector<1x1x16x72xbf16> to vector<16x72xbf16>
    %cst_498 = arith.constant dense<0.000000e+00> : vector<3x72xf32>
    %372 = tpu.matmul %369, %371, %cst_498 {dimension_numbers = #tpu.dot_dimension_numbers<[1], [0], [0], [1], [0, 0, 1, 1], [], []>} : vector<3x16xbf16>, vector<16x72xbf16>, vector<3x72xf32> -> vector<3x72xf32>
    %c12 = arith.constant 12 : index
    %c0_499 = arith.constant 0 : index
    %373 = vector.load %arg24[%c12, %c0_499] : memref<196x24xf32, #tpu.memory_space<vmem>>, vector<3x16xf32>
    %374 = arith.truncf %373 : vector<3x16xf32> to vector<3x16xbf16>
    %c1_500 = arith.constant 1 : index
    %c1_501 = arith.constant 1 : index
    %c0_502 = arith.constant 0 : index
    %c0_503 = arith.constant 0 : index
    %375 = vector.load %arg13[%c1_500, %c1_501, %c0_502, %c0_503] : memref<2x3x16x72xbf16, #tpu.memory_space<vmem>>, vector<1x1x16x72xbf16>
    %376 = vector.shape_cast %375 : vector<1x1x16x72xbf16> to vector<16x72xbf16>
    %cst_504 = arith.constant dense<0.000000e+00> : vector<3x72xf32>
    %377 = tpu.matmul %374, %376, %cst_504 {dimension_numbers = #tpu.dot_dimension_numbers<[1], [0], [0], [1], [0, 0, 1, 1], [], []>} : vector<3x16xbf16>, vector<16x72xbf16>, vector<3x72xf32> -> vector<3x72xf32>
    %378 = arith.addf %372, %377 : vector<3x72xf32>
    %c15 = arith.constant 15 : index
    %c0_505 = arith.constant 0 : index
    %379 = vector.load %arg24[%c15, %c0_505] : memref<196x24xf32, #tpu.memory_space<vmem>>, vector<3x16xf32>
    %380 = arith.truncf %379 : vector<3x16xf32> to vector<3x16xbf16>
    %c1_506 = arith.constant 1 : index
    %c2_507 = arith.constant 2 : index
    %c0_508 = arith.constant 0 : index
    %c0_509 = arith.constant 0 : index
    %381 = vector.load %arg13[%c1_506, %c2_507, %c0_508, %c0_509] : memref<2x3x16x72xbf16, #tpu.memory_space<vmem>>, vector<1x1x16x72xbf16>
    %382 = vector.shape_cast %381 : vector<1x1x16x72xbf16> to vector<16x72xbf16>
    %cst_510 = arith.constant dense<0.000000e+00> : vector<3x72xf32>
    %383 = tpu.matmul %380, %382, %cst_510 {dimension_numbers = #tpu.dot_dimension_numbers<[1], [0], [0], [1], [0, 0, 1, 1], [], []>} : vector<3x16xbf16>, vector<16x72xbf16>, vector<3x72xf32> -> vector<3x72xf32>
    %384 = arith.addf %378, %383 : vector<3x72xf32>
    %c0_511 = arith.constant 0 : index
    %c0_512 = arith.constant 0 : index
    %385 = vector.load %arg25[%c0_511, %c0_512] : memref<7x112xf32, #tpu.memory_space<vmem>>, vector<3x72xf32>
    tpu.vector_store %arg25[%c0_511, %c0_512], %384 {strides = array<i32>} : memref<7x112xf32, #tpu.memory_space<vmem>>, vector<3x72xf32>,
    %c0_513 = arith.constant 0 : index
    %c0_514 = arith.constant 0 : index
    %386 = vector.load %arg25[%c0_513, %c0_514] : memref<7x112xf32, #tpu.memory_space<vmem>>, vector<3x24xf32>
    %c9_515 = arith.constant 9 : index
    %c0_516 = arith.constant 0 : index
    %387 = vector.load %arg26[%c9_515, %c0_516] : memref<196x32xf32, #tpu.memory_space<vmem>>, vector<3x24xf32>
    tpu.vector_store %arg26[%c9_515, %c0_516], %386 {strides = array<i32>} : memref<196x32xf32, #tpu.memory_space<vmem>>, vector<3x24xf32>,
    %c0_517 = arith.constant 0 : index
    %c24_518 = arith.constant 24 : index
    %388 = vector.load %arg25[%c0_517, %c24_518] : memref<7x112xf32, #tpu.memory_space<vmem>>, vector<3x24xf32>
    %c12_519 = arith.constant 12 : index
    %c0_520 = arith.constant 0 : index
    %389 = vector.load %arg26[%c12_519, %c0_520] : memref<196x32xf32, #tpu.memory_space<vmem>>, vector<3x24xf32>
    tpu.vector_store %arg26[%c12_519, %c0_520], %388 {strides = array<i32>} : memref<196x32xf32, #tpu.memory_space<vmem>>, vector<3x24xf32>,
    %c0_521 = arith.constant 0 : index
    %c48_522 = arith.constant 48 : index
    %390 = vector.load %arg25[%c0_521, %c48_522] : memref<7x112xf32, #tpu.memory_space<vmem>>, vector<3x24xf32>
    %c15_523 = arith.constant 15 : index
    %c0_524 = arith.constant 0 : index
    %391 = vector.load %arg26[%c15_523, %c0_524] : memref<196x32xf32, #tpu.memory_space<vmem>>, vector<3x24xf32>
    tpu.vector_store %arg26[%c15_523, %c0_524], %390 {strides = array<i32>} : memref<196x32xf32, #tpu.memory_space<vmem>>, vector<3x24xf32>,
    %c0_525 = arith.constant 0 : index
    %c0_526 = arith.constant 0 : index
    %392 = vector.load %arg26[%c0_525, %c0_526] : memref<196x32xf32, #tpu.memory_space<vmem>>, vector<18x24xf32>
    %393 = arith.truncf %392 : vector<18x24xf32> to vector<18x24xbf16>
    %c0_527 = arith.constant 0 : index
    %c0_528 = arith.constant 0 : index
    %394 = vector.load %arg14[%c0_527, %c0_528] : memref<64x18xbf16, #tpu.memory_space<vmem>>, vector<64x18xbf16>
    %cst_529 = arith.constant dense<0.000000e+00> : vector<64x24xf32>
    %395 = tpu.matmul %394, %393, %cst_529 {dimension_numbers = #tpu.dot_dimension_numbers<[1], [0], [0], [1], [0, 0, 1, 1], [], []>} : vector<64x18xbf16>, vector<18x24xbf16>, vector<64x24xf32> -> vector<64x24xf32>
    %c0_530 = arith.constant 0 : index
    %c0_531 = arith.constant 0 : index
    %396 = vector.load %arg15[%c0_530, %c0_531] : memref<1x24xf32, #tpu.memory_space<vmem>>, vector<1x24xf32>
    %397 = vector.broadcast %396 : vector<1x24xf32> to vector<64x24xf32>
    %398 = arith.addf %395, %397 : vector<64x24xf32>
    %cst_532 = arith.constant 0.000000e+00 : f32
    %399 = vector.broadcast %cst_532 : f32 to vector<64x24xf32>
    %400 = arith.maximumf %398, %399 : vector<64x24xf32>
    %c0_533 = arith.constant 0 : index
    %c0_534 = arith.constant 0 : index
    %401 = vector.load %arg16[%c0_533, %c0_534] : memref<18x64xbf16, #tpu.memory_space<vmem>>, vector<18x64xbf16>
    %402 = arith.truncf %400 : vector<64x24xf32> to vector<64x24xbf16>
    %cst_535 = arith.constant dense<0.000000e+00> : vector<18x24xf32>
    %403 = tpu.matmul %401, %402, %cst_535 {dimension_numbers = #tpu.dot_dimension_numbers<[1], [0], [0], [1], [0, 0, 1, 1], [], []>} : vector<18x64xbf16>, vector<64x24xbf16>, vector<18x24xf32> -> vector<18x24xf32>
    %c0_536 = arith.constant 0 : index
    %c0_537 = arith.constant 0 : index
    %404 = vector.load %arg24[%c0_536, %c0_537] : memref<196x24xf32, #tpu.memory_space<vmem>>, vector<18x24xf32>
    tpu.vector_store %arg24[%c0_536, %c0_537], %403 {strides = array<i32>} : memref<196x24xf32, #tpu.memory_space<vmem>>, vector<18x24xf32>,
    %c0_538 = arith.constant 0 : index
    %c0_539 = arith.constant 0 : index
    %405 = vector.load %arg24[%c0_538, %c0_539] : memref<196x24xf32, #tpu.memory_space<vmem>>, vector<3x24xf32>
    %406 = arith.truncf %405 : vector<3x24xf32> to vector<3x24xbf16>
    %c0_540 = arith.constant 0 : index
    %c0_541 = arith.constant 0 : index
    %c0_542 = arith.constant 0 : index
    %c0_543 = arith.constant 0 : index
    %407 = vector.load %arg17[%c0_540, %c0_541, %c0_542, %c0_543] : memref<2x3x24x96xbf16, #tpu.memory_space<vmem>>, vector<1x1x24x96xbf16>
    %408 = vector.shape_cast %407 : vector<1x1x24x96xbf16> to vector<24x96xbf16>
    %cst_544 = arith.constant dense<0.000000e+00> : vector<3x96xf32>
    %409 = tpu.matmul %406, %408, %cst_544 {dimension_numbers = #tpu.dot_dimension_numbers<[1], [0], [0], [1], [0, 0, 1, 1], [], []>} : vector<3x24xbf16>, vector<24x96xbf16>, vector<3x96xf32> -> vector<3x96xf32>
    %c3_545 = arith.constant 3 : index
    %c0_546 = arith.constant 0 : index
    %410 = vector.load %arg24[%c3_545, %c0_546] : memref<196x24xf32, #tpu.memory_space<vmem>>, vector<3x24xf32>
    %411 = arith.truncf %410 : vector<3x24xf32> to vector<3x24xbf16>
    %c0_547 = arith.constant 0 : index
    %c1_548 = arith.constant 1 : index
    %c0_549 = arith.constant 0 : index
    %c0_550 = arith.constant 0 : index
    %412 = vector.load %arg17[%c0_547, %c1_548, %c0_549, %c0_550] : memref<2x3x24x96xbf16, #tpu.memory_space<vmem>>, vector<1x1x24x96xbf16>
    %413 = vector.shape_cast %412 : vector<1x1x24x96xbf16> to vector<24x96xbf16>
    %cst_551 = arith.constant dense<0.000000e+00> : vector<3x96xf32>
    %414 = tpu.matmul %411, %413, %cst_551 {dimension_numbers = #tpu.dot_dimension_numbers<[1], [0], [0], [1], [0, 0, 1, 1], [], []>} : vector<3x24xbf16>, vector<24x96xbf16>, vector<3x96xf32> -> vector<3x96xf32>
    %415 = arith.addf %409, %414 : vector<3x96xf32>
    %c6_552 = arith.constant 6 : index
    %c0_553 = arith.constant 0 : index
    %416 = vector.load %arg24[%c6_552, %c0_553] : memref<196x24xf32, #tpu.memory_space<vmem>>, vector<3x24xf32>
    %417 = arith.truncf %416 : vector<3x24xf32> to vector<3x24xbf16>
    %c0_554 = arith.constant 0 : index
    %c2_555 = arith.constant 2 : index
    %c0_556 = arith.constant 0 : index
    %c0_557 = arith.constant 0 : index
    %418 = vector.load %arg17[%c0_554, %c2_555, %c0_556, %c0_557] : memref<2x3x24x96xbf16, #tpu.memory_space<vmem>>, vector<1x1x24x96xbf16>
    %419 = vector.shape_cast %418 : vector<1x1x24x96xbf16> to vector<24x96xbf16>
    %cst_558 = arith.constant dense<0.000000e+00> : vector<3x96xf32>
    %420 = tpu.matmul %417, %419, %cst_558 {dimension_numbers = #tpu.dot_dimension_numbers<[1], [0], [0], [1], [0, 0, 1, 1], [], []>} : vector<3x24xbf16>, vector<24x96xbf16>, vector<3x96xf32> -> vector<3x96xf32>
    %421 = arith.addf %415, %420 : vector<3x96xf32>
    %c0_559 = arith.constant 0 : index
    %c0_560 = arith.constant 0 : index
    %422 = vector.load %arg25[%c0_559, %c0_560] : memref<7x112xf32, #tpu.memory_space<vmem>>, vector<3x96xf32>
    tpu.vector_store %arg25[%c0_559, %c0_560], %421 {strides = array<i32>} : memref<7x112xf32, #tpu.memory_space<vmem>>, vector<3x96xf32>,
    %c0_561 = arith.constant 0 : index
    %c0_562 = arith.constant 0 : index
    %423 = vector.load %arg25[%c0_561, %c0_562] : memref<7x112xf32, #tpu.memory_space<vmem>>, vector<3x32xf32>
    %c0_563 = arith.constant 0 : index
    %c0_564 = arith.constant 0 : index
    %424 = vector.load %arg26[%c0_563, %c0_564] : memref<196x32xf32, #tpu.memory_space<vmem>>, vector<3x32xf32>
    tpu.vector_store %arg26[%c0_563, %c0_564], %423 {strides = array<i32>} : memref<196x32xf32, #tpu.memory_space<vmem>>, vector<3x32xf32>,
    %c0_565 = arith.constant 0 : index
    %c32_566 = arith.constant 32 : index
    %425 = vector.load %arg25[%c0_565, %c32_566] : memref<7x112xf32, #tpu.memory_space<vmem>>, vector<3x32xf32>
    %c3_567 = arith.constant 3 : index
    %c0_568 = arith.constant 0 : index
    %426 = vector.load %arg26[%c3_567, %c0_568] : memref<196x32xf32, #tpu.memory_space<vmem>>, vector<3x32xf32>
    tpu.vector_store %arg26[%c3_567, %c0_568], %425 {strides = array<i32>} : memref<196x32xf32, #tpu.memory_space<vmem>>, vector<3x32xf32>,
    %c0_569 = arith.constant 0 : index
    %c64_570 = arith.constant 64 : index
    %427 = vector.load %arg25[%c0_569, %c64_570] : memref<7x112xf32, #tpu.memory_space<vmem>>, vector<3x32xf32>
    %c6_571 = arith.constant 6 : index
    %c0_572 = arith.constant 0 : index
    %428 = vector.load %arg26[%c6_571, %c0_572] : memref<196x32xf32, #tpu.memory_space<vmem>>, vector<3x32xf32>
    tpu.vector_store %arg26[%c6_571, %c0_572], %427 {strides = array<i32>} : memref<196x32xf32, #tpu.memory_space<vmem>>, vector<3x32xf32>,
    %c9_573 = arith.constant 9 : index
    %c0_574 = arith.constant 0 : index
    %429 = vector.load %arg24[%c9_573, %c0_574] : memref<196x24xf32, #tpu.memory_space<vmem>>, vector<3x24xf32>
    %430 = arith.truncf %429 : vector<3x24xf32> to vector<3x24xbf16>
    %c1_575 = arith.constant 1 : index
    %c0_576 = arith.constant 0 : index
    %c0_577 = arith.constant 0 : index
    %c0_578 = arith.constant 0 : index
    %431 = vector.load %arg17[%c1_575, %c0_576, %c0_577, %c0_578] : memref<2x3x24x96xbf16, #tpu.memory_space<vmem>>, vector<1x1x24x96xbf16>
    %432 = vector.shape_cast %431 : vector<1x1x24x96xbf16> to vector<24x96xbf16>
    %cst_579 = arith.constant dense<0.000000e+00> : vector<3x96xf32>
    %433 = tpu.matmul %430, %432, %cst_579 {dimension_numbers = #tpu.dot_dimension_numbers<[1], [0], [0], [1], [0, 0, 1, 1], [], []>} : vector<3x24xbf16>, vector<24x96xbf16>, vector<3x96xf32> -> vector<3x96xf32>
    %c12_580 = arith.constant 12 : index
    %c0_581 = arith.constant 0 : index
    %434 = vector.load %arg24[%c12_580, %c0_581] : memref<196x24xf32, #tpu.memory_space<vmem>>, vector<3x24xf32>
    %435 = arith.truncf %434 : vector<3x24xf32> to vector<3x24xbf16>
    %c1_582 = arith.constant 1 : index
    %c1_583 = arith.constant 1 : index
    %c0_584 = arith.constant 0 : index
    %c0_585 = arith.constant 0 : index
    %436 = vector.load %arg17[%c1_582, %c1_583, %c0_584, %c0_585] : memref<2x3x24x96xbf16, #tpu.memory_space<vmem>>, vector<1x1x24x96xbf16>
    %437 = vector.shape_cast %436 : vector<1x1x24x96xbf16> to vector<24x96xbf16>
    %cst_586 = arith.constant dense<0.000000e+00> : vector<3x96xf32>
    %438 = tpu.matmul %435, %437, %cst_586 {dimension_numbers = #tpu.dot_dimension_numbers<[1], [0], [0], [1], [0, 0, 1, 1], [], []>} : vector<3x24xbf16>, vector<24x96xbf16>, vector<3x96xf32> -> vector<3x96xf32>
    %439 = arith.addf %433, %438 : vector<3x96xf32>
    %c15_587 = arith.constant 15 : index
    %c0_588 = arith.constant 0 : index
    %440 = vector.load %arg24[%c15_587, %c0_588] : memref<196x24xf32, #tpu.memory_space<vmem>>, vector<3x24xf32>
    %441 = arith.truncf %440 : vector<3x24xf32> to vector<3x24xbf16>
    %c1_589 = arith.constant 1 : index
    %c2_590 = arith.constant 2 : index
    %c0_591 = arith.constant 0 : index
    %c0_592 = arith.constant 0 : index
    %442 = vector.load %arg17[%c1_589, %c2_590, %c0_591, %c0_592] : memref<2x3x24x96xbf16, #tpu.memory_space<vmem>>, vector<1x1x24x96xbf16>
    %443 = vector.shape_cast %442 : vector<1x1x24x96xbf16> to vector<24x96xbf16>
    %cst_593 = arith.constant dense<0.000000e+00> : vector<3x96xf32>
    %444 = tpu.matmul %441, %443, %cst_593 {dimension_numbers = #tpu.dot_dimension_numbers<[1], [0], [0], [1], [0, 0, 1, 1], [], []>} : vector<3x24xbf16>, vector<24x96xbf16>, vector<3x96xf32> -> vector<3x96xf32>
    %445 = arith.addf %439, %444 : vector<3x96xf32>
    %c0_594 = arith.constant 0 : index
    %c0_595 = arith.constant 0 : index
    %446 = vector.load %arg25[%c0_594, %c0_595] : memref<7x112xf32, #tpu.memory_space<vmem>>, vector<3x96xf32>
    tpu.vector_store %arg25[%c0_594, %c0_595], %445 {strides = array<i32>} : memref<7x112xf32, #tpu.memory_space<vmem>>, vector<3x96xf32>,
    %c0_596 = arith.constant 0 : index
    %c0_597 = arith.constant 0 : index
    %447 = vector.load %arg25[%c0_596, %c0_597] : memref<7x112xf32, #tpu.memory_space<vmem>>, vector<3x32xf32>
    %c9_598 = arith.constant 9 : index
    %c0_599 = arith.constant 0 : index
    %448 = vector.load %arg26[%c9_598, %c0_599] : memref<196x32xf32, #tpu.memory_space<vmem>>, vector<3x32xf32>
    tpu.vector_store %arg26[%c9_598, %c0_599], %447 {strides = array<i32>} : memref<196x32xf32, #tpu.memory_space<vmem>>, vector<3x32xf32>,
    %c0_600 = arith.constant 0 : index
    %c32_601 = arith.constant 32 : index
    %449 = vector.load %arg25[%c0_600, %c32_601] : memref<7x112xf32, #tpu.memory_space<vmem>>, vector<3x32xf32>
    %c12_602 = arith.constant 12 : index
    %c0_603 = arith.constant 0 : index
    %450 = vector.load %arg26[%c12_602, %c0_603] : memref<196x32xf32, #tpu.memory_space<vmem>>, vector<3x32xf32>
    tpu.vector_store %arg26[%c12_602, %c0_603], %449 {strides = array<i32>} : memref<196x32xf32, #tpu.memory_space<vmem>>, vector<3x32xf32>,
    %c0_604 = arith.constant 0 : index
    %c64_605 = arith.constant 64 : index
    %451 = vector.load %arg25[%c0_604, %c64_605] : memref<7x112xf32, #tpu.memory_space<vmem>>, vector<3x32xf32>
    %c15_606 = arith.constant 15 : index
    %c0_607 = arith.constant 0 : index
    %452 = vector.load %arg26[%c15_606, %c0_607] : memref<196x32xf32, #tpu.memory_space<vmem>>, vector<3x32xf32>
    tpu.vector_store %arg26[%c15_606, %c0_607], %451 {strides = array<i32>} : memref<196x32xf32, #tpu.memory_space<vmem>>, vector<3x32xf32>,
    %c0_608 = arith.constant 0 : index
    %c0_609 = arith.constant 0 : index
    %453 = vector.load %arg26[%c0_608, %c0_609] : memref<196x32xf32, #tpu.memory_space<vmem>>, vector<18x32xf32>
    %454 = arith.truncf %453 : vector<18x32xf32> to vector<18x32xbf16>
    %c0_610 = arith.constant 0 : index
    %c0_611 = arith.constant 0 : index
    %455 = vector.load %arg18[%c0_610, %c0_611] : memref<64x18xbf16, #tpu.memory_space<vmem>>, vector<64x18xbf16>
    %cst_612 = arith.constant dense<0.000000e+00> : vector<64x32xf32>
    %456 = tpu.matmul %455, %454, %cst_612 {dimension_numbers = #tpu.dot_dimension_numbers<[1], [0], [0], [1], [0, 0, 1, 1], [], []>} : vector<64x18xbf16>, vector<18x32xbf16>, vector<64x32xf32> -> vector<64x32xf32>
    %c0_613 = arith.constant 0 : index
    %c0_614 = arith.constant 0 : index
    %457 = vector.load %arg19[%c0_613, %c0_614] : memref<1x32xf32, #tpu.memory_space<vmem>>, vector<1x32xf32>
    %458 = vector.broadcast %457 : vector<1x32xf32> to vector<64x32xf32>
    %459 = arith.addf %456, %458 : vector<64x32xf32>
    %cst_615 = arith.constant 0.000000e+00 : f32
    %460 = vector.broadcast %cst_615 : f32 to vector<64x32xf32>
    %461 = arith.maximumf %459, %460 : vector<64x32xf32>
    %c0_616 = arith.constant 0 : index
    %c0_617 = arith.constant 0 : index
    %462 = vector.load %arg21[%c0_616, %c0_617] : memref<32x2xf32, #tpu.memory_space<vmem>>, vector<32x2xf32>
    %cst_618 = arith.constant dense<0.000000e+00> : vector<64x2xf32>
    %463 = tpu.matmul %461, %462, %cst_618 {dimension_numbers = #tpu.dot_dimension_numbers<[1], [0], [0], [1], [0, 0, 1, 1], [], []>} : vector<64x32xf32>, vector<32x2xf32>, vector<64x2xf32> -> vector<64x2xf32>
    %c0_619 = arith.constant 0 : index
    %c0_620 = arith.constant 0 : index
    %464 = vector.load %arg20[%c0_619, %c0_620] : memref<64x1xf32, #tpu.memory_space<vmem>>, vector<64x1xf32>
    %465 = vector.broadcast %464 : vector<64x1xf32> to vector<64x2xf32>
    %466 = arith.mulf %463, %465 : vector<64x2xf32>
    %cst_621 = arith.constant dense<0.000000e+00> : vector<2xf32>
    %467 = vector.multi_reduction <add>, %466, %cst_621 [0] : vector<64x2xf32> to vector<2xf32>
    %468 = vector.shape_cast %467 : vector<2xf32> to vector<1x2xf32>
    %c0_622 = arith.constant 0 : index
    %c0_623 = arith.constant 0 : index
    %469 = vector.load %arg22[%c0_622, %c0_623] : memref<1x2xf32, #tpu.memory_space<vmem>>, vector<1x2xf32>
    %470 = arith.addf %468, %469 : vector<1x2xf32>
    %cst_624 = arith.constant dense<0xFF800000> : vector<1xf32>
    %471 = vector.multi_reduction <maximumf>, %470, %cst_624 [1] : vector<1x2xf32> to vector<1xf32>
    %472 = vector.shape_cast %471 : vector<1xf32> to vector<1x1xf32>
    %473 = vector.broadcast %472 : vector<1x1xf32> to vector<1x2xf32>
    %474 = arith.subf %470, %473 : vector<1x2xf32>
    %475 = math.exp %474 : vector<1x2xf32>
    %cst_625 = arith.constant dense<0.000000e+00> : vector<1xf32>
    %476 = vector.multi_reduction <add>, %475, %cst_625 [1] : vector<1x2xf32> to vector<1xf32>
    %477 = vector.shape_cast %476 : vector<1xf32> to vector<1x1xf32>
    %478 = math.log %477 : vector<1x1xf32>
    %479 = vector.broadcast %478 : vector<1x1xf32> to vector<1x2xf32>
    %480 = arith.subf %474, %479 : vector<1x2xf32>
    %c0_626 = arith.constant 0 : index
    %c0_627 = arith.constant 0 : index
    %c0_628 = arith.constant 0 : index
    %481 = vector.load %arg23[%c0_626, %c0_627, %c0_628] : memref<1x1x2xf32, #tpu.memory_space<vmem>>, vector<1x1x2xf32>
    %482 = vector.shape_cast %481 : vector<1x1x2xf32> to vector<1x2xf32>
    %483 = vector.shape_cast %480 : vector<1x2xf32> to vector<1x1x2xf32>
    tpu.vector_store %arg23[%c0_626, %c0_627, %c0_628], %483 {strides = array<i32>} : memref<1x1x2xf32, #tpu.memory_space<vmem>>, vector<1x1x2xf32>,
    return
  }
  func.func @transform_0(%arg0: i32) -> (i32, i32, i32) {
    %c0_i32 = arith.constant 0 : i32
    %c0_i32_0 = arith.constant 0 : i32
    %c0_i32_1 = arith.constant 0 : i32
    return %arg0, %c0_i32, %c0_i32_0 : i32, i32, i32
  }
  func.func @transform_1(%arg0: i32) -> (i32, i32) {
    %c0_i32 = arith.constant 0 : i32
    %c0_i32_0 = arith.constant 0 : i32
    %c0_i32_1 = arith.constant 0 : i32
    return %c0_i32, %c0_i32_0 : i32, i32
  }
  func.func @transform_2(%arg0: i32) -> (i32, i32) {
    %c0_i32 = arith.constant 0 : i32
    %c0_i32_0 = arith.constant 0 : i32
    %c0_i32_1 = arith.constant 0 : i32
    return %c0_i32, %c0_i32_0 : i32, i32
  }
  func.func @transform_3(%arg0: i32) -> (i32, i32) {
    %c0_i32 = arith.constant 0 : i32
    %c0_i32_0 = arith.constant 0 : i32
    %c0_i32_1 = arith.constant 0 : i32
    return %c0_i32, %c0_i32_0 : i32, i32
  }
  func.func @transform_4(%arg0: i32) -> (i32, i32, i32) {
    %c0_i32 = arith.constant 0 : i32
    %c0_i32_0 = arith.constant 0 : i32
    %c0_i32_1 = arith.constant 0 : i32
    %c0_i32_2 = arith.constant 0 : i32
    return %c0_i32, %c0_i32_0, %c0_i32_1 : i32, i32, i32
  }
  func.func @transform_5(%arg0: i32) -> (i32, i32) {
    %c0_i32 = arith.constant 0 : i32
    %c0_i32_0 = arith.constant 0 : i32
    %c0_i32_1 = arith.constant 0 : i32
    return %c0_i32, %c0_i32_0 : i32, i32
  }
  func.func @transform_6(%arg0: i32) -> (i32, i32) {
    %c0_i32 = arith.constant 0 : i32
    %c0_i32_0 = arith.constant 0 : i32
    %c0_i32_1 = arith.constant 0 : i32
    return %c0_i32, %c0_i32_0 : i32, i32
  }
  func.func @transform_7(%arg0: i32) -> (i32, i32) {
    %c0_i32 = arith.constant 0 : i32
    %c0_i32_0 = arith.constant 0 : i32
    %c0_i32_1 = arith.constant 0 : i32
    return %c0_i32, %c0_i32_0 : i32, i32
  }
  func.func @transform_8(%arg0: i32) -> (i32, i32, i32, i32) {
    %c0_i32 = arith.constant 0 : i32
    %c0_i32_0 = arith.constant 0 : i32
    %c0_i32_1 = arith.constant 0 : i32
    %c0_i32_2 = arith.constant 0 : i32
    %c0_i32_3 = arith.constant 0 : i32
    return %c0_i32, %c0_i32_0, %c0_i32_1, %c0_i32_2 : i32, i32, i32, i32
  }
  func.func @transform_9(%arg0: i32) -> (i32, i32) {
    %c0_i32 = arith.constant 0 : i32
    %c0_i32_0 = arith.constant 0 : i32
    %c0_i32_1 = arith.constant 0 : i32
    return %c0_i32, %c0_i32_0 : i32, i32
  }
  func.func @transform_10(%arg0: i32) -> (i32, i32) {
    %c0_i32 = arith.constant 0 : i32
    %c0_i32_0 = arith.constant 0 : i32
    %c0_i32_1 = arith.constant 0 : i32
    return %c0_i32, %c0_i32_0 : i32, i32
  }
  func.func @transform_11(%arg0: i32) -> (i32, i32) {
    %c0_i32 = arith.constant 0 : i32
    %c0_i32_0 = arith.constant 0 : i32
    %c0_i32_1 = arith.constant 0 : i32
    return %c0_i32, %c0_i32_0 : i32, i32
  }
  func.func @transform_12(%arg0: i32) -> (i32, i32, i32, i32) {
    %c0_i32 = arith.constant 0 : i32
    %c0_i32_0 = arith.constant 0 : i32
    %c0_i32_1 = arith.constant 0 : i32
    %c0_i32_2 = arith.constant 0 : i32
    %c0_i32_3 = arith.constant 0 : i32
    return %c0_i32, %c0_i32_0, %c0_i32_1, %c0_i32_2 : i32, i32, i32, i32
  }
  func.func @transform_13(%arg0: i32) -> (i32, i32) {
    %c0_i32 = arith.constant 0 : i32
    %c0_i32_0 = arith.constant 0 : i32
    %c0_i32_1 = arith.constant 0 : i32
    return %c0_i32, %c0_i32_0 : i32, i32
  }
  func.func @transform_14(%arg0: i32) -> (i32, i32) {
    %c0_i32 = arith.constant 0 : i32
    %c0_i32_0 = arith.constant 0 : i32
    %c0_i32_1 = arith.constant 0 : i32
    return %c0_i32, %c0_i32_0 : i32, i32
  }
  func.func @transform_15(%arg0: i32) -> (i32, i32) {
    %c0_i32 = arith.constant 0 : i32
    %c0_i32_0 = arith.constant 0 : i32
    %c0_i32_1 = arith.constant 0 : i32
    return %c0_i32, %c0_i32_0 : i32, i32
  }
  func.func @transform_16(%arg0: i32) -> (i32, i32, i32, i32) {
    %c0_i32 = arith.constant 0 : i32
    %c0_i32_0 = arith.constant 0 : i32
    %c0_i32_1 = arith.constant 0 : i32
    %c0_i32_2 = arith.constant 0 : i32
    %c0_i32_3 = arith.constant 0 : i32
    return %c0_i32, %c0_i32_0, %c0_i32_1, %c0_i32_2 : i32, i32, i32, i32
  }
  func.func @transform_17(%arg0: i32) -> (i32, i32) {
    %c0_i32 = arith.constant 0 : i32
    %c0_i32_0 = arith.constant 0 : i32
    %c0_i32_1 = arith.constant 0 : i32
    return %c0_i32, %c0_i32_0 : i32, i32
  }
  func.func @transform_18(%arg0: i32) -> (i32, i32) {
    %c0_i32 = arith.constant 0 : i32
    %c0_i32_0 = arith.constant 0 : i32
    %c0_i32_1 = arith.constant 0 : i32
    return %c0_i32, %c0_i32_0 : i32, i32
  }
  func.func @transform_19(%arg0: i32) -> (i32, i32) {
    %c0_i32 = arith.constant 0 : i32
    %c0_i32_0 = arith.constant 0 : i32
    %c0_i32_1 = arith.constant 0 : i32
    return %c0_i32, %c0_i32_0 : i32, i32
  }
  func.func @transform_20(%arg0: i32) -> (i32, i32) {
    %c0_i32 = arith.constant 0 : i32
    %c0_i32_0 = arith.constant 0 : i32
    %c0_i32_1 = arith.constant 0 : i32
    return %c0_i32, %c0_i32_0 : i32, i32
  }
  func.func @transform_21(%arg0: i32) -> (i32, i32) {
    %c0_i32 = arith.constant 0 : i32
    %c0_i32_0 = arith.constant 0 : i32
    %c0_i32_1 = arith.constant 0 : i32
    return %c0_i32, %c0_i32_0 : i32, i32
  }
  func.func @transform_22(%arg0: i32) -> (i32, i32, i32) {
    %c0_i32 = arith.constant 0 : i32
    %c0_i32_0 = arith.constant 0 : i32
    %c0_i32_1 = arith.constant 0 : i32
    return %arg0, %c0_i32, %c0_i32_0 : i32, i32, i32
  }
}

</mosaic_0001>

<llo_original>
// kernel: forward.2
$region0: #{forward.2}
  #allocation0 [shape = 'u32[]', space=smem, size = 0x4, offset = 0x4, fixed_abs, tag = 'smem constant byte address 0x4 - core index']
  #allocation1 [shape = 'u32[144,128]{1,0:T(1,128)}', space=vmem, size = 0x12000, scoped, tag = 'internal scratch']
  %s0 = inlined_call_operand.vmem [shape: f32[28,6], index: 0, kind: input, shape index: {}]
  %s1 = inlined_call_operand.vmem [shape: f32[6,128], index: 1, kind: input, shape index: {}]
  %s2 = inlined_call_operand.vmem [shape: f32[196,36], index: 2, kind: input, shape index: {}]
  %s3 = inlined_call_operand.hbm [shape: f32[36,256], index: 3, kind: input, shape index: {}]
  %s4 = inlined_call_operand.vmem [shape: f32[18,36], index: 4, kind: input, shape index: {}]
  %s5 = inlined_call_operand.vmem [shape: f32[36,384], index: 5, kind: input, shape index: {}]
  %s6 = inlined_call_operand.hbm [shape: f32[18,36], index: 6, kind: input, shape index: {}]
  %s7 = inlined_call_operand.vmem [shape: f32[36,768], index: 7, kind: input, shape index: {}]
  %s8 = inlined_call_operand.vmem [shape: f32[28,128], index: 8, kind: output, shape index: {0}]
  %s9 = inlined_call_operand.vmem [shape: f32[196,256], index: 9, kind: output, shape index: {1}]
  %s10 = inlined_call_operand.vmem [shape: f32[18,384], index: 10, kind: output, shape index: {2}]
  %s11 = inlined_call_operand.vmem [shape: f32[18,768], index: 11, kind: output, shape index: {3}]
  %12 = xla_tuple %s8, %s9, %s10, %s11
  %s13 = sld [smem:[#allocation0]]
  $region74: #{forward.2} parent=0
    _
  %s15 = ssub.s32 1, %s13
  %s16 = scalar_select 0, %s15, %s13
  $region1: #{forward.2} parent=0
    #allocation2 [shape = 'u8[40960]{0}', space=vmem, size = 0xa000, scoped, tag = 'input window, operand 3, single buffered']
    #allocation3 [shape = 's32[1]{0}', space=sflag, size = 0x4, scoped, tag = 'scoped memory for forward.2']
    #allocation4 [shape = 'u8[12288]{0}', space=vmem, size = 0x3000, scoped, tag = 'input window, operand 6, single buffered']
    #allocation5 [shape = 's32[1]{0}', space=sflag, size = 0x4, scoped, tag = 'scoped memory for forward.2']
    %17 = vsyncpa [#allocation3], 0
    %18 = vsyncpa [#allocation5], 0
    // Predicated region
    $region2: #{forward.2} parent=1 // pred_check
      _
    $region3: #{forward.2} parent=1 // pred_check_branch
      %20 = sbr.rel (0) target = $region5
    $region4: #{forward.2} parent=1 // pred_region
      _
    $region5: #{forward.2} parent=1 // pred_fallthru
      _
    // Predicated region
    $region6: #{forward.2} parent=1 // pred_check
      _
    $region7: #{forward.2} parent=1 // pred_check_branch
      %22 = sbr.rel (0) target = $region9
    $region8: #{forward.2} parent=1 // pred_region
      _
    $region9: #{forward.2} parent=1 // pred_fallthru
      _
    // Predicated region
    $region10: #{forward.2} parent=1 // pred_check
      _
    $region11: #{forward.2} parent=1 // pred_check_branch
      %24 = sbr.rel (0) target = $region13
    $region12: #{forward.2} parent=1 // pred_region
      _
    $region13: #{forward.2} parent=1 // pred_fallthru
      _
    // Predicated region
    $region14: #{forward.2} parent=1 // pred_check
      _
    $region15: #{forward.2} parent=1 // pred_check_branch
      %26 = sbr.rel (0) target = $region17
    $region16: #{forward.2} parent=1 // pred_region
      %s28 = ssub.s32 1280, 1280
      %29 = vsyncadd [#allocation3], %s28
      %s30 = sshll.u32 [#allocation2], 4
      %s31 = int_to_ptr.vmem [resolvable:$true] %s30
      %36 = dma.hbm_to_vmem [thread:$0]  %s3, 1280, %s31, [#allocation3], 256, 256, 16
    $region17: #{forward.2} parent=1 // pred_fallthru
      _
    // Predicated region
    $region18: #{forward.2} parent=1 // pred_check
      _
    $region19: #{forward.2} parent=1 // pred_check_branch
      %38 = sbr.rel (0) target = $region21
    $region20: #{forward.2} parent=1 // pred_region
      _
    $region21: #{forward.2} parent=1 // pred_fallthru
      _
    // Predicated region
    $region22: #{forward.2} parent=1 // pred_check
      _
    $region23: #{forward.2} parent=1 // pred_check_branch
      %40 = sbr.rel (0) target = $region25
    $region24: #{forward.2} parent=1 // pred_region
      _
    $region25: #{forward.2} parent=1 // pred_fallthru
      _
    // Predicated region
    $region26: #{forward.2} parent=1 // pred_check
      _
    $region27: #{forward.2} parent=1 // pred_check_branch
      %42 = sbr.rel (0) target = $region29
    $region28: #{forward.2} parent=1 // pred_region
      %s44 = ssub.s32 384, 384
      %45 = vsyncadd [#allocation5], %s44
      %s46 = sshll.u32 [#allocation4], 4
      %s47 = int_to_ptr.vmem [resolvable:$true] %s46
      %52 = dma.hbm_to_vmem [thread:$0]  %s6, 384, %s47, [#allocation5], 128, 128, 8
    $region29: #{forward.2} parent=1 // pred_fallthru
      _
    // Predicated region
    $region30: #{forward.2} parent=1 // pred_check
      _
    $region31: #{forward.2} parent=1 // pred_check_branch
      %54 = sbr.rel (0) target = $region33
    $region32: #{forward.2} parent=1 // pred_region
      _
    $region33: #{forward.2} parent=1 // pred_fallthru
      _
    // Predicated region
    $region34: #{forward.2} parent=1 // pred_check
      _
    $region35: #{forward.2} parent=1 // pred_check_branch
      %56 = sbr.rel (0) target = $region37
    $region36: #{forward.2} parent=1 // pred_region
      %57 = dma.done [#allocation3], 1280
    $region37: #{forward.2} parent=1 // pred_fallthru
      _
    // Predicated region
    $region38: #{forward.2} parent=1 // pred_check
      _
    $region39: #{forward.2} parent=1 // pred_check_branch
      %59 = sbr.rel (0) target = $region41
    $region40: #{forward.2} parent=1 // pred_region
      %60 = dma.done [#allocation5], 384
    $region41: #{forward.2} parent=1 // pred_fallthru
      _
    %v61 = vld [vmem:[%s0] sm:$0xff]
    %v62 = vld [vmem:[%s0 + $0x8] sm:$0xff]
    %v63 = vld [vmem:[%s0 + $0x10] sm:$0xff]
    %v64 = vld [vmem:[%s0 + $0x18] sm:$0xf]
    %v65 = vld [vmem:[%s1] sm:$0x3f]
    %vm66 = vcmask 48128
    %v68 = vsel %vm66, %v61, 0
    %v71 = vsel %vm66, %v62, 0
    %v74 = vsel %vm66, %v63, 0
    %v77 = vsel %vm66, %v64, 0
    %vm79 = vcmask 1045504
    %v81 = vsel %vm79, %v65, 0
    %83 = vmatprep.subr.mxu0 0.0
    %84 = vmatpush1.msra.mxu0 %v81
    %85 = vmatprep.subr.mxu0 0.0
    %86 = vmatpush1.msra.mxu0 0.0
    %87 = vmatprep.subr.mxu0 0.0
    %88 = vmatpush1.msra.mxu0 0.0
    %89 = vmatprep.subr.mxu0 0.0
    %90 = vmatpush1.msra.mxu0 0.0
    %91 = vmatprep.subr.mxu0 0.0
    %92 = vmatpush1.msra.mxu0 0.0
    %93 = vmatprep.subr.mxu0 0.0
    %94 = vmatpush1.msra.mxu0 0.0
    %95 = vmatprep.subr.mxu0 0.0
    %96 = vmatpush1.msra.mxu0 0.0
    %97 = vmatprep.subr.mxu0 0.0
    %98 = vmatpush1.msra.mxu0 0.0
    %99 = vmatprep.subr.mxu0 0.0
    %100 = vmatpush1.msra.mxu0 0.0
    %101 = vmatprep.subr.mxu0 0.0
    %102 = vmatpush1.msra.mxu0 0.0
    %103 = vmatprep.subr.mxu0 0.0
    %104 = vmatpush1.msra.mxu0 0.0
    %105 = vmatprep.subr.mxu0 0.0
    %106 = vmatpush1.msra.mxu0 0.0
    %107 = vmatprep.subr.mxu0 0.0
    %108 = vmatpush1.msra.mxu0 0.0
    %109 = vmatprep.subr.mxu0 0.0
    %110 = vmatpush1.msra.mxu0 0.0
    %111 = vmatprep.subr.mxu0 0.0
    %112 = vmatpush1.msra.mxu0 0.0
    %113 = vmatprep.subr.mxu0 0.0
    %114 = vmatpush1.msra.mxu0 0.0
    %115 = vmatprep.subr.mxu0 0.0
    %116 = vmatpush1.msra.mxu0 0.0
    %117 = vmatprep.subr.mxu0 0.0
    %118 = vmatpush1.msra.mxu0 0.0
    %119 = vmatprep.subr.mxu0 0.0
    %120 = vmatpush1.msra.mxu0 0.0
    %121 = vmatprep.subr.mxu0 0.0
    %122 = vmatpush1.msra.mxu0 0.0
    %123 = vmatprep.subr.mxu0 0.0
    %124 = vmatpush1.msra.mxu0 0.0
    %125 = vmatprep.subr.mxu0 0.0
    %126 = vmatpush1.msra.mxu0 0.0
    %127 = vmatprep.subr.mxu0 0.0
    %128 = vmatpush1.msra.mxu0 0.0
    %129 = vmatprep.subr.mxu0 0.0
    %130 = vmatpush1.msra.mxu0 0.0
    %131 = vmatprep.subr.mxu0 0.0
    %132 = vmatpush1.msra.mxu0 0.0
    %133 = vmatprep.subr.mxu0 0.0
    %134 = vmatpush1.msra.mxu0 0.0
    %135 = vmatprep.subr.mxu0 0.0
    %136 = vmatpush1.msra.mxu0 0.0
    %137 = vmatprep.subr.mxu0 0.0
    %138 = vmatpush1.msra.mxu0 0.0
    %139 = vmatprep.subr.mxu0 0.0
    %140 = vmatpush1.msra.mxu0 0.0
    %141 = vmatprep.subr.mxu0 0.0
    %142 = vmatpush1.msra.mxu0 0.0
    %143 = vmatprep.subr.mxu0 0.0
    %144 = vmatpush1.msra.mxu0 0.0
    %145 = vmatprep.subr.mxu0 0.0
    %146 = vmatpush1.msra.mxu0 0.0
    %147 = vmatprep.mubr.f32.mxu0 0.0
    %148 = vmatmul.mubr.f32.gmra.mrb[0].mxu0 %v68
    %v149 = vpop.f32.mrb[0].mxu0
    %v150 = vadd.f32 0.0, %v149
    %v151 = vpop.f32.mrb[0].mxu0
    %152 = vmatprep.mubr.f32.mxu0 0.0
    %153 = vmatmul.mubr.f32.gmra.mrb[0].mxu0 %v71
    %v154 = vpop.f32.mrb[0].mxu0
    %v155 = vadd.f32 0.0, %v154
    %v156 = vpop.f32.mrb[0].mxu0
    %157 = vmatprep.mubr.f32.mxu0 0.0
    %158 = vmatmul.mubr.f32.gmra.mrb[0].mxu0 %v74
    %v159 = vpop.f32.mrb[0].mxu0
    %v160 = vadd.f32 0.0, %v159
    %v161 = vpop.f32.mrb[0].mxu0
    %162 = vmatprep.mubr.f32.mxu0 0.0
    %163 = vmatmul.mubr.f32.gmra.mrb[0].mxu0 %v77
    %v164 = vpop.f32.mrb[0].mxu0
    %v165 = vadd.f32 0.0, %v164
    %v166 = vpop.f32.mrb[0].mxu0
    %167 = vdwg.mxu0
    %168 = vst [vmem:[%s8] sm:$0xff] %v150
    %169 = vst [vmem:[%s8 + $0x8] sm:$0xff] %v155
    %170 = vst [vmem:[%s8 + $0x10] sm:$0xff] %v160
    %171 = vst [vmem:[%s8 + $0x18] sm:$0xf] %v165
    %v172 = vld [vmem:[%s2] sm:$0xff]
    %v173 = vld [vmem:[%s2 + $0x8] sm:$0xff]
    %v174 = vld [vmem:[%s2 + $0x10] sm:$0xff]
    %v175 = vld [vmem:[%s2 + $0x18] sm:$0xff]
    %v176 = vld [vmem:[%s2 + $0x20] sm:$0xff]
    %v177 = vld [vmem:[%s2 + $0x28] sm:$0xff]
    %v178 = vld [vmem:[%s2 + $0x30] sm:$0xff]
    %v179 = vld [vmem:[%s2 + $0x38] sm:$0xff]
    %v180 = vld [vmem:[%s2 + $0x40] sm:$0xff]
    %v181 = vld [vmem:[%s2 + $0x48] sm:$0xff]
    %v182 = vld [vmem:[%s2 + $0x50] sm:$0xff]
    %v183 = vld [vmem:[%s2 + $0x58] sm:$0xff]
    %v184 = vld [vmem:[%s2 + $0x60] sm:$0xff]
    %v185 = vld [vmem:[%s2 + $0x68] sm:$0xff]
    %v186 = vld [vmem:[%s2 + $0x70] sm:$0xff]
    %v187 = vld [vmem:[%s2 + $0x78] sm:$0xff]
    %v188 = vld [vmem:[%s2 + $0x80] sm:$0xff]
    %v189 = vld [vmem:[%s2 + $0x88] sm:$0xff]
    %v190 = vld [vmem:[%s2 + $0x90] sm:$0xff]
    %v191 = vld [vmem:[%s2 + $0x98] sm:$0xff]
    %v192 = vld [vmem:[%s2 + $0xa0] sm:$0xff]
    %v193 = vld [vmem:[%s2 + $0xa8] sm:$0xff]
    %v194 = vld [vmem:[%s2 + $0xb0] sm:$0xff]
    %v195 = vld [vmem:[%s2 + $0xb8] sm:$0xff]
    %v196 = vld [vmem:[%s2 + $0xc0] sm:$0xf]
    %v197 = vld [vmem:[#allocation2] sm:$0xff]
    %v198 = vld [vmem:[#allocation2 + $0x8] sm:$0xff]
    %v199 = vld [vmem:[#allocation2 + $0x10] sm:$0xff]
    %v200 = vld [vmem:[#allocation2 + $0x18] sm:$0xff]
    %v201 = vld [vmem:[#allocation2 + $0x20] sm:$0xff]
    %v202 = vld [vmem:[#allocation2 + $0x28] sm:$0xff]
    %v203 = vld [vmem:[#allocation2 + $0x30] sm:$0xff]
    %v204 = vld [vmem:[#allocation2 + $0x38] sm:$0xff]
    %v205 = vld [vmem:[#allocation2 + $0x40] sm:$0xf]
    %v206 = vld [vmem:[#allocation2 + $0x48] sm:$0xf]
    %vm207 = vcmask 293888
    %v209 = vsel %vm207, %v172, 0
    %v212 = vsel %vm207, %v173, 0
    %v215 = vsel %vm207, %v174, 0
    %v218 = vsel %vm207, %v175, 0
    %v221 = vsel %vm207, %v176, 0
    %v224 = vsel %vm207, %v177, 0
    %v227 = vsel %vm207, %v178, 0
    %v230 = vsel %vm207, %v179, 0
    %v233 = vsel %vm207, %v180, 0
    %v236 = vsel %vm207, %v181, 0
    %v239 = vsel %vm207, %v182, 0
    %v242 = vsel %vm207, %v183, 0
    %v245 = vsel %vm207, %v184, 0
    %v248 = vsel %vm207, %v185, 0
    %v251 = vsel %vm207, %v186, 0
    %v254 = vsel %vm207, %v187, 0
    %v257 = vsel %vm207, %v188, 0
    %v260 = vsel %vm207, %v189, 0
    %v263 = vsel %vm207, %v190, 0
    %v266 = vsel %vm207, %v191, 0
    %v269 = vsel %vm207, %v192, 0
    %v272 = vsel %vm207, %v193, 0
    %v275 = vsel %vm207, %v194, 0
    %v278 = vsel %vm207, %v195, 0
    %v281 = vsel %vm207, %v196, 0
    %vm283 = vcmask 1043456
    %v285 = vsel %vm283, %v205, 0
    %v288 = vsel %vm283, %v206, 0
    %290 = vmatprep.subr.mxu0 %v198
    %291 = vmatpush1.msra.mxu0 %v197
    %292 = vmatprep.subr.mxu0 %v200
    %293 = vmatpush1.msra.mxu0 %v199
    %294 = vmatprep.subr.mxu0 %v202
    %295 = vmatpush1.msra.mxu0 %v201
    %296 = vmatprep.subr.mxu0 %v204
    %297 = vmatpush1.msra.mxu0 %v203
    %298 = vmatprep.subr.mxu0 %v288
    %299 = vmatpush1.msra.mxu0 %v285
    %300 = vmatprep.subr.mxu0 0.0
    %301 = vmatpush1.msra.mxu0 0.0
    %302 = vmatprep.subr.mxu0 0.0
    %303 = vmatpush1.msra.mxu0 0.0
    %304 = vmatprep.subr.mxu0 0.0
    %305 = vmatpush1.msra.mxu0 0.0
    %306 = vmatprep.subr.mxu0 0.0
    %307 = vmatpush1.msra.mxu0 0.0
    %308 = vmatprep.subr.mxu0 0.0
    %309 = vmatpush1.msra.mxu0 0.0
    %310 = vmatprep.subr.mxu0 0.0
    %311 = vmatpush1.msra.mxu0 0.0
    %312 = vmatprep.subr.mxu0 0.0
    %313 = vmatpush1.msra.mxu0 0.0
    %314 = vmatprep.subr.mxu0 0.0
    %315 = vmatpush1.msra.mxu0 0.0
    %316 = vmatprep.subr.mxu0 0.0
    %317 = vmatpush1.msra.mxu0 0.0
    %318 = vmatprep.subr.mxu0 0.0
    %319 = vmatpush1.msra.mxu0 0.0
    %320 = vmatprep.subr.mxu0 0.0
    %321 = vmatpush1.msra.mxu0 0.0
    %322 = vmatprep.subr.mxu0 0.0
    %323 = vmatpush1.msra.mxu0 0.0
    %324 = vmatprep.subr.mxu0 0.0
    %325 = vmatpush1.msra.mxu0 0.0
    %326 = vmatprep.subr.mxu0 0.0
    %327 = vmatpush1.msra.mxu0 0.0
    %328 = vmatprep.subr.mxu0 0.0
    %329 = vmatpush1.msra.mxu0 0.0
    %330 = vmatprep.subr.mxu0 0.0
    %331 = vmatpush1.msra.mxu0 0.0
    %332 = vmatprep.subr.mxu0 0.0
    %333 = vmatpush1.msra.mxu0 0.0
    %334 = vmatprep.subr.mxu0 0.0
    %335 = vmatpush1.msra.mxu0 0.0
    %336 = vmatprep.subr.mxu0 0.0
    %337 = vmatpush1.msra.mxu0 0.0
    %338 = vmatprep.subr.mxu0 0.0
    %339 = vmatpush1.msra.mxu0 0.0
    %340 = vmatprep.subr.mxu0 0.0
    %341 = vmatpush1.msra.mxu0 0.0
    %342 = vmatprep.subr.mxu0 0.0
    %343 = vmatpush1.msra.mxu0 0.0
    %344 = vmatprep.subr.mxu0 0.0
    %345 = vmatpush1.msra.mxu0 0.0
    %346 = vmatprep.subr.mxu0 0.0
    %347 = vmatpush1.msra.mxu0 0.0
    %348 = vmatprep.subr.mxu0 0.0
    %349 = vmatpush1.msra.mxu0 0.0
    %350 = vmatprep.subr.mxu0 0.0
    %351 = vmatpush1.msra.mxu0 0.0
    %352 = vmatprep.subr.mxu0 0.0
    %353 = vmatpush1.msra.mxu0 0.0
    %354 = vmatprep.mubr.f32.mxu0 0.0
    %355 = vmatmul.mubr.f32.gmra.mrb[0].mxu0 %v209
    %v356 = vpop.f32.mrb[0].mxu0
    %v357 = vadd.f32 0.0, %v356
    %v358 = vpop.f32.mrb[0].mxu0
    %v359 = vadd.f32 0.0, %v358
    %360 = vmatprep.mubr.f32.mxu0 0.0
    %361 = vmatmul.mubr.f32.gmra.mrb[0].mxu0 %v212
    %v362 = vpop.f32.mrb[0].mxu0
    %v363 = vadd.f32 0.0, %v362
    %v364 = vpop.f32.mrb[0].mxu0
    %v365 = vadd.f32 0.0, %v364
    %366 = vmatprep.mubr.f32.mxu0 0.0
    %367 = vmatmul.mubr.f32.gmra.mrb[0].mxu0 %v215
    %v368 = vpop.f32.mrb[0].mxu0
    %v369 = vadd.f32 0.0, %v368
    %v370 = vpop.f32.mrb[0].mxu0
    %v371 = vadd.f32 0.0, %v370
    %372 = vmatprep.mubr.f32.mxu0 0.0
    %373 = vmatmul.mubr.f32.gmra.mrb[0].mxu0 %v218
    %v374 = vpop.f32.mrb[0].mxu0
    %v375 = vadd.f32 0.0, %v374
    %v376 = vpop.f32.mrb[0].mxu0
    %v377 = vadd.f32 0.0, %v376
    %378 = vmatprep.mubr.f32.mxu0 0.0
    %379 = vmatmul.mubr.f32.gmra.mrb[0].mxu0 %v221
    %v380 = vpop.f32.mrb[0].mxu0
    %v381 = vadd.f32 0.0, %v380
    %v382 = vpop.f32.mrb[0].mxu0
    %v383 = vadd.f32 0.0, %v382
    %384 = vmatprep.mubr.f32.mxu0 0.0
    %385 = vmatmul.mubr.f32.gmra.mrb[0].mxu0 %v224
    %v386 = vpop.f32.mrb[0].mxu0
    %v387 = vadd.f32 0.0, %v386
    %v388 = vpop.f32.mrb[0].mxu0
    %v389 = vadd.f32 0.0, %v388
    %390 = vmatprep.mubr.f32.mxu0 0.0
    %391 = vmatmul.mubr.f32.gmra.mrb[0].mxu0 %v227
    %v392 = vpop.f32.mrb[0].mxu0
    %v393 = vadd.f32 0.0, %v392
    %v394 = vpop.f32.mrb[0].mxu0
    %v395 = vadd.f32 0.0, %v394
    %396 = vmatprep.mubr.f32.mxu0 0.0
    %397 = vmatmul.mubr.f32.gmra.mrb[0].mxu0 %v230
    %v398 = vpop.f32.mrb[0].mxu0
    %v399 = vadd.f32 0.0, %v398
    %v400 = vpop.f32.mrb[0].mxu0
    %v401 = vadd.f32 0.0, %v400
    %402 = vmatprep.mubr.f32.mxu0 0.0
    %403 = vmatmul.mubr.f32.gmra.mrb[0].mxu0 %v233
    %v404 = vpop.f32.mrb[0].mxu0
    %v405 = vadd.f32 0.0, %v404
    %v406 = vpop.f32.mrb[0].mxu0
    %v407 = vadd.f32 0.0, %v406
    %408 = vmatprep.mubr.f32.mxu0 0.0
    %409 = vmatmul.mubr.f32.gmra.mrb[0].mxu0 %v236
    %v410 = vpop.f32.mrb[0].mxu0
    %v411 = vadd.f32 0.0, %v410
    %v412 = vpop.f32.mrb[0].mxu0
    %v413 = vadd.f32 0.0, %v412
    %414 = vmatprep.mubr.f32.mxu0 0.0
    %415 = vmatmul.mubr.f32.gmra.mrb[0].mxu0 %v239
    %v416 = vpop.f32.mrb[0].mxu0
    %v417 = vadd.f32 0.0, %v416
    %v418 = vpop.f32.mrb[0].mxu0
    %v419 = vadd.f32 0.0, %v418
    %420 = vmatprep.mubr.f32.mxu0 0.0
    %421 = vmatmul.mubr.f32.gmra.mrb[0].mxu0 %v242
    %v422 = vpop.f32.mrb[0].mxu0
    %v423 = vadd.f32 0.0, %v422
    %v424 = vpop.f32.mrb[0].mxu0
    %v425 = vadd.f32 0.0, %v424
    %426 = vmatprep.mubr.f32.mxu0 0.0
    %427 = vmatmul.mubr.f32.gmra.mrb[0].mxu0 %v245
    %v428 = vpop.f32.mrb[0].mxu0
    %v429 = vadd.f32 0.0, %v428
    %v430 = vpop.f32.mrb[0].mxu0
    %v431 = vadd.f32 0.0, %v430
    %432 = vmatprep.mubr.f32.mxu0 0.0
    %433 = vmatmul.mubr.f32.gmra.mrb[0].mxu0 %v248
    %v434 = vpop.f32.mrb[0].mxu0
    %v435 = vadd.f32 0.0, %v434
    %v436 = vpop.f32.mrb[0].mxu0
    %v437 = vadd.f32 0.0, %v436
    %438 = vmatprep.mubr.f32.mxu0 0.0
    %439 = vmatmul.mubr.f32.gmra.mrb[0].mxu0 %v251
    %v440 = vpop.f32.mrb[0].mxu0
    %v441 = vadd.f32 0.0, %v440
    %v442 = vpop.f32.mrb[0].mxu0
    %v443 = vadd.f32 0.0, %v442
    %444 = vmatprep.mubr.f32.mxu0 0.0
    %445 = vmatmul.mubr.f32.gmra.mrb[0].mxu0 %v254
    %v446 = vpop.f32.mrb[0].mxu0
    %v447 = vadd.f32 0.0, %v446
    %v448 = vpop.f32.mrb[0].mxu0
    %v449 = vadd.f32 0.0, %v448
    %450 = vmatprep.mubr.f32.mxu0 0.0
    %451 = vmatmul.mubr.f32.gmra.mrb[0].mxu0 %v257
    %v452 = vpop.f32.mrb[0].mxu0
    %v453 = vadd.f32 0.0, %v452
    %v454 = vpop.f32.mrb[0].mxu0
    %v455 = vadd.f32 0.0, %v454
    %456 = vmatprep.mubr.f32.mxu0 0.0
    %457 = vmatmul.mubr.f32.gmra.mrb[0].mxu0 %v260
    %v458 = vpop.f32.mrb[0].mxu0
    %v459 = vadd.f32 0.0, %v458
    %v460 = vpop.f32.mrb[0].mxu0
    %v461 = vadd.f32 0.0, %v460
    %462 = vmatprep.mubr.f32.mxu0 0.0
    %463 = vmatmul.mubr.f32.gmra.mrb[0].mxu0 %v263
    %v464 = vpop.f32.mrb[0].mxu0
    %v465 = vadd.f32 0.0, %v464
    %v466 = vpop.f32.mrb[0].mxu0
    %v467 = vadd.f32 0.0, %v466
    %468 = vmatprep.mubr.f32.mxu0 0.0
    %469 = vmatmul.mubr.f32.gmra.mrb[0].mxu0 %v266
    %v470 = vpop.f32.mrb[0].mxu0
    %v471 = vadd.f32 0.0, %v470
    %v472 = vpop.f32.mrb[0].mxu0
    %v473 = vadd.f32 0.0, %v472
    %474 = vmatprep.mubr.f32.mxu0 0.0
    %475 = vmatmul.mubr.f32.gmra.mrb[0].mxu0 %v269
    %v476 = vpop.f32.mrb[0].mxu0
    %v477 = vadd.f32 0.0, %v476
    %v478 = vpop.f32.mrb[0].mxu0
    %v479 = vadd.f32 0.0, %v478
    %480 = vmatprep.mubr.f32.mxu0 0.0
    %481 = vmatmul.mubr.f32.gmra.mrb[0].mxu0 %v272
    %v482 = vpop.f32.mrb[0].mxu0
    %v483 = vadd.f32 0.0, %v482
    %v484 = vpop.f32.mrb[0].mxu0
    %v485 = vadd.f32 0.0, %v484
    %486 = vmatprep.mubr.f32.mxu0 0.0
    %487 = vmatmul.mubr.f32.gmra.mrb[0].mxu0 %v275
    %v488 = vpop.f32.mrb[0].mxu0
    %v489 = vadd.f32 0.0, %v488
    %v490 = vpop.f32.mrb[0].mxu0
    %v491 = vadd.f32 0.0, %v490
    %492 = vmatprep.mubr.f32.mxu0 0.0
    %493 = vmatmul.mubr.f32.gmra.mrb[0].mxu0 %v278
    %v494 = vpop.f32.mrb[0].mxu0
    %v495 = vadd.f32 0.0, %v494
    %v496 = vpop.f32.mrb[0].mxu0
    %v497 = vadd.f32 0.0, %v496
    %498 = vmatprep.mubr.f32.mxu0 0.0
    %499 = vmatmul.mubr.f32.gmra.mrb[0].mxu0 %v281
    %v500 = vpop.f32.mrb[0].mxu0
    %v501 = vadd.f32 0.0, %v500
    %v502 = vpop.f32.mrb[0].mxu0
    %v503 = vadd.f32 0.0, %v502
    %504 = vdwg.mxu0
    %505 = vst [vmem:[%s9] sm:$0xff] %v357
    %506 = vst [vmem:[%s9 + $0x8] sm:$0xff] %v359
    %507 = vst [vmem:[%s9 + $0x10] sm:$0xff] %v363
    %508 = vst [vmem:[%s9 + $0x18] sm:$0xff] %v365
    %509 = vst [vmem:[%s9 + $0x20] sm:$0xff] %v369
    %510 = vst [vmem:[%s9 + $0x28] sm:$0xff] %v371
    %511 = vst [vmem:[%s9 + $0x30] sm:$0xff] %v375
    %512 = vst [vmem:[%s9 + $0x38] sm:$0xff] %v377
    %513 = vst [vmem:[%s9 + $0x40] sm:$0xff] %v381
    %514 = vst [vmem:[%s9 + $0x48] sm:$0xff] %v383
    %515 = vst [vmem:[%s9 + $0x50] sm:$0xff] %v387
    %516 = vst [vmem:[%s9 + $0x58] sm:$0xff] %v389
    %517 = vst [vmem:[%s9 + $0x60] sm:$0xff] %v393
    %518 = vst [vmem:[%s9 + $0x68] sm:$0xff] %v395
    %519 = vst [vmem:[%s9 + $0x70] sm:$0xff] %v399
    %520 = vst [vmem:[%s9 + $0x78] sm:$0xff] %v401
    %521 = vst [vmem:[%s9 + $0x80] sm:$0xff] %v405
    %522 = vst [vmem:[%s9 + $0x88] sm:$0xff] %v407
    %523 = vst [vmem:[%s9 + $0x90] sm:$0xff] %v411
    %524 = vst [vmem:[%s9 + $0x98] sm:$0xff] %v413
    %525 = vst [vmem:[%s9 + $0xa0] sm:$0xff] %v417
    %526 = vst [vmem:[%s9 + $0xa8] sm:$0xff] %v419
    %527 = vst [vmem:[%s9 + $0xb0] sm:$0xff] %v423
    %528 = vst [vmem:[%s9 + $0xb8] sm:$0xff] %v425
    %529 = vst [vmem:[%s9 + $0xc0] sm:$0xff] %v429
    %530 = vst [vmem:[%s9 + $0xc8] sm:$0xff] %v431
    %531 = vst [vmem:[%s9 + $0xd0] sm:$0xff] %v435
    %532 = vst [vmem:[%s9 + $0xd8] sm:$0xff] %v437
    %533 = vst [vmem:[%s9 + $0xe0] sm:$0xff] %v441
    %534 = vst [vmem:[%s9 + $0xe8] sm:$0xff] %v443
    %535 = vst [vmem:[%s9 + $0xf0] sm:$0xff] %v447
    %536 = vst [vmem:[%s9 + $0xf8] sm:$0xff] %v449
    %537 = vst [vmem:[%s9 + $0x100] sm:$0xff] %v453
    %538 = vst [vmem:[%s9 + $0x108] sm:$0xff] %v455
    %539 = vst [vmem:[%s9 + $0x110] sm:$0xff] %v459
    %540 = vst [vmem:[%s9 + $0x118] sm:$0xff] %v461
    %541 = vst [vmem:[%s9 + $0x120] sm:$0xff] %v465
    %542 = vst [vmem:[%s9 + $0x128] sm:$0xff] %v467
    %543 = vst [vmem:[%s9 + $0x130] sm:$0xff] %v471
    %544 = vst [vmem:[%s9 + $0x138] sm:$0xff] %v473
    %545 = vst [vmem:[%s9 + $0x140] sm:$0xff] %v477
    %546 = vst [vmem:[%s9 + $0x148] sm:$0xff] %v479
    %547 = vst [vmem:[%s9 + $0x150] sm:$0xff] %v483
    %548 = vst [vmem:[%s9 + $0x158] sm:$0xff] %v485
    %549 = vst [vmem:[%s9 + $0x160] sm:$0xff] %v489
    %550 = vst [vmem:[%s9 + $0x168] sm:$0xff] %v491
    %551 = vst [vmem:[%s9 + $0x170] sm:$0xff] %v495
    %552 = vst [vmem:[%s9 + $0x178] sm:$0xff] %v497
    %553 = vst [vmem:[%s9 + $0x180] sm:$0xf] %v501
    %554 = vst [vmem:[%s9 + $0x188] sm:$0xf] %v503
    %v555 = vld [vmem:[%s4] sm:$0xff]
    %v556 = vld [vmem:[%s4 + $0x8] sm:$0xff]
    %v557 = vld [vmem:[%s4 + $0x10] sm:$0x3]
    %v558 = vld [vmem:[%s5] sm:$0xff]
    %v559 = vld [vmem:[%s5 + $0x8] sm:$0xff]
    %v560 = vld [vmem:[%s5 + $0x10] sm:$0xff]
    %v561 = vld [vmem:[%s5 + $0x18] sm:$0xff]
    %v562 = vld [vmem:[%s5 + $0x20] sm:$0xff]
    %v563 = vld [vmem:[%s5 + $0x28] sm:$0xff]
    %v564 = vld [vmem:[%s5 + $0x30] sm:$0xff]
    %v565 = vld [vmem:[%s5 + $0x38] sm:$0xff]
    %v566 = vld [vmem:[%s5 + $0x40] sm:$0xff]
    %v567 = vld [vmem:[%s5 + $0x48] sm:$0xff]
    %v568 = vld [vmem:[%s5 + $0x50] sm:$0xff]
    %v569 = vld [vmem:[%s5 + $0x58] sm:$0xff]
    %v570 = vld [vmem:[%s5 + $0x60] sm:$0xf]
    %v571 = vld [vmem:[%s5 + $0x68] sm:$0xf]
    %v572 = vld [vmem:[%s5 + $0x70] sm:$0xf]
    %v574 = vsel %vm207, %v555, 0
    %v577 = vsel %vm207, %v556, 0
    %v580 = vsel %vm207, %v557, 0
    %v583 = vsel %vm283, %v570, 0
    %v586 = vsel %vm283, %v571, 0
    %v589 = vsel %vm283, %v572, 0
    %591 = vmatprep.subr.mxu0 %v559
    %592 = vmatpush1.msra.mxu0 %v558
    %593 = vmatprep.subr.mxu0 %v562
    %594 = vmatpush1.msra.mxu0 %v561
    %595 = vmatprep.subr.mxu0 %v565
    %596 = vmatpush1.msra.mxu0 %v564
    %597 = vmatprep.subr.mxu0 %v568
    %598 = vmatpush1.msra.mxu0 %v567
    %599 = vmatprep.subr.mxu0 %v586
    %600 = vmatpush1.msra.mxu0 %v583
    %601 = vmatprep.subr.mxu0 0.0
    %602 = vmatpush1.msra.mxu0 0.0
    %603 = vmatprep.subr.mxu0 0.0
    %604 = vmatpush1.msra.mxu0 0.0
    %605 = vmatprep.subr.mxu0 0.0
    %606 = vmatpush1.msra.mxu0 0.0
    %607 = vmatprep.subr.mxu0 0.0
    %608 = vmatpush1.msra.mxu0 0.0
    %609 = vmatprep.subr.mxu0 0.0
    %610 = vmatpush1.msra.mxu0 0.0
    %611 = vmatprep.subr.mxu0 0.0
    %612 = vmatpush1.msra.mxu0 0.0
    %613 = vmatprep.subr.mxu0 0.0
    %614 = vmatpush1.msra.mxu0 0.0
    %615 = vmatprep.subr.mxu0 0.0
    %616 = vmatpush1.msra.mxu0 0.0
    %617 = vmatprep.subr.mxu0 0.0
    %618 = vmatpush1.msra.mxu0 0.0
    %619 = vmatprep.subr.mxu0 0.0
    %620 = vmatpush1.msra.mxu0 0.0
    %621 = vmatprep.subr.mxu0 0.0
    %622 = vmatpush1.msra.mxu0 0.0
    %623 = vmatprep.subr.mxu0 0.0
    %624 = vmatpush1.msra.mxu0 0.0
    %625 = vmatprep.subr.mxu0 0.0
    %626 = vmatpush1.msra.mxu0 0.0
    %627 = vmatprep.subr.mxu0 0.0
    %628 = vmatpush1.msra.mxu0 0.0
    %629 = vmatprep.subr.mxu0 0.0
    %630 = vmatpush1.msra.mxu0 0.0
    %631 = vmatprep.subr.mxu0 0.0
    %632 = vmatpush1.msra.mxu0 0.0
    %633 = vmatprep.subr.mxu0 0.0
    %634 = vmatpush1.msra.mxu0 0.0
    %635 = vmatprep.subr.mxu0 0.0
    %636 = vmatpush1.msra.mxu0 0.0
    %637 = vmatprep.subr.mxu0 0.0
    %638 = vmatpush1.msra.mxu0 0.0
    %639 = vmatprep.subr.mxu0 0.0
    %640 = vmatpush1.msra.mxu0 0.0
    %641 = vmatprep.subr.mxu0 0.0
    %642 = vmatpush1.msra.mxu0 0.0
    %643 = vmatprep.subr.mxu0 0.0
    %644 = vmatpush1.msra.mxu0 0.0
    %645 = vmatprep.subr.mxu0 0.0
    %646 = vmatpush1.msra.mxu0 0.0
    %647 = vmatprep.subr.mxu0 0.0
    %648 = vmatpush1.msra.mxu0 0.0
    %649 = vmatprep.subr.mxu0 0.0
    %650 = vmatpush1.msra.mxu0 0.0
    %651 = vmatprep.subr.mxu0 0.0
    %652 = vmatpush1.msra.mxu0 0.0
    %653 = vmatprep.subr.mxu0 0.0
    %654 = vmatpush1.msra.mxu0 0.0
    %655 = vmatprep.mubr.f32.mxu0 0.0
    %656 = vmatmul.mubr.f32.gmra.mrb[0].mxu0 %v574
    %v657 = vpop.f32.mrb[0].mxu0
    %v658 = vadd.f32 0.0, %v657
    %v659 = vpop.f32.mrb[0].mxu0
    %v660 = vadd.f32 0.0, %v659
    %661 = vmatprep.mubr.f32.mxu0 0.0
    %662 = vmatmul.mubr.f32.gmra.mrb[0].mxu0 %v577
    %v663 = vpop.f32.mrb[0].mxu0
    %v664 = vadd.f32 0.0, %v663
    %v665 = vpop.f32.mrb[0].mxu0
    %v666 = vadd.f32 0.0, %v665
    %667 = vmatprep.mubr.f32.mxu0 0.0
    %668 = vmatmul.mubr.f32.gmra.mrb[0].mxu0 %v580
    %v669 = vpop.f32.mrb[0].mxu0
    %v670 = vadd.f32 0.0, %v669
    %v671 = vpop.f32.mrb[0].mxu0
    %v672 = vadd.f32 0.0, %v671
    %673 = vdwg.mxu0
    %674 = vmatprep.subr.mxu0 0.0
    %675 = vmatpush1.msra.mxu0 %v560
    %676 = vmatprep.subr.mxu0 0.0
    %677 = vmatpush1.msra.mxu0 %v563
    %678 = vmatprep.subr.mxu0 0.0
    %679 = vmatpush1.msra.mxu0 %v566
    %680 = vmatprep.subr.mxu0 0.0
    %681 = vmatpush1.msra.mxu0 %v569
    %682 = vmatprep.subr.mxu0 0.0
    %683 = vmatpush1.msra.mxu0 %v589
    %684 = vmatprep.subr.mxu0 0.0
    %685 = vmatpush1.msra.mxu0 0.0
    %686 = vmatprep.subr.mxu0 0.0
    %687 = vmatpush1.msra.mxu0 0.0
    %688 = vmatprep.subr.mxu0 0.0
    %689 = vmatpush1.msra.mxu0 0.0
    %690 = vmatprep.subr.mxu0 0.0
    %691 = vmatpush1.msra.mxu0 0.0
    %692 = vmatprep.subr.mxu0 0.0
    %693 = vmatpush1.msra.mxu0 0.0
    %694 = vmatprep.subr.mxu0 0.0
    %695 = vmatpush1.msra.mxu0 0.0
    %696 = vmatprep.subr.mxu0 0.0
    %697 = vmatpush1.msra.mxu0 0.0
    %698 = vmatprep.subr.mxu0 0.0
    %699 = vmatpush1.msra.mxu0 0.0
    %700 = vmatprep.subr.mxu0 0.0
    %701 = vmatpush1.msra.mxu0 0.0
    %702 = vmatprep.subr.mxu0 0.0
    %703 = vmatpush1.msra.mxu0 0.0
    %704 = vmatprep.subr.mxu0 0.0
    %705 = vmatpush1.msra.mxu0 0.0
    %706 = vmatprep.subr.mxu0 0.0
    %707 = vmatpush1.msra.mxu0 0.0
    %708 = vmatprep.subr.mxu0 0.0
    %709 = vmatpush1.msra.mxu0 0.0
    %710 = vmatprep.subr.mxu0 0.0
    %711 = vmatpush1.msra.mxu0 0.0
    %712 = vmatprep.subr.mxu0 0.0
    %713 = vmatpush1.msra.mxu0 0.0
    %714 = vmatprep.subr.mxu0 0.0
    %715 = vmatpush1.msra.mxu0 0.0
    %716 = vmatprep.subr.mxu0 0.0
    %717 = vmatpush1.msra.mxu0 0.0
    %718 = vmatprep.subr.mxu0 0.0
    %719 = vmatpush1.msra.mxu0 0.0
    %720 = vmatprep.subr.mxu0 0.0
    %721 = vmatpush1.msra.mxu0 0.0
    %722 = vmatprep.subr.mxu0 0.0
    %723 = vmatpush1.msra.mxu0 0.0
    %724 = vmatprep.subr.mxu0 0.0
    %725 = vmatpush1.msra.mxu0 0.0
    %726 = vmatprep.subr.mxu0 0.0
    %727 = vmatpush1.msra.mxu0 0.0
    %728 = vmatprep.subr.mxu0 0.0
    %729 = vmatpush1.msra.mxu0 0.0
    %730 = vmatprep.subr.mxu0 0.0
    %731 = vmatpush1.msra.mxu0 0.0
    %732 = vmatprep.subr.mxu0 0.0
    %733 = vmatpush1.msra.mxu0 0.0
    %734 = vmatprep.subr.mxu0 0.0
    %735 = vmatpush1.msra.mxu0 0.0
    %736 = vmatprep.subr.mxu0 0.0
    %737 = vmatpush1.msra.mxu0 0.0
    %738 = vmatprep.mubr.f32.mxu0 0.0
    %739 = vmatmul.mubr.f32.gmra.mrb[0].mxu0 %v574
    %v740 = vpop.f32.mrb[0].mxu0
    %v741 = vadd.f32 0.0, %v740
    %v742 = vpop.f32.mrb[0].mxu0
    %743 = vmatprep.mubr.f32.mxu0 0.0
    %744 = vmatmul.mubr.f32.gmra.mrb[0].mxu0 %v577
    %v745 = vpop.f32.mrb[0].mxu0
    %v746 = vadd.f32 0.0, %v745
    %v747 = vpop.f32.mrb[0].mxu0
    %748 = vmatprep.mubr.f32.mxu0 0.0
    %749 = vmatmul.mubr.f32.gmra.mrb[0].mxu0 %v580
    %v750 = vpop.f32.mrb[0].mxu0
    %v751 = vadd.f32 0.0, %v750
    %v752 = vpop.f32.mrb[0].mxu0
    %753 = vdwg.mxu0
    %754 = vst [vmem:[%s10] sm:$0xff] %v658
    %755 = vst [vmem:[%s10 + $0x8] sm:$0xff] %v660
    %756 = vst [vmem:[%s10 + $0x10] sm:$0xff] %v741
    %757 = vst [vmem:[%s10 + $0x18] sm:$0xff] %v664
    %758 = vst [vmem:[%s10 + $0x20] sm:$0xff] %v666
    %759 = vst [vmem:[%s10 + $0x28] sm:$0xff] %v746
    %760 = vst [vmem:[%s10 + $0x30] sm:$0x3] %v670
    %761 = vst [vmem:[%s10 + $0x38] sm:$0x3] %v672
    %762 = vst [vmem:[%s10 + $0x40] sm:$0x3] %v751
    %v763 = vld [vmem:[#allocation4] sm:$0xff]
    %v764 = vld [vmem:[#allocation4 + $0x8] sm:$0xff]
    %v765 = vld [vmem:[#allocation4 + $0x10] sm:$0x3]
    %v766 = vld [vmem:[%s7] sm:$0xff]
    %v767 = vld [vmem:[%s7 + $0x8] sm:$0xff]
    %v768 = vld [vmem:[%s7 + $0x10] sm:$0xff]
    %v769 = vld [vmem:[%s7 + $0x18] sm:$0xff]
    %v770 = vld [vmem:[%s7 + $0x20] sm:$0xff]
    %v771 = vld [vmem:[%s7 + $0x28] sm:$0xff]
    %v772 = vld [vmem:[%s7 + $0x30] sm:$0xff]
    %v773 = vld [vmem:[%s7 + $0x38] sm:$0xff]
    %v774 = vld [vmem:[%s7 + $0x40] sm:$0xff]
    %v775 = vld [vmem:[%s7 + $0x48] sm:$0xff]
    %v776 = vld [vmem:[%s7 + $0x50] sm:$0xff]
    %v777 = vld [vmem:[%s7 + $0x58] sm:$0xff]
    %v778 = vld [vmem:[%s7 + $0x60] sm:$0xff]
    %v779 = vld [vmem:[%s7 + $0x68] sm:$0xff]
    %v780 = vld [vmem:[%s7 + $0x70] sm:$0xff]
    %v781 = vld [vmem:[%s7 + $0x78] sm:$0xff]
    %v782 = vld [vmem:[%s7 + $0x80] sm:$0xff]
    %v783 = vld [vmem:[%s7 + $0x88] sm:$0xff]
    %v784 = vld [vmem:[%s7 + $0x90] sm:$0xff]
    %v785 = vld [vmem:[%s7 + $0x98] sm:$0xff]
    %v786 = vld [vmem:[%s7 + $0xa0] sm:$0xff]
    %v787 = vld [vmem:[%s7 + $0xa8] sm:$0xff]
    %v788 = vld [vmem:[%s7 + $0xb0] sm:$0xff]
    %v789 = vld [vmem:[%s7 + $0xb8] sm:$0xff]
    %v790 = vld [vmem:[%s7 + $0xc0] sm:$0xf]
    %v791 = vld [vmem:[%s7 + $0xc8] sm:$0xf]
    %v792 = vld [vmem:[%s7 + $0xd0] sm:$0xf]
    %v793 = vld [vmem:[%s7 + $0xd8] sm:$0xf]
    %v794 = vld [vmem:[%s7 + $0xe0] sm:$0xf]
    %v795 = vld [vmem:[%s7 + $0xe8] sm:$0xf]
    %v797 = vsel %vm207, %v763, 0
    %v800 = vsel %vm207, %v764, 0
    %v803 = vsel %vm207, %v765, 0
    %v806 = vsel %vm283, %v790, 0
    %v809 = vsel %vm283, %v791, 0
    %v812 = vsel %vm283, %v792, 0
    %v815 = vsel %vm283, %v793, 0
    %v818 = vsel %vm283, %v794, 0
    %v821 = vsel %vm283, %v795, 0
    %823 = vmatprep.subr.mxu0 %v767
    %824 = vmatpush1.msra.mxu0 %v766
    %825 = vmatprep.subr.mxu0 %v773
    %826 = vmatpush1.msra.mxu0 %v772
    %827 = vmatprep.subr.mxu0 %v779
    %828 = vmatpush1.msra.mxu0 %v778
    %829 = vmatprep.subr.mxu0 %v785
    %830 = vmatpush1.msra.mxu0 %v784
    %831 = vmatprep.subr.mxu0 %v809
    %832 = vmatpush1.msra.mxu0 %v806
    %833 = vmatprep.subr.mxu0 0.0
    %834 = vmatpush1.msra.mxu0 0.0
    %835 = vmatprep.subr.mxu0 0.0
    %836 = vmatpush1.msra.mxu0 0.0
    %837 = vmatprep.subr.mxu0 0.0
    %838 = vmatpush1.msra.mxu0 0.0
    %839 = vmatprep.subr.mxu0 0.0
    %840 = vmatpush1.msra.mxu0 0.0
    %841 = vmatprep.subr.mxu0 0.0
    %842 = vmatpush1.msra.mxu0 0.0
    %843 = vmatprep.subr.mxu0 0.0
    %844 = vmatpush1.msra.mxu0 0.0
    %845 = vmatprep.subr.mxu0 0.0
    %846 = vmatpush1.msra.mxu0 0.0
    %847 = vmatprep.subr.mxu0 0.0
    %848 = vmatpush1.msra.mxu0 0.0
    %849 = vmatprep.subr.mxu0 0.0
    %850 = vmatpush1.msra.mxu0 0.0
    %851 = vmatprep.subr.mxu0 0.0
    %852 = vmatpush1.msra.mxu0 0.0
    %853 = vmatprep.subr.mxu0 0.0
    %854 = vmatpush1.msra.mxu0 0.0
    %855 = vmatprep.subr.mxu0 0.0
    %856 = vmatpush1.msra.mxu0 0.0
    %857 = vmatprep.subr.mxu0 0.0
    %858 = vmatpush1.msra.mxu0 0.0
    %859 = vmatprep.subr.mxu0 0.0
    %860 = vmatpush1.msra.mxu0 0.0
    %861 = vmatprep.subr.mxu0 0.0
    %862 = vmatpush1.msra.mxu0 0.0
    %863 = vmatprep.subr.mxu0 0.0
    %864 = vmatpush1.msra.mxu0 0.0
    %865 = vmatprep.subr.mxu0 0.0
    %866 = vmatpush1.msra.mxu0 0.0
    %867 = vmatprep.subr.mxu0 0.0
    %868 = vmatpush1.msra.mxu0 0.0
    %869 = vmatprep.subr.mxu0 0.0
    %870 = vmatpush1.msra.mxu0 0.0
    %871 = vmatprep.subr.mxu0 0.0
    %872 = vmatpush1.msra.mxu0 0.0
    %873 = vmatprep.subr.mxu0 0.0
    %874 = vmatpush1.msra.mxu0 0.0
    %875 = vmatprep.subr.mxu0 0.0
    %876 = vmatpush1.msra.mxu0 0.0
    %877 = vmatprep.subr.mxu0 0.0
    %878 = vmatpush1.msra.mxu0 0.0
    %879 = vmatprep.subr.mxu0 0.0
    %880 = vmatpush1.msra.mxu0 0.0
    %881 = vmatprep.subr.mxu0 0.0
    %882 = vmatpush1.msra.mxu0 0.0
    %883 = vmatprep.subr.mxu0 0.0
    %884 = vmatpush1.msra.mxu0 0.0
    %885 = vmatprep.subr.mxu0 0.0
    %886 = vmatpush1.msra.mxu0 0.0
    %887 = vmatprep.mubr.f32.mxu0 0.0
    %888 = vmatmul.mubr.f32.gmra.mrb[0].mxu0 %v797
    %v889 = vpop.f32.mrb[0].mxu0
    %v890 = vadd.f32 0.0, %v889
    %v891 = vpop.f32.mrb[0].mxu0
    %v892 = vadd.f32 0.0, %v891
    %893 = vmatprep.mubr.f32.mxu0 0.0
    %894 = vmatmul.mubr.f32.gmra.mrb[0].mxu0 %v800
    %v895 = vpop.f32.mrb[0].mxu0
    %v896 = vadd.f32 0.0, %v895
    %v897 = vpop.f32.mrb[0].mxu0
    %v898 = vadd.f32 0.0, %v897
    %899 = vmatprep.mubr.f32.mxu0 0.0
    %900 = vmatmul.mubr.f32.gmra.mrb[0].mxu0 %v803
    %v901 = vpop.f32.mrb[0].mxu0
    %v902 = vadd.f32 0.0, %v901
    %v903 = vpop.f32.mrb[0].mxu0
    %v904 = vadd.f32 0.0, %v903
    %905 = vdwg.mxu0
    %906 = vmatprep.subr.mxu0 %v769
    %907 = vmatpush1.msra.mxu0 %v768
    %908 = vmatprep.subr.mxu0 %v775
    %909 = vmatpush1.msra.mxu0 %v774
    %910 = vmatprep.subr.mxu0 %v781
    %911 = vmatpush1.msra.mxu0 %v780
    %912 = vmatprep.subr.mxu0 %v787
    %913 = vmatpush1.msra.mxu0 %v786
    %914 = vmatprep.subr.mxu0 %v815
    %915 = vmatpush1.msra.mxu0 %v812
    %916 = vmatprep.subr.mxu0 0.0
    %917 = vmatpush1.msra.mxu0 0.0
    %918 = vmatprep.subr.mxu0 0.0
    %919 = vmatpush1.msra.mxu0 0.0
    %920 = vmatprep.subr.mxu0 0.0
    %921 = vmatpush1.msra.mxu0 0.0
    %922 = vmatprep.subr.mxu0 0.0
    %923 = vmatpush1.msra.mxu0 0.0
    %924 = vmatprep.subr.mxu0 0.0
    %925 = vmatpush1.msra.mxu0 0.0
    %926 = vmatprep.subr.mxu0 0.0
    %927 = vmatpush1.msra.mxu0 0.0
    %928 = vmatprep.subr.mxu0 0.0
    %929 = vmatpush1.msra.mxu0 0.0
    %930 = vmatprep.subr.mxu0 0.0
    %931 = vmatpush1.msra.mxu0 0.0
    %932 = vmatprep.subr.mxu0 0.0
    %933 = vmatpush1.msra.mxu0 0.0
    %934 = vmatprep.subr.mxu0 0.0
    %935 = vmatpush1.msra.mxu0 0.0
    %936 = vmatprep.subr.mxu0 0.0
    %937 = vmatpush1.msra.mxu0 0.0
    %938 = vmatprep.subr.mxu0 0.0
    %939 = vmatpush1.msra.mxu0 0.0
    %940 = vmatprep.subr.mxu0 0.0
    %941 = vmatpush1.msra.mxu0 0.0
    %942 = vmatprep.subr.mxu0 0.0
    %943 = vmatpush1.msra.mxu0 0.0
    %944 = vmatprep.subr.mxu0 0.0
    %945 = vmatpush1.msra.mxu0 0.0
    %946 = vmatprep.subr.mxu0 0.0
    %947 = vmatpush1.msra.mxu0 0.0
    %948 = vmatprep.subr.mxu0 0.0
    %949 = vmatpush1.msra.mxu0 0.0
    %950 = vmatprep.subr.mxu0 0.0
    %951 = vmatpush1.msra.mxu0 0.0
    %952 = vmatprep.subr.mxu0 0.0
    %953 = vmatpush1.msra.mxu0 0.0
    %954 = vmatprep.subr.mxu0 0.0
    %955 = vmatpush1.msra.mxu0 0.0
    %956 = vmatprep.subr.mxu0 0.0
    %957 = vmatpush1.msra.mxu0 0.0
    %958 = vmatprep.subr.mxu0 0.0
    %959 = vmatpush1.msra.mxu0 0.0
    %960 = vmatprep.subr.mxu0 0.0
    %961 = vmatpush1.msra.mxu0 0.0
    %962 = vmatprep.subr.mxu0 0.0
    %963 = vmatpush1.msra.mxu0 0.0
    %964 = vmatprep.subr.mxu0 0.0
    %965 = vmatpush1.msra.mxu0 0.0
    %966 = vmatprep.subr.mxu0 0.0
    %967 = vmatpush1.msra.mxu0 0.0
    %968 = vmatprep.subr.mxu0 0.0
    %969 = vmatpush1.msra.mxu0 0.0
    %970 = vmatprep.mubr.f32.mxu0 0.0
    %971 = vmatmul.mubr.f32.gmra.mrb[0].mxu0 %v797
    %v972 = vpop.f32.mrb[0].mxu0
    %v973 = vadd.f32 0.0, %v972
    %v974 = vpop.f32.mrb[0].mxu0
    %v975 = vadd.f32 0.0, %v974
    %976 = vmatprep.mubr.f32.mxu0 0.0
    %977 = vmatmul.mubr.f32.gmra.mrb[0].mxu0 %v800
    %v978 = vpop.f32.mrb[0].mxu0
    %v979 = vadd.f32 0.0, %v978
    %v980 = vpop.f32.mrb[0].mxu0
    %v981 = vadd.f32 0.0, %v980
    %982 = vmatprep.mubr.f32.mxu0 0.0
    %983 = vmatmul.mubr.f32.gmra.mrb[0].mxu0 %v803
    %v984 = vpop.f32.mrb[0].mxu0
    %v985 = vadd.f32 0.0, %v984
    %v986 = vpop.f32.mrb[0].mxu0
    %v987 = vadd.f32 0.0, %v986
    %988 = vdwg.mxu0
    %989 = vmatprep.subr.mxu0 %v771
    %990 = vmatpush1.msra.mxu0 %v770
    %991 = vmatprep.subr.mxu0 %v777
    %992 = vmatpush1.msra.mxu0 %v776
    %993 = vmatprep.subr.mxu0 %v783
    %994 = vmatpush1.msra.mxu0 %v782
    %995 = vmatprep.subr.mxu0 %v789
    %996 = vmatpush1.msra.mxu0 %v788
    %997 = vmatprep.subr.mxu0 %v821
    %998 = vmatpush1.msra.mxu0 %v818
    %999 = vmatprep.subr.mxu0 0.0
    %1000 = vmatpush1.msra.mxu0 0.0
    %1001 = vmatprep.subr.mxu0 0.0
    %1002 = vmatpush1.msra.mxu0 0.0
    %1003 = vmatprep.subr.mxu0 0.0
    %1004 = vmatpush1.msra.mxu0 0.0
    %1005 = vmatprep.subr.mxu0 0.0
    %1006 = vmatpush1.msra.mxu0 0.0
    %1007 = vmatprep.subr.mxu0 0.0
    %1008 = vmatpush1.msra.mxu0 0.0
    %1009 = vmatprep.subr.mxu0 0.0
    %1010 = vmatpush1.msra.mxu0 0.0
    %1011 = vmatprep.subr.mxu0 0.0
    %1012 = vmatpush1.msra.mxu0 0.0
    %1013 = vmatprep.subr.mxu0 0.0
    %1014 = vmatpush1.msra.mxu0 0.0
    %1015 = vmatprep.subr.mxu0 0.0
    %1016 = vmatpush1.msra.mxu0 0.0
    %1017 = vmatprep.subr.mxu0 0.0
    %1018 = vmatpush1.msra.mxu0 0.0
    %1019 = vmatprep.subr.mxu0 0.0
    %1020 = vmatpush1.msra.mxu0 0.0
    %1021 = vmatprep.subr.mxu0 0.0
    %1022 = vmatpush1.msra.mxu0 0.0
    %1023 = vmatprep.subr.mxu0 0.0
    %1024 = vmatpush1.msra.mxu0 0.0
    %1025 = vmatprep.subr.mxu0 0.0
    %1026 = vmatpush1.msra.mxu0 0.0
    %1027 = vmatprep.subr.mxu0 0.0
    %1028 = vmatpush1.msra.mxu0 0.0
    %1029 = vmatprep.subr.mxu0 0.0
    %1030 = vmatpush1.msra.mxu0 0.0
    %1031 = vmatprep.subr.mxu0 0.0
    %1032 = vmatpush1.msra.mxu0 0.0
    %1033 = vmatprep.subr.mxu0 0.0
    %1034 = vmatpush1.msra.mxu0 0.0
    %1035 = vmatprep.subr.mxu0 0.0
    %1036 = vmatpush1.msra.mxu0 0.0
    %1037 = vmatprep.subr.mxu0 0.0
    %1038 = vmatpush1.msra.mxu0 0.0
    %1039 = vmatprep.subr.mxu0 0.0
    %1040 = vmatpush1.msra.mxu0 0.0
    %1041 = vmatprep.subr.mxu0 0.0
    %1042 = vmatpush1.msra.mxu0 0.0
    %1043 = vmatprep.subr.mxu0 0.0
    %1044 = vmatpush1.msra.mxu0 0.0
    %1045 = vmatprep.subr.mxu0 0.0
    %1046 = vmatpush1.msra.mxu0 0.0
    %1047 = vmatprep.subr.mxu0 0.0
    %1048 = vmatpush1.msra.mxu0 0.0
    %1049 = vmatprep.subr.mxu0 0.0
    %1050 = vmatpush1.msra.mxu0 0.0
    %1051 = vmatprep.subr.mxu0 0.0
    %1052 = vmatpush1.msra.mxu0 0.0
    %1053 = vmatprep.mubr.f32.mxu0 0.0
    %1054 = vmatmul.mubr.f32.gmra.mrb[0].mxu0 %v797
    %v1055 = vpop.f32.mrb[0].mxu0
    %v1056 = vadd.f32 0.0, %v1055
    %v1057 = vpop.f32.mrb[0].mxu0
    %v1058 = vadd.f32 0.0, %v1057
    %1059 = vmatprep.mubr.f32.mxu0 0.0
    %1060 = vmatmul.mubr.f32.gmra.mrb[0].mxu0 %v800
    %v1061 = vpop.f32.mrb[0].mxu0
    %v1062 = vadd.f32 0.0, %v1061
    %v1063 = vpop.f32.mrb[0].mxu0
    %v1064 = vadd.f32 0.0, %v1063
    %1065 = vmatprep.mubr.f32.mxu0 0.0
    %1066 = vmatmul.mubr.f32.gmra.mrb[0].mxu0 %v803
    %v1067 = vpop.f32.mrb[0].mxu0
    %v1068 = vadd.f32 0.0, %v1067
    %v1069 = vpop.f32.mrb[0].mxu0
    %v1070 = vadd.f32 0.0, %v1069
    %1071 = vdwg.mxu0
    %1072 = vst [vmem:[%s11] sm:$0xff] %v890
    %1073 = vst [vmem:[%s11 + $0x8] sm:$0xff] %v892
    %1074 = vst [vmem:[%s11 + $0x10] sm:$0xff] %v973
    %1075 = vst [vmem:[%s11 + $0x18] sm:$0xff] %v975
    %1076 = vst [vmem:[%s11 + $0x20] sm:$0xff] %v1056
    %1077 = vst [vmem:[%s11 + $0x28] sm:$0xff] %v1058
    %1078 = vst [vmem:[%s11 + $0x30] sm:$0xff] %v896
    %1079 = vst [vmem:[%s11 + $0x38] sm:$0xff] %v898
    %1080 = vst [vmem:[%s11 + $0x40] sm:$0xff] %v979
    %1081 = vst [vmem:[%s11 + $0x48] sm:$0xff] %v981
    %1082 = vst [vmem:[%s11 + $0x50] sm:$0xff] %v1062
    %1083 = vst [vmem:[%s11 + $0x58] sm:$0xff] %v1064
    %1084 = vst [vmem:[%s11 + $0x60] sm:$0x3] %v902
    %1085 = vst [vmem:[%s11 + $0x68] sm:$0x3] %v904
    %1086 = vst [vmem:[%s11 + $0x70] sm:$0x3] %v985
    %1087 = vst [vmem:[%s11 + $0x78] sm:$0x3] %v987
    %1088 = vst [vmem:[%s11 + $0x80] sm:$0x3] %v1068
    %1089 = vst [vmem:[%s11 + $0x88] sm:$0x3] %v1070
    // Predicated region
    $region42: #{forward.2} parent=1 // pred_check
      _
    $region43: #{forward.2} parent=1 // pred_check_branch
      %1091 = sbr.rel (0) target = $region45
    $region44: #{forward.2} parent=1 // pred_region
      _
    $region45: #{forward.2} parent=1 // pred_fallthru
      _
    // Predicated region
    $region46: #{forward.2} parent=1 // pred_check
      _
    $region47: #{forward.2} parent=1 // pred_check_branch
      %1093 = sbr.rel (0) target = $region49
    $region48: #{forward.2} parent=1 // pred_region
      _
    $region49: #{forward.2} parent=1 // pred_fallthru
      _
    // Predicated region
    $region50: #{forward.2} parent=1 // pred_check
      _
    $region51: #{forward.2} parent=1 // pred_check_branch
      %1095 = sbr.rel (0) target = $region53
    $region52: #{forward.2} parent=1 // pred_region
      _
    $region53: #{forward.2} parent=1 // pred_fallthru
      _
    // Predicated region
    $region54: #{forward.2} parent=1 // pred_check
      _
    $region55: #{forward.2} parent=1 // pred_check_branch
      %1097 = sbr.rel (0) target = $region57
    $region56: #{forward.2} parent=1 // pred_region
      _
    $region57: #{forward.2} parent=1 // pred_fallthru
      _
    // Predicated region
    $region58: #{forward.2} parent=1 // pred_check
      _
    $region59: #{forward.2} parent=1 // pred_check_branch
      %1099 = sbr.rel (0) target = $region61
    $region60: #{forward.2} parent=1 // pred_region
      _
    $region61: #{forward.2} parent=1 // pred_fallthru
      _
    // Predicated region
    $region62: #{forward.2} parent=1 // pred_check
      _
    $region63: #{forward.2} parent=1 // pred_check_branch
      %1101 = sbr.rel (0) target = $region65
    $region64: #{forward.2} parent=1 // pred_region
      _
    $region65: #{forward.2} parent=1 // pred_fallthru
      _
    // Predicated region
    $region66: #{forward.2} parent=1 // pred_check
      _
    $region67: #{forward.2} parent=1 // pred_check_branch
      %1103 = sbr.rel (0) target = $region69
    $region68: #{forward.2} parent=1 // pred_region
      _
    $region69: #{forward.2} parent=1 // pred_fallthru
      _
    // Predicated region
    $region70: #{forward.2} parent=1 // pred_check
      _
    $region71: #{forward.2} parent=1 // pred_check_branch
      %1105 = sbr.rel (0) target = $region73
    $region72: #{forward.2} parent=1 // pred_region
      _
    $region73: #{forward.2} parent=1 // pred_fallthru
      _
    %1106 = vsyncpa [#allocation3], 1
    %1107 = vsyncpa [#allocation5], 1

// kernel: forward.3
$region0: #{forward.3}
  #allocation0 [shape = 'u32[]', space=smem, size = 0x4, offset = 0x4, fixed_abs, tag = 'smem constant byte address 0x4 - core index']
  #allocation1 [shape = 'u32[144,128]{1,0:T(1,128)}', space=vmem, size = 0x12000, scoped, tag = 'internal scratch']
  #allocation2 [shape = 'f32[196,24]{1,0:T(8,128)}', space=vmem, size = 0x19000, scoped, tag = 'scratch operand']
  #allocation3 [shape = 'f32[7,112]{1,0:T(8,128)}', space=vmem, size = 0x1000, scoped, tag = 'scratch operand']
  #allocation4 [shape = 'f32[196,32]{1,0:T(8,128)}', space=vmem, size = 0x19000, scoped, tag = 'scratch operand']
  %s0 = inlined_call_operand.vmem [shape: f32[2,256,4], index: 0, kind: input, shape index: {}]
  %s1 = inlined_call_operand.vmem [shape: bf16[4,8], index: 1, kind: input, shape index: {}]
  %s2 = inlined_call_operand.vmem [shape: f32[1,8], index: 2, kind: input, shape index: {}]
  %s3 = inlined_call_operand.vmem [shape: bf16[28,256], index: 3, kind: input, shape index: {}]
  %s4 = inlined_call_operand.vmem [shape: bf16[4,8,112], index: 4, kind: input, shape index: {}]
  %s5 = inlined_call_operand.vmem [shape: bf16[512,196], index: 5, kind: input, shape index: {}]
  %s6 = inlined_call_operand.vmem [shape: f32[1,16], index: 6, kind: input, shape index: {}]
  %s7 = inlined_call_operand.vmem [shape: bf16[196,512], index: 7, kind: input, shape index: {}]
  %s8 = inlined_call_operand.vmem [shape: bf16[4,7,16,112], index: 8, kind: input, shape index: {}]
  %s9 = inlined_call_operand.vmem [shape: bf16[512,196], index: 9, kind: input, shape index: {}]
  %s10 = inlined_call_operand.vmem [shape: f32[1,16], index: 10, kind: input, shape index: {}]
  %s11 = inlined_call_operand.vmem [shape: bf16[18,512], index: 11, kind: input, shape index: {}]
  %s12 = inlined_call_operand.vmem [shape: bf16[2,3,16,72], index: 12, kind: input, shape index: {}]
  %s13 = inlined_call_operand.vmem [shape: bf16[64,18], index: 13, kind: input, shape index: {}]
  %s14 = inlined_call_operand.vmem [shape: f32[1,24], index: 14, kind: input, shape index: {}]
  %s15 = inlined_call_operand.vmem [shape: bf16[18,64], index: 15, kind: input, shape index: {}]
  %s16 = inlined_call_operand.vmem [shape: bf16[2,3,24,96], index: 16, kind: input, shape index: {}]
  %s17 = inlined_call_operand.vmem [shape: bf16[64,18], index: 17, kind: input, shape index: {}]
  %s18 = inlined_call_operand.vmem [shape: f32[1,32], index: 18, kind: input, shape index: {}]
  %s19 = inlined_call_operand.vmem [shape: f32[64,1], index: 19, kind: input, shape index: {}]
  %s20 = inlined_call_operand.vmem [shape: f32[32,2], index: 20, kind: input, shape index: {}]
  %s21 = inlined_call_operand.vmem [shape: f32[1,2], index: 21, kind: input, shape index: {}]
  %s22 = inlined_call_operand.hbm [shape: f32[2,1,2], index: 22, kind: output, shape index: {}]
  %s23 = sld [smem:[#allocation0]]
  $region121: #{forward.3} parent=0
    _
  %s25 = ssub.s32 1, %s23
  %s26 = scalar_select 0, %s25, %s23
  $region1: #{forward.3} parent=0
    #allocation5 [shape = 'u8[1024]{0}', space=vmem, size = 0x400, scoped, tag = 'output window, operand 0']
    #allocation6 [shape = 's32[2]{0}', space=sflag, size = 0x8, scoped, tag = 'scoped memory for forward.3']
    %27 = vsyncpa [#allocation6], 0
    %s28 = scalar_lea.sflag [#allocation6], 1
    %29 = vsyncpa %s28, 0
    loop: start=0, step=1, limit=4
    $region2: #{forward.3} parent=1 // loop_pre_header
      _
    $region3: #{forward.3} parent=1 // loop_header
      %s31 = sphi 0, %s35
      %p32 = scmp.ge.s32.totalorder %s31, 4
      %s41 = sphi 0, %s43
      %s44 = sphi 0, %s41
      %s45 = sphi 0, %s44
      %s61 = sphi 0, %s45
      %s65 = sphi 0, %s65
      %s67 = sphi 0, %s65
      %s68 = sphi 0, %s67
      %s82 = sphi 0, %s68
      %s86 = sphi 0, %s86
      %s88 = sphi 0, %s86
      %s89 = sphi 0, %s88
      %s103 = sphi 0, %s89
      %s107 = sphi 0, %s107
      %s109 = sphi 0, %s107
      %s110 = sphi 0, %s109
      %s124 = sphi 0, %s110
      %s128 = sphi 0, %s128
      %s130 = sphi 0, %s128
      %s131 = sphi 0, %s130
      %s145 = sphi 0, %s131
      %s149 = sphi 0, %s149
      %s151 = sphi 0, %s149
      %s152 = sphi 0, %s151
      %s166 = sphi 0, %s152
      %s170 = sphi 0, %s170
      %s172 = sphi 0, %s170
      %s173 = sphi 0, %s172
      %s187 = sphi 0, %s173
      %s191 = sphi 0, %s191
      %s193 = sphi 0, %s191
      %s194 = sphi 0, %s193
      %s208 = sphi 0, %s194
      %s212 = sphi 0, %s212
      %s214 = sphi 0, %s212
      %s215 = sphi 0, %s214
      %s229 = sphi 0, %s215
      %s233 = sphi 0, %s233
      %s235 = sphi 0, %s233
      %s236 = sphi 0, %s235
      %s250 = sphi 0, %s236
      %s254 = sphi 0, %s254
      %s256 = sphi 0, %s254
      %s257 = sphi 0, %s256
      %s271 = sphi 0, %s257
      %s275 = sphi 0, %s275
      %s277 = sphi 0, %s275
      %s278 = sphi 0, %s277
      %s292 = sphi 0, %s278
      %s296 = sphi 0, %s296
      %s298 = sphi 0, %s296
      %s299 = sphi 0, %s298
      %s313 = sphi 0, %s299
      %s317 = sphi 0, %s317
      %s319 = sphi 0, %s317
      %s320 = sphi 0, %s319
      %s334 = sphi 0, %s320
      %s338 = sphi 0, %s338
      %s340 = sphi 0, %s338
      %s341 = sphi 0, %s340
      %s355 = sphi 0, %s341
      %s359 = sphi 0, %s359
      %s361 = sphi 0, %s359
      %s362 = sphi 0, %s361
      %s376 = sphi 0, %s362
      %s380 = sphi 0, %s380
      %s382 = sphi 0, %s380
      %s383 = sphi 0, %s382
      %s397 = sphi 0, %s383
      %s401 = sphi 0, %s401
      %s403 = sphi 0, %s401
      %s404 = sphi 0, %s403
      %s418 = sphi 0, %s404
      %s422 = sphi 0, %s422
      %s424 = sphi 0, %s422
      %s425 = sphi 0, %s424
      %s439 = sphi 0, %s425
      %s443 = sphi 0, %s443
      %s445 = sphi 0, %s443
      %s446 = sphi 0, %s445
      %s460 = sphi 0, %s446
      %s464 = sphi 0, %s464
      %s466 = sphi 0, %s464
      %s467 = sphi 0, %s466
      %s481 = sphi 0, %s467
      %s485 = sphi 0, %s485
      %s487 = sphi 0, %s485
      %s488 = sphi 0, %s487
      %s502 = sphi 0, %s488
      %s508 = sphi 0, %s510
      %s511 = sphi 0, %s508
      %s512 = sphi 0, %s511
      %s528 = sphi 0, %s512
    $region4: #{forward.3} parent=1 // loop_header_branch
      %34 = sbr.rel (%p32) target = $region8
    $region5: #{forward.3} parent=1 // loop_body
      %s36 = ssub.s32 %s31, 1
      %s37 = ssub.s32 %s31, 2
      %s38 = sadd.s32 %s31, 1
      %s39 = ssub.s32 %s31, %s38
      %p40 = scmp.eq.s32.totalorder %s39, 0
      %s42 = sadd.s32 %s41, 1
      %s43 = scalar_select %p40, %s41, %s42
      %p46 = pneg %p40
      %p47 = scmp.eq.s32.totalorder %s31, 1
      %p48 = por %p46, %p47
      %p49 = scmp.ne.s32.totalorder %s41, %s44
      %p50 = scmp.eq.s32.totalorder %s31, 0
      %p51 = por %p49, %p50
      %p52 = scmp.ne.s32.totalorder %s41, %s44
      %p53 = scmp.eq.s32.totalorder %s36, 1
      %p54 = por %p52, %p53
      %p55 = scmp.ne.s32.totalorder %s44, %s45
      %p56 = scmp.eq.s32.totalorder %s36, 0
      %p57 = por %p55, %p56
      %p58 = scmp.ne.s32.totalorder %s44, %s45
      %p59 = scmp.eq.s32.totalorder %s37, 1
      %p60 = por %p58, %p59
      %p62 = scmp.ne.s32.totalorder %s45, %s61
      %p63 = scmp.eq.s32.totalorder %s37, 0
      %p64 = por %p62, %p63
      %s66 = sadd.s32 %s65, 1
      %p69 = scmp.eq.s32.totalorder %s31, 1
      %p70 = scmp.ne.s32.totalorder %s65, %s67
      %p71 = scmp.eq.s32.totalorder %s31, 0
      %p72 = por %p70, %p71
      %p73 = scmp.ne.s32.totalorder %s65, %s67
      %p74 = scmp.eq.s32.totalorder %s36, 1
      %p75 = por %p73, %p74
      %p76 = scmp.ne.s32.totalorder %s67, %s68
      %p77 = scmp.eq.s32.totalorder %s36, 0
      %p78 = por %p76, %p77
      %p79 = scmp.ne.s32.totalorder %s67, %s68
      %p80 = scmp.eq.s32.totalorder %s37, 1
      %p81 = por %p79, %p80
      %p83 = scmp.ne.s32.totalorder %s68, %s82
      %p84 = scmp.eq.s32.totalorder %s37, 0
      %p85 = por %p83, %p84
      %s87 = sadd.s32 %s86, 1
      %p90 = scmp.eq.s32.totalorder %s31, 1
      %p91 = scmp.ne.s32.totalorder %s86, %s88
      %p92 = scmp.eq.s32.totalorder %s31, 0
      %p93 = por %p91, %p92
      %p94 = scmp.ne.s32.totalorder %s86, %s88
      %p95 = scmp.eq.s32.totalorder %s36, 1
      %p96 = por %p94, %p95
      %p97 = scmp.ne.s32.totalorder %s88, %s89
      %p98 = scmp.eq.s32.totalorder %s36, 0
      %p99 = por %p97, %p98
      %p100 = scmp.ne.s32.totalorder %s88, %s89
      %p101 = scmp.eq.s32.totalorder %s37, 1
      %p102 = por %p100, %p101
      %p104 = scmp.ne.s32.totalorder %s89, %s103
      %p105 = scmp.eq.s32.totalorder %s37, 0
      %p106 = por %p104, %p105
      %s108 = sadd.s32 %s107, 1
      %p111 = scmp.eq.s32.totalorder %s31, 1
      %p112 = scmp.ne.s32.totalorder %s107, %s109
      %p113 = scmp.eq.s32.totalorder %s31, 0
      %p114 = por %p112, %p113
      %p115 = scmp.ne.s32.totalorder %s107, %s109
      %p116 = scmp.eq.s32.totalorder %s36, 1
      %p117 = por %p115, %p116
      %p118 = scmp.ne.s32.totalorder %s109, %s110
      %p119 = scmp.eq.s32.totalorder %s36, 0
      %p120 = por %p118, %p119
      %p121 = scmp.ne.s32.totalorder %s109, %s110
      %p122 = scmp.eq.s32.totalorder %s37, 1
      %p123 = por %p121, %p122
      %p125 = scmp.ne.s32.totalorder %s110, %s124
      %p126 = scmp.eq.s32.totalorder %s37, 0
      %p127 = por %p125, %p126
      %s129 = sadd.s32 %s128, 1
      %p132 = scmp.eq.s32.totalorder %s31, 1
      %p133 = scmp.ne.s32.totalorder %s128, %s130
      %p134 = scmp.eq.s32.totalorder %s31, 0
      %p135 = por %p133, %p134
      %p136 = scmp.ne.s32.totalorder %s128, %s130
      %p137 = scmp.eq.s32.totalorder %s36, 1
      %p138 = por %p136, %p137
      %p139 = scmp.ne.s32.totalorder %s130, %s131
      %p140 = scmp.eq.s32.totalorder %s36, 0
      %p141 = por %p139, %p140
      %p142 = scmp.ne.s32.totalorder %s130, %s131
      %p143 = scmp.eq.s32.totalorder %s37, 1
      %p144 = por %p142, %p143
      %p146 = scmp.ne.s32.totalorder %s131, %s145
      %p147 = scmp.eq.s32.totalorder %s37, 0
      %p148 = por %p146, %p147
      %s150 = sadd.s32 %s149, 1
      %p153 = scmp.eq.s32.totalorder %s31, 1
      %p154 = scmp.ne.s32.totalorder %s149, %s151
      %p155 = scmp.eq.s32.totalorder %s31, 0
      %p156 = por %p154, %p155
      %p157 = scmp.ne.s32.totalorder %s149, %s151
      %p158 = scmp.eq.s32.totalorder %s36, 1
      %p159 = por %p157, %p158
      %p160 = scmp.ne.s32.totalorder %s151, %s152
      %p161 = scmp.eq.s32.totalorder %s36, 0
      %p162 = por %p160, %p161
      %p163 = scmp.ne.s32.totalorder %s151, %s152
      %p164 = scmp.eq.s32.totalorder %s37, 1
      %p165 = por %p163, %p164
      %p167 = scmp.ne.s32.totalorder %s152, %s166
      %p168 = scmp.eq.s32.totalorder %s37, 0
      %p169 = por %p167, %p168
      %s171 = sadd.s32 %s170, 1
      %p174 = scmp.eq.s32.totalorder %s31, 1
      %p175 = scmp.ne.s32.totalorder %s170, %s172
      %p176 = scmp.eq.s32.totalorder %s31, 0
      %p177 = por %p175, %p176
      %p178 = scmp.ne.s32.totalorder %s170, %s172
      %p179 = scmp.eq.s32.totalorder %s36, 1
      %p180 = por %p178, %p179
      %p181 = scmp.ne.s32.totalorder %s172, %s173
      %p182 = scmp.eq.s32.totalorder %s36, 0
      %p183 = por %p181, %p182
      %p184 = scmp.ne.s32.totalorder %s172, %s173
      %p185 = scmp.eq.s32.totalorder %s37, 1
      %p186 = por %p184, %p185
      %p188 = scmp.ne.s32.totalorder %s173, %s187
      %p189 = scmp.eq.s32.totalorder %s37, 0
      %p190 = por %p188, %p189
      %s192 = sadd.s32 %s191, 1
      %p195 = scmp.eq.s32.totalorder %s31, 1
      %p196 = scmp.ne.s32.totalorder %s191, %s193
      %p197 = scmp.eq.s32.totalorder %s31, 0
      %p198 = por %p196, %p197
      %p199 = scmp.ne.s32.totalorder %s191, %s193
      %p200 = scmp.eq.s32.totalorder %s36, 1
      %p201 = por %p199, %p200
      %p202 = scmp.ne.s32.totalorder %s193, %s194
      %p203 = scmp.eq.s32.totalorder %s36, 0
      %p204 = por %p202, %p203
      %p205 = scmp.ne.s32.totalorder %s193, %s194
      %p206 = scmp.eq.s32.totalorder %s37, 1
      %p207 = por %p205, %p206
      %p209 = scmp.ne.s32.totalorder %s194, %s208
      %p210 = scmp.eq.s32.totalorder %s37, 0
      %p211 = por %p209, %p210
      %s213 = sadd.s32 %s212, 1
      %p216 = scmp.eq.s32.totalorder %s31, 1
      %p217 = scmp.ne.s32.totalorder %s212, %s214
      %p218 = scmp.eq.s32.totalorder %s31, 0
      %p219 = por %p217, %p218
      %p220 = scmp.ne.s32.totalorder %s212, %s214
      %p221 = scmp.eq.s32.totalorder %s36, 1
      %p222 = por %p220, %p221
      %p223 = scmp.ne.s32.totalorder %s214, %s215
      %p224 = scmp.eq.s32.totalorder %s36, 0
      %p225 = por %p223, %p224
      %p226 = scmp.ne.s32.totalorder %s214, %s215
      %p227 = scmp.eq.s32.totalorder %s37, 1
      %p228 = por %p226, %p227
      %p230 = scmp.ne.s32.totalorder %s215, %s229
      %p231 = scmp.eq.s32.totalorder %s37, 0
      %p232 = por %p230, %p231
      %s234 = sadd.s32 %s233, 1
      %p237 = scmp.eq.s32.totalorder %s31, 1
      %p238 = scmp.ne.s32.totalorder %s233, %s235
      %p239 = scmp.eq.s32.totalorder %s31, 0
      %p240 = por %p238, %p239
      %p241 = scmp.ne.s32.totalorder %s233, %s235
      %p242 = scmp.eq.s32.totalorder %s36, 1
      %p243 = por %p241, %p242
      %p244 = scmp.ne.s32.totalorder %s235, %s236
      %p245 = scmp.eq.s32.totalorder %s36, 0
      %p246 = por %p244, %p245
      %p247 = scmp.ne.s32.totalorder %s235, %s236
      %p248 = scmp.eq.s32.totalorder %s37, 1
      %p249 = por %p247, %p248
      %p251 = scmp.ne.s32.totalorder %s236, %s250
      %p252 = scmp.eq.s32.totalorder %s37, 0
      %p253 = por %p251, %p252
      %s255 = sadd.s32 %s254, 1
      %p258 = scmp.eq.s32.totalorder %s31, 1
      %p259 = scmp.ne.s32.totalorder %s254, %s256
      %p260 = scmp.eq.s32.totalorder %s31, 0
      %p261 = por %p259, %p260
      %p262 = scmp.ne.s32.totalorder %s254, %s256
      %p263 = scmp.eq.s32.totalorder %s36, 1
      %p264 = por %p262, %p263
      %p265 = scmp.ne.s32.totalorder %s256, %s257
      %p266 = scmp.eq.s32.totalorder %s36, 0
      %p267 = por %p265, %p266
      %p268 = scmp.ne.s32.totalorder %s256, %s257
      %p269 = scmp.eq.s32.totalorder %s37, 1
      %p270 = por %p268, %p269
      %p272 = scmp.ne.s32.totalorder %s257, %s271
      %p273 = scmp.eq.s32.totalorder %s37, 0
      %p274 = por %p272, %p273
      %s276 = sadd.s32 %s275, 1
      %p279 = scmp.eq.s32.totalorder %s31, 1
      %p280 = scmp.ne.s32.totalorder %s275, %s277
      %p281 = scmp.eq.s32.totalorder %s31, 0
      %p282 = por %p280, %p281
      %p283 = scmp.ne.s32.totalorder %s275, %s277
      %p284 = scmp.eq.s32.totalorder %s36, 1
      %p285 = por %p283, %p284
      %p286 = scmp.ne.s32.totalorder %s277, %s278
      %p287 = scmp.eq.s32.totalorder %s36, 0
      %p288 = por %p286, %p287
      %p289 = scmp.ne.s32.totalorder %s277, %s278
      %p290 = scmp.eq.s32.totalorder %s37, 1
      %p291 = por %p289, %p290
      %p293 = scmp.ne.s32.totalorder %s278, %s292
      %p294 = scmp.eq.s32.totalorder %s37, 0
      %p295 = por %p293, %p294
      %s297 = sadd.s32 %s296, 1
      %p300 = scmp.eq.s32.totalorder %s31, 1
      %p301 = scmp.ne.s32.totalorder %s296, %s298
      %p302 = scmp.eq.s32.totalorder %s31, 0
      %p303 = por %p301, %p302
      %p304 = scmp.ne.s32.totalorder %s296, %s298
      %p305 = scmp.eq.s32.totalorder %s36, 1
      %p306 = por %p304, %p305
      %p307 = scmp.ne.s32.totalorder %s298, %s299
      %p308 = scmp.eq.s32.totalorder %s36, 0
      %p309 = por %p307, %p308
      %p310 = scmp.ne.s32.totalorder %s298, %s299
      %p311 = scmp.eq.s32.totalorder %s37, 1
      %p312 = por %p310, %p311
      %p314 = scmp.ne.s32.totalorder %s299, %s313
      %p315 = scmp.eq.s32.totalorder %s37, 0
      %p316 = por %p314, %p315
      %s318 = sadd.s32 %s317, 1
      %p321 = scmp.eq.s32.totalorder %s31, 1
      %p322 = scmp.ne.s32.totalorder %s317, %s319
      %p323 = scmp.eq.s32.totalorder %s31, 0
      %p324 = por %p322, %p323
      %p325 = scmp.ne.s32.totalorder %s317, %s319
      %p326 = scmp.eq.s32.totalorder %s36, 1
      %p327 = por %p325, %p326
      %p328 = scmp.ne.s32.totalorder %s319, %s320
      %p329 = scmp.eq.s32.totalorder %s36, 0
      %p330 = por %p328, %p329
      %p331 = scmp.ne.s32.totalorder %s319, %s320
      %p332 = scmp.eq.s32.totalorder %s37, 1
      %p333 = por %p331, %p332
      %p335 = scmp.ne.s32.totalorder %s320, %s334
      %p336 = scmp.eq.s32.totalorder %s37, 0
      %p337 = por %p335, %p336
      %s339 = sadd.s32 %s338, 1
      %p342 = scmp.eq.s32.totalorder %s31, 1
      %p343 = scmp.ne.s32.totalorder %s338, %s340
      %p344 = scmp.eq.s32.totalorder %s31, 0
      %p345 = por %p343, %p344
      %p346 = scmp.ne.s32.totalorder %s338, %s340
      %p347 = scmp.eq.s32.totalorder %s36, 1
      %p348 = por %p346, %p347
      %p349 = scmp.ne.s32.totalorder %s340, %s341
      %p350 = scmp.eq.s32.totalorder %s36, 0
      %p351 = por %p349, %p350
      %p352 = scmp.ne.s32.totalorder %s340, %s341
      %p353 = scmp.eq.s32.totalorder %s37, 1
      %p354 = por %p352, %p353
      %p356 = scmp.ne.s32.totalorder %s341, %s355
      %p357 = scmp.eq.s32.totalorder %s37, 0
      %p358 = por %p356, %p357
      %s360 = sadd.s32 %s359, 1
      %p363 = scmp.eq.s32.totalorder %s31, 1
      %p364 = scmp.ne.s32.totalorder %s359, %s361
      %p365 = scmp.eq.s32.totalorder %s31, 0
      %p366 = por %p364, %p365
      %p367 = scmp.ne.s32.totalorder %s359, %s361
      %p368 = scmp.eq.s32.totalorder %s36, 1
      %p369 = por %p367, %p368
      %p370 = scmp.ne.s32.totalorder %s361, %s362
      %p371 = scmp.eq.s32.totalorder %s36, 0
      %p372 = por %p370, %p371
      %p373 = scmp.ne.s32.totalorder %s361, %s362
      %p374 = scmp.eq.s32.totalorder %s37, 1
      %p375 = por %p373, %p374
      %p377 = scmp.ne.s32.totalorder %s362, %s376
      %p378 = scmp.eq.s32.totalorder %s37, 0
      %p379 = por %p377, %p378
      %s381 = sadd.s32 %s380, 1
      %p384 = scmp.eq.s32.totalorder %s31, 1
      %p385 = scmp.ne.s32.totalorder %s380, %s382
      %p386 = scmp.eq.s32.totalorder %s31, 0
      %p387 = por %p385, %p386
      %p388 = scmp.ne.s32.totalorder %s380, %s382
      %p389 = scmp.eq.s32.totalorder %s36, 1
      %p390 = por %p388, %p389
      %p391 = scmp.ne.s32.totalorder %s382, %s383
      %p392 = scmp.eq.s32.totalorder %s36, 0
      %p393 = por %p391, %p392
      %p394 = scmp.ne.s32.totalorder %s382, %s383
      %p395 = scmp.eq.s32.totalorder %s37, 1
      %p396 = por %p394, %p395
      %p398 = scmp.ne.s32.totalorder %s383, %s397
      %p399 = scmp.eq.s32.totalorder %s37, 0
      %p400 = por %p398, %p399
      %s402 = sadd.s32 %s401, 1
      %p405 = scmp.eq.s32.totalorder %s31, 1
      %p406 = scmp.ne.s32.totalorder %s401, %s403
      %p407 = scmp.eq.s32.totalorder %s31, 0
      %p408 = por %p406, %p407
      %p409 = scmp.ne.s32.totalorder %s401, %s403
      %p410 = scmp.eq.s32.totalorder %s36, 1
      %p411 = por %p409, %p410
      %p412 = scmp.ne.s32.totalorder %s403, %s404
      %p413 = scmp.eq.s32.totalorder %s36, 0
      %p414 = por %p412, %p413
      %p415 = scmp.ne.s32.totalorder %s403, %s404
      %p416 = scmp.eq.s32.totalorder %s37, 1
      %p417 = por %p415, %p416
      %p419 = scmp.ne.s32.totalorder %s404, %s418
      %p420 = scmp.eq.s32.totalorder %s37, 0
      %p421 = por %p419, %p420
      %s423 = sadd.s32 %s422, 1
      %p426 = scmp.eq.s32.totalorder %s31, 1
      %p427 = scmp.ne.s32.totalorder %s422, %s424
      %p428 = scmp.eq.s32.totalorder %s31, 0
      %p429 = por %p427, %p428
      %p430 = scmp.ne.s32.totalorder %s422, %s424
      %p431 = scmp.eq.s32.totalorder %s36, 1
      %p432 = por %p430, %p431
      %p433 = scmp.ne.s32.totalorder %s424, %s425
      %p434 = scmp.eq.s32.totalorder %s36, 0
      %p435 = por %p433, %p434
      %p436 = scmp.ne.s32.totalorder %s424, %s425
      %p437 = scmp.eq.s32.totalorder %s37, 1
      %p438 = por %p436, %p437
      %p440 = scmp.ne.s32.totalorder %s425, %s439
      %p441 = scmp.eq.s32.totalorder %s37, 0
      %p442 = por %p440, %p441
      %s444 = sadd.s32 %s443, 1
      %p447 = scmp.eq.s32.totalorder %s31, 1
      %p448 = scmp.ne.s32.totalorder %s443, %s445
      %p449 = scmp.eq.s32.totalorder %s31, 0
      %p450 = por %p448, %p449
      %p451 = scmp.ne.s32.totalorder %s443, %s445
      %p452 = scmp.eq.s32.totalorder %s36, 1
      %p453 = por %p451, %p452
      %p454 = scmp.ne.s32.totalorder %s445, %s446
      %p455 = scmp.eq.s32.totalorder %s36, 0
      %p456 = por %p454, %p455
      %p457 = scmp.ne.s32.totalorder %s445, %s446
      %p458 = scmp.eq.s32.totalorder %s37, 1
      %p459 = por %p457, %p458
      %p461 = scmp.ne.s32.totalorder %s446, %s460
      %p462 = scmp.eq.s32.totalorder %s37, 0
      %p463 = por %p461, %p462
      %s465 = sadd.s32 %s464, 1
      %p468 = scmp.eq.s32.totalorder %s31, 1
      %p469 = scmp.ne.s32.totalorder %s464, %s466
      %p470 = scmp.eq.s32.totalorder %s31, 0
      %p471 = por %p469, %p470
      %p472 = scmp.ne.s32.totalorder %s464, %s466
      %p473 = scmp.eq.s32.totalorder %s36, 1
      %p474 = por %p472, %p473
      %p475 = scmp.ne.s32.totalorder %s466, %s467
      %p476 = scmp.eq.s32.totalorder %s36, 0
      %p477 = por %p475, %p476
      %p478 = scmp.ne.s32.totalorder %s466, %s467
      %p479 = scmp.eq.s32.totalorder %s37, 1
      %p480 = por %p478, %p479
      %p482 = scmp.ne.s32.totalorder %s467, %s481
      %p483 = scmp.eq.s32.totalorder %s37, 0
      %p484 = por %p482, %p483
      %s486 = sadd.s32 %s485, 1
      %p489 = scmp.eq.s32.totalorder %s31, 1
      %p490 = scmp.ne.s32.totalorder %s485, %s487
      %p491 = scmp.eq.s32.totalorder %s31, 0
      %p492 = por %p490, %p491
      %p493 = scmp.ne.s32.totalorder %s485, %s487
      %p494 = scmp.eq.s32.totalorder %s36, 1
      %p495 = por %p493, %p494
      %p496 = scmp.ne.s32.totalorder %s487, %s488
      %p497 = scmp.eq.s32.totalorder %s36, 0
      %p498 = por %p496, %p497
      %p499 = scmp.ne.s32.totalorder %s487, %s488
      %p500 = scmp.eq.s32.totalorder %s37, 1
      %p501 = por %p499, %p500
      %p503 = scmp.ne.s32.totalorder %s488, %s502
      %p504 = scmp.eq.s32.totalorder %s37, 0
      %p505 = por %p503, %p504
      %s506 = ssub.s32 %s31, %s38
      %p507 = scmp.eq.s32.totalorder %s506, 0
      %s509 = sadd.s32 %s508, 1
      %s510 = scalar_select %p507, %s508, %s509
      %p513 = pneg %p507
      %p514 = scmp.eq.s32.totalorder %s31, 1
      %p515 = por %p513, %p514
      %p516 = scmp.ne.s32.totalorder %s508, %s511
      %p517 = scmp.eq.s32.totalorder %s31, 0
      %p518 = por %p516, %p517
      %p519 = scmp.ne.s32.totalorder %s508, %s511
      %p520 = scmp.eq.s32.totalorder %s36, 1
      %p521 = por %p519, %p520
      %p522 = scmp.ne.s32.totalorder %s511, %s512
      %p523 = scmp.eq.s32.totalorder %s36, 0
      %p524 = por %p522, %p523
      %p525 = scmp.ne.s32.totalorder %s511, %s512
      %p526 = scmp.eq.s32.totalorder %s37, 1
      %p527 = por %p525, %p526
      %p529 = scmp.ne.s32.totalorder %s512, %s528
      %p530 = scmp.eq.s32.totalorder %s37, 0
      %p531 = por %p529, %p530
      %p532 = scmp.le.s32.totalorder 1, %s31
      %p533 = scmp.lt.s32.totalorder %s31, 3
      %p534 = pnand %p532, %p533
      %p535 = pneg %p534
      // Predicated region
      $region9: #{forward.3} parent=5 // pred_check
        _
      $region10: #{forward.3} parent=5 // pred_check_branch
        %537 = sbr.rel (%p534) target = $region12
      $region11: #{forward.3} parent=5 // pred_region
        %s538 = ssub.s32 %s31, 1
        // Predicated region
        $region13: #{forward.3} parent=11 // pred_check
          %p539 = pneg %p78
        $region14: #{forward.3} parent=11 // pred_check_branch
          %541 = sbr.rel (%p539) target = $region16
        $region15: #{forward.3} parent=11 // pred_region
          _
        $region16: #{forward.3} parent=11 // pred_fallthru
          _
        // Predicated region
        $region17: #{forward.3} parent=11 // pred_check
          %p542 = pneg %p99
        $region18: #{forward.3} parent=11 // pred_check_branch
          %544 = sbr.rel (%p542) target = $region20
        $region19: #{forward.3} parent=11 // pred_region
          _
        $region20: #{forward.3} parent=11 // pred_fallthru
          _
        // Predicated region
        $region21: #{forward.3} parent=11 // pred_check
          %p545 = pneg %p120
        $region22: #{forward.3} parent=11 // pred_check_branch
          %547 = sbr.rel (%p545) target = $region24
        $region23: #{forward.3} parent=11 // pred_region
          _
        $region24: #{forward.3} parent=11 // pred_fallthru
          _
        // Predicated region
        $region25: #{forward.3} parent=11 // pred_check
          %p548 = pneg %p141
        $region26: #{forward.3} parent=11 // pred_check_branch
          %550 = sbr.rel (%p548) target = $region28
        $region27: #{forward.3} parent=11 // pred_region
          _
        $region28: #{forward.3} parent=11 // pred_fallthru
          _
        // Predicated region
        $region29: #{forward.3} parent=11 // pred_check
          %p551 = pneg %p162
        $region30: #{forward.3} parent=11 // pred_check_branch
          %553 = sbr.rel (%p551) target = $region32
        $region31: #{forward.3} parent=11 // pred_region
          _
        $region32: #{forward.3} parent=11 // pred_fallthru
          _
        // Predicated region
        $region33: #{forward.3} parent=11 // pred_check
          %p554 = pneg %p183
        $region34: #{forward.3} parent=11 // pred_check_branch
          %556 = sbr.rel (%p554) target = $region36
        $region35: #{forward.3} parent=11 // pred_region
          _
        $region36: #{forward.3} parent=11 // pred_fallthru
          _
        // Predicated region
        $region37: #{forward.3} parent=11 // pred_check
          %p557 = pneg %p204
        $region38: #{forward.3} parent=11 // pred_check_branch
          %559 = sbr.rel (%p557) target = $region40
        $region39: #{forward.3} parent=11 // pred_region
          _
        $region40: #{forward.3} parent=11 // pred_fallthru
          _
        // Predicated region
        $region41: #{forward.3} parent=11 // pred_check
          %p560 = pneg %p225
        $region42: #{forward.3} parent=11 // pred_check_branch
          %562 = sbr.rel (%p560) target = $region44
        $region43: #{forward.3} parent=11 // pred_region
          _
        $region44: #{forward.3} parent=11 // pred_fallthru
          _
        // Predicated region
        $region45: #{forward.3} parent=11 // pred_check
          %p563 = pneg %p246
        $region46: #{forward.3} parent=11 // pred_check_branch
          %565 = sbr.rel (%p563) target = $region48
        $region47: #{forward.3} parent=11 // pred_region
          _
        $region48: #{forward.3} parent=11 // pred_fallthru
          _
        // Predicated region
        $region49: #{forward.3} parent=11 // pred_check
          %p566 = pneg %p267
        $region50: #{forward.3} parent=11 // pred_check_branch
          %568 = sbr.rel (%p566) target = $region52
        $region51: #{forward.3} parent=11 // pred_region
          _
        $region52: #{forward.3} parent=11 // pred_fallthru
          _
        // Predicated region
        $region53: #{forward.3} parent=11 // pred_check
          %p569 = pneg %p288
        $region54: #{forward.3} parent=11 // pred_check_branch
          %571 = sbr.rel (%p569) target = $region56
        $region55: #{forward.3} parent=11 // pred_region
          _
        $region56: #{forward.3} parent=11 // pred_fallthru
          _
        // Predicated region
        $region57: #{forward.3} parent=11 // pred_check
          %p572 = pneg %p309
        $region58: #{forward.3} parent=11 // pred_check_branch
          %574 = sbr.rel (%p572) target = $region60
        $region59: #{forward.3} parent=11 // pred_region
          _
        $region60: #{forward.3} parent=11 // pred_fallthru
          _
        // Predicated region
        $region61: #{forward.3} parent=11 // pred_check
          %p575 = pneg %p330
        $region62: #{forward.3} parent=11 // pred_check_branch
          %577 = sbr.rel (%p575) target = $region64
        $region63: #{forward.3} parent=11 // pred_region
          _
        $region64: #{forward.3} parent=11 // pred_fallthru
          _
        // Predicated region
        $region65: #{forward.3} parent=11 // pred_check
          %p578 = pneg %p351
        $region66: #{forward.3} parent=11 // pred_check_branch
          %580 = sbr.rel (%p578) target = $region68
        $region67: #{forward.3} parent=11 // pred_region
          _
        $region68: #{forward.3} parent=11 // pred_fallthru
          _
        // Predicated region
        $region69: #{forward.3} parent=11 // pred_check
          %p581 = pneg %p372
        $region70: #{forward.3} parent=11 // pred_check_branch
          %583 = sbr.rel (%p581) target = $region72
        $region71: #{forward.3} parent=11 // pred_region
          _
        $region72: #{forward.3} parent=11 // pred_fallthru
          _
        // Predicated region
        $region73: #{forward.3} parent=11 // pred_check
          %p584 = pneg %p393
        $region74: #{forward.3} parent=11 // pred_check_branch
          %586 = sbr.rel (%p584) target = $region76
        $region75: #{forward.3} parent=11 // pred_region
          _
        $region76: #{forward.3} parent=11 // pred_fallthru
          _
        // Predicated region
        $region77: #{forward.3} parent=11 // pred_check
          %p587 = pneg %p414
        $region78: #{forward.3} parent=11 // pred_check_branch
          %589 = sbr.rel (%p587) target = $region80
        $region79: #{forward.3} parent=11 // pred_region
          _
        $region80: #{forward.3} parent=11 // pred_fallthru
          _
        // Predicated region
        $region81: #{forward.3} parent=11 // pred_check
          %p590 = pneg %p435
        $region82: #{forward.3} parent=11 // pred_check_branch
          %592 = sbr.rel (%p590) target = $region84
        $region83: #{forward.3} parent=11 // pred_region
          _
        $region84: #{forward.3} parent=11 // pred_fallthru
          _
        // Predicated region
        $region85: #{forward.3} parent=11 // pred_check
          %p593 = pneg %p456
        $region86: #{forward.3} parent=11 // pred_check_branch
          %595 = sbr.rel (%p593) target = $region88
        $region87: #{forward.3} parent=11 // pred_region
          _
        $region88: #{forward.3} parent=11 // pred_fallthru
          _
        // Predicated region
        $region89: #{forward.3} parent=11 // pred_check
          %p596 = pneg %p477
        $region90: #{forward.3} parent=11 // pred_check_branch
          %598 = sbr.rel (%p596) target = $region92
        $region91: #{forward.3} parent=11 // pred_region
          _
        $region92: #{forward.3} parent=11 // pred_fallthru
          _
        // Predicated region
        $region93: #{forward.3} parent=11 // pred_check
          %p599 = pneg %p498
        $region94: #{forward.3} parent=11 // pred_check_branch
          %601 = sbr.rel (%p599) target = $region96
        $region95: #{forward.3} parent=11 // pred_region
          _
        $region96: #{forward.3} parent=11 // pred_fallthru
          _
      $region12: #{forward.3} parent=5 // pred_fallthru
        _
      %p602 = scmp.lt.s32.totalorder %s31, 2
      // Predicated region
      $region97: #{forward.3} parent=5 // pred_check
        %p603 = pneg %p602
      $region98: #{forward.3} parent=5 // pred_check_branch
        %605 = sbr.rel (%p603) target = $region100
      $region99: #{forward.3} parent=5 // pred_region
        // Predicated region
        $region101: #{forward.3} parent=99 // pred_check
          %p606 = pneg %p51
        $region102: #{forward.3} parent=99 // pred_check_branch
          %608 = sbr.rel (%p606) target = $region104
        $region103: #{forward.3} parent=99 // pred_region
          %p609 = scmp.lt.s32.totalorder %s31, 1
          %s610 = scalar_select %p609, %s31, 1
          %s611 = smul.addr %s610, 32
          %s612 = smul.addr %s611, 8
          %s613 = scalar_lea.vmem %s0, %s612
        $region104: #{forward.3} parent=99 // pred_fallthru
          _
      $region100: #{forward.3} parent=5 // pred_fallthru
        _
      %p614 = scmp.le.s32.totalorder 1, %s31
      %p615 = scmp.lt.s32.totalorder %s31, 3
      %p616 = pnand %p614, %p615
      %p617 = pneg %p616
      // Predicated region
      $region105: #{forward.3} parent=5 // pred_check
        _
      $region106: #{forward.3} parent=5 // pred_check_branch
        %619 = sbr.rel (%p616) target = $region108
      $region107: #{forward.3} parent=5 // pred_region
        %s620 = ssub.s32 %s31, 1
        %p621 = scmp.lt.s32.totalorder %s36, 1
        %s622 = scalar_select %p621, %s36, 1
        %s623 = smul.addr %s622, 32
        %s624 = smul.addr %s623, 8
        %s625 = scalar_lea.vmem %s0, %s624
        %p626 = pneg %p57
        %p627 = pneg %p54
        %p628 = pneg %p78
        %p629 = pneg %p75
        %p630 = pneg %p99
        %p631 = pneg %p96
        %p632 = pneg %p120
        %p633 = pneg %p117
        %p634 = pneg %p141
        %p635 = pneg %p138
        %p636 = pneg %p162
        %p637 = pneg %p159
        %p638 = pneg %p183
        %p639 = pneg %p180
        %p640 = pneg %p204
        %p641 = pneg %p201
        %p642 = pneg %p225
        %p643 = pneg %p222
        %p644 = pneg %p246
        %p645 = pneg %p243
        %p646 = pneg %p267
        %p647 = pneg %p264
        %p648 = pneg %p288
        %p649 = pneg %p285
        %p650 = pneg %p309
        %p651 = pneg %p306
        %p652 = pneg %p330
        %p653 = pneg %p327
        %p654 = pneg %p351
        %p655 = pneg %p348
        %p656 = pneg %p372
        %p657 = pneg %p369
        %p658 = pneg %p393
        %p659 = pneg %p390
        %p660 = pneg %p414
        %p661 = pneg %p411
        %p662 = pneg %p435
        %p663 = pneg %p432
        %p664 = pneg %p456
        %p665 = pneg %p453
        %p666 = pneg %p477
        %p667 = pneg %p474
        %p668 = pneg %p498
        %p669 = pneg %p495
        %p670 = pneg %p524
        %p671 = pneg %p521
        %s672 = sand.u32 %s511, 1
        %s673 = scalar_lea.sflag [#allocation6], %s672
        %s674 = sand.u32 %s511, 1
        %s675 = scalar_lea.vmem [#allocation5], %s674
        %p676 = scmp.lt.s32.totalorder %s36, 1
        %s677 = scalar_select %p676, %s36, 1
        %s678 = smul.addr %s677, 32
        %s679 = smul.addr %s678, 8
        %s680 = scalar_lea.vmem %s0, %s679
        %v682 = vld [vmem:[%s680] sm:$0xff]
        %v683 = vld [vmem:[%s680 + $0x8] sm:$0xff]
        %v684 = vld [vmem:[%s680 + $0x10] sm:$0xff]
        %v685 = vld [vmem:[%s680 + $0x18] sm:$0xff]
        %v686 = vld [vmem:[%s680 + $0x20] sm:$0xff]
        %v687 = vld [vmem:[%s680 + $0x28] sm:$0xff]
        %v688 = vld [vmem:[%s680 + $0x30] sm:$0xff]
        %v689 = vld [vmem:[%s680 + $0x38] sm:$0xff]
        %v690 = vld [vmem:[%s680 + $0x40] sm:$0xff]
        %v691 = vld [vmem:[%s680 + $0x48] sm:$0xff]
        %v692 = vld [vmem:[%s680 + $0x50] sm:$0xff]
        %v693 = vld [vmem:[%s680 + $0x58] sm:$0xff]
        %v694 = vld [vmem:[%s680 + $0x60] sm:$0xff]
        %v695 = vld [vmem:[%s680 + $0x68] sm:$0xff]
        %v696 = vld [vmem:[%s680 + $0x70] sm:$0xff]
        %v697 = vld [vmem:[%s680 + $0x78] sm:$0xff]
        %v698 = vld [vmem:[%s680 + $0x80] sm:$0xff]
        %v699 = vld [vmem:[%s680 + $0x88] sm:$0xff]
        %v700 = vld [vmem:[%s680 + $0x90] sm:$0xff]
        %v701 = vld [vmem:[%s680 + $0x98] sm:$0xff]
        %v702 = vld [vmem:[%s680 + $0xa0] sm:$0xff]
        %v703 = vld [vmem:[%s680 + $0xa8] sm:$0xff]
        %v704 = vld [vmem:[%s680 + $0xb0] sm:$0xff]
        %v705 = vld [vmem:[%s680 + $0xb8] sm:$0xff]
        %v706 = vld [vmem:[%s680 + $0xc0] sm:$0xff]
        %v707 = vld [vmem:[%s680 + $0xc8] sm:$0xff]
        %v708 = vld [vmem:[%s680 + $0xd0] sm:$0xff]
        %v709 = vld [vmem:[%s680 + $0xd8] sm:$0xff]
        %v710 = vld [vmem:[%s680 + $0xe0] sm:$0xff]
        %v711 = vld [vmem:[%s680 + $0xe8] sm:$0xff]
        %v712 = vld [vmem:[%s680 + $0xf0] sm:$0xff]
        %v713 = vld [vmem:[%s680 + $0xf8] sm:$0xff]
        %v714 = vpack.c.bf16 %v683, %v682
        %v715 = vpack.c.bf16 %v685, %v684
        %v716 = vpack.c.bf16 %v687, %v686
        %v717 = vpack.c.bf16 %v689, %v688
        %v718 = vpack.c.bf16 %v691, %v690
        %v719 = vpack.c.bf16 %v693, %v692
        %v720 = vpack.c.bf16 %v695, %v694
        %v721 = vpack.c.bf16 %v697, %v696
        %v722 = vpack.c.bf16 %v699, %v698
        %v723 = vpack.c.bf16 %v701, %v700
        %v724 = vpack.c.bf16 %v703, %v702
        %v725 = vpack.c.bf16 %v705, %v704
        %v726 = vpack.c.bf16 %v707, %v706
        %v727 = vpack.c.bf16 %v709, %v708
        %v728 = vpack.c.bf16 %v711, %v710
        %v729 = vpack.c.bf16 %v713, %v712
        %v730 = vld [vmem:[%s1] sm:$0x3]
        %v731 = vld [vmem:[%s2] sm:$0x1]
        %v733 = vlaneseq
        %v734 = vshrl.u32 %v733, 7
        %v735 = vsub.s32 0, %v734
        %v736 = vrot.slane %v731, %v735
        %vm738 = vcmask 31744
        %v740 = vsel %vm738, %v714, 0
        %v743 = vsel %vm738, %v715, 0
        %v746 = vsel %vm738, %v716, 0
        %v749 = vsel %vm738, %v717, 0
        %v752 = vsel %vm738, %v718, 0
        %v755 = vsel %vm738, %v719, 0
        %v758 = vsel %vm738, %v720, 0
        %v761 = vsel %vm738, %v721, 0
        %v764 = vsel %vm738, %v722, 0
        %v767 = vsel %vm738, %v723, 0
        %v770 = vsel %vm738, %v724, 0
        %v773 = vsel %vm738, %v725, 0
        %v776 = vsel %vm738, %v726, 0
        %v779 = vsel %vm738, %v727, 0
        %v782 = vsel %vm738, %v728, 0
        %v785 = vsel %vm738, %v729, 0
        %vm787 = vcmask 1041408
        %v789 = vsel %vm787, %v730, 0
        %791 = vmatprep.subr.bf16.mxu0 0
        %792 = vmatpush1.bf16.msra.mxu0 %v789
        %793 = vmatprep.subr.bf16.mxu0 0
        %794 = vmatpush1.bf16.msra.mxu0 0
        %795 = vmatprep.subr.bf16.mxu0 0
        %796 = vmatpush1.bf16.msra.mxu0 0
        %797 = vmatprep.subr.bf16.mxu0 0
        %798 = vmatpush1.bf16.msra.mxu0 0
        %799 = vmatprep.subr.bf16.mxu0 0
        %800 = vmatpush1.bf16.msra.mxu0 0
        %801 = vmatprep.subr.bf16.mxu0 0
        %802 = vmatpush1.bf16.msra.mxu0 0
        %803 = vmatprep.subr.bf16.mxu0 0
        %804 = vmatpush1.bf16.msra.mxu0 0
        %805 = vmatprep.subr.bf16.mxu0 0
        %806 = vmatpush1.bf16.msra.mxu0 0
        %807 = vmatprep.subr.bf16.mxu0 0
        %808 = vmatpush1.bf16.msra.mxu0 0
        %809 = vmatprep.subr.bf16.mxu0 0
        %810 = vmatpush1.bf16.msra.mxu0 0
        %811 = vmatprep.subr.bf16.mxu0 0
        %812 = vmatpush1.bf16.msra.mxu0 0
        %813 = vmatprep.subr.bf16.mxu0 0
        %814 = vmatpush1.bf16.msra.mxu0 0
        %815 = vmatprep.subr.bf16.mxu0 0
        %816 = vmatpush1.bf16.msra.mxu0 0
        %817 = vmatprep.subr.bf16.mxu0 0
        %818 = vmatpush1.bf16.msra.mxu0 0
        %819 = vmatprep.subr.bf16.mxu0 0
        %820 = vmatpush1.bf16.msra.mxu0 0
        %821 = vmatprep.subr.bf16.mxu0 0
        %822 = vmatpush1.bf16.msra.mxu0 0
        %823 = vmatprep.mubr.bf16.mxu0 0
        %824 = vmatmul.mubr.bf16.gmra.mrb[0].mxu0 %v740
        %v825 = vpop.f32.mrb[0].mxu0
        %v826 = vadd.f32 %v736, %v825
        %v827 = vpop.f32.mrb[0].mxu0
        %v828 = vpop.f32.mrb[0].mxu0
        %v829 = vadd.f32 %v736, %v828
        %v830 = vpop.f32.mrb[0].mxu0
        %831 = vmatprep.mubr.bf16.mxu0 0
        %832 = vmatmul.mubr.bf16.gmra.mrb[0].mxu0 %v743
        %v833 = vpop.f32.mrb[0].mxu0
        %v834 = vadd.f32 %v736, %v833
        %v835 = vpop.f32.mrb[0].mxu0
        %v836 = vpop.f32.mrb[0].mxu0
        %v837 = vadd.f32 %v736, %v836
        %v838 = vpop.f32.mrb[0].mxu0
        %839 = vmatprep.mubr.bf16.mxu0 0
        %840 = vmatmul.mubr.bf16.gmra.mrb[0].mxu0 %v746
        %v841 = vpop.f32.mrb[0].mxu0
        %v842 = vadd.f32 %v736, %v841
        %v843 = vpop.f32.mrb[0].mxu0
        %v844 = vpop.f32.mrb[0].mxu0
        %v845 = vadd.f32 %v736, %v844
        %v846 = vpop.f32.mrb[0].mxu0
        %847 = vmatprep.mubr.bf16.mxu0 0
        %848 = vmatmul.mubr.bf16.gmra.mrb[0].mxu0 %v749
        %v849 = vpop.f32.mrb[0].mxu0
        %v850 = vadd.f32 %v736, %v849
        %v851 = vpop.f32.mrb[0].mxu0
        %v852 = vpop.f32.mrb[0].mxu0
        %v853 = vadd.f32 %v736, %v852
        %v854 = vpop.f32.mrb[0].mxu0
        %855 = vmatprep.mubr.bf16.mxu0 0
        %856 = vmatmul.mubr.bf16.gmra.mrb[0].mxu0 %v752
        %v857 = vpop.f32.mrb[0].mxu0
        %v858 = vadd.f32 %v736, %v857
        %v859 = vpop.f32.mrb[0].mxu0
        %v860 = vpop.f32.mrb[0].mxu0
        %v861 = vadd.f32 %v736, %v860
        %v862 = vpop.f32.mrb[0].mxu0
        %863 = vmatprep.mubr.bf16.mxu0 0
        %864 = vmatmul.mubr.bf16.gmra.mrb[0].mxu0 %v755
        %v865 = vpop.f32.mrb[0].mxu0
        %v866 = vadd.f32 %v736, %v865
        %v867 = vpop.f32.mrb[0].mxu0
        %v868 = vpop.f32.mrb[0].mxu0
        %v869 = vadd.f32 %v736, %v868
        %v870 = vpop.f32.mrb[0].mxu0
        %871 = vmatprep.mubr.bf16.mxu0 0
        %872 = vmatmul.mubr.bf16.gmra.mrb[0].mxu0 %v758
        %v873 = vpop.f32.mrb[0].mxu0
        %v874 = vadd.f32 %v736, %v873
        %v875 = vpop.f32.mrb[0].mxu0
        %v876 = vpop.f32.mrb[0].mxu0
        %v877 = vadd.f32 %v736, %v876
        %v878 = vpop.f32.mrb[0].mxu0
        %879 = vmatprep.mubr.bf16.mxu0 0
        %880 = vmatmul.mubr.bf16.gmra.mrb[0].mxu0 %v761
        %v881 = vpop.f32.mrb[0].mxu0
        %v882 = vadd.f32 %v736, %v881
        %v883 = vpop.f32.mrb[0].mxu0
        %v884 = vpop.f32.mrb[0].mxu0
        %v885 = vadd.f32 %v736, %v884
        %v886 = vpop.f32.mrb[0].mxu0
        %887 = vmatprep.mubr.bf16.mxu0 0
        %888 = vmatmul.mubr.bf16.gmra.mrb[0].mxu0 %v764
        %v889 = vpop.f32.mrb[0].mxu0
        %v890 = vadd.f32 %v736, %v889
        %v891 = vpop.f32.mrb[0].mxu0
        %v892 = vpop.f32.mrb[0].mxu0
        %v893 = vadd.f32 %v736, %v892
        %v894 = vpop.f32.mrb[0].mxu0
        %895 = vmatprep.mubr.bf16.mxu0 0
        %896 = vmatmul.mubr.bf16.gmra.mrb[0].mxu0 %v767
        %v897 = vpop.f32.mrb[0].mxu0
        %v898 = vadd.f32 %v736, %v897
        %v899 = vpop.f32.mrb[0].mxu0
        %v900 = vpop.f32.mrb[0].mxu0
        %v901 = vadd.f32 %v736, %v900
        %v902 = vpop.f32.mrb[0].mxu0
        %903 = vmatprep.mubr.bf16.mxu0 0
        %904 = vmatmul.mubr.bf16.gmra.mrb[0].mxu0 %v770
        %v905 = vpop.f32.mrb[0].mxu0
        %v906 = vadd.f32 %v736, %v905
        %v907 = vpop.f32.mrb[0].mxu0
        %v908 = vpop.f32.mrb[0].mxu0
        %v909 = vadd.f32 %v736, %v908
        %v910 = vpop.f32.mrb[0].mxu0
        %911 = vmatprep.mubr.bf16.mxu0 0
        %912 = vmatmul.mubr.bf16.gmra.mrb[0].mxu0 %v773
        %v913 = vpop.f32.mrb[0].mxu0
        %v914 = vadd.f32 %v736, %v913
        %v915 = vpop.f32.mrb[0].mxu0
        %v916 = vpop.f32.mrb[0].mxu0
        %v917 = vadd.f32 %v736, %v916
        %v918 = vpop.f32.mrb[0].mxu0
        %919 = vmatprep.mubr.bf16.mxu0 0
        %920 = vmatmul.mubr.bf16.gmra.mrb[0].mxu0 %v776
        %v921 = vpop.f32.mrb[0].mxu0
        %v922 = vadd.f32 %v736, %v921
        %v923 = vpop.f32.mrb[0].mxu0
        %v924 = vpop.f32.mrb[0].mxu0
        %v925 = vadd.f32 %v736, %v924
        %v926 = vpop.f32.mrb[0].mxu0
        %927 = vmatprep.mubr.bf16.mxu0 0
        %928 = vmatmul.mubr.bf16.gmra.mrb[0].mxu0 %v779
        %v929 = vpop.f32.mrb[0].mxu0
        %v930 = vadd.f32 %v736, %v929
        %v931 = vpop.f32.mrb[0].mxu0
        %v932 = vpop.f32.mrb[0].mxu0
        %v933 = vadd.f32 %v736, %v932
        %v934 = vpop.f32.mrb[0].mxu0
        %935 = vmatprep.mubr.bf16.mxu0 0
        %936 = vmatmul.mubr.bf16.gmra.mrb[0].mxu0 %v782
        %v937 = vpop.f32.mrb[0].mxu0
        %v938 = vadd.f32 %v736, %v937
        %v939 = vpop.f32.mrb[0].mxu0
        %v940 = vpop.f32.mrb[0].mxu0
        %v941 = vadd.f32 %v736, %v940
        %v942 = vpop.f32.mrb[0].mxu0
        %943 = vmatprep.mubr.bf16.mxu0 0
        %944 = vmatmul.mubr.bf16.gmra.mrb[0].mxu0 %v785
        %v945 = vpop.f32.mrb[0].mxu0
        %v946 = vadd.f32 %v736, %v945
        %v947 = vpop.f32.mrb[0].mxu0
        %v948 = vpop.f32.mrb[0].mxu0
        %v949 = vadd.f32 %v736, %v948
        %v950 = vpop.f32.mrb[0].mxu0
        %951 = vdwg.mxu0
        %v952 = vmax.f32 %v826, 0.0
        %v953 = vmax.f32 %v829, 0.0
        %v954 = vmax.f32 %v834, 0.0
        %v955 = vmax.f32 %v837, 0.0
        %v956 = vmax.f32 %v842, 0.0
        %v957 = vmax.f32 %v845, 0.0
        %v958 = vmax.f32 %v850, 0.0
        %v959 = vmax.f32 %v853, 0.0
        %v960 = vmax.f32 %v858, 0.0
        %v961 = vmax.f32 %v861, 0.0
        %v962 = vmax.f32 %v866, 0.0
        %v963 = vmax.f32 %v869, 0.0
        %v964 = vmax.f32 %v874, 0.0
        %v965 = vmax.f32 %v877, 0.0
        %v966 = vmax.f32 %v882, 0.0
        %v967 = vmax.f32 %v885, 0.0
        %v968 = vmax.f32 %v890, 0.0
        %v969 = vmax.f32 %v893, 0.0
        %v970 = vmax.f32 %v898, 0.0
        %v971 = vmax.f32 %v901, 0.0
        %v972 = vmax.f32 %v906, 0.0
        %v973 = vmax.f32 %v909, 0.0
        %v974 = vmax.f32 %v914, 0.0
        %v975 = vmax.f32 %v917, 0.0
        %v976 = vmax.f32 %v922, 0.0
        %v977 = vmax.f32 %v925, 0.0
        %v978 = vmax.f32 %v930, 0.0
        %v979 = vmax.f32 %v933, 0.0
        %v980 = vmax.f32 %v938, 0.0
        %v981 = vmax.f32 %v941, 0.0
        %v982 = vmax.f32 %v946, 0.0
        %v983 = vmax.f32 %v949, 0.0
        %v984 = vld [vmem:[%s3] sm:$0xff]
        %v985 = vld [vmem:[%s3 + $0x8] sm:$0xff]
        %v986 = vld [vmem:[%s3 + $0x10] sm:$0xff]
        %v987 = vld [vmem:[%s3 + $0x18] sm:$0x33]
        %v988 = vpack.c.bf16 %v953, %v952
        %v989 = vpack.c.bf16 %v955, %v954
        %v990 = vpack.c.bf16 %v957, %v956
        %v991 = vpack.c.bf16 %v959, %v958
        %v992 = vpack.c.bf16 %v961, %v960
        %v993 = vpack.c.bf16 %v963, %v962
        %v994 = vpack.c.bf16 %v965, %v964
        %v995 = vpack.c.bf16 %v967, %v966
        %v996 = vpack.c.bf16 %v969, %v968
        %v997 = vpack.c.bf16 %v971, %v970
        %v998 = vpack.c.bf16 %v973, %v972
        %v999 = vpack.c.bf16 %v975, %v974
        %v1000 = vpack.c.bf16 %v977, %v976
        %v1001 = vpack.c.bf16 %v979, %v978
        %v1002 = vpack.c.bf16 %v981, %v980
        %v1003 = vpack.c.bf16 %v983, %v982
        %v1008 = vunpack.c.l.b16 %v984
        %v1009 = vunpack.c.h.b16 %v984
        %v1010 = vunpack.c.l.b16 %v985
        %v1011 = vunpack.c.h.b16 %v985
        %v1012 = vunpack.c.l.b16 %v986
        %v1013 = vunpack.c.h.b16 %v986
        %v1014 = vunpack.c.l.b16 %v987
        %v1015 = vunpack.c.h.b16 %v987
        %v1016 = vpack.c.b16 %v1010, %v1008
        %v1017 = vpack.c.b16 %v1011, %v1009
        %v1018 = vpack.c.b16 %v1014, %v1012
        %v1019 = vpack.c.b16 %v1015, %v1013
        %1024 = vmatprep.subr.bf16.mxu0 0
        %1025 = vmatpush1.bf16.msra.mxu0 %v988
        %1026 = vmatprep.subr.bf16.mxu0 0
        %1027 = vmatpush1.bf16.msra.mxu0 %v989
        %1028 = vmatprep.subr.bf16.mxu0 0
        %1029 = vmatpush1.bf16.msra.mxu0 %v990
        %1030 = vmatprep.subr.bf16.mxu0 0
        %1031 = vmatpush1.bf16.msra.mxu0 %v991
        %1032 = vmatprep.subr.bf16.mxu0 0
        %1033 = vmatpush1.bf16.msra.mxu0 %v992
        %1034 = vmatprep.subr.bf16.mxu0 0
        %1035 = vmatpush1.bf16.msra.mxu0 %v993
        %1036 = vmatprep.subr.bf16.mxu0 0
        %1037 = vmatpush1.bf16.msra.mxu0 %v994
        %1038 = vmatprep.subr.bf16.mxu0 0
        %1039 = vmatpush1.bf16.msra.mxu0 %v995
        %1040 = vmatprep.subr.bf16.mxu0 0
        %1041 = vmatpush1.bf16.msra.mxu0 %v996
        %1042 = vmatprep.subr.bf16.mxu0 0
        %1043 = vmatpush1.bf16.msra.mxu0 %v997
        %1044 = vmatprep.subr.bf16.mxu0 0
        %1045 = vmatpush1.bf16.msra.mxu0 %v998
        %1046 = vmatprep.subr.bf16.mxu0 0
        %1047 = vmatpush1.bf16.msra.mxu0 %v999
        %1048 = vmatprep.subr.bf16.mxu0 0
        %1049 = vmatpush1.bf16.msra.mxu0 %v1000
        %1050 = vmatprep.subr.bf16.mxu0 0
        %1051 = vmatpush1.bf16.msra.mxu0 %v1001
        %1052 = vmatprep.subr.bf16.mxu0 0
        %1053 = vmatpush1.bf16.msra.mxu0 %v1002
        %1054 = vmatprep.subr.bf16.mxu0 0
        %1055 = vmatpush1.bf16.msra.mxu0 %v1003
        %1056 = vmatprep.mubr.bf16.mxu0 %v1017
        %1057 = vmatmul.mubr.bf16.gmra.mrb[0].mxu0 %v1016
        %v1058 = vpop.f32.mrb[0].mxu0
        %v1059 = vadd.f32 0.0, %v1058
        %v1060 = vpop.f32.mrb[0].mxu0
        %v1061 = vpop.f32.mrb[0].mxu0
        %v1062 = vadd.f32 0.0, %v1061
        %v1063 = vpop.f32.mrb[0].mxu0
        %1064 = vmatprep.mubr.bf16.mxu0 %v1019
        %1065 = vmatmul.mubr.bf16.gmra.mrb[0].mxu0 %v1018
        %v1066 = vpop.f32.mrb[0].mxu0
        %v1067 = vadd.f32 0.0, %v1066
        %v1068 = vpop.f32.mrb[0].mxu0
        %v1069 = vpop.f32.mrb[0].mxu0
        %v1070 = vadd.f32 0.0, %v1069
        %v1071 = vpop.f32.mrb[0].mxu0
        %1072 = vdwg.mxu0
        %vm1073 = vcmask 64512
        %1074 = vst.msk [vmem:[#allocation2] sm:$0xff] %vm1073, %v1059
        %1075 = vst.msk [vmem:[#allocation2 + $0x8] sm:$0xff] %vm1073, %v1062
        %1076 = vst.msk [vmem:[#allocation2 + $0x10] sm:$0xff] %vm1073, %v1067
        %vm1077 = vcmask 60416
        %1078 = vst.msk [vmem:[#allocation2 + $0x18] sm:$0xf] %vm1077, %v1070
        %v1079 = vld [vmem:[#allocation2] sm:$0x7f]
        %v1080 = vpack.c.bf16 %v1079, %v1079
        %v1081 = vld [vmem:[%s4] sm:$0xf]
        %v1083 = vsel %vm1073, %v1080, 0
        %vm1085 = vcmask 1043456
        %v1087 = vsel %vm1085, %v1081, 0
        %1089 = vmatprep.subr.bf16.mxu0 0
        %1090 = vmatpush1.bf16.msra.mxu0 %v1087
        %1091 = vmatprep.subr.bf16.mxu0 0
        %1092 = vmatpush1.bf16.msra.mxu0 0
        %1093 = vmatprep.subr.bf16.mxu0 0
        %1094 = vmatpush1.bf16.msra.mxu0 0
        %1095 = vmatprep.subr.bf16.mxu0 0
        %1096 = vmatpush1.bf16.msra.mxu0 0
        %1097 = vmatprep.subr.bf16.mxu0 0
        %1098 = vmatpush1.bf16.msra.mxu0 0
        %1099 = vmatprep.subr.bf16.mxu0 0
        %1100 = vmatpush1.bf16.msra.mxu0 0
        %1101 = vmatprep.subr.bf16.mxu0 0
        %1102 = vmatpush1.bf16.msra.mxu0 0
        %1103 = vmatprep.subr.bf16.mxu0 0
        %1104 = vmatpush1.bf16.msra.mxu0 0
        %1105 = vmatprep.subr.bf16.mxu0 0
        %1106 = vmatpush1.bf16.msra.mxu0 0
        %1107 = vmatprep.subr.bf16.mxu0 0
        %1108 = vmatpush1.bf16.msra.mxu0 0
        %1109 = vmatprep.subr.bf16.mxu0 0
        %1110 = vmatpush1.bf16.msra.mxu0 0
        %1111 = vmatprep.subr.bf16.mxu0 0
        %1112 = vmatpush1.bf16.msra.mxu0 0
        %1113 = vmatprep.subr.bf16.mxu0 0
        %1114 = vmatpush1.bf16.msra.mxu0 0
        %1115 = vmatprep.subr.bf16.mxu0 0
        %1116 = vmatpush1.bf16.msra.mxu0 0
        %1117 = vmatprep.subr.bf16.mxu0 0
        %1118 = vmatpush1.bf16.msra.mxu0 0
        %1119 = vmatprep.subr.bf16.mxu0 0
        %1120 = vmatpush1.bf16.msra.mxu0 0
        %1121 = vmatprep.mubr.bf16.mxu0 0
        %1122 = vmatmul.mubr.bf16.gmra.mrb[0].mxu0 %v1083
        %v1123 = vpop.f32.mrb[0].mxu0
        %v1124 = vadd.f32 0.0, %v1123
        %v1125 = vpop.f32.mrb[0].mxu0
        %v1126 = vpop.f32.mrb[0].mxu0
        %v1127 = vpop.f32.mrb[0].mxu0
        %1128 = vdwg.mxu0
        %vm1129 = vcmask 915456
        %1130 = vst.msk [vmem:[#allocation3] sm:$0x7f] %vm1129, %v1124
        %v1131 = vld [vmem:[#allocation3] sm:$0x7f]
        %vm1132 = vcmask 129024
        %1133 = vst.msk [vmem:[#allocation4] sm:$0x7f] %vm1132, %v1131
        %v1134 = vld [vmem:[#allocation3] sm:$0x7f]
        %1136 = vrot.lane.b32.xlu0 %v1134, 112
        %v1137 = vpop.permute.xlu0 %1136
        %1139 = vst.msk [vmem:[#allocation4 + $0x7] sm:$0x7f] %vm1132, %v1137
        %v1140 = vld [vmem:[#allocation3] sm:$0x7f]
        %1142 = vrot.lane.b32.xlu0 %v1140, 96
        %v1143 = vpop.permute.xlu0 %1142
        %1145 = vst.msk [vmem:[#allocation4 + $0xe] sm:$0x7f] %vm1132, %v1143
        %v1146 = vld [vmem:[#allocation3] sm:$0x7f]
        %1148 = vrot.lane.b32.xlu0 %v1146, 80
        %v1149 = vpop.permute.xlu0 %1148
        %1151 = vst.msk [vmem:[#allocation4 + $0x15] sm:$0x7f] %vm1132, %v1149
        %v1152 = vld [vmem:[#allocation3] sm:$0x7f]
        %1154 = vrot.lane.b32.xlu0 %v1152, 64
        %v1155 = vpop.permute.xlu0 %1154
        %1157 = vst.msk [vmem:[#allocation4 + $0x1c] sm:$0x7f] %vm1132, %v1155
        %v1158 = vld [vmem:[#allocation3] sm:$0x7f]
        %1160 = vrot.lane.b32.xlu0 %v1158, 48
        %v1161 = vpop.permute.xlu0 %1160
        %1163 = vst.msk [vmem:[#allocation4 + $0x23] sm:$0x7f] %vm1132, %v1161
        %v1164 = vld [vmem:[#allocation3] sm:$0x7f]
        %1166 = vrot.lane.b32.xlu0 %v1164, 32
        %v1167 = vpop.permute.xlu0 %1166
        %1169 = vst.msk [vmem:[#allocation4 + $0x2a] sm:$0x7f] %vm1132, %v1167
        %v1170 = vld [vmem:[#allocation2 + $0x7] sm:$0x7f]
        %v1171 = vpack.c.bf16 %v1170, %v1170
        %s1172 = scalar_lea.vmem %s4, 4
        %v1173 = vld [vmem:[%s1172] sm:$0xf]
        %v1175 = vsel %vm1073, %v1171, 0
        %v1178 = vsel %vm1085, %v1173, 0
        %1180 = vmatprep.subr.bf16.mxu0 0
        %1181 = vmatpush1.bf16.msra.mxu0 %v1178
        %1182 = vmatprep.subr.bf16.mxu0 0
        %1183 = vmatpush1.bf16.msra.mxu0 0
        %1184 = vmatprep.subr.bf16.mxu0 0
        %1185 = vmatpush1.bf16.msra.mxu0 0
        %1186 = vmatprep.subr.bf16.mxu0 0
        %1187 = vmatpush1.bf16.msra.mxu0 0
        %1188 = vmatprep.subr.bf16.mxu0 0
        %1189 = vmatpush1.bf16.msra.mxu0 0
        %1190 = vmatprep.subr.bf16.mxu0 0
        %1191 = vmatpush1.bf16.msra.mxu0 0
        %1192 = vmatprep.subr.bf16.mxu0 0
        %1193 = vmatpush1.bf16.msra.mxu0 0
        %1194 = vmatprep.subr.bf16.mxu0 0
        %1195 = vmatpush1.bf16.msra.mxu0 0
        %1196 = vmatprep.subr.bf16.mxu0 0
        %1197 = vmatpush1.bf16.msra.mxu0 0
        %1198 = vmatprep.subr.bf16.mxu0 0
        %1199 = vmatpush1.bf16.msra.mxu0 0
        %1200 = vmatprep.subr.bf16.mxu0 0
        %1201 = vmatpush1.bf16.msra.mxu0 0
        %1202 = vmatprep.subr.bf16.mxu0 0
        %1203 = vmatpush1.bf16.msra.mxu0 0
        %1204 = vmatprep.subr.bf16.mxu0 0
        %1205 = vmatpush1.bf16.msra.mxu0 0
        %1206 = vmatprep.subr.bf16.mxu0 0
        %1207 = vmatpush1.bf16.msra.mxu0 0
        %1208 = vmatprep.subr.bf16.mxu0 0
        %1209 = vmatpush1.bf16.msra.mxu0 0
        %1210 = vmatprep.subr.bf16.mxu0 0
        %1211 = vmatpush1.bf16.msra.mxu0 0
        %1212 = vmatprep.mubr.bf16.mxu0 0
        %1213 = vmatmul.mubr.bf16.gmra.mrb[0].mxu0 %v1175
        %v1214 = vpop.f32.mrb[0].mxu0
        %v1215 = vadd.f32 0.0, %v1214
        %v1216 = vpop.f32.mrb[0].mxu0
        %v1217 = vpop.f32.mrb[0].mxu0
        %v1218 = vpop.f32.mrb[0].mxu0
        %1219 = vdwg.mxu0
        %1220 = vst.msk [vmem:[#allocation3] sm:$0x7f] %vm1129, %v1215
        %v1221 = vld [vmem:[#allocation3] sm:$0x7f]
        %1222 = vst.msk [vmem:[#allocation4 + $0x31] sm:$0x7f] %vm1132, %v1221
        %v1223 = vld [vmem:[#allocation3] sm:$0x7f]
        %1225 = vrot.lane.b32.xlu0 %v1223, 112
        %v1226 = vpop.permute.xlu0 %1225
        %1228 = vst.msk [vmem:[#allocation4 + $0x38] sm:$0x7f] %vm1132, %v1226
        %v1229 = vld [vmem:[#allocation3] sm:$0x7f]
        %1231 = vrot.lane.b32.xlu0 %v1229, 96
        %v1232 = vpop.permute.xlu0 %1231
        %1234 = vst.msk [vmem:[#allocation4 + $0x3f] sm:$0x7f] %vm1132, %v1232
        %v1235 = vld [vmem:[#allocation3] sm:$0x7f]
        %1237 = vrot.lane.b32.xlu0 %v1235, 80
        %v1238 = vpop.permute.xlu0 %1237
        %1240 = vst.msk [vmem:[#allocation4 + $0x46] sm:$0x7f] %vm1132, %v1238
        %v1241 = vld [vmem:[#allocation3] sm:$0x7f]
        %1243 = vrot.lane.b32.xlu0 %v1241, 64
        %v1244 = vpop.permute.xlu0 %1243
        %1246 = vst.msk [vmem:[#allocation4 + $0x4d] sm:$0x7f] %vm1132, %v1244
        %v1247 = vld [vmem:[#allocation3] sm:$0x7f]
        %1249 = vrot.lane.b32.xlu0 %v1247, 48
        %v1250 = vpop.permute.xlu0 %1249
        %1252 = vst.msk [vmem:[#allocation4 + $0x54] sm:$0x7f] %vm1132, %v1250
        %v1253 = vld [vmem:[#allocation3] sm:$0x7f]
        %1255 = vrot.lane.b32.xlu0 %v1253, 32
        %v1256 = vpop.permute.xlu0 %1255
        %1258 = vst.msk [vmem:[#allocation4 + $0x5b] sm:$0x7f] %vm1132, %v1256
        %v1259 = vld [vmem:[#allocation2 + $0xe] sm:$0x7f]
        %v1260 = vpack.c.bf16 %v1259, %v1259
        %s1261 = scalar_lea.vmem %s4, 8
        %v1262 = vld [vmem:[%s1261] sm:$0xf]
        %v1264 = vsel %vm1073, %v1260, 0
        %v1267 = vsel %vm1085, %v1262, 0
        %1269 = vmatprep.subr.bf16.mxu0 0
        %1270 = vmatpush1.bf16.msra.mxu0 %v1267
        %1271 = vmatprep.subr.bf16.mxu0 0
        %1272 = vmatpush1.bf16.msra.mxu0 0
        %1273 = vmatprep.subr.bf16.mxu0 0
        %1274 = vmatpush1.bf16.msra.mxu0 0
        %1275 = vmatprep.subr.bf16.mxu0 0
        %1276 = vmatpush1.bf16.msra.mxu0 0
        %1277 = vmatprep.subr.bf16.mxu0 0
        %1278 = vmatpush1.bf16.msra.mxu0 0
        %1279 = vmatprep.subr.bf16.mxu0 0
        %1280 = vmatpush1.bf16.msra.mxu0 0
        %1281 = vmatprep.subr.bf16.mxu0 0
        %1282 = vmatpush1.bf16.msra.mxu0 0
        %1283 = vmatprep.subr.bf16.mxu0 0
        %1284 = vmatpush1.bf16.msra.mxu0 0
        %1285 = vmatprep.subr.bf16.mxu0 0
        %1286 = vmatpush1.bf16.msra.mxu0 0
        %1287 = vmatprep.subr.bf16.mxu0 0
        %1288 = vmatpush1.bf16.msra.mxu0 0
        %1289 = vmatprep.subr.bf16.mxu0 0
        %1290 = vmatpush1.bf16.msra.mxu0 0
        %1291 = vmatprep.subr.bf16.mxu0 0
        %1292 = vmatpush1.bf16.msra.mxu0 0
        %1293 = vmatprep.subr.bf16.mxu0 0
        %1294 = vmatpush1.bf16.msra.mxu0 0
        %1295 = vmatprep.subr.bf16.mxu0 0
        %1296 = vmatpush1.bf16.msra.mxu0 0
        %1297 = vmatprep.subr.bf16.mxu0 0
        %1298 = vmatpush1.bf16.msra.mxu0 0
        %1299 = vmatprep.subr.bf16.mxu0 0
        %1300 = vmatpush1.bf16.msra.mxu0 0
        %1301 = vmatprep.mubr.bf16.mxu0 0
        %1302 = vmatmul.mubr.bf16.gmra.mrb[0].mxu0 %v1264
        %v1303 = vpop.f32.mrb[0].mxu0
        %v1304 = vadd.f32 0.0, %v1303
        %v1305 = vpop.f32.mrb[0].mxu0
        %v1306 = vpop.f32.mrb[0].mxu0
        %v1307 = vpop.f32.mrb[0].mxu0
        %1308 = vdwg.mxu0
        %1309 = vst.msk [vmem:[#allocation3] sm:$0x7f] %vm1129, %v1304
        %v1310 = vld [vmem:[#allocation3] sm:$0x7f]
        %1311 = vst.msk [vmem:[#allocation4 + $0x62] sm:$0x7f] %vm1132, %v1310
        %v1312 = vld [vmem:[#allocation3] sm:$0x7f]
        %1314 = vrot.lane.b32.xlu0 %v1312, 112
        %v1315 = vpop.permute.xlu0 %1314
        %1317 = vst.msk [vmem:[#allocation4 + $0x69] sm:$0x7f] %vm1132, %v1315
        %v1318 = vld [vmem:[#allocation3] sm:$0x7f]
        %1320 = vrot.lane.b32.xlu0 %v1318, 96
        %v1321 = vpop.permute.xlu0 %1320
        %1323 = vst.msk [vmem:[#allocation4 + $0x70] sm:$0x7f] %vm1132, %v1321
        %v1324 = vld [vmem:[#allocation3] sm:$0x7f]
        %1326 = vrot.lane.b32.xlu0 %v1324, 80
        %v1327 = vpop.permute.xlu0 %1326
        %1329 = vst.msk [vmem:[#allocation4 + $0x77] sm:$0x7f] %vm1132, %v1327
        %v1330 = vld [vmem:[#allocation3] sm:$0x7f]
        %1332 = vrot.lane.b32.xlu0 %v1330, 64
        %v1333 = vpop.permute.xlu0 %1332
        %1335 = vst.msk [vmem:[#allocation4 + $0x7e] sm:$0x7f] %vm1132, %v1333
        %v1336 = vld [vmem:[#allocation3] sm:$0x7f]
        %1338 = vrot.lane.b32.xlu0 %v1336, 48
        %v1339 = vpop.permute.xlu0 %1338
        %1341 = vst.msk [vmem:[#allocation4 + $0x85] sm:$0x7f] %vm1132, %v1339
        %v1342 = vld [vmem:[#allocation3] sm:$0x7f]
        %1344 = vrot.lane.b32.xlu0 %v1342, 32
        %v1345 = vpop.permute.xlu0 %1344
        %1347 = vst.msk [vmem:[#allocation4 + $0x8c] sm:$0x7f] %vm1132, %v1345
        %v1348 = vld [vmem:[#allocation2 + $0x15] sm:$0x7f]
        %v1349 = vpack.c.bf16 %v1348, %v1348
        %s1350 = scalar_lea.vmem %s4, 12
        %v1351 = vld [vmem:[%s1350] sm:$0xf]
        %v1353 = vsel %vm1073, %v1349, 0
        %v1356 = vsel %vm1085, %v1351, 0
        %1358 = vmatprep.subr.bf16.mxu0 0
        %1359 = vmatpush1.bf16.msra.mxu0 %v1356
        %1360 = vmatprep.subr.bf16.mxu0 0
        %1361 = vmatpush1.bf16.msra.mxu0 0
        %1362 = vmatprep.subr.bf16.mxu0 0
        %1363 = vmatpush1.bf16.msra.mxu0 0
        %1364 = vmatprep.subr.bf16.mxu0 0
        %1365 = vmatpush1.bf16.msra.mxu0 0
        %1366 = vmatprep.subr.bf16.mxu0 0
        %1367 = vmatpush1.bf16.msra.mxu0 0
        %1368 = vmatprep.subr.bf16.mxu0 0
        %1369 = vmatpush1.bf16.msra.mxu0 0
        %1370 = vmatprep.subr.bf16.mxu0 0
        %1371 = vmatpush1.bf16.msra.mxu0 0
        %1372 = vmatprep.subr.bf16.mxu0 0
        %1373 = vmatpush1.bf16.msra.mxu0 0
        %1374 = vmatprep.subr.bf16.mxu0 0
        %1375 = vmatpush1.bf16.msra.mxu0 0
        %1376 = vmatprep.subr.bf16.mxu0 0
        %1377 = vmatpush1.bf16.msra.mxu0 0
        %1378 = vmatprep.subr.bf16.mxu0 0
        %1379 = vmatpush1.bf16.msra.mxu0 0
        %1380 = vmatprep.subr.bf16.mxu0 0
        %1381 = vmatpush1.bf16.msra.mxu0 0
        %1382 = vmatprep.subr.bf16.mxu0 0
        %1383 = vmatpush1.bf16.msra.mxu0 0
        %1384 = vmatprep.subr.bf16.mxu0 0
        %1385 = vmatpush1.bf16.msra.mxu0 0
        %1386 = vmatprep.subr.bf16.mxu0 0
        %1387 = vmatpush1.bf16.msra.mxu0 0
        %1388 = vmatprep.subr.bf16.mxu0 0
        %1389 = vmatpush1.bf16.msra.mxu0 0
        %1390 = vmatprep.mubr.bf16.mxu0 0
        %1391 = vmatmul.mubr.bf16.gmra.mrb[0].mxu0 %v1353
        %v1392 = vpop.f32.mrb[0].mxu0
        %v1393 = vadd.f32 0.0, %v1392
        %v1394 = vpop.f32.mrb[0].mxu0
        %v1395 = vpop.f32.mrb[0].mxu0
        %v1396 = vpop.f32.mrb[0].mxu0
        %1397 = vdwg.mxu0
        %1398 = vst.msk [vmem:[#allocation3] sm:$0x7f] %vm1129, %v1393
        %v1399 = vld [vmem:[#allocation3] sm:$0x7f]
        %1400 = vst.msk [vmem:[#allocation4 + $0x93] sm:$0x7f] %vm1132, %v1399
        %v1401 = vld [vmem:[#allocation3] sm:$0x7f]
        %1403 = vrot.lane.b32.xlu0 %v1401, 112
        %v1404 = vpop.permute.xlu0 %1403
        %1406 = vst.msk [vmem:[#allocation4 + $0x9a] sm:$0x7f] %vm1132, %v1404
        %v1407 = vld [vmem:[#allocation3] sm:$0x7f]
        %1409 = vrot.lane.b32.xlu0 %v1407, 96
        %v1410 = vpop.permute.xlu0 %1409
        %1412 = vst.msk [vmem:[#allocation4 + $0xa1] sm:$0x7f] %vm1132, %v1410
        %v1413 = vld [vmem:[#allocation3] sm:$0x7f]
        %1415 = vrot.lane.b32.xlu0 %v1413, 80
        %v1416 = vpop.permute.xlu0 %1415
        %1418 = vst.msk [vmem:[#allocation4 + $0xa8] sm:$0x7f] %vm1132, %v1416
        %v1419 = vld [vmem:[#allocation3] sm:$0x7f]
        %1421 = vrot.lane.b32.xlu0 %v1419, 64
        %v1422 = vpop.permute.xlu0 %1421
        %1424 = vst.msk [vmem:[#allocation4 + $0xaf] sm:$0x7f] %vm1132, %v1422
        %v1425 = vld [vmem:[#allocation3] sm:$0x7f]
        %1427 = vrot.lane.b32.xlu0 %v1425, 48
        %v1428 = vpop.permute.xlu0 %1427
        %1430 = vst.msk [vmem:[#allocation4 + $0xb6] sm:$0x7f] %vm1132, %v1428
        %v1431 = vld [vmem:[#allocation3] sm:$0x7f]
        %1433 = vrot.lane.b32.xlu0 %v1431, 32
        %v1434 = vpop.permute.xlu0 %1433
        %1436 = vst.msk [vmem:[#allocation4 + $0xbd] sm:$0x7f] %vm1132, %v1434
        %v1437 = vld [vmem:[#allocation4] sm:$0xff]
        %v1438 = vld [vmem:[#allocation4 + $0x8] sm:$0xff]
        %v1439 = vld [vmem:[#allocation4 + $0x10] sm:$0xff]
        %v1440 = vld [vmem:[#allocation4 + $0x18] sm:$0xff]
        %v1441 = vld [vmem:[#allocation4 + $0x20] sm:$0xff]
        %v1442 = vld [vmem:[#allocation4 + $0x28] sm:$0xff]
        %v1443 = vld [vmem:[#allocation4 + $0x30] sm:$0xff]
        %v1444 = vld [vmem:[#allocation4 + $0x38] sm:$0xff]
        %v1445 = vld [vmem:[#allocation4 + $0x40] sm:$0xff]
        %v1446 = vld [vmem:[#allocation4 + $0x48] sm:$0xff]
        %v1447 = vld [vmem:[#allocation4 + $0x50] sm:$0xff]
        %v1448 = vld [vmem:[#allocation4 + $0x58] sm:$0xff]
        %v1449 = vld [vmem:[#allocation4 + $0x60] sm:$0xff]
        %v1450 = vld [vmem:[#allocation4 + $0x68] sm:$0xff]
        %v1451 = vld [vmem:[#allocation4 + $0x70] sm:$0xff]
        %v1452 = vld [vmem:[#allocation4 + $0x78] sm:$0xff]
        %v1453 = vld [vmem:[#allocation4 + $0x80] sm:$0xff]
        %v1454 = vld [vmem:[#allocation4 + $0x88] sm:$0xff]
        %v1455 = vld [vmem:[#allocation4 + $0x90] sm:$0xff]
        %v1456 = vld [vmem:[#allocation4 + $0x98] sm:$0xff]
        %v1457 = vld [vmem:[#allocation4 + $0xa0] sm:$0xff]
        %v1458 = vld [vmem:[#allocation4 + $0xa8] sm:$0xff]
        %v1459 = vld [vmem:[#allocation4 + $0xb0] sm:$0xff]
        %v1460 = vld [vmem:[#allocation4 + $0xb8] sm:$0xff]
        %v1461 = vld [vmem:[#allocation4 + $0xc0] sm:$0xf]
        %v1462 = vpack.c.bf16 %v1438, %v1437
        %v1463 = vpack.c.bf16 %v1440, %v1439
        %v1464 = vpack.c.bf16 %v1442, %v1441
        %v1465 = vpack.c.bf16 %v1444, %v1443
        %v1466 = vpack.c.bf16 %v1446, %v1445
        %v1467 = vpack.c.bf16 %v1448, %v1447
        %v1468 = vpack.c.bf16 %v1450, %v1449
        %v1469 = vpack.c.bf16 %v1452, %v1451
        %v1470 = vpack.c.bf16 %v1454, %v1453
        %v1471 = vpack.c.bf16 %v1456, %v1455
        %v1472 = vpack.c.bf16 %v1458, %v1457
        %v1473 = vpack.c.bf16 %v1460, %v1459
        %v1474 = vpack.c.bf16 %v1461, %v1461
        %v1475 = vld [vmem:[%s5] sm:$0xff]
        %v1476 = vld [vmem:[%s5 + $0x8] sm:$0xff]
        %v1477 = vld [vmem:[%s5 + $0x10] sm:$0xff]
        %v1478 = vld [vmem:[%s5 + $0x18] sm:$0xff]
        %v1479 = vld [vmem:[%s5 + $0x20] sm:$0xff]
        %v1480 = vld [vmem:[%s5 + $0x28] sm:$0xff]
        %v1481 = vld [vmem:[%s5 + $0x30] sm:$0xff]
        %v1482 = vld [vmem:[%s5 + $0x38] sm:$0xff]
        %v1483 = vld [vmem:[%s5 + $0x40] sm:$0xff]
        %v1484 = vld [vmem:[%s5 + $0x48] sm:$0xff]
        %v1485 = vld [vmem:[%s5 + $0x50] sm:$0xff]
        %v1486 = vld [vmem:[%s5 + $0x58] sm:$0xff]
        %v1487 = vld [vmem:[%s5 + $0x60] sm:$0xff]
        %v1488 = vld [vmem:[%s5 + $0x68] sm:$0xff]
        %v1489 = vld [vmem:[%s5 + $0x70] sm:$0xff]
        %v1490 = vld [vmem:[%s5 + $0x78] sm:$0xff]
        %v1491 = vld [vmem:[%s5 + $0x80] sm:$0xff]
        %v1492 = vld [vmem:[%s5 + $0x88] sm:$0xff]
        %v1493 = vld [vmem:[%s5 + $0x90] sm:$0xff]
        %v1494 = vld [vmem:[%s5 + $0x98] sm:$0xff]
        %v1495 = vld [vmem:[%s5 + $0xa0] sm:$0xff]
        %v1496 = vld [vmem:[%s5 + $0xa8] sm:$0xff]
        %v1497 = vld [vmem:[%s5 + $0xb0] sm:$0xff]
        %v1498 = vld [vmem:[%s5 + $0xb8] sm:$0xff]
        %v1499 = vld [vmem:[%s5 + $0xc0] sm:$0xff]
        %v1500 = vld [vmem:[%s5 + $0xc8] sm:$0xff]
        %v1501 = vld [vmem:[%s5 + $0xd0] sm:$0xff]
        %v1502 = vld [vmem:[%s5 + $0xd8] sm:$0xff]
        %v1503 = vld [vmem:[%s5 + $0xe0] sm:$0xff]
        %v1504 = vld [vmem:[%s5 + $0xe8] sm:$0xff]
        %v1505 = vld [vmem:[%s5 + $0xf0] sm:$0xff]
        %v1506 = vld [vmem:[%s5 + $0xf8] sm:$0xff]
        %v1507 = vld [vmem:[%s5 + $0x100] sm:$0xff]
        %v1508 = vld [vmem:[%s5 + $0x108] sm:$0xff]
        %v1509 = vld [vmem:[%s5 + $0x110] sm:$0xff]
        %v1510 = vld [vmem:[%s5 + $0x118] sm:$0xff]
        %v1511 = vld [vmem:[%s5 + $0x120] sm:$0xff]
        %v1512 = vld [vmem:[%s5 + $0x128] sm:$0xff]
        %v1513 = vld [vmem:[%s5 + $0x130] sm:$0xff]
        %v1514 = vld [vmem:[%s5 + $0x138] sm:$0xff]
        %v1515 = vld [vmem:[%s5 + $0x140] sm:$0xff]
        %v1516 = vld [vmem:[%s5 + $0x148] sm:$0xff]
        %v1517 = vld [vmem:[%s5 + $0x150] sm:$0xff]
        %v1518 = vld [vmem:[%s5 + $0x158] sm:$0xff]
        %v1519 = vld [vmem:[%s5 + $0x160] sm:$0xff]
        %v1520 = vld [vmem:[%s5 + $0x168] sm:$0xff]
        %v1521 = vld [vmem:[%s5 + $0x170] sm:$0xff]
        %v1522 = vld [vmem:[%s5 + $0x178] sm:$0xff]
        %v1523 = vld [vmem:[%s5 + $0x180] sm:$0xff]
        %v1524 = vld [vmem:[%s5 + $0x188] sm:$0xff]
        %v1525 = vld [vmem:[%s5 + $0x190] sm:$0xff]
        %v1526 = vld [vmem:[%s5 + $0x198] sm:$0xff]
        %v1527 = vld [vmem:[%s5 + $0x1a0] sm:$0xff]
        %v1528 = vld [vmem:[%s5 + $0x1a8] sm:$0xff]
        %v1529 = vld [vmem:[%s5 + $0x1b0] sm:$0xff]
        %v1530 = vld [vmem:[%s5 + $0x1b8] sm:$0xff]
        %v1531 = vld [vmem:[%s5 + $0x1c0] sm:$0xff]
        %v1532 = vld [vmem:[%s5 + $0x1c8] sm:$0xff]
        %v1533 = vld [vmem:[%s5 + $0x1d0] sm:$0xff]
        %v1534 = vld [vmem:[%s5 + $0x1d8] sm:$0xff]
        %v1535 = vld [vmem:[%s5 + $0x1e0] sm:$0xff]
        %v1536 = vld [vmem:[%s5 + $0x1e8] sm:$0xff]
        %v1537 = vld [vmem:[%s5 + $0x1f0] sm:$0xff]
        %v1538 = vld [vmem:[%s5 + $0x1f8] sm:$0xff]
        %v1539 = vld [vmem:[%s6] sm:$0x1]
        %v1541 = vlaneseq
        %v1542 = vshrl.u32 %v1541, 7
        %v1543 = vsub.s32 0, %v1542
        %v1544 = vrot.slane %v1539, %v1543
        %v1610 = vunpack.c.l.b16 %v1475
        %v1611 = vunpack.c.h.b16 %v1475
        %v1612 = vunpack.c.l.b16 %v1476
        %v1613 = vunpack.c.h.b16 %v1476
        %v1614 = vunpack.c.l.b16 %v1477
        %v1615 = vunpack.c.h.b16 %v1477
        %v1616 = vunpack.c.l.b16 %v1478
        %v1617 = vunpack.c.h.b16 %v1478
        %v1618 = vunpack.c.l.b16 %v1479
        %v1619 = vunpack.c.h.b16 %v1479
        %v1620 = vunpack.c.l.b16 %v1480
        %v1621 = vunpack.c.h.b16 %v1480
        %v1622 = vunpack.c.l.b16 %v1481
        %v1623 = vunpack.c.h.b16 %v1481
        %v1624 = vunpack.c.l.b16 %v1482
        %v1625 = vunpack.c.h.b16 %v1482
        %v1626 = vunpack.c.l.b16 %v1483
        %v1627 = vunpack.c.h.b16 %v1483
        %v1628 = vunpack.c.l.b16 %v1484
        %v1629 = vunpack.c.h.b16 %v1484
        %v1630 = vunpack.c.l.b16 %v1485
        %v1631 = vunpack.c.h.b16 %v1485
        %v1632 = vunpack.c.l.b16 %v1486
        %v1633 = vunpack.c.h.b16 %v1486
        %v1634 = vunpack.c.l.b16 %v1487
        %v1635 = vunpack.c.h.b16 %v1487
        %v1636 = vunpack.c.l.b16 %v1488
        %v1637 = vunpack.c.h.b16 %v1488
        %v1638 = vunpack.c.l.b16 %v1489
        %v1639 = vunpack.c.h.b16 %v1489
        %v1640 = vunpack.c.l.b16 %v1490
        %v1641 = vunpack.c.h.b16 %v1490
        %v1642 = vunpack.c.l.b16 %v1491
        %v1643 = vunpack.c.h.b16 %v1491
        %v1644 = vunpack.c.l.b16 %v1492
        %v1645 = vunpack.c.h.b16 %v1492
        %v1646 = vunpack.c.l.b16 %v1493
        %v1647 = vunpack.c.h.b16 %v1493
        %v1648 = vunpack.c.l.b16 %v1494
        %v1649 = vunpack.c.h.b16 %v1494
        %v1650 = vunpack.c.l.b16 %v1495
        %v1651 = vunpack.c.h.b16 %v1495
        %v1652 = vunpack.c.l.b16 %v1496
        %v1653 = vunpack.c.h.b16 %v1496
        %v1654 = vunpack.c.l.b16 %v1497
        %v1655 = vunpack.c.h.b16 %v1497
        %v1656 = vunpack.c.l.b16 %v1498
        %v1657 = vunpack.c.h.b16 %v1498
        %v1658 = vunpack.c.l.b16 %v1499
        %v1659 = vunpack.c.h.b16 %v1499
        %v1660 = vunpack.c.l.b16 %v1500
        %v1661 = vunpack.c.h.b16 %v1500
        %v1662 = vunpack.c.l.b16 %v1501
        %v1663 = vunpack.c.h.b16 %v1501
        %v1664 = vunpack.c.l.b16 %v1502
        %v1665 = vunpack.c.h.b16 %v1502
        %v1666 = vunpack.c.l.b16 %v1503
        %v1667 = vunpack.c.h.b16 %v1503
        %v1668 = vunpack.c.l.b16 %v1504
        %v1669 = vunpack.c.h.b16 %v1504
        %v1670 = vunpack.c.l.b16 %v1505
        %v1671 = vunpack.c.h.b16 %v1505
        %v1672 = vunpack.c.l.b16 %v1506
        %v1673 = vunpack.c.h.b16 %v1506
        %v1674 = vunpack.c.l.b16 %v1507
        %v1675 = vunpack.c.h.b16 %v1507
        %v1676 = vunpack.c.l.b16 %v1508
        %v1677 = vunpack.c.h.b16 %v1508
        %v1678 = vunpack.c.l.b16 %v1509
        %v1679 = vunpack.c.h.b16 %v1509
        %v1680 = vunpack.c.l.b16 %v1510
        %v1681 = vunpack.c.h.b16 %v1510
        %v1682 = vunpack.c.l.b16 %v1511
        %v1683 = vunpack.c.h.b16 %v1511
        %v1684 = vunpack.c.l.b16 %v1512
        %v1685 = vunpack.c.h.b16 %v1512
        %v1686 = vunpack.c.l.b16 %v1513
        %v1687 = vunpack.c.h.b16 %v1513
        %v1688 = vunpack.c.l.b16 %v1514
        %v1689 = vunpack.c.h.b16 %v1514
        %v1690 = vunpack.c.l.b16 %v1515
        %v1691 = vunpack.c.h.b16 %v1515
        %v1692 = vunpack.c.l.b16 %v1516
        %v1693 = vunpack.c.h.b16 %v1516
        %v1694 = vunpack.c.l.b16 %v1517
        %v1695 = vunpack.c.h.b16 %v1517
        %v1696 = vunpack.c.l.b16 %v1518
        %v1697 = vunpack.c.h.b16 %v1518
        %v1698 = vunpack.c.l.b16 %v1519
        %v1699 = vunpack.c.h.b16 %v1519
        %v1700 = vunpack.c.l.b16 %v1520
        %v1701 = vunpack.c.h.b16 %v1520
        %v1702 = vunpack.c.l.b16 %v1521
        %v1703 = vunpack.c.h.b16 %v1521
        %v1704 = vunpack.c.l.b16 %v1522
        %v1705 = vunpack.c.h.b16 %v1522
        %v1706 = vunpack.c.l.b16 %v1523
        %v1707 = vunpack.c.h.b16 %v1523
        %v1708 = vunpack.c.l.b16 %v1524
        %v1709 = vunpack.c.h.b16 %v1524
        %v1710 = vunpack.c.l.b16 %v1525
        %v1711 = vunpack.c.h.b16 %v1525
        %v1712 = vunpack.c.l.b16 %v1526
        %v1713 = vunpack.c.h.b16 %v1526
        %v1714 = vunpack.c.l.b16 %v1527
        %v1715 = vunpack.c.h.b16 %v1527
        %v1716 = vunpack.c.l.b16 %v1528
        %v1717 = vunpack.c.h.b16 %v1528
        %v1718 = vunpack.c.l.b16 %v1529
        %v1719 = vunpack.c.h.b16 %v1529
        %v1720 = vunpack.c.l.b16 %v1530
        %v1721 = vunpack.c.h.b16 %v1530
        %v1722 = vunpack.c.l.b16 %v1531
        %v1723 = vunpack.c.h.b16 %v1531
        %v1724 = vunpack.c.l.b16 %v1532
        %v1725 = vunpack.c.h.b16 %v1532
        %v1726 = vunpack.c.l.b16 %v1533
        %v1727 = vunpack.c.h.b16 %v1533
        %v1728 = vunpack.c.l.b16 %v1534
        %v1729 = vunpack.c.h.b16 %v1534
        %v1730 = vunpack.c.l.b16 %v1535
        %v1731 = vunpack.c.h.b16 %v1535
        %v1732 = vunpack.c.l.b16 %v1536
        %v1733 = vunpack.c.h.b16 %v1536
        %v1734 = vunpack.c.l.b16 %v1537
        %v1735 = vunpack.c.h.b16 %v1537
        %v1736 = vunpack.c.l.b16 %v1538
        %v1737 = vunpack.c.h.b16 %v1538
        %v1738 = vpack.c.b16 %v1612, %v1610
        %v1739 = vpack.c.b16 %v1613, %v1611
        %v1740 = vpack.c.b16 %v1616, %v1614
        %v1741 = vpack.c.b16 %v1617, %v1615
        %v1742 = vpack.c.b16 %v1620, %v1618
        %v1743 = vpack.c.b16 %v1621, %v1619
        %v1744 = vpack.c.b16 %v1624, %v1622
        %v1745 = vpack.c.b16 %v1625, %v1623
        %v1746 = vpack.c.b16 %v1628, %v1626
        %v1747 = vpack.c.b16 %v1629, %v1627
        %v1748 = vpack.c.b16 %v1632, %v1630
        %v1749 = vpack.c.b16 %v1633, %v1631
        %v1750 = vpack.c.b16 %v1636, %v1634
        %v1751 = vpack.c.b16 %v1637, %v1635
        %v1752 = vpack.c.b16 %v1640, %v1638
        %v1753 = vpack.c.b16 %v1641, %v1639
        %v1754 = vpack.c.b16 %v1644, %v1642
        %v1755 = vpack.c.b16 %v1645, %v1643
        %v1756 = vpack.c.b16 %v1648, %v1646
        %v1757 = vpack.c.b16 %v1649, %v1647
        %v1758 = vpack.c.b16 %v1652, %v1650
        %v1759 = vpack.c.b16 %v1653, %v1651
        %v1760 = vpack.c.b16 %v1656, %v1654
        %v1761 = vpack.c.b16 %v1657, %v1655
        %v1762 = vpack.c.b16 %v1660, %v1658
        %v1763 = vpack.c.b16 %v1661, %v1659
        %v1764 = vpack.c.b16 %v1664, %v1662
        %v1765 = vpack.c.b16 %v1665, %v1663
        %v1766 = vpack.c.b16 %v1668, %v1666
        %v1767 = vpack.c.b16 %v1669, %v1667
        %v1768 = vpack.c.b16 %v1672, %v1670
        %v1769 = vpack.c.b16 %v1673, %v1671
        %v1770 = vpack.c.b16 %v1676, %v1674
        %v1771 = vpack.c.b16 %v1677, %v1675
        %v1772 = vpack.c.b16 %v1680, %v1678
        %v1773 = vpack.c.b16 %v1681, %v1679
        %v1774 = vpack.c.b16 %v1684, %v1682
        %v1775 = vpack.c.b16 %v1685, %v1683
        %v1776 = vpack.c.b16 %v1688, %v1686
        %v1777 = vpack.c.b16 %v1689, %v1687
        %v1778 = vpack.c.b16 %v1692, %v1690
        %v1779 = vpack.c.b16 %v1693, %v1691
        %v1780 = vpack.c.b16 %v1696, %v1694
        %v1781 = vpack.c.b16 %v1697, %v1695
        %v1782 = vpack.c.b16 %v1700, %v1698
        %v1783 = vpack.c.b16 %v1701, %v1699
        %v1784 = vpack.c.b16 %v1704, %v1702
        %v1785 = vpack.c.b16 %v1705, %v1703
        %v1786 = vpack.c.b16 %v1708, %v1706
        %v1787 = vpack.c.b16 %v1709, %v1707
        %v1788 = vpack.c.b16 %v1712, %v1710
        %v1789 = vpack.c.b16 %v1713, %v1711
        %v1790 = vpack.c.b16 %v1716, %v1714
        %v1791 = vpack.c.b16 %v1717, %v1715
        %v1792 = vpack.c.b16 %v1720, %v1718
        %v1793 = vpack.c.b16 %v1721, %v1719
        %v1794 = vpack.c.b16 %v1724, %v1722
        %v1795 = vpack.c.b16 %v1725, %v1723
        %v1796 = vpack.c.b16 %v1728, %v1726
        %v1797 = vpack.c.b16 %v1729, %v1727
        %v1798 = vpack.c.b16 %v1732, %v1730
        %v1799 = vpack.c.b16 %v1733, %v1731
        %v1800 = vpack.c.b16 %v1736, %v1734
        %v1801 = vpack.c.b16 %v1737, %v1735
        %vm1834 = vcmask 556032
        %v1836 = vsel %vm1834, %v1739, 0
        %v1839 = vsel %vm1834, %v1741, 0
        %v1842 = vsel %vm1834, %v1743, 0
        %v1845 = vsel %vm1834, %v1745, 0
        %v1848 = vsel %vm1834, %v1747, 0
        %v1851 = vsel %vm1834, %v1749, 0
        %v1854 = vsel %vm1834, %v1751, 0
        %v1857 = vsel %vm1834, %v1753, 0
        %v1860 = vsel %vm1834, %v1755, 0
        %v1863 = vsel %vm1834, %v1757, 0
        %v1866 = vsel %vm1834, %v1759, 0
        %v1869 = vsel %vm1834, %v1761, 0
        %v1872 = vsel %vm1834, %v1763, 0
        %v1875 = vsel %vm1834, %v1765, 0
        %v1878 = vsel %vm1834, %v1767, 0
        %v1881 = vsel %vm1834, %v1769, 0
        %v1884 = vsel %vm1834, %v1771, 0
        %v1887 = vsel %vm1834, %v1773, 0
        %v1890 = vsel %vm1834, %v1775, 0
        %v1893 = vsel %vm1834, %v1777, 0
        %v1896 = vsel %vm1834, %v1779, 0
        %v1899 = vsel %vm1834, %v1781, 0
        %v1902 = vsel %vm1834, %v1783, 0
        %v1905 = vsel %vm1834, %v1785, 0
        %v1908 = vsel %vm1834, %v1787, 0
        %v1911 = vsel %vm1834, %v1789, 0
        %v1914 = vsel %vm1834, %v1791, 0
        %v1917 = vsel %vm1834, %v1793, 0
        %v1920 = vsel %vm1834, %v1795, 0
        %v1923 = vsel %vm1834, %v1797, 0
        %v1926 = vsel %vm1834, %v1799, 0
        %v1929 = vsel %vm1834, %v1801, 0
        %v1932 = vsel %vm787, %v1474, 0
        %1934 = vmatprep.subr.bf16.mxu0 0
        %1935 = vmatpush1.bf16.msra.mxu0 %v1462
        %1936 = vmatprep.subr.bf16.mxu0 0
        %1937 = vmatpush1.bf16.msra.mxu0 %v1463
        %1938 = vmatprep.subr.bf16.mxu0 0
        %1939 = vmatpush1.bf16.msra.mxu0 %v1464
        %1940 = vmatprep.subr.bf16.mxu0 0
        %1941 = vmatpush1.bf16.msra.mxu0 %v1465
        %1942 = vmatprep.subr.bf16.mxu0 0
        %1943 = vmatpush1.bf16.msra.mxu0 %v1466
        %1944 = vmatprep.subr.bf16.mxu0 0
        %1945 = vmatpush1.bf16.msra.mxu0 %v1467
        %1946 = vmatprep.subr.bf16.mxu0 0
        %1947 = vmatpush1.bf16.msra.mxu0 %v1468
        %1948 = vmatprep.subr.bf16.mxu0 0
        %1949 = vmatpush1.bf16.msra.mxu0 %v1469
        %1950 = vmatprep.subr.bf16.mxu0 0
        %1951 = vmatpush1.bf16.msra.mxu0 %v1470
        %1952 = vmatprep.subr.bf16.mxu0 0
        %1953 = vmatpush1.bf16.msra.mxu0 %v1471
        %1954 = vmatprep.subr.bf16.mxu0 0
        %1955 = vmatpush1.bf16.msra.mxu0 %v1472
        %1956 = vmatprep.subr.bf16.mxu0 0
        %1957 = vmatpush1.bf16.msra.mxu0 %v1473
        %1958 = vmatprep.subr.bf16.mxu0 0
        %1959 = vmatpush1.bf16.msra.mxu0 %v1932
        %1960 = vmatprep.subr.bf16.mxu0 0
        %1961 = vmatpush1.bf16.msra.mxu0 0
        %1962 = vmatprep.subr.bf16.mxu0 0
        %1963 = vmatpush1.bf16.msra.mxu0 0
        %1964 = vmatprep.subr.bf16.mxu0 0
        %1965 = vmatpush1.bf16.msra.mxu0 0
        %1966 = vmatprep.mubr.bf16.mxu0 %v1836
        %1967 = vmatmul.mubr.bf16.gmra.mrb[0].mxu0 %v1738
        %v1968 = vpop.f32.mrb[0].mxu0
        %v1969 = vadd.f32 %v1544, %v1968
        %v1970 = vpop.f32.mrb[0].mxu0
        %v1971 = vpop.f32.mrb[0].mxu0
        %v1972 = vadd.f32 %v1544, %v1971
        %v1973 = vpop.f32.mrb[0].mxu0
        %1974 = vmatprep.mubr.bf16.mxu0 %v1839
        %1975 = vmatmul.mubr.bf16.gmra.mrb[0].mxu0 %v1740
        %v1976 = vpop.f32.mrb[0].mxu0
        %v1977 = vadd.f32 %v1544, %v1976
        %v1978 = vpop.f32.mrb[0].mxu0
        %v1979 = vpop.f32.mrb[0].mxu0
        %v1980 = vadd.f32 %v1544, %v1979
        %v1981 = vpop.f32.mrb[0].mxu0
        %1982 = vmatprep.mubr.bf16.mxu0 %v1842
        %1983 = vmatmul.mubr.bf16.gmra.mrb[0].mxu0 %v1742
        %v1984 = vpop.f32.mrb[0].mxu0
        %v1985 = vadd.f32 %v1544, %v1984
        %v1986 = vpop.f32.mrb[0].mxu0
        %v1987 = vpop.f32.mrb[0].mxu0
        %v1988 = vadd.f32 %v1544, %v1987
        %v1989 = vpop.f32.mrb[0].mxu0
        %1990 = vmatprep.mubr.bf16.mxu0 %v1845
        %1991 = vmatmul.mubr.bf16.gmra.mrb[0].mxu0 %v1744
        %v1992 = vpop.f32.mrb[0].mxu0
        %v1993 = vadd.f32 %v1544, %v1992
        %v1994 = vpop.f32.mrb[0].mxu0
        %v1995 = vpop.f32.mrb[0].mxu0
        %v1996 = vadd.f32 %v1544, %v1995
        %v1997 = vpop.f32.mrb[0].mxu0
        %1998 = vmatprep.mubr.bf16.mxu0 %v1848
        %1999 = vmatmul.mubr.bf16.gmra.mrb[0].mxu0 %v1746
        %v2000 = vpop.f32.mrb[0].mxu0
        %v2001 = vadd.f32 %v1544, %v2000
        %v2002 = vpop.f32.mrb[0].mxu0
        %v2003 = vpop.f32.mrb[0].mxu0
        %v2004 = vadd.f32 %v1544, %v2003
        %v2005 = vpop.f32.mrb[0].mxu0
        %2006 = vmatprep.mubr.bf16.mxu0 %v1851
        %2007 = vmatmul.mubr.bf16.gmra.mrb[0].mxu0 %v1748
        %v2008 = vpop.f32.mrb[0].mxu0
        %v2009 = vadd.f32 %v1544, %v2008
        %v2010 = vpop.f32.mrb[0].mxu0
        %v2011 = vpop.f32.mrb[0].mxu0
        %v2012 = vadd.f32 %v1544, %v2011
        %v2013 = vpop.f32.mrb[0].mxu0
        %2014 = vmatprep.mubr.bf16.mxu0 %v1854
        %2015 = vmatmul.mubr.bf16.gmra.mrb[0].mxu0 %v1750
        %v2016 = vpop.f32.mrb[0].mxu0
        %v2017 = vadd.f32 %v1544, %v2016
        %v2018 = vpop.f32.mrb[0].mxu0
        %v2019 = vpop.f32.mrb[0].mxu0
        %v2020 = vadd.f32 %v1544, %v2019
        %v2021 = vpop.f32.mrb[0].mxu0
        %2022 = vmatprep.mubr.bf16.mxu0 %v1857
        %2023 = vmatmul.mubr.bf16.gmra.mrb[0].mxu0 %v1752
        %v2024 = vpop.f32.mrb[0].mxu0
        %v2025 = vadd.f32 %v1544, %v2024
        %v2026 = vpop.f32.mrb[0].mxu0
        %v2027 = vpop.f32.mrb[0].mxu0
        %v2028 = vadd.f32 %v1544, %v2027
        %v2029 = vpop.f32.mrb[0].mxu0
        %2030 = vmatprep.mubr.bf16.mxu0 %v1860
        %2031 = vmatmul.mubr.bf16.gmra.mrb[0].mxu0 %v1754
        %v2032 = vpop.f32.mrb[0].mxu0
        %v2033 = vadd.f32 %v1544, %v2032
        %v2034 = vpop.f32.mrb[0].mxu0
        %v2035 = vpop.f32.mrb[0].mxu0
        %v2036 = vadd.f32 %v1544, %v2035
        %v2037 = vpop.f32.mrb[0].mxu0
        %2038 = vmatprep.mubr.bf16.mxu0 %v1863
        %2039 = vmatmul.mubr.bf16.gmra.mrb[0].mxu0 %v1756
        %v2040 = vpop.f32.mrb[0].mxu0
        %v2041 = vadd.f32 %v1544, %v2040
        %v2042 = vpop.f32.mrb[0].mxu0
        %v2043 = vpop.f32.mrb[0].mxu0
        %v2044 = vadd.f32 %v1544, %v2043
        %v2045 = vpop.f32.mrb[0].mxu0
        %2046 = vmatprep.mubr.bf16.mxu0 %v1866
        %2047 = vmatmul.mubr.bf16.gmra.mrb[0].mxu0 %v1758
        %v2048 = vpop.f32.mrb[0].mxu0
        %v2049 = vadd.f32 %v1544, %v2048
        %v2050 = vpop.f32.mrb[0].mxu0
        %v2051 = vpop.f32.mrb[0].mxu0
        %v2052 = vadd.f32 %v1544, %v2051
        %v2053 = vpop.f32.mrb[0].mxu0
        %2054 = vmatprep.mubr.bf16.mxu0 %v1869
        %2055 = vmatmul.mubr.bf16.gmra.mrb[0].mxu0 %v1760
        %v2056 = vpop.f32.mrb[0].mxu0
        %v2057 = vadd.f32 %v1544, %v2056
        %v2058 = vpop.f32.mrb[0].mxu0
        %v2059 = vpop.f32.mrb[0].mxu0
        %v2060 = vadd.f32 %v1544, %v2059
        %v2061 = vpop.f32.mrb[0].mxu0
        %2062 = vmatprep.mubr.bf16.mxu0 %v1872
        %2063 = vmatmul.mubr.bf16.gmra.mrb[0].mxu0 %v1762
        %v2064 = vpop.f32.mrb[0].mxu0
        %v2065 = vadd.f32 %v1544, %v2064
        %v2066 = vpop.f32.mrb[0].mxu0
        %v2067 = vpop.f32.mrb[0].mxu0
        %v2068 = vadd.f32 %v1544, %v2067
        %v2069 = vpop.f32.mrb[0].mxu0
        %2070 = vmatprep.mubr.bf16.mxu0 %v1875
        %2071 = vmatmul.mubr.bf16.gmra.mrb[0].mxu0 %v1764
        %v2072 = vpop.f32.mrb[0].mxu0
        %v2073 = vadd.f32 %v1544, %v2072
        %v2074 = vpop.f32.mrb[0].mxu0
        %v2075 = vpop.f32.mrb[0].mxu0
        %v2076 = vadd.f32 %v1544, %v2075
        %v2077 = vpop.f32.mrb[0].mxu0
        %2078 = vmatprep.mubr.bf16.mxu0 %v1878
        %2079 = vmatmul.mubr.bf16.gmra.mrb[0].mxu0 %v1766
        %v2080 = vpop.f32.mrb[0].mxu0
        %v2081 = vadd.f32 %v1544, %v2080
        %v2082 = vpop.f32.mrb[0].mxu0
        %v2083 = vpop.f32.mrb[0].mxu0
        %v2084 = vadd.f32 %v1544, %v2083
        %v2085 = vpop.f32.mrb[0].mxu0
        %2086 = vmatprep.mubr.bf16.mxu0 %v1881
        %2087 = vmatmul.mubr.bf16.gmra.mrb[0].mxu0 %v1768
        %v2088 = vpop.f32.mrb[0].mxu0
        %v2089 = vadd.f32 %v1544, %v2088
        %v2090 = vpop.f32.mrb[0].mxu0
        %v2091 = vpop.f32.mrb[0].mxu0
        %v2092 = vadd.f32 %v1544, %v2091
        %v2093 = vpop.f32.mrb[0].mxu0
        %2094 = vmatprep.mubr.bf16.mxu0 %v1884
        %2095 = vmatmul.mubr.bf16.gmra.mrb[0].mxu0 %v1770
        %v2096 = vpop.f32.mrb[0].mxu0
        %v2097 = vadd.f32 %v1544, %v2096
        %v2098 = vpop.f32.mrb[0].mxu0
        %v2099 = vpop.f32.mrb[0].mxu0
        %v2100 = vadd.f32 %v1544, %v2099
        %v2101 = vpop.f32.mrb[0].mxu0
        %2102 = vmatprep.mubr.bf16.mxu0 %v1887
        %2103 = vmatmul.mubr.bf16.gmra.mrb[0].mxu0 %v1772
        %v2104 = vpop.f32.mrb[0].mxu0
        %v2105 = vadd.f32 %v1544, %v2104
        %v2106 = vpop.f32.mrb[0].mxu0
        %v2107 = vpop.f32.mrb[0].mxu0
        %v2108 = vadd.f32 %v1544, %v2107
        %v2109 = vpop.f32.mrb[0].mxu0
        %2110 = vmatprep.mubr.bf16.mxu0 %v1890
        %2111 = vmatmul.mubr.bf16.gmra.mrb[0].mxu0 %v1774
        %v2112 = vpop.f32.mrb[0].mxu0
        %v2113 = vadd.f32 %v1544, %v2112
        %v2114 = vpop.f32.mrb[0].mxu0
        %v2115 = vpop.f32.mrb[0].mxu0
        %v2116 = vadd.f32 %v1544, %v2115
        %v2117 = vpop.f32.mrb[0].mxu0
        %2118 = vmatprep.mubr.bf16.mxu0 %v1893
        %2119 = vmatmul.mubr.bf16.gmra.mrb[0].mxu0 %v1776
        %v2120 = vpop.f32.mrb[0].mxu0
        %v2121 = vadd.f32 %v1544, %v2120
        %v2122 = vpop.f32.mrb[0].mxu0
        %v2123 = vpop.f32.mrb[0].mxu0
        %v2124 = vadd.f32 %v1544, %v2123
        %v2125 = vpop.f32.mrb[0].mxu0
        %2126 = vmatprep.mubr.bf16.mxu0 %v1896
        %2127 = vmatmul.mubr.bf16.gmra.mrb[0].mxu0 %v1778
        %v2128 = vpop.f32.mrb[0].mxu0
        %v2129 = vadd.f32 %v1544, %v2128
        %v2130 = vpop.f32.mrb[0].mxu0
        %v2131 = vpop.f32.mrb[0].mxu0
        %v2132 = vadd.f32 %v1544, %v2131
        %v2133 = vpop.f32.mrb[0].mxu0
        %2134 = vmatprep.mubr.bf16.mxu0 %v1899
        %2135 = vmatmul.mubr.bf16.gmra.mrb[0].mxu0 %v1780
        %v2136 = vpop.f32.mrb[0].mxu0
        %v2137 = vadd.f32 %v1544, %v2136
        %v2138 = vpop.f32.mrb[0].mxu0
        %v2139 = vpop.f32.mrb[0].mxu0
        %v2140 = vadd.f32 %v1544, %v2139
        %v2141 = vpop.f32.mrb[0].mxu0
        %2142 = vmatprep.mubr.bf16.mxu0 %v1902
        %2143 = vmatmul.mubr.bf16.gmra.mrb[0].mxu0 %v1782
        %v2144 = vpop.f32.mrb[0].mxu0
        %v2145 = vadd.f32 %v1544, %v2144
        %v2146 = vpop.f32.mrb[0].mxu0
        %v2147 = vpop.f32.mrb[0].mxu0
        %v2148 = vadd.f32 %v1544, %v2147
        %v2149 = vpop.f32.mrb[0].mxu0
        %2150 = vmatprep.mubr.bf16.mxu0 %v1905
        %2151 = vmatmul.mubr.bf16.gmra.mrb[0].mxu0 %v1784
        %v2152 = vpop.f32.mrb[0].mxu0
        %v2153 = vadd.f32 %v1544, %v2152
        %v2154 = vpop.f32.mrb[0].mxu0
        %v2155 = vpop.f32.mrb[0].mxu0
        %v2156 = vadd.f32 %v1544, %v2155
        %v2157 = vpop.f32.mrb[0].mxu0
        %2158 = vmatprep.mubr.bf16.mxu0 %v1908
        %2159 = vmatmul.mubr.bf16.gmra.mrb[0].mxu0 %v1786
        %v2160 = vpop.f32.mrb[0].mxu0
        %v2161 = vadd.f32 %v1544, %v2160
        %v2162 = vpop.f32.mrb[0].mxu0
        %v2163 = vpop.f32.mrb[0].mxu0
        %v2164 = vadd.f32 %v1544, %v2163
        %v2165 = vpop.f32.mrb[0].mxu0
        %2166 = vmatprep.mubr.bf16.mxu0 %v1911
        %2167 = vmatmul.mubr.bf16.gmra.mrb[0].mxu0 %v1788
        %v2168 = vpop.f32.mrb[0].mxu0
        %v2169 = vadd.f32 %v1544, %v2168
        %v2170 = vpop.f32.mrb[0].mxu0
        %v2171 = vpop.f32.mrb[0].mxu0
        %v2172 = vadd.f32 %v1544, %v2171
        %v2173 = vpop.f32.mrb[0].mxu0
        %2174 = vmatprep.mubr.bf16.mxu0 %v1914
        %2175 = vmatmul.mubr.bf16.gmra.mrb[0].mxu0 %v1790
        %v2176 = vpop.f32.mrb[0].mxu0
        %v2177 = vadd.f32 %v1544, %v2176
        %v2178 = vpop.f32.mrb[0].mxu0
        %v2179 = vpop.f32.mrb[0].mxu0
        %v2180 = vadd.f32 %v1544, %v2179
        %v2181 = vpop.f32.mrb[0].mxu0
        %2182 = vmatprep.mubr.bf16.mxu0 %v1917
        %2183 = vmatmul.mubr.bf16.gmra.mrb[0].mxu0 %v1792
        %v2184 = vpop.f32.mrb[0].mxu0
        %v2185 = vadd.f32 %v1544, %v2184
        %v2186 = vpop.f32.mrb[0].mxu0
        %v2187 = vpop.f32.mrb[0].mxu0
        %v2188 = vadd.f32 %v1544, %v2187
        %v2189 = vpop.f32.mrb[0].mxu0
        %2190 = vmatprep.mubr.bf16.mxu0 %v1920
        %2191 = vmatmul.mubr.bf16.gmra.mrb[0].mxu0 %v1794
        %v2192 = vpop.f32.mrb[0].mxu0
        %v2193 = vadd.f32 %v1544, %v2192
        %v2194 = vpop.f32.mrb[0].mxu0
        %v2195 = vpop.f32.mrb[0].mxu0
        %v2196 = vadd.f32 %v1544, %v2195
        %v2197 = vpop.f32.mrb[0].mxu0
        %2198 = vmatprep.mubr.bf16.mxu0 %v1923
        %2199 = vmatmul.mubr.bf16.gmra.mrb[0].mxu0 %v1796
        %v2200 = vpop.f32.mrb[0].mxu0
        %v2201 = vadd.f32 %v1544, %v2200
        %v2202 = vpop.f32.mrb[0].mxu0
        %v2203 = vpop.f32.mrb[0].mxu0
        %v2204 = vadd.f32 %v1544, %v2203
        %v2205 = vpop.f32.mrb[0].mxu0
        %2206 = vmatprep.mubr.bf16.mxu0 %v1926
        %2207 = vmatmul.mubr.bf16.gmra.mrb[0].mxu0 %v1798
        %v2208 = vpop.f32.mrb[0].mxu0
        %v2209 = vadd.f32 %v1544, %v2208
        %v2210 = vpop.f32.mrb[0].mxu0
        %v2211 = vpop.f32.mrb[0].mxu0
        %v2212 = vadd.f32 %v1544, %v2211
        %v2213 = vpop.f32.mrb[0].mxu0
        %2214 = vmatprep.mubr.bf16.mxu0 %v1929
        %2215 = vmatmul.mubr.bf16.gmra.mrb[0].mxu0 %v1800
        %v2216 = vpop.f32.mrb[0].mxu0
        %v2217 = vadd.f32 %v1544, %v2216
        %v2218 = vpop.f32.mrb[0].mxu0
        %v2219 = vpop.f32.mrb[0].mxu0
        %v2220 = vadd.f32 %v1544, %v2219
        %v2221 = vpop.f32.mrb[0].mxu0
        %2222 = vdwg.mxu0
        %v2223 = vmax.f32 %v1969, 0.0
        %v2224 = vmax.f32 %v1972, 0.0
        %v2225 = vmax.f32 %v1977, 0.0
        %v2226 = vmax.f32 %v1980, 0.0
        %v2227 = vmax.f32 %v1985, 0.0
        %v2228 = vmax.f32 %v1988, 0.0
        %v2229 = vmax.f32 %v1993, 0.0
        %v2230 = vmax.f32 %v1996, 0.0
        %v2231 = vmax.f32 %v2001, 0.0
        %v2232 = vmax.f32 %v2004, 0.0
        %v2233 = vmax.f32 %v2009, 0.0
        %v2234 = vmax.f32 %v2012, 0.0
        %v2235 = vmax.f32 %v2017, 0.0
        %v2236 = vmax.f32 %v2020, 0.0
        %v2237 = vmax.f32 %v2025, 0.0
        %v2238 = vmax.f32 %v2028, 0.0
        %v2239 = vmax.f32 %v2033, 0.0
        %v2240 = vmax.f32 %v2036, 0.0
        %v2241 = vmax.f32 %v2041, 0.0
        %v2242 = vmax.f32 %v2044, 0.0
        %v2243 = vmax.f32 %v2049, 0.0
        %v2244 = vmax.f32 %v2052, 0.0
        %v2245 = vmax.f32 %v2057, 0.0
        %v2246 = vmax.f32 %v2060, 0.0
        %v2247 = vmax.f32 %v2065, 0.0
        %v2248 = vmax.f32 %v2068, 0.0
        %v2249 = vmax.f32 %v2073, 0.0
        %v2250 = vmax.f32 %v2076, 0.0
        %v2251 = vmax.f32 %v2081, 0.0
        %v2252 = vmax.f32 %v2084, 0.0
        %v2253 = vmax.f32 %v2089, 0.0
        %v2254 = vmax.f32 %v2092, 0.0
        %v2255 = vmax.f32 %v2097, 0.0
        %v2256 = vmax.f32 %v2100, 0.0
        %v2257 = vmax.f32 %v2105, 0.0
        %v2258 = vmax.f32 %v2108, 0.0
        %v2259 = vmax.f32 %v2113, 0.0
        %v2260 = vmax.f32 %v2116, 0.0
        %v2261 = vmax.f32 %v2121, 0.0
        %v2262 = vmax.f32 %v2124, 0.0
        %v2263 = vmax.f32 %v2129, 0.0
        %v2264 = vmax.f32 %v2132, 0.0
        %v2265 = vmax.f32 %v2137, 0.0
        %v2266 = vmax.f32 %v2140, 0.0
        %v2267 = vmax.f32 %v2145, 0.0
        %v2268 = vmax.f32 %v2148, 0.0
        %v2269 = vmax.f32 %v2153, 0.0
        %v2270 = vmax.f32 %v2156, 0.0
        %v2271 = vmax.f32 %v2161, 0.0
        %v2272 = vmax.f32 %v2164, 0.0
        %v2273 = vmax.f32 %v2169, 0.0
        %v2274 = vmax.f32 %v2172, 0.0
        %v2275 = vmax.f32 %v2177, 0.0
        %v2276 = vmax.f32 %v2180, 0.0
        %v2277 = vmax.f32 %v2185, 0.0
        %v2278 = vmax.f32 %v2188, 0.0
        %v2279 = vmax.f32 %v2193, 0.0
        %v2280 = vmax.f32 %v2196, 0.0
        %v2281 = vmax.f32 %v2201, 0.0
        %v2282 = vmax.f32 %v2204, 0.0
        %v2283 = vmax.f32 %v2209, 0.0
        %v2284 = vmax.f32 %v2212, 0.0
        %v2285 = vmax.f32 %v2217, 0.0
        %v2286 = vmax.f32 %v2220, 0.0
        %v2287 = vld [vmem:[%s7] sm:$0xff]
        %v2288 = vld [vmem:[%s7 + $0x8] sm:$0xff]
        %v2289 = vld [vmem:[%s7 + $0x10] sm:$0xff]
        %v2290 = vld [vmem:[%s7 + $0x18] sm:$0xff]
        %v2291 = vld [vmem:[%s7 + $0x20] sm:$0xff]
        %v2292 = vld [vmem:[%s7 + $0x28] sm:$0xff]
        %v2293 = vld [vmem:[%s7 + $0x30] sm:$0xff]
        %v2294 = vld [vmem:[%s7 + $0x38] sm:$0xff]
        %v2295 = vld [vmem:[%s7 + $0x40] sm:$0xff]
        %v2296 = vld [vmem:[%s7 + $0x48] sm:$0xff]
        %v2297 = vld [vmem:[%s7 + $0x50] sm:$0xff]
        %v2298 = vld [vmem:[%s7 + $0x58] sm:$0xff]
        %v2299 = vld [vmem:[%s7 + $0x60] sm:$0xff]
        %v2300 = vld [vmem:[%s7 + $0x68] sm:$0xff]
        %v2301 = vld [vmem:[%s7 + $0x70] sm:$0xff]
        %v2302 = vld [vmem:[%s7 + $0x78] sm:$0xff]
        %v2303 = vld [vmem:[%s7 + $0x80] sm:$0xff]
        %v2304 = vld [vmem:[%s7 + $0x88] sm:$0xff]
        %v2305 = vld [vmem:[%s7 + $0x90] sm:$0xff]
        %v2306 = vld [vmem:[%s7 + $0x98] sm:$0xff]
        %v2307 = vld [vmem:[%s7 + $0xa0] sm:$0xff]
        %v2308 = vld [vmem:[%s7 + $0xa8] sm:$0xff]
        %v2309 = vld [vmem:[%s7 + $0xb0] sm:$0xff]
        %v2310 = vld [vmem:[%s7 + $0xb8] sm:$0xff]
        %v2311 = vld [vmem:[%s7 + $0xc0] sm:$0xff]
        %v2312 = vld [vmem:[%s7 + $0xc8] sm:$0xff]
        %v2313 = vld [vmem:[%s7 + $0xd0] sm:$0xff]
        %v2314 = vld [vmem:[%s7 + $0xd8] sm:$0xff]
        %v2315 = vld [vmem:[%s7 + $0xe0] sm:$0xff]
        %v2316 = vld [vmem:[%s7 + $0xe8] sm:$0xff]
        %v2317 = vld [vmem:[%s7 + $0xf0] sm:$0xff]
        %v2318 = vld [vmem:[%s7 + $0xf8] sm:$0xff]
        %v2319 = vld [vmem:[%s7 + $0x100] sm:$0xff]
        %v2320 = vld [vmem:[%s7 + $0x108] sm:$0xff]
        %v2321 = vld [vmem:[%s7 + $0x110] sm:$0xff]
        %v2322 = vld [vmem:[%s7 + $0x118] sm:$0xff]
        %v2323 = vld [vmem:[%s7 + $0x120] sm:$0xff]
        %v2324 = vld [vmem:[%s7 + $0x128] sm:$0xff]
        %v2325 = vld [vmem:[%s7 + $0x130] sm:$0xff]
        %v2326 = vld [vmem:[%s7 + $0x138] sm:$0xff]
        %v2327 = vld [vmem:[%s7 + $0x140] sm:$0xff]
        %v2328 = vld [vmem:[%s7 + $0x148] sm:$0xff]
        %v2329 = vld [vmem:[%s7 + $0x150] sm:$0xff]
        %v2330 = vld [vmem:[%s7 + $0x158] sm:$0xff]
        %v2331 = vld [vmem:[%s7 + $0x160] sm:$0xff]
        %v2332 = vld [vmem:[%s7 + $0x168] sm:$0xff]
        %v2333 = vld [vmem:[%s7 + $0x170] sm:$0xff]
        %v2334 = vld [vmem:[%s7 + $0x178] sm:$0xff]
        %v2335 = vld [vmem:[%s7 + $0x180] sm:$0x33]
        %v2336 = vld [vmem:[%s7 + $0x188] sm:$0x33]
        %v2337 = vpack.c.bf16 %v2224, %v2223
        %v2338 = vpack.c.bf16 %v2226, %v2225
        %v2339 = vpack.c.bf16 %v2228, %v2227
        %v2340 = vpack.c.bf16 %v2230, %v2229
        %v2341 = vpack.c.bf16 %v2232, %v2231
        %v2342 = vpack.c.bf16 %v2234, %v2233
        %v2343 = vpack.c.bf16 %v2236, %v2235
        %v2344 = vpack.c.bf16 %v2238, %v2237
        %v2345 = vpack.c.bf16 %v2240, %v2239
        %v2346 = vpack.c.bf16 %v2242, %v2241
        %v2347 = vpack.c.bf16 %v2244, %v2243
        %v2348 = vpack.c.bf16 %v2246, %v2245
        %v2349 = vpack.c.bf16 %v2248, %v2247
        %v2350 = vpack.c.bf16 %v2250, %v2249
        %v2351 = vpack.c.bf16 %v2252, %v2251
        %v2352 = vpack.c.bf16 %v2254, %v2253
        %v2353 = vpack.c.bf16 %v2256, %v2255
        %v2354 = vpack.c.bf16 %v2258, %v2257
        %v2355 = vpack.c.bf16 %v2260, %v2259
        %v2356 = vpack.c.bf16 %v2262, %v2261
        %v2357 = vpack.c.bf16 %v2264, %v2263
        %v2358 = vpack.c.bf16 %v2266, %v2265
        %v2359 = vpack.c.bf16 %v2268, %v2267
        %v2360 = vpack.c.bf16 %v2270, %v2269
        %v2361 = vpack.c.bf16 %v2272, %v2271
        %v2362 = vpack.c.bf16 %v2274, %v2273
        %v2363 = vpack.c.bf16 %v2276, %v2275
        %v2364 = vpack.c.bf16 %v2278, %v2277
        %v2365 = vpack.c.bf16 %v2280, %v2279
        %v2366 = vpack.c.bf16 %v2282, %v2281
        %v2367 = vpack.c.bf16 %v2284, %v2283
        %v2368 = vpack.c.bf16 %v2286, %v2285
        %v2419 = vunpack.c.l.b16 %v2287
        %v2420 = vunpack.c.h.b16 %v2287
        %v2421 = vunpack.c.l.b16 %v2288
        %v2422 = vunpack.c.h.b16 %v2288
        %v2423 = vunpack.c.l.b16 %v2289
        %v2424 = vunpack.c.h.b16 %v2289
        %v2425 = vunpack.c.l.b16 %v2290
        %v2426 = vunpack.c.h.b16 %v2290
        %v2427 = vunpack.c.l.b16 %v2291
        %v2428 = vunpack.c.h.b16 %v2291
        %v2429 = vunpack.c.l.b16 %v2292
        %v2430 = vunpack.c.h.b16 %v2292
        %v2431 = vunpack.c.l.b16 %v2293
        %v2432 = vunpack.c.h.b16 %v2293
        %v2433 = vunpack.c.l.b16 %v2294
        %v2434 = vunpack.c.h.b16 %v2294
        %v2435 = vunpack.c.l.b16 %v2295
        %v2436 = vunpack.c.h.b16 %v2295
        %v2437 = vunpack.c.l.b16 %v2296
        %v2438 = vunpack.c.h.b16 %v2296
        %v2439 = vunpack.c.l.b16 %v2297
        %v2440 = vunpack.c.h.b16 %v2297
        %v2441 = vunpack.c.l.b16 %v2298
        %v2442 = vunpack.c.h.b16 %v2298
        %v2443 = vunpack.c.l.b16 %v2299
        %v2444 = vunpack.c.h.b16 %v2299
        %v2445 = vunpack.c.l.b16 %v2300
        %v2446 = vunpack.c.h.b16 %v2300
        %v2447 = vunpack.c.l.b16 %v2301
        %v2448 = vunpack.c.h.b16 %v2301
        %v2449 = vunpack.c.l.b16 %v2302
        %v2450 = vunpack.c.h.b16 %v2302
        %v2451 = vunpack.c.l.b16 %v2303
        %v2452 = vunpack.c.h.b16 %v2303
        %v2453 = vunpack.c.l.b16 %v2304
        %v2454 = vunpack.c.h.b16 %v2304
        %v2455 = vunpack.c.l.b16 %v2305
        %v2456 = vunpack.c.h.b16 %v2305
        %v2457 = vunpack.c.l.b16 %v2306
        %v2458 = vunpack.c.h.b16 %v2306
        %v2459 = vunpack.c.l.b16 %v2307
        %v2460 = vunpack.c.h.b16 %v2307
        %v2461 = vunpack.c.l.b16 %v2308
        %v2462 = vunpack.c.h.b16 %v2308
        %v2463 = vunpack.c.l.b16 %v2309
        %v2464 = vunpack.c.h.b16 %v2309
        %v2465 = vunpack.c.l.b16 %v2310
        %v2466 = vunpack.c.h.b16 %v2310
        %v2467 = vunpack.c.l.b16 %v2311
        %v2468 = vunpack.c.h.b16 %v2311
        %v2469 = vunpack.c.l.b16 %v2312
        %v2470 = vunpack.c.h.b16 %v2312
        %v2471 = vunpack.c.l.b16 %v2313
        %v2472 = vunpack.c.h.b16 %v2313
        %v2473 = vunpack.c.l.b16 %v2314
        %v2474 = vunpack.c.h.b16 %v2314
        %v2475 = vunpack.c.l.b16 %v2315
        %v2476 = vunpack.c.h.b16 %v2315
        %v2477 = vunpack.c.l.b16 %v2316
        %v2478 = vunpack.c.h.b16 %v2316
        %v2479 = vunpack.c.l.b16 %v2317
        %v2480 = vunpack.c.h.b16 %v2317
        %v2481 = vunpack.c.l.b16 %v2318
        %v2482 = vunpack.c.h.b16 %v2318
        %v2483 = vunpack.c.l.b16 %v2319
        %v2484 = vunpack.c.h.b16 %v2319
        %v2485 = vunpack.c.l.b16 %v2320
        %v2486 = vunpack.c.h.b16 %v2320
        %v2487 = vunpack.c.l.b16 %v2321
        %v2488 = vunpack.c.h.b16 %v2321
        %v2489 = vunpack.c.l.b16 %v2322
        %v2490 = vunpack.c.h.b16 %v2322
        %v2491 = vunpack.c.l.b16 %v2323
        %v2492 = vunpack.c.h.b16 %v2323
        %v2493 = vunpack.c.l.b16 %v2324
        %v2494 = vunpack.c.h.b16 %v2324
        %v2495 = vunpack.c.l.b16 %v2325
        %v2496 = vunpack.c.h.b16 %v2325
        %v2497 = vunpack.c.l.b16 %v2326
        %v2498 = vunpack.c.h.b16 %v2326
        %v2499 = vunpack.c.l.b16 %v2327
        %v2500 = vunpack.c.h.b16 %v2327
        %v2501 = vunpack.c.l.b16 %v2328
        %v2502 = vunpack.c.h.b16 %v2328
        %v2503 = vunpack.c.l.b16 %v2329
        %v2504 = vunpack.c.h.b16 %v2329
        %v2505 = vunpack.c.l.b16 %v2330
        %v2506 = vunpack.c.h.b16 %v2330
        %v2507 = vunpack.c.l.b16 %v2331
        %v2508 = vunpack.c.h.b16 %v2331
        %v2509 = vunpack.c.l.b16 %v2332
        %v2510 = vunpack.c.h.b16 %v2332
        %v2511 = vunpack.c.l.b16 %v2333
        %v2512 = vunpack.c.h.b16 %v2333
        %v2513 = vunpack.c.l.b16 %v2334
        %v2514 = vunpack.c.h.b16 %v2334
        %v2515 = vunpack.c.l.b16 %v2335
        %v2516 = vunpack.c.h.b16 %v2335
        %v2517 = vunpack.c.l.b16 %v2336
        %v2518 = vunpack.c.h.b16 %v2336
        %v2519 = vpack.c.b16 %v2423, %v2419
        %v2520 = vpack.c.b16 %v2424, %v2420
        %v2521 = vpack.c.b16 %v2425, %v2421
        %v2522 = vpack.c.b16 %v2426, %v2422
        %v2523 = vpack.c.b16 %v2431, %v2427
        %v2524 = vpack.c.b16 %v2432, %v2428
        %v2525 = vpack.c.b16 %v2433, %v2429
        %v2526 = vpack.c.b16 %v2434, %v2430
        %v2527 = vpack.c.b16 %v2439, %v2435
        %v2528 = vpack.c.b16 %v2440, %v2436
        %v2529 = vpack.c.b16 %v2441, %v2437
        %v2530 = vpack.c.b16 %v2442, %v2438
        %v2531 = vpack.c.b16 %v2447, %v2443
        %v2532 = vpack.c.b16 %v2448, %v2444
        %v2533 = vpack.c.b16 %v2449, %v2445
        %v2534 = vpack.c.b16 %v2450, %v2446
        %v2535 = vpack.c.b16 %v2455, %v2451
        %v2536 = vpack.c.b16 %v2456, %v2452
        %v2537 = vpack.c.b16 %v2457, %v2453
        %v2538 = vpack.c.b16 %v2458, %v2454
        %v2539 = vpack.c.b16 %v2463, %v2459
        %v2540 = vpack.c.b16 %v2464, %v2460
        %v2541 = vpack.c.b16 %v2465, %v2461
        %v2542 = vpack.c.b16 %v2466, %v2462
        %v2543 = vpack.c.b16 %v2471, %v2467
        %v2544 = vpack.c.b16 %v2472, %v2468
        %v2545 = vpack.c.b16 %v2473, %v2469
        %v2546 = vpack.c.b16 %v2474, %v2470
        %v2547 = vpack.c.b16 %v2479, %v2475
        %v2548 = vpack.c.b16 %v2480, %v2476
        %v2549 = vpack.c.b16 %v2481, %v2477
        %v2550 = vpack.c.b16 %v2482, %v2478
        %v2551 = vpack.c.b16 %v2487, %v2483
        %v2552 = vpack.c.b16 %v2488, %v2484
        %v2553 = vpack.c.b16 %v2489, %v2485
        %v2554 = vpack.c.b16 %v2490, %v2486
        %v2555 = vpack.c.b16 %v2495, %v2491
        %v2556 = vpack.c.b16 %v2496, %v2492
        %v2557 = vpack.c.b16 %v2497, %v2493
        %v2558 = vpack.c.b16 %v2498, %v2494
        %v2559 = vpack.c.b16 %v2503, %v2499
        %v2560 = vpack.c.b16 %v2504, %v2500
        %v2561 = vpack.c.b16 %v2505, %v2501
        %v2562 = vpack.c.b16 %v2506, %v2502
        %v2563 = vpack.c.b16 %v2511, %v2507
        %v2564 = vpack.c.b16 %v2512, %v2508
        %v2565 = vpack.c.b16 %v2513, %v2509
        %v2566 = vpack.c.b16 %v2514, %v2510
        %v2567 = vpack.c.b16 %v2515, %v2515
        %v2568 = vpack.c.b16 %v2516, %v2516
        %v2569 = vpack.c.b16 %v2517, %v2517
        %v2570 = vpack.c.b16 %v2518, %v2518
        %2623 = vmatprep.subr.bf16.mxu0 0
        %2624 = vmatpush1.bf16.msra.mxu0 %v2337
        %2625 = vmatprep.subr.bf16.mxu0 0
        %2626 = vmatpush1.bf16.msra.mxu0 %v2338
        %2627 = vmatprep.subr.bf16.mxu0 0
        %2628 = vmatpush1.bf16.msra.mxu0 %v2339
        %2629 = vmatprep.subr.bf16.mxu0 0
        %2630 = vmatpush1.bf16.msra.mxu0 %v2340
        %2631 = vmatprep.subr.bf16.mxu0 0
        %2632 = vmatpush1.bf16.msra.mxu0 %v2341
        %2633 = vmatprep.subr.bf16.mxu0 0
        %2634 = vmatpush1.bf16.msra.mxu0 %v2342
        %2635 = vmatprep.subr.bf16.mxu0 0
        %2636 = vmatpush1.bf16.msra.mxu0 %v2343
        %2637 = vmatprep.subr.bf16.mxu0 0
        %2638 = vmatpush1.bf16.msra.mxu0 %v2344
        %2639 = vmatprep.subr.bf16.mxu0 0
        %2640 = vmatpush1.bf16.msra.mxu0 %v2345
        %2641 = vmatprep.subr.bf16.mxu0 0
        %2642 = vmatpush1.bf16.msra.mxu0 %v2346
        %2643 = vmatprep.subr.bf16.mxu0 0
        %2644 = vmatpush1.bf16.msra.mxu0 %v2347
        %2645 = vmatprep.subr.bf16.mxu0 0
        %2646 = vmatpush1.bf16.msra.mxu0 %v2348
        %2647 = vmatprep.subr.bf16.mxu0 0
        %2648 = vmatpush1.bf16.msra.mxu0 %v2349
        %2649 = vmatprep.subr.bf16.mxu0 0
        %2650 = vmatpush1.bf16.msra.mxu0 %v2350
        %2651 = vmatprep.subr.bf16.mxu0 0
        %2652 = vmatpush1.bf16.msra.mxu0 %v2351
        %2653 = vmatprep.subr.bf16.mxu0 0
        %2654 = vmatpush1.bf16.msra.mxu0 %v2352
        %2655 = vmatprep.mubr.bf16.mxu0 %v2520
        %2656 = vmatmul.mubr.bf16.gmra.mrb[0].mxu0 %v2519
        %v2657 = vpop.f32.mrb[0].mxu0
        %v2658 = vadd.f32 0.0, %v2657
        %v2659 = vpop.f32.mrb[0].mxu0
        %v2660 = vpop.f32.mrb[0].mxu0
        %v2661 = vadd.f32 0.0, %v2660
        %v2662 = vpop.f32.mrb[0].mxu0
        %2663 = vmatprep.mubr.bf16.mxu0 %v2524
        %2664 = vmatmul.mubr.bf16.gmra.mrb[0].mxu0 %v2523
        %v2665 = vpop.f32.mrb[0].mxu0
        %v2666 = vadd.f32 0.0, %v2665
        %v2667 = vpop.f32.mrb[0].mxu0
        %v2668 = vpop.f32.mrb[0].mxu0
        %v2669 = vadd.f32 0.0, %v2668
        %v2670 = vpop.f32.mrb[0].mxu0
        %2671 = vmatprep.mubr.bf16.mxu0 %v2528
        %2672 = vmatmul.mubr.bf16.gmra.mrb[0].mxu0 %v2527
        %v2673 = vpop.f32.mrb[0].mxu0
        %v2674 = vadd.f32 0.0, %v2673
        %v2675 = vpop.f32.mrb[0].mxu0
        %v2676 = vpop.f32.mrb[0].mxu0
        %v2677 = vadd.f32 0.0, %v2676
        %v2678 = vpop.f32.mrb[0].mxu0
        %2679 = vmatprep.mubr.bf16.mxu0 %v2532
        %2680 = vmatmul.mubr.bf16.gmra.mrb[0].mxu0 %v2531
        %v2681 = vpop.f32.mrb[0].mxu0
        %v2682 = vadd.f32 0.0, %v2681
        %v2683 = vpop.f32.mrb[0].mxu0
        %v2684 = vpop.f32.mrb[0].mxu0
        %v2685 = vadd.f32 0.0, %v2684
        %v2686 = vpop.f32.mrb[0].mxu0
        %2687 = vmatprep.mubr.bf16.mxu0 %v2536
        %2688 = vmatmul.mubr.bf16.gmra.mrb[0].mxu0 %v2535
        %v2689 = vpop.f32.mrb[0].mxu0
        %v2690 = vadd.f32 0.0, %v2689
        %v2691 = vpop.f32.mrb[0].mxu0
        %v2692 = vpop.f32.mrb[0].mxu0
        %v2693 = vadd.f32 0.0, %v2692
        %v2694 = vpop.f32.mrb[0].mxu0
        %2695 = vmatprep.mubr.bf16.mxu0 %v2540
        %2696 = vmatmul.mubr.bf16.gmra.mrb[0].mxu0 %v2539
        %v2697 = vpop.f32.mrb[0].mxu0
        %v2698 = vadd.f32 0.0, %v2697
        %v2699 = vpop.f32.mrb[0].mxu0
        %v2700 = vpop.f32.mrb[0].mxu0
        %v2701 = vadd.f32 0.0, %v2700
        %v2702 = vpop.f32.mrb[0].mxu0
        %2703 = vmatprep.mubr.bf16.mxu0 %v2544
        %2704 = vmatmul.mubr.bf16.gmra.mrb[0].mxu0 %v2543
        %v2705 = vpop.f32.mrb[0].mxu0
        %v2706 = vadd.f32 0.0, %v2705
        %v2707 = vpop.f32.mrb[0].mxu0
        %v2708 = vpop.f32.mrb[0].mxu0
        %v2709 = vadd.f32 0.0, %v2708
        %v2710 = vpop.f32.mrb[0].mxu0
        %2711 = vmatprep.mubr.bf16.mxu0 %v2548
        %2712 = vmatmul.mubr.bf16.gmra.mrb[0].mxu0 %v2547
        %v2713 = vpop.f32.mrb[0].mxu0
        %v2714 = vadd.f32 0.0, %v2713
        %v2715 = vpop.f32.mrb[0].mxu0
        %v2716 = vpop.f32.mrb[0].mxu0
        %v2717 = vadd.f32 0.0, %v2716
        %v2718 = vpop.f32.mrb[0].mxu0
        %2719 = vmatprep.mubr.bf16.mxu0 %v2552
        %2720 = vmatmul.mubr.bf16.gmra.mrb[0].mxu0 %v2551
        %v2721 = vpop.f32.mrb[0].mxu0
        %v2722 = vadd.f32 0.0, %v2721
        %v2723 = vpop.f32.mrb[0].mxu0
        %v2724 = vpop.f32.mrb[0].mxu0
        %v2725 = vadd.f32 0.0, %v2724
        %v2726 = vpop.f32.mrb[0].mxu0
        %2727 = vmatprep.mubr.bf16.mxu0 %v2556
        %2728 = vmatmul.mubr.bf16.gmra.mrb[0].mxu0 %v2555
        %v2729 = vpop.f32.mrb[0].mxu0
        %v2730 = vadd.f32 0.0, %v2729
        %v2731 = vpop.f32.mrb[0].mxu0
        %v2732 = vpop.f32.mrb[0].mxu0
        %v2733 = vadd.f32 0.0, %v2732
        %v2734 = vpop.f32.mrb[0].mxu0
        %2735 = vmatprep.mubr.bf16.mxu0 %v2560
        %2736 = vmatmul.mubr.bf16.gmra.mrb[0].mxu0 %v2559
        %v2737 = vpop.f32.mrb[0].mxu0
        %v2738 = vadd.f32 0.0, %v2737
        %v2739 = vpop.f32.mrb[0].mxu0
        %v2740 = vpop.f32.mrb[0].mxu0
        %v2741 = vadd.f32 0.0, %v2740
        %v2742 = vpop.f32.mrb[0].mxu0
        %2743 = vmatprep.mubr.bf16.mxu0 %v2564
        %2744 = vmatmul.mubr.bf16.gmra.mrb[0].mxu0 %v2563
        %v2745 = vpop.f32.mrb[0].mxu0
        %v2746 = vadd.f32 0.0, %v2745
        %v2747 = vpop.f32.mrb[0].mxu0
        %v2748 = vpop.f32.mrb[0].mxu0
        %v2749 = vadd.f32 0.0, %v2748
        %v2750 = vpop.f32.mrb[0].mxu0
        %2751 = vmatprep.mubr.bf16.mxu0 %v2568
        %2752 = vmatmul.mubr.bf16.gmra.mrb[0].mxu0 %v2567
        %v2753 = vpop.f32.mrb[0].mxu0
        %v2754 = vadd.f32 0.0, %v2753
        %v2755 = vpop.f32.mrb[0].mxu0
        %v2756 = vpop.f32.mrb[0].mxu0
        %v2757 = vpop.f32.mrb[0].mxu0
        %2758 = vdwg.mxu0
        %2759 = vmatprep.subr.bf16.mxu0 0
        %2760 = vmatpush1.bf16.msra.mxu0 %v2353
        %2761 = vmatprep.subr.bf16.mxu0 0
        %2762 = vmatpush1.bf16.msra.mxu0 %v2354
        %2763 = vmatprep.subr.bf16.mxu0 0
        %2764 = vmatpush1.bf16.msra.mxu0 %v2355
        %2765 = vmatprep.subr.bf16.mxu0 0
        %2766 = vmatpush1.bf16.msra.mxu0 %v2356
        %2767 = vmatprep.subr.bf16.mxu0 0
        %2768 = vmatpush1.bf16.msra.mxu0 %v2357
        %2769 = vmatprep.subr.bf16.mxu0 0
        %2770 = vmatpush1.bf16.msra.mxu0 %v2358
        %2771 = vmatprep.subr.bf16.mxu0 0
        %2772 = vmatpush1.bf16.msra.mxu0 %v2359
        %2773 = vmatprep.subr.bf16.mxu0 0
        %2774 = vmatpush1.bf16.msra.mxu0 %v2360
        %2775 = vmatprep.subr.bf16.mxu0 0
        %2776 = vmatpush1.bf16.msra.mxu0 %v2361
        %2777 = vmatprep.subr.bf16.mxu0 0
        %2778 = vmatpush1.bf16.msra.mxu0 %v2362
        %2779 = vmatprep.subr.bf16.mxu0 0
        %2780 = vmatpush1.bf16.msra.mxu0 %v2363
        %2781 = vmatprep.subr.bf16.mxu0 0
        %2782 = vmatpush1.bf16.msra.mxu0 %v2364
        %2783 = vmatprep.subr.bf16.mxu0 0
        %2784 = vmatpush1.bf16.msra.mxu0 %v2365
        %2785 = vmatprep.subr.bf16.mxu0 0
        %2786 = vmatpush1.bf16.msra.mxu0 %v2366
        %2787 = vmatprep.subr.bf16.mxu0 0
        %2788 = vmatpush1.bf16.msra.mxu0 %v2367
        %2789 = vmatprep.subr.bf16.mxu0 0
        %2790 = vmatpush1.bf16.msra.mxu0 %v2368
        %2791 = vmatprep.mubr.bf16.mxu0 %v2522
        %2792 = vmatmul.mubr.bf16.gmra.mrb[0].mxu0 %v2521
        %v2793 = vpop.f32.mrb[0].mxu0
        %v2794 = vadd.f32 %v2658, %v2793
        %v2795 = vpop.f32.mrb[0].mxu0
        %v2796 = vpop.f32.mrb[0].mxu0
        %v2797 = vadd.f32 %v2661, %v2796
        %v2798 = vpop.f32.mrb[0].mxu0
        %2799 = vmatprep.mubr.bf16.mxu0 %v2526
        %2800 = vmatmul.mubr.bf16.gmra.mrb[0].mxu0 %v2525
        %v2801 = vpop.f32.mrb[0].mxu0
        %v2802 = vadd.f32 %v2666, %v2801
        %v2803 = vpop.f32.mrb[0].mxu0
        %v2804 = vpop.f32.mrb[0].mxu0
        %v2805 = vadd.f32 %v2669, %v2804
        %v2806 = vpop.f32.mrb[0].mxu0
        %2807 = vmatprep.mubr.bf16.mxu0 %v2530
        %2808 = vmatmul.mubr.bf16.gmra.mrb[0].mxu0 %v2529
        %v2809 = vpop.f32.mrb[0].mxu0
        %v2810 = vadd.f32 %v2674, %v2809
        %v2811 = vpop.f32.mrb[0].mxu0
        %v2812 = vpop.f32.mrb[0].mxu0
        %v2813 = vadd.f32 %v2677, %v2812
        %v2814 = vpop.f32.mrb[0].mxu0
        %2815 = vmatprep.mubr.bf16.mxu0 %v2534
        %2816 = vmatmul.mubr.bf16.gmra.mrb[0].mxu0 %v2533
        %v2817 = vpop.f32.mrb[0].mxu0
        %v2818 = vadd.f32 %v2682, %v2817
        %v2819 = vpop.f32.mrb[0].mxu0
        %v2820 = vpop.f32.mrb[0].mxu0
        %v2821 = vadd.f32 %v2685, %v2820
        %v2822 = vpop.f32.mrb[0].mxu0
        %2823 = vmatprep.mubr.bf16.mxu0 %v2538
        %2824 = vmatmul.mubr.bf16.gmra.mrb[0].mxu0 %v2537
        %v2825 = vpop.f32.mrb[0].mxu0
        %v2826 = vadd.f32 %v2690, %v2825
        %v2827 = vpop.f32.mrb[0].mxu0
        %v2828 = vpop.f32.mrb[0].mxu0
        %v2829 = vadd.f32 %v2693, %v2828
        %v2830 = vpop.f32.mrb[0].mxu0
        %2831 = vmatprep.mubr.bf16.mxu0 %v2542
        %2832 = vmatmul.mubr.bf16.gmra.mrb[0].mxu0 %v2541
        %v2833 = vpop.f32.mrb[0].mxu0
        %v2834 = vadd.f32 %v2698, %v2833
        %v2835 = vpop.f32.mrb[0].mxu0
        %v2836 = vpop.f32.mrb[0].mxu0
        %v2837 = vadd.f32 %v2701, %v2836
        %v2838 = vpop.f32.mrb[0].mxu0
        %2839 = vmatprep.mubr.bf16.mxu0 %v2546
        %2840 = vmatmul.mubr.bf16.gmra.mrb[0].mxu0 %v2545
        %v2841 = vpop.f32.mrb[0].mxu0
        %v2842 = vadd.f32 %v2706, %v2841
        %v2843 = vpop.f32.mrb[0].mxu0
        %v2844 = vpop.f32.mrb[0].mxu0
        %v2845 = vadd.f32 %v2709, %v2844
        %v2846 = vpop.f32.mrb[0].mxu0
        %2847 = vmatprep.mubr.bf16.mxu0 %v2550
        %2848 = vmatmul.mubr.bf16.gmra.mrb[0].mxu0 %v2549
        %v2849 = vpop.f32.mrb[0].mxu0
        %v2850 = vadd.f32 %v2714, %v2849
        %v2851 = vpop.f32.mrb[0].mxu0
        %v2852 = vpop.f32.mrb[0].mxu0
        %v2853 = vadd.f32 %v2717, %v2852
        %v2854 = vpop.f32.mrb[0].mxu0
        %2855 = vmatprep.mubr.bf16.mxu0 %v2554
        %2856 = vmatmul.mubr.bf16.gmra.mrb[0].mxu0 %v2553
        %v2857 = vpop.f32.mrb[0].mxu0
        %v2858 = vadd.f32 %v2722, %v2857
        %v2859 = vpop.f32.mrb[0].mxu0
        %v2860 = vpop.f32.mrb[0].mxu0
        %v2861 = vadd.f32 %v2725, %v2860
        %v2862 = vpop.f32.mrb[0].mxu0
        %2863 = vmatprep.mubr.bf16.mxu0 %v2558
        %2864 = vmatmul.mubr.bf16.gmra.mrb[0].mxu0 %v2557
        %v2865 = vpop.f32.mrb[0].mxu0
        %v2866 = vadd.f32 %v2730, %v2865
        %v2867 = vpop.f32.mrb[0].mxu0
        %v2868 = vpop.f32.mrb[0].mxu0
        %v2869 = vadd.f32 %v2733, %v2868
        %v2870 = vpop.f32.mrb[0].mxu0
        %2871 = vmatprep.mubr.bf16.mxu0 %v2562
        %2872 = vmatmul.mubr.bf16.gmra.mrb[0].mxu0 %v2561
        %v2873 = vpop.f32.mrb[0].mxu0
        %v2874 = vadd.f32 %v2738, %v2873
        %v2875 = vpop.f32.mrb[0].mxu0
        %v2876 = vpop.f32.mrb[0].mxu0
        %v2877 = vadd.f32 %v2741, %v2876
        %v2878 = vpop.f32.mrb[0].mxu0
        %2879 = vmatprep.mubr.bf16.mxu0 %v2566
        %2880 = vmatmul.mubr.bf16.gmra.mrb[0].mxu0 %v2565
        %v2881 = vpop.f32.mrb[0].mxu0
        %v2882 = vadd.f32 %v2746, %v2881
        %v2883 = vpop.f32.mrb[0].mxu0
        %v2884 = vpop.f32.mrb[0].mxu0
        %v2885 = vadd.f32 %v2749, %v2884
        %v2886 = vpop.f32.mrb[0].mxu0
        %2887 = vmatprep.mubr.bf16.mxu0 %v2570
        %2888 = vmatmul.mubr.bf16.gmra.mrb[0].mxu0 %v2569
        %v2889 = vpop.f32.mrb[0].mxu0
        %v2890 = vadd.f32 %v2754, %v2889
        %v2891 = vpop.f32.mrb[0].mxu0
        %v2892 = vpop.f32.mrb[0].mxu0
        %v2893 = vpop.f32.mrb[0].mxu0
        %2894 = vdwg.mxu0
        %vm2895 = vcmask 130048
        %2896 = vst.msk [vmem:[#allocation2] sm:$0xff] %vm2895, %v2794
        %2897 = vst.msk [vmem:[#allocation2 + $0x8] sm:$0xff] %vm2895, %v2797
        %2898 = vst.msk [vmem:[#allocation2 + $0x10] sm:$0xff] %vm2895, %v2802
        %2899 = vst.msk [vmem:[#allocation2 + $0x18] sm:$0xff] %vm2895, %v2805
        %2900 = vst.msk [vmem:[#allocation2 + $0x20] sm:$0xff] %vm2895, %v2810
        %2901 = vst.msk [vmem:[#allocation2 + $0x28] sm:$0xff] %vm2895, %v2813
        %2902 = vst.msk [vmem:[#allocation2 + $0x30] sm:$0xff] %vm2895, %v2818
        %2903 = vst.msk [vmem:[#allocation2 + $0x38] sm:$0xff] %vm2895, %v2821
        %2904 = vst.msk [vmem:[#allocation2 + $0x40] sm:$0xff] %vm2895, %v2826
        %2905 = vst.msk [vmem:[#allocation2 + $0x48] sm:$0xff] %vm2895, %v2829
        %2906 = vst.msk [vmem:[#allocation2 + $0x50] sm:$0xff] %vm2895, %v2834
        %2907 = vst.msk [vmem:[#allocation2 + $0x58] sm:$0xff] %vm2895, %v2837
        %2908 = vst.msk [vmem:[#allocation2 + $0x60] sm:$0xff] %vm2895, %v2842
        %2909 = vst.msk [vmem:[#allocation2 + $0x68] sm:$0xff] %vm2895, %v2845
        %2910 = vst.msk [vmem:[#allocation2 + $0x70] sm:$0xff] %vm2895, %v2850
        %2911 = vst.msk [vmem:[#allocation2 + $0x78] sm:$0xff] %vm2895, %v2853
        %2912 = vst.msk [vmem:[#allocation2 + $0x80] sm:$0xff] %vm2895, %v2858
        %2913 = vst.msk [vmem:[#allocation2 + $0x88] sm:$0xff] %vm2895, %v2861
        %2914 = vst.msk [vmem:[#allocation2 + $0x90] sm:$0xff] %vm2895, %v2866
        %2915 = vst.msk [vmem:[#allocation2 + $0x98] sm:$0xff] %vm2895, %v2869
        %2916 = vst.msk [vmem:[#allocation2 + $0xa0] sm:$0xff] %vm2895, %v2874
        %2917 = vst.msk [vmem:[#allocation2 + $0xa8] sm:$0xff] %vm2895, %v2877
        %2918 = vst.msk [vmem:[#allocation2 + $0xb0] sm:$0xff] %vm2895, %v2882
        %2919 = vst.msk [vmem:[#allocation2 + $0xb8] sm:$0xff] %vm2895, %v2885
        %vm2920 = vcmask 125952
        %2921 = vst.msk [vmem:[#allocation2 + $0xc0] sm:$0xf] %vm2920, %v2890
        %v2922 = vld [vmem:[#allocation2] sm:$0x7f]
        %v2923 = vpack.c.bf16 %v2922, %v2922
        %v2924 = vld [vmem:[%s8] sm:$0xf]
        %v2925 = vld [vmem:[%s8 + $0x4] sm:$0xf]
        %v2926 = vld [vmem:[#allocation2 + $0x7] sm:$0x7f]
        %v2927 = vpack.c.bf16 %v2926, %v2926
        %s2928 = scalar_lea.vmem %s8, 8
        %v2929 = vld [vmem:[%s2928] sm:$0xf]
        %v2930 = vld [vmem:[%s2928 + $0x4] sm:$0xf]
        %v2933 = vunpack.c.l.b16 %v2929
        %v2934 = vunpack.c.l.b16 %v2930
        %v2935 = vpack.c.b16 %v2934, %v2933
        %v2938 = vsel %vm2895, %v2927, 0
        %2940 = vmatprep.subr.bf16.mxu0 0
        %2941 = vmatpush1.bf16.msra.mxu0 %v2935
        %2942 = vmatprep.subr.bf16.mxu0 0
        %2943 = vmatpush1.bf16.msra.mxu0 0
        %2944 = vmatprep.subr.bf16.mxu0 0
        %2945 = vmatpush1.bf16.msra.mxu0 0
        %2946 = vmatprep.subr.bf16.mxu0 0
        %2947 = vmatpush1.bf16.msra.mxu0 0
        %2948 = vmatprep.subr.bf16.mxu0 0
        %2949 = vmatpush1.bf16.msra.mxu0 0
        %2950 = vmatprep.subr.bf16.mxu0 0
        %2951 = vmatpush1.bf16.msra.mxu0 0
        %2952 = vmatprep.subr.bf16.mxu0 0
        %2953 = vmatpush1.bf16.msra.mxu0 0
        %2954 = vmatprep.subr.bf16.mxu0 0
        %2955 = vmatpush1.bf16.msra.mxu0 0
        %2956 = vmatprep.subr.bf16.mxu0 0
        %2957 = vmatpush1.bf16.msra.mxu0 0
        %2958 = vmatprep.subr.bf16.mxu0 0
        %2959 = vmatpush1.bf16.msra.mxu0 0
        %2960 = vmatprep.subr.bf16.mxu0 0
        %2961 = vmatpush1.bf16.msra.mxu0 0
        %2962 = vmatprep.subr.bf16.mxu0 0
        %2963 = vmatpush1.bf16.msra.mxu0 0
        %2964 = vmatprep.subr.bf16.mxu0 0
        %2965 = vmatpush1.bf16.msra.mxu0 0
        %2966 = vmatprep.subr.bf16.mxu0 0
        %2967 = vmatpush1.bf16.msra.mxu0 0
        %2968 = vmatprep.subr.bf16.mxu0 0
        %2969 = vmatpush1.bf16.msra.mxu0 0
        %2970 = vmatprep.subr.bf16.mxu0 0
        %2971 = vmatpush1.bf16.msra.mxu0 0
        %2972 = vmatprep.mubr.bf16.mxu0 0
        %2973 = vmatmul.mubr.bf16.gmra.mrb[0].mxu0 %v2938
        %v2974 = vpop.f32.mrb[0].mxu0
        %v2975 = vadd.f32 0.0, %v2974
        %v2976 = vpop.f32.mrb[0].mxu0
        %v2977 = vpop.f32.mrb[0].mxu0
        %v2978 = vpop.f32.mrb[0].mxu0
        %2979 = vdwg.mxu0
        %v2982 = vunpack.c.l.b16 %v2924
        %v2983 = vunpack.c.l.b16 %v2925
        %v2984 = vpack.c.b16 %v2983, %v2982
        %v2987 = vsel %vm2895, %v2923, 0
        %2989 = vmatprep.subr.bf16.mxu0 0
        %2990 = vmatpush1.bf16.msra.mxu0 %v2984
        %2991 = vmatprep.subr.bf16.mxu0 0
        %2992 = vmatpush1.bf16.msra.mxu0 0
        %2993 = vmatprep.subr.bf16.mxu0 0
        %2994 = vmatpush1.bf16.msra.mxu0 0
        %2995 = vmatprep.subr.bf16.mxu0 0
        %2996 = vmatpush1.bf16.msra.mxu0 0
        %2997 = vmatprep.subr.bf16.mxu0 0
        %2998 = vmatpush1.bf16.msra.mxu0 0
        %2999 = vmatprep.subr.bf16.mxu0 0
        %3000 = vmatpush1.bf16.msra.mxu0 0
        %3001 = vmatprep.subr.bf16.mxu0 0
        %3002 = vmatpush1.bf16.msra.mxu0 0
        %3003 = vmatprep.subr.bf16.mxu0 0
        %3004 = vmatpush1.bf16.msra.mxu0 0
        %3005 = vmatprep.subr.bf16.mxu0 0
        %3006 = vmatpush1.bf16.msra.mxu0 0
        %3007 = vmatprep.subr.bf16.mxu0 0
        %3008 = vmatpush1.bf16.msra.mxu0 0
        %3009 = vmatprep.subr.bf16.mxu0 0
        %3010 = vmatpush1.bf16.msra.mxu0 0
        %3011 = vmatprep.subr.bf16.mxu0 0
        %3012 = vmatpush1.bf16.msra.mxu0 0
        %3013 = vmatprep.subr.bf16.mxu0 0
        %3014 = vmatpush1.bf16.msra.mxu0 0
        %3015 = vmatprep.subr.bf16.mxu0 0
        %3016 = vmatpush1.bf16.msra.mxu0 0
        %3017 = vmatprep.subr.bf16.mxu0 0
        %3018 = vmatpush1.bf16.msra.mxu0 0
        %3019 = vmatprep.subr.bf16.mxu0 0
        %3020 = vmatpush1.bf16.msra.mxu0 0
        %3021 = vmatprep.mubr.bf16.mxu0 0
        %3022 = vmatmul.mubr.bf16.gmra.mrb[0].mxu0 %v2987
        %v3023 = vpop.f32.mrb[0].mxu0
        %v3024 = vadd.f32 %v2975, %v3023
        %v3025 = vpop.f32.mrb[0].mxu0
        %v3026 = vpop.f32.mrb[0].mxu0
        %v3027 = vpop.f32.mrb[0].mxu0
        %3028 = vdwg.mxu0
        %v3029 = vld [vmem:[#allocation2 + $0xe] sm:$0x7f]
        %v3030 = vpack.c.bf16 %v3029, %v3029
        %s3031 = scalar_lea.vmem %s8, 16
        %v3032 = vld [vmem:[%s3031] sm:$0xf]
        %v3033 = vld [vmem:[%s3031 + $0x4] sm:$0xf]
        %v3036 = vunpack.c.l.b16 %v3032
        %v3037 = vunpack.c.l.b16 %v3033
        %v3038 = vpack.c.b16 %v3037, %v3036
        %v3041 = vsel %vm2895, %v3030, 0
        %3043 = vmatprep.subr.bf16.mxu0 0
        %3044 = vmatpush1.bf16.msra.mxu0 %v3038
        %3045 = vmatprep.subr.bf16.mxu0 0
        %3046 = vmatpush1.bf16.msra.mxu0 0
        %3047 = vmatprep.subr.bf16.mxu0 0
        %3048 = vmatpush1.bf16.msra.mxu0 0
        %3049 = vmatprep.subr.bf16.mxu0 0
        %3050 = vmatpush1.bf16.msra.mxu0 0
        %3051 = vmatprep.subr.bf16.mxu0 0
        %3052 = vmatpush1.bf16.msra.mxu0 0
        %3053 = vmatprep.subr.bf16.mxu0 0
        %3054 = vmatpush1.bf16.msra.mxu0 0
        %3055 = vmatprep.subr.bf16.mxu0 0
        %3056 = vmatpush1.bf16.msra.mxu0 0
        %3057 = vmatprep.subr.bf16.mxu0 0
        %3058 = vmatpush1.bf16.msra.mxu0 0
        %3059 = vmatprep.subr.bf16.mxu0 0
        %3060 = vmatpush1.bf16.msra.mxu0 0
        %3061 = vmatprep.subr.bf16.mxu0 0
        %3062 = vmatpush1.bf16.msra.mxu0 0
        %3063 = vmatprep.subr.bf16.mxu0 0
        %3064 = vmatpush1.bf16.msra.mxu0 0
        %3065 = vmatprep.subr.bf16.mxu0 0
        %3066 = vmatpush1.bf16.msra.mxu0 0
        %3067 = vmatprep.subr.bf16.mxu0 0
        %3068 = vmatpush1.bf16.msra.mxu0 0
        %3069 = vmatprep.subr.bf16.mxu0 0
        %3070 = vmatpush1.bf16.msra.mxu0 0
        %3071 = vmatprep.subr.bf16.mxu0 0
        %3072 = vmatpush1.bf16.msra.mxu0 0
        %3073 = vmatprep.subr.bf16.mxu0 0
        %3074 = vmatpush1.bf16.msra.mxu0 0
        %3075 = vmatprep.mubr.bf16.mxu0 0
        %3076 = vmatmul.mubr.bf16.gmra.mrb[0].mxu0 %v3041
        %v3077 = vpop.f32.mrb[0].mxu0
        %v3078 = vadd.f32 0.0, %v3077
        %v3079 = vpop.f32.mrb[0].mxu0
        %v3080 = vpop.f32.mrb[0].mxu0
        %v3081 = vpop.f32.mrb[0].mxu0
        %3082 = vdwg.mxu0
        %v3083 = vadd.f32 %v3024, %v3078
        %v3084 = vld [vmem:[#allocation2 + $0x15] sm:$0x7f]
        %v3085 = vpack.c.bf16 %v3084, %v3084
        %s3086 = scalar_lea.vmem %s8, 24
        %v3087 = vld [vmem:[%s3086] sm:$0xf]
        %v3088 = vld [vmem:[%s3086 + $0x4] sm:$0xf]
        %v3091 = vunpack.c.l.b16 %v3087
        %v3092 = vunpack.c.l.b16 %v3088
        %v3093 = vpack.c.b16 %v3092, %v3091
        %v3096 = vsel %vm2895, %v3085, 0
        %3098 = vmatprep.subr.bf16.mxu0 0
        %3099 = vmatpush1.bf16.msra.mxu0 %v3093
        %3100 = vmatprep.subr.bf16.mxu0 0
        %3101 = vmatpush1.bf16.msra.mxu0 0
        %3102 = vmatprep.subr.bf16.mxu0 0
        %3103 = vmatpush1.bf16.msra.mxu0 0
        %3104 = vmatprep.subr.bf16.mxu0 0
        %3105 = vmatpush1.bf16.msra.mxu0 0
        %3106 = vmatprep.subr.bf16.mxu0 0
        %3107 = vmatpush1.bf16.msra.mxu0 0
        %3108 = vmatprep.subr.bf16.mxu0 0
        %3109 = vmatpush1.bf16.msra.mxu0 0
        %3110 = vmatprep.subr.bf16.mxu0 0
        %3111 = vmatpush1.bf16.msra.mxu0 0
        %3112 = vmatprep.subr.bf16.mxu0 0
        %3113 = vmatpush1.bf16.msra.mxu0 0
        %3114 = vmatprep.subr.bf16.mxu0 0
        %3115 = vmatpush1.bf16.msra.mxu0 0
        %3116 = vmatprep.subr.bf16.mxu0 0
        %3117 = vmatpush1.bf16.msra.mxu0 0
        %3118 = vmatprep.subr.bf16.mxu0 0
        %3119 = vmatpush1.bf16.msra.mxu0 0
        %3120 = vmatprep.subr.bf16.mxu0 0
        %3121 = vmatpush1.bf16.msra.mxu0 0
        %3122 = vmatprep.subr.bf16.mxu0 0
        %3123 = vmatpush1.bf16.msra.mxu0 0
        %3124 = vmatprep.subr.bf16.mxu0 0
        %3125 = vmatpush1.bf16.msra.mxu0 0
        %3126 = vmatprep.subr.bf16.mxu0 0
        %3127 = vmatpush1.bf16.msra.mxu0 0
        %3128 = vmatprep.subr.bf16.mxu0 0
        %3129 = vmatpush1.bf16.msra.mxu0 0
        %3130 = vmatprep.mubr.bf16.mxu0 0
        %3131 = vmatmul.mubr.bf16.gmra.mrb[0].mxu0 %v3096
        %v3132 = vpop.f32.mrb[0].mxu0
        %v3133 = vadd.f32 0.0, %v3132
        %v3134 = vpop.f32.mrb[0].mxu0
        %v3135 = vpop.f32.mrb[0].mxu0
        %v3136 = vpop.f32.mrb[0].mxu0
        %3137 = vdwg.mxu0
        %v3138 = vadd.f32 %v3083, %v3133
        %v3139 = vld [vmem:[#allocation2 + $0x1c] sm:$0x7f]
        %v3140 = vpack.c.bf16 %v3139, %v3139
        %s3141 = scalar_lea.vmem %s8, 32
        %v3142 = vld [vmem:[%s3141] sm:$0xf]
        %v3143 = vld [vmem:[%s3141 + $0x4] sm:$0xf]
        %v3146 = vunpack.c.l.b16 %v3142
        %v3147 = vunpack.c.l.b16 %v3143
        %v3148 = vpack.c.b16 %v3147, %v3146
        %v3151 = vsel %vm2895, %v3140, 0
        %3153 = vmatprep.subr.bf16.mxu0 0
        %3154 = vmatpush1.bf16.msra.mxu0 %v3148
        %3155 = vmatprep.subr.bf16.mxu0 0
        %3156 = vmatpush1.bf16.msra.mxu0 0
        %3157 = vmatprep.subr.bf16.mxu0 0
        %3158 = vmatpush1.bf16.msra.mxu0 0
        %3159 = vmatprep.subr.bf16.mxu0 0
        %3160 = vmatpush1.bf16.msra.mxu0 0
        %3161 = vmatprep.subr.bf16.mxu0 0
        %3162 = vmatpush1.bf16.msra.mxu0 0
        %3163 = vmatprep.subr.bf16.mxu0 0
        %3164 = vmatpush1.bf16.msra.mxu0 0
        %3165 = vmatprep.subr.bf16.mxu0 0
        %3166 = vmatpush1.bf16.msra.mxu0 0
        %3167 = vmatprep.subr.bf16.mxu0 0
        %3168 = vmatpush1.bf16.msra.mxu0 0
        %3169 = vmatprep.subr.bf16.mxu0 0
        %3170 = vmatpush1.bf16.msra.mxu0 0
        %3171 = vmatprep.subr.bf16.mxu0 0
        %3172 = vmatpush1.bf16.msra.mxu0 0
        %3173 = vmatprep.subr.bf16.mxu0 0
        %3174 = vmatpush1.bf16.msra.mxu0 0
        %3175 = vmatprep.subr.bf16.mxu0 0
        %3176 = vmatpush1.bf16.msra.mxu0 0
        %3177 = vmatprep.subr.bf16.mxu0 0
        %3178 = vmatpush1.bf16.msra.mxu0 0
        %3179 = vmatprep.subr.bf16.mxu0 0
        %3180 = vmatpush1.bf16.msra.mxu0 0
        %3181 = vmatprep.subr.bf16.mxu0 0
        %3182 = vmatpush1.bf16.msra.mxu0 0
        %3183 = vmatprep.subr.bf16.mxu0 0
        %3184 = vmatpush1.bf16.msra.mxu0 0
        %3185 = vmatprep.mubr.bf16.mxu0 0
        %3186 = vmatmul.mubr.bf16.gmra.mrb[0].mxu0 %v3151
        %v3187 = vpop.f32.mrb[0].mxu0
        %v3188 = vadd.f32 0.0, %v3187
        %v3189 = vpop.f32.mrb[0].mxu0
        %v3190 = vpop.f32.mrb[0].mxu0
        %v3191 = vpop.f32.mrb[0].mxu0
        %3192 = vdwg.mxu0
        %v3193 = vadd.f32 %v3138, %v3188
        %v3194 = vld [vmem:[#allocation2 + $0x23] sm:$0x7f]
        %v3195 = vpack.c.bf16 %v3194, %v3194
        %s3196 = scalar_lea.vmem %s8, 40
        %v3197 = vld [vmem:[%s3196] sm:$0xf]
        %v3198 = vld [vmem:[%s3196 + $0x4] sm:$0xf]
        %v3201 = vunpack.c.l.b16 %v3197
        %v3202 = vunpack.c.l.b16 %v3198
        %v3203 = vpack.c.b16 %v3202, %v3201
        %v3206 = vsel %vm2895, %v3195, 0
        %3208 = vmatprep.subr.bf16.mxu0 0
        %3209 = vmatpush1.bf16.msra.mxu0 %v3203
        %3210 = vmatprep.subr.bf16.mxu0 0
        %3211 = vmatpush1.bf16.msra.mxu0 0
        %3212 = vmatprep.subr.bf16.mxu0 0
        %3213 = vmatpush1.bf16.msra.mxu0 0
        %3214 = vmatprep.subr.bf16.mxu0 0
        %3215 = vmatpush1.bf16.msra.mxu0 0
        %3216 = vmatprep.subr.bf16.mxu0 0
        %3217 = vmatpush1.bf16.msra.mxu0 0
        %3218 = vmatprep.subr.bf16.mxu0 0
        %3219 = vmatpush1.bf16.msra.mxu0 0
        %3220 = vmatprep.subr.bf16.mxu0 0
        %3221 = vmatpush1.bf16.msra.mxu0 0
        %3222 = vmatprep.subr.bf16.mxu0 0
        %3223 = vmatpush1.bf16.msra.mxu0 0
        %3224 = vmatprep.subr.bf16.mxu0 0
        %3225 = vmatpush1.bf16.msra.mxu0 0
        %3226 = vmatprep.subr.bf16.mxu0 0
        %3227 = vmatpush1.bf16.msra.mxu0 0
        %3228 = vmatprep.subr.bf16.mxu0 0
        %3229 = vmatpush1.bf16.msra.mxu0 0
        %3230 = vmatprep.subr.bf16.mxu0 0
        %3231 = vmatpush1.bf16.msra.mxu0 0
        %3232 = vmatprep.subr.bf16.mxu0 0
        %3233 = vmatpush1.bf16.msra.mxu0 0
        %3234 = vmatprep.subr.bf16.mxu0 0
        %3235 = vmatpush1.bf16.msra.mxu0 0
        %3236 = vmatprep.subr.bf16.mxu0 0
        %3237 = vmatpush1.bf16.msra.mxu0 0
        %3238 = vmatprep.subr.bf16.mxu0 0
        %3239 = vmatpush1.bf16.msra.mxu0 0
        %3240 = vmatprep.mubr.bf16.mxu0 0
        %3241 = vmatmul.mubr.bf16.gmra.mrb[0].mxu0 %v3206
        %v3242 = vpop.f32.mrb[0].mxu0
        %v3243 = vadd.f32 0.0, %v3242
        %v3244 = vpop.f32.mrb[0].mxu0
        %v3245 = vpop.f32.mrb[0].mxu0
        %v3246 = vpop.f32.mrb[0].mxu0
        %3247 = vdwg.mxu0
        %v3248 = vadd.f32 %v3193, %v3243
        %v3249 = vld [vmem:[#allocation2 + $0x2a] sm:$0x7f]
        %v3250 = vpack.c.bf16 %v3249, %v3249
        %s3251 = scalar_lea.vmem %s8, 48
        %v3252 = vld [vmem:[%s3251] sm:$0xf]
        %v3253 = vld [vmem:[%s3251 + $0x4] sm:$0xf]
        %v3256 = vunpack.c.l.b16 %v3252
        %v3257 = vunpack.c.l.b16 %v3253
        %v3258 = vpack.c.b16 %v3257, %v3256
        %v3261 = vsel %vm2895, %v3250, 0
        %3263 = vmatprep.subr.bf16.mxu0 0
        %3264 = vmatpush1.bf16.msra.mxu0 %v3258
        %3265 = vmatprep.subr.bf16.mxu0 0
        %3266 = vmatpush1.bf16.msra.mxu0 0
        %3267 = vmatprep.subr.bf16.mxu0 0
        %3268 = vmatpush1.bf16.msra.mxu0 0
        %3269 = vmatprep.subr.bf16.mxu0 0
        %3270 = vmatpush1.bf16.msra.mxu0 0
        %3271 = vmatprep.subr.bf16.mxu0 0
        %3272 = vmatpush1.bf16.msra.mxu0 0
        %3273 = vmatprep.subr.bf16.mxu0 0
        %3274 = vmatpush1.bf16.msra.mxu0 0
        %3275 = vmatprep.subr.bf16.mxu0 0
        %3276 = vmatpush1.bf16.msra.mxu0 0
        %3277 = vmatprep.subr.bf16.mxu0 0
        %3278 = vmatpush1.bf16.msra.mxu0 0
        %3279 = vmatprep.subr.bf16.mxu0 0
        %3280 = vmatpush1.bf16.msra.mxu0 0
        %3281 = vmatprep.subr.bf16.mxu0 0
        %3282 = vmatpush1.bf16.msra.mxu0 0
        %3283 = vmatprep.subr.bf16.mxu0 0
        %3284 = vmatpush1.bf16.msra.mxu0 0
        %3285 = vmatprep.subr.bf16.mxu0 0
        %3286 = vmatpush1.bf16.msra.mxu0 0
        %3287 = vmatprep.subr.bf16.mxu0 0
        %3288 = vmatpush1.bf16.msra.mxu0 0
        %3289 = vmatprep.subr.bf16.mxu0 0
        %3290 = vmatpush1.bf16.msra.mxu0 0
        %3291 = vmatprep.subr.bf16.mxu0 0
        %3292 = vmatpush1.bf16.msra.mxu0 0
        %3293 = vmatprep.subr.bf16.mxu0 0
        %3294 = vmatpush1.bf16.msra.mxu0 0
        %3295 = vmatprep.mubr.bf16.mxu0 0
        %3296 = vmatmul.mubr.bf16.gmra.mrb[0].mxu0 %v3261
        %v3297 = vpop.f32.mrb[0].mxu0
        %v3298 = vadd.f32 0.0, %v3297
        %v3299 = vpop.f32.mrb[0].mxu0
        %v3300 = vpop.f32.mrb[0].mxu0
        %v3301 = vpop.f32.mrb[0].mxu0
        %3302 = vdwg.mxu0
        %v3303 = vadd.f32 %v3248, %v3298
        %3304 = vst.msk [vmem:[#allocation3] sm:$0x7f] %vm1129, %v3303
        %v3305 = vld [vmem:[#allocation3] sm:$0x7f]
        %3306 = vst.msk [vmem:[#allocation4] sm:$0x7f] %vm1132, %v3305
        %v3307 = vld [vmem:[#allocation3] sm:$0x7f]
        %3309 = vrot.lane.b32.xlu0 %v3307, 112
        %v3310 = vpop.permute.xlu0 %3309
        %3312 = vst.msk [vmem:[#allocation4 + $0x7] sm:$0x7f] %vm1132, %v3310
        %v3313 = vld [vmem:[#allocation3] sm:$0x7f]
        %3315 = vrot.lane.b32.xlu0 %v3313, 96
        %v3316 = vpop.permute.xlu0 %3315
        %3318 = vst.msk [vmem:[#allocation4 + $0xe] sm:$0x7f] %vm1132, %v3316
        %v3319 = vld [vmem:[#allocation3] sm:$0x7f]
        %3321 = vrot.lane.b32.xlu0 %v3319, 80
        %v3322 = vpop.permute.xlu0 %3321
        %3324 = vst.msk [vmem:[#allocation4 + $0x15] sm:$0x7f] %vm1132, %v3322
        %v3325 = vld [vmem:[#allocation3] sm:$0x7f]
        %3327 = vrot.lane.b32.xlu0 %v3325, 64
        %v3328 = vpop.permute.xlu0 %3327
        %3330 = vst.msk [vmem:[#allocation4 + $0x1c] sm:$0x7f] %vm1132, %v3328
        %v3331 = vld [vmem:[#allocation3] sm:$0x7f]
        %3333 = vrot.lane.b32.xlu0 %v3331, 48
        %v3334 = vpop.permute.xlu0 %3333
        %3336 = vst.msk [vmem:[#allocation4 + $0x23] sm:$0x7f] %vm1132, %v3334
        %v3337 = vld [vmem:[#allocation3] sm:$0x7f]
        %3339 = vrot.lane.b32.xlu0 %v3337, 32
        %v3340 = vpop.permute.xlu0 %3339
        %3342 = vst.msk [vmem:[#allocation4 + $0x2a] sm:$0x7f] %vm1132, %v3340
        %v3343 = vld [vmem:[#allocation2 + $0x31] sm:$0x7f]
        %v3344 = vpack.c.bf16 %v3343, %v3343
        %s3345 = scalar_lea.vmem %s8, 56
        %v3346 = vld [vmem:[%s3345] sm:$0xf]
        %v3347 = vld [vmem:[%s3345 + $0x4] sm:$0xf]
        %v3348 = vld [vmem:[#allocation2 + $0x38] sm:$0x7f]
        %v3349 = vpack.c.bf16 %v3348, %v3348
        %s3350 = scalar_lea.vmem %s8, 64
        %v3351 = vld [vmem:[%s3350] sm:$0xf]
        %v3352 = vld [vmem:[%s3350 + $0x4] sm:$0xf]
        %v3355 = vunpack.c.l.b16 %v3351
        %v3356 = vunpack.c.l.b16 %v3352
        %v3357 = vpack.c.b16 %v3356, %v3355
        %v3360 = vsel %vm2895, %v3349, 0
        %3362 = vmatprep.subr.bf16.mxu0 0
        %3363 = vmatpush1.bf16.msra.mxu0 %v3357
        %3364 = vmatprep.subr.bf16.mxu0 0
        %3365 = vmatpush1.bf16.msra.mxu0 0
        %3366 = vmatprep.subr.bf16.mxu0 0
        %3367 = vmatpush1.bf16.msra.mxu0 0
        %3368 = vmatprep.subr.bf16.mxu0 0
        %3369 = vmatpush1.bf16.msra.mxu0 0
        %3370 = vmatprep.subr.bf16.mxu0 0
        %3371 = vmatpush1.bf16.msra.mxu0 0
        %3372 = vmatprep.subr.bf16.mxu0 0
        %3373 = vmatpush1.bf16.msra.mxu0 0
        %3374 = vmatprep.subr.bf16.mxu0 0
        %3375 = vmatpush1.bf16.msra.mxu0 0
        %3376 = vmatprep.subr.bf16.mxu0 0
        %3377 = vmatpush1.bf16.msra.mxu0 0
        %3378 = vmatprep.subr.bf16.mxu0 0
        %3379 = vmatpush1.bf16.msra.mxu0 0
        %3380 = vmatprep.subr.bf16.mxu0 0
        %3381 = vmatpush1.bf16.msra.mxu0 0
        %3382 = vmatprep.subr.bf16.mxu0 0
        %3383 = vmatpush1.bf16.msra.mxu0 0
        %3384 = vmatprep.subr.bf16.mxu0 0
        %3385 = vmatpush1.bf16.msra.mxu0 0
        %3386 = vmatprep.subr.bf16.mxu0 0
        %3387 = vmatpush1.bf16.msra.mxu0 0
        %3388 = vmatprep.subr.bf16.mxu0 0
        %3389 = vmatpush1.bf16.msra.mxu0 0
        %3390 = vmatprep.subr.bf16.mxu0 0
        %3391 = vmatpush1.bf16.msra.mxu0 0
        %3392 = vmatprep.subr.bf16.mxu0 0
        %3393 = vmatpush1.bf16.msra.mxu0 0
        %3394 = vmatprep.mubr.bf16.mxu0 0
        %3395 = vmatmul.mubr.bf16.gmra.mrb[0].mxu0 %v3360
        %v3396 = vpop.f32.mrb[0].mxu0
        %v3397 = vadd.f32 0.0, %v3396
        %v3398 = vpop.f32.mrb[0].mxu0
        %v3399 = vpop.f32.mrb[0].mxu0
        %v3400 = vpop.f32.mrb[0].mxu0
        %3401 = vdwg.mxu0
        %v3404 = vunpack.c.l.b16 %v3346
        %v3405 = vunpack.c.l.b16 %v3347
        %v3406 = vpack.c.b16 %v3405, %v3404
        %v3409 = vsel %vm2895, %v3344, 0
        %3411 = vmatprep.subr.bf16.mxu0 0
        %3412 = vmatpush1.bf16.msra.mxu0 %v3406
        %3413 = vmatprep.subr.bf16.mxu0 0
        %3414 = vmatpush1.bf16.msra.mxu0 0
        %3415 = vmatprep.subr.bf16.mxu0 0
        %3416 = vmatpush1.bf16.msra.mxu0 0
        %3417 = vmatprep.subr.bf16.mxu0 0
        %3418 = vmatpush1.bf16.msra.mxu0 0
        %3419 = vmatprep.subr.bf16.mxu0 0
        %3420 = vmatpush1.bf16.msra.mxu0 0
        %3421 = vmatprep.subr.bf16.mxu0 0
        %3422 = vmatpush1.bf16.msra.mxu0 0
        %3423 = vmatprep.subr.bf16.mxu0 0
        %3424 = vmatpush1.bf16.msra.mxu0 0
        %3425 = vmatprep.subr.bf16.mxu0 0
        %3426 = vmatpush1.bf16.msra.mxu0 0
        %3427 = vmatprep.subr.bf16.mxu0 0
        %3428 = vmatpush1.bf16.msra.mxu0 0
        %3429 = vmatprep.subr.bf16.mxu0 0
        %3430 = vmatpush1.bf16.msra.mxu0 0
        %3431 = vmatprep.subr.bf16.mxu0 0
        %3432 = vmatpush1.bf16.msra.mxu0 0
        %3433 = vmatprep.subr.bf16.mxu0 0
        %3434 = vmatpush1.bf16.msra.mxu0 0
        %3435 = vmatprep.subr.bf16.mxu0 0
        %3436 = vmatpush1.bf16.msra.mxu0 0
        %3437 = vmatprep.subr.bf16.mxu0 0
        %3438 = vmatpush1.bf16.msra.mxu0 0
        %3439 = vmatprep.subr.bf16.mxu0 0
        %3440 = vmatpush1.bf16.msra.mxu0 0
        %3441 = vmatprep.subr.bf16.mxu0 0
        %3442 = vmatpush1.bf16.msra.mxu0 0
        %3443 = vmatprep.mubr.bf16.mxu0 0
        %3444 = vmatmul.mubr.bf16.gmra.mrb[0].mxu0 %v3409
        %v3445 = vpop.f32.mrb[0].mxu0
        %v3446 = vadd.f32 %v3397, %v3445
        %v3447 = vpop.f32.mrb[0].mxu0
        %v3448 = vpop.f32.mrb[0].mxu0
        %v3449 = vpop.f32.mrb[0].mxu0
        %3450 = vdwg.mxu0
        %v3451 = vld [vmem:[#allocation2 + $0x3f] sm:$0x7f]
        %v3452 = vpack.c.bf16 %v3451, %v3451
        %s3453 = scalar_lea.vmem %s8, 72
        %v3454 = vld [vmem:[%s3453] sm:$0xf]
        %v3455 = vld [vmem:[%s3453 + $0x4] sm:$0xf]
        %v3458 = vunpack.c.l.b16 %v3454
        %v3459 = vunpack.c.l.b16 %v3455
        %v3460 = vpack.c.b16 %v3459, %v3458
        %v3463 = vsel %vm2895, %v3452, 0
        %3465 = vmatprep.subr.bf16.mxu0 0
        %3466 = vmatpush1.bf16.msra.mxu0 %v3460
        %3467 = vmatprep.subr.bf16.mxu0 0
        %3468 = vmatpush1.bf16.msra.mxu0 0
        %3469 = vmatprep.subr.bf16.mxu0 0
        %3470 = vmatpush1.bf16.msra.mxu0 0
        %3471 = vmatprep.subr.bf16.mxu0 0
        %3472 = vmatpush1.bf16.msra.mxu0 0
        %3473 = vmatprep.subr.bf16.mxu0 0
        %3474 = vmatpush1.bf16.msra.mxu0 0
        %3475 = vmatprep.subr.bf16.mxu0 0
        %3476 = vmatpush1.bf16.msra.mxu0 0
        %3477 = vmatprep.subr.bf16.mxu0 0
        %3478 = vmatpush1.bf16.msra.mxu0 0
        %3479 = vmatprep.subr.bf16.mxu0 0
        %3480 = vmatpush1.bf16.msra.mxu0 0
        %3481 = vmatprep.subr.bf16.mxu0 0
        %3482 = vmatpush1.bf16.msra.mxu0 0
        %3483 = vmatprep.subr.bf16.mxu0 0
        %3484 = vmatpush1.bf16.msra.mxu0 0
        %3485 = vmatprep.subr.bf16.mxu0 0
        %3486 = vmatpush1.bf16.msra.mxu0 0
        %3487 = vmatprep.subr.bf16.mxu0 0
        %3488 = vmatpush1.bf16.msra.mxu0 0
        %3489 = vmatprep.subr.bf16.mxu0 0
        %3490 = vmatpush1.bf16.msra.mxu0 0
        %3491 = vmatprep.subr.bf16.mxu0 0
        %3492 = vmatpush1.bf16.msra.mxu0 0
        %3493 = vmatprep.subr.bf16.mxu0 0
        %3494 = vmatpush1.bf16.msra.mxu0 0
        %3495 = vmatprep.subr.bf16.mxu0 0
        %3496 = vmatpush1.bf16.msra.mxu0 0
        %3497 = vmatprep.mubr.bf16.mxu0 0
        %3498 = vmatmul.mubr.bf16.gmra.mrb[0].mxu0 %v3463
        %v3499 = vpop.f32.mrb[0].mxu0
        %v3500 = vadd.f32 0.0, %v3499
        %v3501 = vpop.f32.mrb[0].mxu0
        %v3502 = vpop.f32.mrb[0].mxu0
        %v3503 = vpop.f32.mrb[0].mxu0
        %3504 = vdwg.mxu0
        %v3505 = vadd.f32 %v3446, %v3500
        %v3506 = vld [vmem:[#allocation2 + $0x46] sm:$0x7f]
        %v3507 = vpack.c.bf16 %v3506, %v3506
        %s3508 = scalar_lea.vmem %s8, 80
        %v3509 = vld [vmem:[%s3508] sm:$0xf]
        %v3510 = vld [vmem:[%s3508 + $0x4] sm:$0xf]
        %v3513 = vunpack.c.l.b16 %v3509
        %v3514 = vunpack.c.l.b16 %v3510
        %v3515 = vpack.c.b16 %v3514, %v3513
        %v3518 = vsel %vm2895, %v3507, 0
        %3520 = vmatprep.subr.bf16.mxu0 0
        %3521 = vmatpush1.bf16.msra.mxu0 %v3515
        %3522 = vmatprep.subr.bf16.mxu0 0
        %3523 = vmatpush1.bf16.msra.mxu0 0
        %3524 = vmatprep.subr.bf16.mxu0 0
        %3525 = vmatpush1.bf16.msra.mxu0 0
        %3526 = vmatprep.subr.bf16.mxu0 0
        %3527 = vmatpush1.bf16.msra.mxu0 0
        %3528 = vmatprep.subr.bf16.mxu0 0
        %3529 = vmatpush1.bf16.msra.mxu0 0
        %3530 = vmatprep.subr.bf16.mxu0 0
        %3531 = vmatpush1.bf16.msra.mxu0 0
        %3532 = vmatprep.subr.bf16.mxu0 0
        %3533 = vmatpush1.bf16.msra.mxu0 0
        %3534 = vmatprep.subr.bf16.mxu0 0
        %3535 = vmatpush1.bf16.msra.mxu0 0
        %3536 = vmatprep.subr.bf16.mxu0 0
        %3537 = vmatpush1.bf16.msra.mxu0 0
        %3538 = vmatprep.subr.bf16.mxu0 0
        %3539 = vmatpush1.bf16.msra.mxu0 0
        %3540 = vmatprep.subr.bf16.mxu0 0
        %3541 = vmatpush1.bf16.msra.mxu0 0
        %3542 = vmatprep.subr.bf16.mxu0 0
        %3543 = vmatpush1.bf16.msra.mxu0 0
        %3544 = vmatprep.subr.bf16.mxu0 0
        %3545 = vmatpush1.bf16.msra.mxu0 0
        %3546 = vmatprep.subr.bf16.mxu0 0
        %3547 = vmatpush1.bf16.msra.mxu0 0
        %3548 = vmatprep.subr.bf16.mxu0 0
        %3549 = vmatpush1.bf16.msra.mxu0 0
        %3550 = vmatprep.subr.bf16.mxu0 0
        %3551 = vmatpush1.bf16.msra.mxu0 0
        %3552 = vmatprep.mubr.bf16.mxu0 0
        %3553 = vmatmul.mubr.bf16.gmra.mrb[0].mxu0 %v3518
        %v3554 = vpop.f32.mrb[0].mxu0
        %v3555 = vadd.f32 0.0, %v3554
        %v3556 = vpop.f32.mrb[0].mxu0
        %v3557 = vpop.f32.mrb[0].mxu0
        %v3558 = vpop.f32.mrb[0].mxu0
        %3559 = vdwg.mxu0
        %v3560 = vadd.f32 %v3505, %v3555
        %v3561 = vld [vmem:[#allocation2 + $0x4d] sm:$0x7f]
        %v3562 = vpack.c.bf16 %v3561, %v3561
        %s3563 = scalar_lea.vmem %s8, 88
        %v3564 = vld [vmem:[%s3563] sm:$0xf]
        %v3565 = vld [vmem:[%s3563 + $0x4] sm:$0xf]
        %v3568 = vunpack.c.l.b16 %v3564
        %v3569 = vunpack.c.l.b16 %v3565
        %v3570 = vpack.c.b16 %v3569, %v3568
        %v3573 = vsel %vm2895, %v3562, 0
        %3575 = vmatprep.subr.bf16.mxu0 0
        %3576 = vmatpush1.bf16.msra.mxu0 %v3570
        %3577 = vmatprep.subr.bf16.mxu0 0
        %3578 = vmatpush1.bf16.msra.mxu0 0
        %3579 = vmatprep.subr.bf16.mxu0 0
        %3580 = vmatpush1.bf16.msra.mxu0 0
        %3581 = vmatprep.subr.bf16.mxu0 0
        %3582 = vmatpush1.bf16.msra.mxu0 0
        %3583 = vmatprep.subr.bf16.mxu0 0
        %3584 = vmatpush1.bf16.msra.mxu0 0
        %3585 = vmatprep.subr.bf16.mxu0 0
        %3586 = vmatpush1.bf16.msra.mxu0 0
        %3587 = vmatprep.subr.bf16.mxu0 0
        %3588 = vmatpush1.bf16.msra.mxu0 0
        %3589 = vmatprep.subr.bf16.mxu0 0
        %3590 = vmatpush1.bf16.msra.mxu0 0
        %3591 = vmatprep.subr.bf16.mxu0 0
        %3592 = vmatpush1.bf16.msra.mxu0 0
        %3593 = vmatprep.subr.bf16.mxu0 0
        %3594 = vmatpush1.bf16.msra.mxu0 0
        %3595 = vmatprep.subr.bf16.mxu0 0
        %3596 = vmatpush1.bf16.msra.mxu0 0
        %3597 = vmatprep.subr.bf16.mxu0 0
        %3598 = vmatpush1.bf16.msra.mxu0 0
        %3599 = vmatprep.subr.bf16.mxu0 0
        %3600 = vmatpush1.bf16.msra.mxu0 0
        %3601 = vmatprep.subr.bf16.mxu0 0
        %3602 = vmatpush1.bf16.msra.mxu0 0
        %3603 = vmatprep.subr.bf16.mxu0 0
        %3604 = vmatpush1.bf16.msra.mxu0 0
        %3605 = vmatprep.subr.bf16.mxu0 0
        %3606 = vmatpush1.bf16.msra.mxu0 0
        %3607 = vmatprep.mubr.bf16.mxu0 0
        %3608 = vmatmul.mubr.bf16.gmra.mrb[0].mxu0 %v3573
        %v3609 = vpop.f32.mrb[0].mxu0
        %v3610 = vadd.f32 0.0, %v3609
        %v3611 = vpop.f32.mrb[0].mxu0
        %v3612 = vpop.f32.mrb[0].mxu0
        %v3613 = vpop.f32.mrb[0].mxu0
        %3614 = vdwg.mxu0
        %v3615 = vadd.f32 %v3560, %v3610
        %v3616 = vld [vmem:[#allocation2 + $0x54] sm:$0x7f]
        %v3617 = vpack.c.bf16 %v3616, %v3616
        %s3618 = scalar_lea.vmem %s8, 96
        %v3619 = vld [vmem:[%s3618] sm:$0xf]
        %v3620 = vld [vmem:[%s3618 + $0x4] sm:$0xf]
        %v3623 = vunpack.c.l.b16 %v3619
        %v3624 = vunpack.c.l.b16 %v3620
        %v3625 = vpack.c.b16 %v3624, %v3623
        %v3628 = vsel %vm2895, %v3617, 0
        %3630 = vmatprep.subr.bf16.mxu0 0
        %3631 = vmatpush1.bf16.msra.mxu0 %v3625
        %3632 = vmatprep.subr.bf16.mxu0 0
        %3633 = vmatpush1.bf16.msra.mxu0 0
        %3634 = vmatprep.subr.bf16.mxu0 0
        %3635 = vmatpush1.bf16.msra.mxu0 0
        %3636 = vmatprep.subr.bf16.mxu0 0
        %3637 = vmatpush1.bf16.msra.mxu0 0
        %3638 = vmatprep.subr.bf16.mxu0 0
        %3639 = vmatpush1.bf16.msra.mxu0 0
        %3640 = vmatprep.subr.bf16.mxu0 0
        %3641 = vmatpush1.bf16.msra.mxu0 0
        %3642 = vmatprep.subr.bf16.mxu0 0
        %3643 = vmatpush1.bf16.msra.mxu0 0
        %3644 = vmatprep.subr.bf16.mxu0 0
        %3645 = vmatpush1.bf16.msra.mxu0 0
        %3646 = vmatprep.subr.bf16.mxu0 0
        %3647 = vmatpush1.bf16.msra.mxu0 0
        %3648 = vmatprep.subr.bf16.mxu0 0
        %3649 = vmatpush1.bf16.msra.mxu0 0
        %3650 = vmatprep.subr.bf16.mxu0 0
        %3651 = vmatpush1.bf16.msra.mxu0 0
        %3652 = vmatprep.subr.bf16.mxu0 0
        %3653 = vmatpush1.bf16.msra.mxu0 0
        %3654 = vmatprep.subr.bf16.mxu0 0
        %3655 = vmatpush1.bf16.msra.mxu0 0
        %3656 = vmatprep.subr.bf16.mxu0 0
        %3657 = vmatpush1.bf16.msra.mxu0 0
        %3658 = vmatprep.subr.bf16.mxu0 0
        %3659 = vmatpush1.bf16.msra.mxu0 0
        %3660 = vmatprep.subr.bf16.mxu0 0
        %3661 = vmatpush1.bf16.msra.mxu0 0
        %3662 = vmatprep.mubr.bf16.mxu0 0
        %3663 = vmatmul.mubr.bf16.gmra.mrb[0].mxu0 %v3628
        %v3664 = vpop.f32.mrb[0].mxu0
        %v3665 = vadd.f32 0.0, %v3664
        %v3666 = vpop.f32.mrb[0].mxu0
        %v3667 = vpop.f32.mrb[0].mxu0
        %v3668 = vpop.f32.mrb[0].mxu0
        %3669 = vdwg.mxu0
        %v3670 = vadd.f32 %v3615, %v3665
        %v3671 = vld [vmem:[#allocation2 + $0x5b] sm:$0x7f]
        %v3672 = vpack.c.bf16 %v3671, %v3671
        %s3673 = scalar_lea.vmem %s8, 104
        %v3674 = vld [vmem:[%s3673] sm:$0xf]
        %v3675 = vld [vmem:[%s3673 + $0x4] sm:$0xf]
        %v3678 = vunpack.c.l.b16 %v3674
        %v3679 = vunpack.c.l.b16 %v3675
        %v3680 = vpack.c.b16 %v3679, %v3678
        %v3683 = vsel %vm2895, %v3672, 0
        %3685 = vmatprep.subr.bf16.mxu0 0
        %3686 = vmatpush1.bf16.msra.mxu0 %v3680
        %3687 = vmatprep.subr.bf16.mxu0 0
        %3688 = vmatpush1.bf16.msra.mxu0 0
        %3689 = vmatprep.subr.bf16.mxu0 0
        %3690 = vmatpush1.bf16.msra.mxu0 0
        %3691 = vmatprep.subr.bf16.mxu0 0
        %3692 = vmatpush1.bf16.msra.mxu0 0
        %3693 = vmatprep.subr.bf16.mxu0 0
        %3694 = vmatpush1.bf16.msra.mxu0 0
        %3695 = vmatprep.subr.bf16.mxu0 0
        %3696 = vmatpush1.bf16.msra.mxu0 0
        %3697 = vmatprep.subr.bf16.mxu0 0
        %3698 = vmatpush1.bf16.msra.mxu0 0
        %3699 = vmatprep.subr.bf16.mxu0 0
        %3700 = vmatpush1.bf16.msra.mxu0 0
        %3701 = vmatprep.subr.bf16.mxu0 0
        %3702 = vmatpush1.bf16.msra.mxu0 0
        %3703 = vmatprep.subr.bf16.mxu0 0
        %3704 = vmatpush1.bf16.msra.mxu0 0
        %3705 = vmatprep.subr.bf16.mxu0 0
        %3706 = vmatpush1.bf16.msra.mxu0 0
        %3707 = vmatprep.subr.bf16.mxu0 0
        %3708 = vmatpush1.bf16.msra.mxu0 0
        %3709 = vmatprep.subr.bf16.mxu0 0
        %3710 = vmatpush1.bf16.msra.mxu0 0
        %3711 = vmatprep.subr.bf16.mxu0 0
        %3712 = vmatpush1.bf16.msra.mxu0 0
        %3713 = vmatprep.subr.bf16.mxu0 0
        %3714 = vmatpush1.bf16.msra.mxu0 0
        %3715 = vmatprep.subr.bf16.mxu0 0
        %3716 = vmatpush1.bf16.msra.mxu0 0
        %3717 = vmatprep.mubr.bf16.mxu0 0
        %3718 = vmatmul.mubr.bf16.gmra.mrb[0].mxu0 %v3683
        %v3719 = vpop.f32.mrb[0].mxu0
        %v3720 = vadd.f32 0.0, %v3719
        %v3721 = vpop.f32.mrb[0].mxu0
        %v3722 = vpop.f32.mrb[0].mxu0
        %v3723 = vpop.f32.mrb[0].mxu0
        %3724 = vdwg.mxu0
        %v3725 = vadd.f32 %v3670, %v3720
        %3726 = vst.msk [vmem:[#allocation3] sm:$0x7f] %vm1129, %v3725
        %v3727 = vld [vmem:[#allocation3] sm:$0x7f]
        %3728 = vst.msk [vmem:[#allocation4 + $0x31] sm:$0x7f] %vm1132, %v3727
        %v3729 = vld [vmem:[#allocation3] sm:$0x7f]
        %3731 = vrot.lane.b32.xlu0 %v3729, 112
        %v3732 = vpop.permute.xlu0 %3731
        %3734 = vst.msk [vmem:[#allocation4 + $0x38] sm:$0x7f] %vm1132, %v3732
        %v3735 = vld [vmem:[#allocation3] sm:$0x7f]
        %3737 = vrot.lane.b32.xlu0 %v3735, 96
        %v3738 = vpop.permute.xlu0 %3737
        %3740 = vst.msk [vmem:[#allocation4 + $0x3f] sm:$0x7f] %vm1132, %v3738
        %v3741 = vld [vmem:[#allocation3] sm:$0x7f]
        %3743 = vrot.lane.b32.xlu0 %v3741, 80
        %v3744 = vpop.permute.xlu0 %3743
        %3746 = vst.msk [vmem:[#allocation4 + $0x46] sm:$0x7f] %vm1132, %v3744
        %v3747 = vld [vmem:[#allocation3] sm:$0x7f]
        %3749 = vrot.lane.b32.xlu0 %v3747, 64
        %v3750 = vpop.permute.xlu0 %3749
        %3752 = vst.msk [vmem:[#allocation4 + $0x4d] sm:$0x7f] %vm1132, %v3750
        %v3753 = vld [vmem:[#allocation3] sm:$0x7f]
        %3755 = vrot.lane.b32.xlu0 %v3753, 48
        %v3756 = vpop.permute.xlu0 %3755
        %3758 = vst.msk [vmem:[#allocation4 + $0x54] sm:$0x7f] %vm1132, %v3756
        %v3759 = vld [vmem:[#allocation3] sm:$0x7f]
        %3761 = vrot.lane.b32.xlu0 %v3759, 32
        %v3762 = vpop.permute.xlu0 %3761
        %3764 = vst.msk [vmem:[#allocation4 + $0x5b] sm:$0x7f] %vm1132, %v3762
        %v3765 = vld [vmem:[#allocation2 + $0x62] sm:$0x7f]
        %v3766 = vpack.c.bf16 %v3765, %v3765
        %s3767 = scalar_lea.vmem %s8, 112
        %v3768 = vld [vmem:[%s3767] sm:$0xf]
        %v3769 = vld [vmem:[%s3767 + $0x4] sm:$0xf]
        %v3770 = vld [vmem:[#allocation2 + $0x69] sm:$0x7f]
        %v3771 = vpack.c.bf16 %v3770, %v3770
        %s3772 = scalar_lea.vmem %s8, 120
        %v3773 = vld [vmem:[%s3772] sm:$0xf]
        %v3774 = vld [vmem:[%s3772 + $0x4] sm:$0xf]
        %v3777 = vunpack.c.l.b16 %v3773
        %v3778 = vunpack.c.l.b16 %v3774
        %v3779 = vpack.c.b16 %v3778, %v3777
        %v3782 = vsel %vm2895, %v3771, 0
        %3784 = vmatprep.subr.bf16.mxu0 0
        %3785 = vmatpush1.bf16.msra.mxu0 %v3779
        %3786 = vmatprep.subr.bf16.mxu0 0
        %3787 = vmatpush1.bf16.msra.mxu0 0
        %3788 = vmatprep.subr.bf16.mxu0 0
        %3789 = vmatpush1.bf16.msra.mxu0 0
        %3790 = vmatprep.subr.bf16.mxu0 0
        %3791 = vmatpush1.bf16.msra.mxu0 0
        %3792 = vmatprep.subr.bf16.mxu0 0
        %3793 = vmatpush1.bf16.msra.mxu0 0
        %3794 = vmatprep.subr.bf16.mxu0 0
        %3795 = vmatpush1.bf16.msra.mxu0 0
        %3796 = vmatprep.subr.bf16.mxu0 0
        %3797 = vmatpush1.bf16.msra.mxu0 0
        %3798 = vmatprep.subr.bf16.mxu0 0
        %3799 = vmatpush1.bf16.msra.mxu0 0
        %3800 = vmatprep.subr.bf16.mxu0 0
        %3801 = vmatpush1.bf16.msra.mxu0 0
        %3802 = vmatprep.subr.bf16.mxu0 0
        %3803 = vmatpush1.bf16.msra.mxu0 0
        %3804 = vmatprep.subr.bf16.mxu0 0
        %3805 = vmatpush1.bf16.msra.mxu0 0
        %3806 = vmatprep.subr.bf16.mxu0 0
        %3807 = vmatpush1.bf16.msra.mxu0 0
        %3808 = vmatprep.subr.bf16.mxu0 0
        %3809 = vmatpush1.bf16.msra.mxu0 0
        %3810 = vmatprep.subr.bf16.mxu0 0
        %3811 = vmatpush1.bf16.msra.mxu0 0
        %3812 = vmatprep.subr.bf16.mxu0 0
        %3813 = vmatpush1.bf16.msra.mxu0 0
        %3814 = vmatprep.subr.bf16.mxu0 0
        %3815 = vmatpush1.bf16.msra.mxu0 0
        %3816 = vmatprep.mubr.bf16.mxu0 0
        %3817 = vmatmul.mubr.bf16.gmra.mrb[0].mxu0 %v3782
        %v3818 = vpop.f32.mrb[0].mxu0
        %v3819 = vadd.f32 0.0, %v3818
        %v3820 = vpop.f32.mrb[0].mxu0
        %v3821 = vpop.f32.mrb[0].mxu0
        %v3822 = vpop.f32.mrb[0].mxu0
        %3823 = vdwg.mxu0
        %v3826 = vunpack.c.l.b16 %v3768
        %v3827 = vunpack.c.l.b16 %v3769
        %v3828 = vpack.c.b16 %v3827, %v3826
        %v3831 = vsel %vm2895, %v3766, 0
        %3833 = vmatprep.subr.bf16.mxu0 0
        %3834 = vmatpush1.bf16.msra.mxu0 %v3828
        %3835 = vmatprep.subr.bf16.mxu0 0
        %3836 = vmatpush1.bf16.msra.mxu0 0
        %3837 = vmatprep.subr.bf16.mxu0 0
        %3838 = vmatpush1.bf16.msra.mxu0 0
        %3839 = vmatprep.subr.bf16.mxu0 0
        %3840 = vmatpush1.bf16.msra.mxu0 0
        %3841 = vmatprep.subr.bf16.mxu0 0
        %3842 = vmatpush1.bf16.msra.mxu0 0
        %3843 = vmatprep.subr.bf16.mxu0 0
        %3844 = vmatpush1.bf16.msra.mxu0 0
        %3845 = vmatprep.subr.bf16.mxu0 0
        %3846 = vmatpush1.bf16.msra.mxu0 0
        %3847 = vmatprep.subr.bf16.mxu0 0
        %3848 = vmatpush1.bf16.msra.mxu0 0
        %3849 = vmatprep.subr.bf16.mxu0 0
        %3850 = vmatpush1.bf16.msra.mxu0 0
        %3851 = vmatprep.subr.bf16.mxu0 0
        %3852 = vmatpush1.bf16.msra.mxu0 0
        %3853 = vmatprep.subr.bf16.mxu0 0
        %3854 = vmatpush1.bf16.msra.mxu0 0
        %3855 = vmatprep.subr.bf16.mxu0 0
        %3856 = vmatpush1.bf16.msra.mxu0 0
        %3857 = vmatprep.subr.bf16.mxu0 0
        %3858 = vmatpush1.bf16.msra.mxu0 0
        %3859 = vmatprep.subr.bf16.mxu0 0
        %3860 = vmatpush1.bf16.msra.mxu0 0
        %3861 = vmatprep.subr.bf16.mxu0 0
        %3862 = vmatpush1.bf16.msra.mxu0 0
        %3863 = vmatprep.subr.bf16.mxu0 0
        %3864 = vmatpush1.bf16.msra.mxu0 0
        %3865 = vmatprep.mubr.bf16.mxu0 0
        %3866 = vmatmul.mubr.bf16.gmra.mrb[0].mxu0 %v3831
        %v3867 = vpop.f32.mrb[0].mxu0
        %v3868 = vadd.f32 %v3819, %v3867
        %v3869 = vpop.f32.mrb[0].mxu0
        %v3870 = vpop.f32.mrb[0].mxu0
        %v3871 = vpop.f32.mrb[0].mxu0
        %3872 = vdwg.mxu0
        %v3873 = vld [vmem:[#allocation2 + $0x70] sm:$0x7f]
        %v3874 = vpack.c.bf16 %v3873, %v3873
        %s3875 = scalar_lea.vmem %s8, 128
        %v3876 = vld [vmem:[%s3875] sm:$0xf]
        %v3877 = vld [vmem:[%s3875 + $0x4] sm:$0xf]
        %v3880 = vunpack.c.l.b16 %v3876
        %v3881 = vunpack.c.l.b16 %v3877
        %v3882 = vpack.c.b16 %v3881, %v3880
        %v3885 = vsel %vm2895, %v3874, 0
        %3887 = vmatprep.subr.bf16.mxu0 0
        %3888 = vmatpush1.bf16.msra.mxu0 %v3882
        %3889 = vmatprep.subr.bf16.mxu0 0
        %3890 = vmatpush1.bf16.msra.mxu0 0
        %3891 = vmatprep.subr.bf16.mxu0 0
        %3892 = vmatpush1.bf16.msra.mxu0 0
        %3893 = vmatprep.subr.bf16.mxu0 0
        %3894 = vmatpush1.bf16.msra.mxu0 0
        %3895 = vmatprep.subr.bf16.mxu0 0
        %3896 = vmatpush1.bf16.msra.mxu0 0
        %3897 = vmatprep.subr.bf16.mxu0 0
        %3898 = vmatpush1.bf16.msra.mxu0 0
        %3899 = vmatprep.subr.bf16.mxu0 0
        %3900 = vmatpush1.bf16.msra.mxu0 0
        %3901 = vmatprep.subr.bf16.mxu0 0
        %3902 = vmatpush1.bf16.msra.mxu0 0
        %3903 = vmatprep.subr.bf16.mxu0 0
        %3904 = vmatpush1.bf16.msra.mxu0 0
        %3905 = vmatprep.subr.bf16.mxu0 0
        %3906 = vmatpush1.bf16.msra.mxu0 0
        %3907 = vmatprep.subr.bf16.mxu0 0
        %3908 = vmatpush1.bf16.msra.mxu0 0
        %3909 = vmatprep.subr.bf16.mxu0 0
        %3910 = vmatpush1.bf16.msra.mxu0 0
        %3911 = vmatprep.subr.bf16.mxu0 0
        %3912 = vmatpush1.bf16.msra.mxu0 0
        %3913 = vmatprep.subr.bf16.mxu0 0
        %3914 = vmatpush1.bf16.msra.mxu0 0
        %3915 = vmatprep.subr.bf16.mxu0 0
        %3916 = vmatpush1.bf16.msra.mxu0 0
        %3917 = vmatprep.subr.bf16.mxu0 0
        %3918 = vmatpush1.bf16.msra.mxu0 0
        %3919 = vmatprep.mubr.bf16.mxu0 0
        %3920 = vmatmul.mubr.bf16.gmra.mrb[0].mxu0 %v3885
        %v3921 = vpop.f32.mrb[0].mxu0
        %v3922 = vadd.f32 0.0, %v3921
        %v3923 = vpop.f32.mrb[0].mxu0
        %v3924 = vpop.f32.mrb[0].mxu0
        %v3925 = vpop.f32.mrb[0].mxu0
        %3926 = vdwg.mxu0
        %v3927 = vadd.f32 %v3868, %v3922
        %v3928 = vld [vmem:[#allocation2 + $0x77] sm:$0x7f]
        %v3929 = vpack.c.bf16 %v3928, %v3928
        %s3930 = scalar_lea.vmem %s8, 136
        %v3931 = vld [vmem:[%s3930] sm:$0xf]
        %v3932 = vld [vmem:[%s3930 + $0x4] sm:$0xf]
        %v3935 = vunpack.c.l.b16 %v3931
        %v3936 = vunpack.c.l.b16 %v3932
        %v3937 = vpack.c.b16 %v3936, %v3935
        %v3940 = vsel %vm2895, %v3929, 0
        %3942 = vmatprep.subr.bf16.mxu0 0
        %3943 = vmatpush1.bf16.msra.mxu0 %v3937
        %3944 = vmatprep.subr.bf16.mxu0 0
        %3945 = vmatpush1.bf16.msra.mxu0 0
        %3946 = vmatprep.subr.bf16.mxu0 0
        %3947 = vmatpush1.bf16.msra.mxu0 0
        %3948 = vmatprep.subr.bf16.mxu0 0
        %3949 = vmatpush1.bf16.msra.mxu0 0
        %3950 = vmatprep.subr.bf16.mxu0 0
        %3951 = vmatpush1.bf16.msra.mxu0 0
        %3952 = vmatprep.subr.bf16.mxu0 0
        %3953 = vmatpush1.bf16.msra.mxu0 0
        %3954 = vmatprep.subr.bf16.mxu0 0
        %3955 = vmatpush1.bf16.msra.mxu0 0
        %3956 = vmatprep.subr.bf16.mxu0 0
        %3957 = vmatpush1.bf16.msra.mxu0 0
        %3958 = vmatprep.subr.bf16.mxu0 0
        %3959 = vmatpush1.bf16.msra.mxu0 0
        %3960 = vmatprep.subr.bf16.mxu0 0
        %3961 = vmatpush1.bf16.msra.mxu0 0
        %3962 = vmatprep.subr.bf16.mxu0 0
        %3963 = vmatpush1.bf16.msra.mxu0 0
        %3964 = vmatprep.subr.bf16.mxu0 0
        %3965 = vmatpush1.bf16.msra.mxu0 0
        %3966 = vmatprep.subr.bf16.mxu0 0
        %3967 = vmatpush1.bf16.msra.mxu0 0
        %3968 = vmatprep.subr.bf16.mxu0 0
        %3969 = vmatpush1.bf16.msra.mxu0 0
        %3970 = vmatprep.subr.bf16.mxu0 0
        %3971 = vmatpush1.bf16.msra.mxu0 0
        %3972 = vmatprep.subr.bf16.mxu0 0
        %3973 = vmatpush1.bf16.msra.mxu0 0
        %3974 = vmatprep.mubr.bf16.mxu0 0
        %3975 = vmatmul.mubr.bf16.gmra.mrb[0].mxu0 %v3940
        %v3976 = vpop.f32.mrb[0].mxu0
        %v3977 = vadd.f32 0.0, %v3976
        %v3978 = vpop.f32.mrb[0].mxu0
        %v3979 = vpop.f32.mrb[0].mxu0
        %v3980 = vpop.f32.mrb[0].mxu0
        %3981 = vdwg.mxu0
        %v3982 = vadd.f32 %v3927, %v3977
        %v3983 = vld [vmem:[#allocation2 + $0x7e] sm:$0x7f]
        %v3984 = vpack.c.bf16 %v3983, %v3983
        %s3985 = scalar_lea.vmem %s8, 144
        %v3986 = vld [vmem:[%s3985] sm:$0xf]
        %v3987 = vld [vmem:[%s3985 + $0x4] sm:$0xf]
        %v3990 = vunpack.c.l.b16 %v3986
        %v3991 = vunpack.c.l.b16 %v3987
        %v3992 = vpack.c.b16 %v3991, %v3990
        %v3995 = vsel %vm2895, %v3984, 0
        %3997 = vmatprep.subr.bf16.mxu0 0
        %3998 = vmatpush1.bf16.msra.mxu0 %v3992
        %3999 = vmatprep.subr.bf16.mxu0 0
        %4000 = vmatpush1.bf16.msra.mxu0 0
        %4001 = vmatprep.subr.bf16.mxu0 0
        %4002 = vmatpush1.bf16.msra.mxu0 0
        %4003 = vmatprep.subr.bf16.mxu0 0
        %4004 = vmatpush1.bf16.msra.mxu0 0
        %4005 = vmatprep.subr.bf16.mxu0 0
        %4006 = vmatpush1.bf16.msra.mxu0 0
        %4007 = vmatprep.subr.bf16.mxu0 0
        %4008 = vmatpush1.bf16.msra.mxu0 0
        %4009 = vmatprep.subr.bf16.mxu0 0
        %4010 = vmatpush1.bf16.msra.mxu0 0
        %4011 = vmatprep.subr.bf16.mxu0 0
        %4012 = vmatpush1.bf16.msra.mxu0 0
        %4013 = vmatprep.subr.bf16.mxu0 0
        %4014 = vmatpush1.bf16.msra.mxu0 0
        %4015 = vmatprep.subr.bf16.mxu0 0
        %4016 = vmatpush1.bf16.msra.mxu0 0
        %4017 = vmatprep.subr.bf16.mxu0 0
        %4018 = vmatpush1.bf16.msra.mxu0 0
        %4019 = vmatprep.subr.bf16.mxu0 0
        %4020 = vmatpush1.bf16.msra.mxu0 0
        %4021 = vmatprep.subr.bf16.mxu0 0
        %4022 = vmatpush1.bf16.msra.mxu0 0
        %4023 = vmatprep.subr.bf16.mxu0 0
        %4024 = vmatpush1.bf16.msra.mxu0 0
        %4025 = vmatprep.subr.bf16.mxu0 0
        %4026 = vmatpush1.bf16.msra.mxu0 0
        %4027 = vmatprep.subr.bf16.mxu0 0
        %4028 = vmatpush1.bf16.msra.mxu0 0
        %4029 = vmatprep.mubr.bf16.mxu0 0
        %4030 = vmatmul.mubr.bf16.gmra.mrb[0].mxu0 %v3995
        %v4031 = vpop.f32.mrb[0].mxu0
        %v4032 = vadd.f32 0.0, %v4031
        %v4033 = vpop.f32.mrb[0].mxu0
        %v4034 = vpop.f32.mrb[0].mxu0
        %v4035 = vpop.f32.mrb[0].mxu0
        %4036 = vdwg.mxu0
        %v4037 = vadd.f32 %v3982, %v4032
        %v4038 = vld [vmem:[#allocation2 + $0x85] sm:$0x7f]
        %v4039 = vpack.c.bf16 %v4038, %v4038
        %s4040 = scalar_lea.vmem %s8, 152
        %v4041 = vld [vmem:[%s4040] sm:$0xf]
        %v4042 = vld [vmem:[%s4040 + $0x4] sm:$0xf]
        %v4045 = vunpack.c.l.b16 %v4041
        %v4046 = vunpack.c.l.b16 %v4042
        %v4047 = vpack.c.b16 %v4046, %v4045
        %v4050 = vsel %vm2895, %v4039, 0
        %4052 = vmatprep.subr.bf16.mxu0 0
        %4053 = vmatpush1.bf16.msra.mxu0 %v4047
        %4054 = vmatprep.subr.bf16.mxu0 0
        %4055 = vmatpush1.bf16.msra.mxu0 0
        %4056 = vmatprep.subr.bf16.mxu0 0
        %4057 = vmatpush1.bf16.msra.mxu0 0
        %4058 = vmatprep.subr.bf16.mxu0 0
        %4059 = vmatpush1.bf16.msra.mxu0 0
        %4060 = vmatprep.subr.bf16.mxu0 0
        %4061 = vmatpush1.bf16.msra.mxu0 0
        %4062 = vmatprep.subr.bf16.mxu0 0
        %4063 = vmatpush1.bf16.msra.mxu0 0
        %4064 = vmatprep.subr.bf16.mxu0 0
        %4065 = vmatpush1.bf16.msra.mxu0 0
        %4066 = vmatprep.subr.bf16.mxu0 0
        %4067 = vmatpush1.bf16.msra.mxu0 0
        %4068 = vmatprep.subr.bf16.mxu0 0
        %4069 = vmatpush1.bf16.msra.mxu0 0
        %4070 = vmatprep.subr.bf16.mxu0 0
        %4071 = vmatpush1.bf16.msra.mxu0 0
        %4072 = vmatprep.subr.bf16.mxu0 0
        %4073 = vmatpush1.bf16.msra.mxu0 0
        %4074 = vmatprep.subr.bf16.mxu0 0
        %4075 = vmatpush1.bf16.msra.mxu0 0
        %4076 = vmatprep.subr.bf16.mxu0 0
        %4077 = vmatpush1.bf16.msra.mxu0 0
        %4078 = vmatprep.subr.bf16.mxu0 0
        %4079 = vmatpush1.bf16.msra.mxu0 0
        %4080 = vmatprep.subr.bf16.mxu0 0
        %4081 = vmatpush1.bf16.msra.mxu0 0
        %4082 = vmatprep.subr.bf16.mxu0 0
        %4083 = vmatpush1.bf16.msra.mxu0 0
        %4084 = vmatprep.mubr.bf16.mxu0 0
        %4085 = vmatmul.mubr.bf16.gmra.mrb[0].mxu0 %v4050
        %v4086 = vpop.f32.mrb[0].mxu0
        %v4087 = vadd.f32 0.0, %v4086
        %v4088 = vpop.f32.mrb[0].mxu0
        %v4089 = vpop.f32.mrb[0].mxu0
        %v4090 = vpop.f32.mrb[0].mxu0
        %4091 = vdwg.mxu0
        %v4092 = vadd.f32 %v4037, %v4087
        %v4093 = vld [vmem:[#allocation2 + $0x8c] sm:$0x7f]
        %v4094 = vpack.c.bf16 %v4093, %v4093
        %s4095 = scalar_lea.vmem %s8, 160
        %v4096 = vld [vmem:[%s4095] sm:$0xf]
        %v4097 = vld [vmem:[%s4095 + $0x4] sm:$0xf]
        %v4100 = vunpack.c.l.b16 %v4096
        %v4101 = vunpack.c.l.b16 %v4097
        %v4102 = vpack.c.b16 %v4101, %v4100
        %v4105 = vsel %vm2895, %v4094, 0
        %4107 = vmatprep.subr.bf16.mxu0 0
        %4108 = vmatpush1.bf16.msra.mxu0 %v4102
        %4109 = vmatprep.subr.bf16.mxu0 0
        %4110 = vmatpush1.bf16.msra.mxu0 0
        %4111 = vmatprep.subr.bf16.mxu0 0
        %4112 = vmatpush1.bf16.msra.mxu0 0
        %4113 = vmatprep.subr.bf16.mxu0 0
        %4114 = vmatpush1.bf16.msra.mxu0 0
        %4115 = vmatprep.subr.bf16.mxu0 0
        %4116 = vmatpush1.bf16.msra.mxu0 0
        %4117 = vmatprep.subr.bf16.mxu0 0
        %4118 = vmatpush1.bf16.msra.mxu0 0
        %4119 = vmatprep.subr.bf16.mxu0 0
        %4120 = vmatpush1.bf16.msra.mxu0 0
        %4121 = vmatprep.subr.bf16.mxu0 0
        %4122 = vmatpush1.bf16.msra.mxu0 0
        %4123 = vmatprep.subr.bf16.mxu0 0
        %4124 = vmatpush1.bf16.msra.mxu0 0
        %4125 = vmatprep.subr.bf16.mxu0 0
        %4126 = vmatpush1.bf16.msra.mxu0 0
        %4127 = vmatprep.subr.bf16.mxu0 0
        %4128 = vmatpush1.bf16.msra.mxu0 0
        %4129 = vmatprep.subr.bf16.mxu0 0
        %4130 = vmatpush1.bf16.msra.mxu0 0
        %4131 = vmatprep.subr.bf16.mxu0 0
        %4132 = vmatpush1.bf16.msra.mxu0 0
        %4133 = vmatprep.subr.bf16.mxu0 0
        %4134 = vmatpush1.bf16.msra.mxu0 0
        %4135 = vmatprep.subr.bf16.mxu0 0
        %4136 = vmatpush1.bf16.msra.mxu0 0
        %4137 = vmatprep.subr.bf16.mxu0 0
        %4138 = vmatpush1.bf16.msra.mxu0 0
        %4139 = vmatprep.mubr.bf16.mxu0 0
        %4140 = vmatmul.mubr.bf16.gmra.mrb[0].mxu0 %v4105
        %v4141 = vpop.f32.mrb[0].mxu0
        %v4142 = vadd.f32 0.0, %v4141
        %v4143 = vpop.f32.mrb[0].mxu0
        %v4144 = vpop.f32.mrb[0].mxu0
        %v4145 = vpop.f32.mrb[0].mxu0
        %4146 = vdwg.mxu0
        %v4147 = vadd.f32 %v4092, %v4142
        %4148 = vst.msk [vmem:[#allocation3] sm:$0x7f] %vm1129, %v4147
        %v4149 = vld [vmem:[#allocation3] sm:$0x7f]
        %4150 = vst.msk [vmem:[#allocation4 + $0x62] sm:$0x7f] %vm1132, %v4149
        %v4151 = vld [vmem:[#allocation3] sm:$0x7f]
        %4153 = vrot.lane.b32.xlu0 %v4151, 112
        %v4154 = vpop.permute.xlu0 %4153
        %4156 = vst.msk [vmem:[#allocation4 + $0x69] sm:$0x7f] %vm1132, %v4154
        %v4157 = vld [vmem:[#allocation3] sm:$0x7f]
        %4159 = vrot.lane.b32.xlu0 %v4157, 96
        %v4160 = vpop.permute.xlu0 %4159
        %4162 = vst.msk [vmem:[#allocation4 + $0x70] sm:$0x7f] %vm1132, %v4160
        %v4163 = vld [vmem:[#allocation3] sm:$0x7f]
        %4165 = vrot.lane.b32.xlu0 %v4163, 80
        %v4166 = vpop.permute.xlu0 %4165
        %4168 = vst.msk [vmem:[#allocation4 + $0x77] sm:$0x7f] %vm1132, %v4166
        %v4169 = vld [vmem:[#allocation3] sm:$0x7f]
        %4171 = vrot.lane.b32.xlu0 %v4169, 64
        %v4172 = vpop.permute.xlu0 %4171
        %4174 = vst.msk [vmem:[#allocation4 + $0x7e] sm:$0x7f] %vm1132, %v4172
        %v4175 = vld [vmem:[#allocation3] sm:$0x7f]
        %4177 = vrot.lane.b32.xlu0 %v4175, 48
        %v4178 = vpop.permute.xlu0 %4177
        %4180 = vst.msk [vmem:[#allocation4 + $0x85] sm:$0x7f] %vm1132, %v4178
        %v4181 = vld [vmem:[#allocation3] sm:$0x7f]
        %4183 = vrot.lane.b32.xlu0 %v4181, 32
        %v4184 = vpop.permute.xlu0 %4183
        %4186 = vst.msk [vmem:[#allocation4 + $0x8c] sm:$0x7f] %vm1132, %v4184
        %v4187 = vld [vmem:[#allocation2 + $0x93] sm:$0x7f]
        %v4188 = vpack.c.bf16 %v4187, %v4187
        %s4189 = scalar_lea.vmem %s8, 168
        %v4190 = vld [vmem:[%s4189] sm:$0xf]
        %v4191 = vld [vmem:[%s4189 + $0x4] sm:$0xf]
        %v4192 = vld [vmem:[#allocation2 + $0x9a] sm:$0x7f]
        %v4193 = vpack.c.bf16 %v4192, %v4192
        %s4194 = scalar_lea.vmem %s8, 176
        %v4195 = vld [vmem:[%s4194] sm:$0xf]
        %v4196 = vld [vmem:[%s4194 + $0x4] sm:$0xf]
        %v4199 = vunpack.c.l.b16 %v4195
        %v4200 = vunpack.c.l.b16 %v4196
        %v4201 = vpack.c.b16 %v4200, %v4199
        %v4204 = vsel %vm2895, %v4193, 0
        %4206 = vmatprep.subr.bf16.mxu0 0
        %4207 = vmatpush1.bf16.msra.mxu0 %v4201
        %4208 = vmatprep.subr.bf16.mxu0 0
        %4209 = vmatpush1.bf16.msra.mxu0 0
        %4210 = vmatprep.subr.bf16.mxu0 0
        %4211 = vmatpush1.bf16.msra.mxu0 0
        %4212 = vmatprep.subr.bf16.mxu0 0
        %4213 = vmatpush1.bf16.msra.mxu0 0
        %4214 = vmatprep.subr.bf16.mxu0 0
        %4215 = vmatpush1.bf16.msra.mxu0 0
        %4216 = vmatprep.subr.bf16.mxu0 0
        %4217 = vmatpush1.bf16.msra.mxu0 0
        %4218 = vmatprep.subr.bf16.mxu0 0
        %4219 = vmatpush1.bf16.msra.mxu0 0
        %4220 = vmatprep.subr.bf16.mxu0 0
        %4221 = vmatpush1.bf16.msra.mxu0 0
        %4222 = vmatprep.subr.bf16.mxu0 0
        %4223 = vmatpush1.bf16.msra.mxu0 0
        %4224 = vmatprep.subr.bf16.mxu0 0
        %4225 = vmatpush1.bf16.msra.mxu0 0
        %4226 = vmatprep.subr.bf16.mxu0 0
        %4227 = vmatpush1.bf16.msra.mxu0 0
        %4228 = vmatprep.subr.bf16.mxu0 0
        %4229 = vmatpush1.bf16.msra.mxu0 0
        %4230 = vmatprep.subr.bf16.mxu0 0
        %4231 = vmatpush1.bf16.msra.mxu0 0
        %4232 = vmatprep.subr.bf16.mxu0 0
        %4233 = vmatpush1.bf16.msra.mxu0 0
        %4234 = vmatprep.subr.bf16.mxu0 0
        %4235 = vmatpush1.bf16.msra.mxu0 0
        %4236 = vmatprep.subr.bf16.mxu0 0
        %4237 = vmatpush1.bf16.msra.mxu0 0
        %4238 = vmatprep.mubr.bf16.mxu0 0
        %4239 = vmatmul.mubr.bf16.gmra.mrb[0].mxu0 %v4204
        %v4240 = vpop.f32.mrb[0].mxu0
        %v4241 = vadd.f32 0.0, %v4240
        %v4242 = vpop.f32.mrb[0].mxu0
        %v4243 = vpop.f32.mrb[0].mxu0
        %v4244 = vpop.f32.mrb[0].mxu0
        %4245 = vdwg.mxu0
        %v4248 = vunpack.c.l.b16 %v4190
        %v4249 = vunpack.c.l.b16 %v4191
        %v4250 = vpack.c.b16 %v4249, %v4248
        %v4253 = vsel %vm2895, %v4188, 0
        %4255 = vmatprep.subr.bf16.mxu0 0
        %4256 = vmatpush1.bf16.msra.mxu0 %v4250
        %4257 = vmatprep.subr.bf16.mxu0 0
        %4258 = vmatpush1.bf16.msra.mxu0 0
        %4259 = vmatprep.subr.bf16.mxu0 0
        %4260 = vmatpush1.bf16.msra.mxu0 0
        %4261 = vmatprep.subr.bf16.mxu0 0
        %4262 = vmatpush1.bf16.msra.mxu0 0
        %4263 = vmatprep.subr.bf16.mxu0 0
        %4264 = vmatpush1.bf16.msra.mxu0 0
        %4265 = vmatprep.subr.bf16.mxu0 0
        %4266 = vmatpush1.bf16.msra.mxu0 0
        %4267 = vmatprep.subr.bf16.mxu0 0
        %4268 = vmatpush1.bf16.msra.mxu0 0
        %4269 = vmatprep.subr.bf16.mxu0 0
        %4270 = vmatpush1.bf16.msra.mxu0 0
        %4271 = vmatprep.subr.bf16.mxu0 0
        %4272 = vmatpush1.bf16.msra.mxu0 0
        %4273 = vmatprep.subr.bf16.mxu0 0
        %4274 = vmatpush1.bf16.msra.mxu0 0
        %4275 = vmatprep.subr.bf16.mxu0 0
        %4276 = vmatpush1.bf16.msra.mxu0 0
        %4277 = vmatprep.subr.bf16.mxu0 0
        %4278 = vmatpush1.bf16.msra.mxu0 0
        %4279 = vmatprep.subr.bf16.mxu0 0
        %4280 = vmatpush1.bf16.msra.mxu0 0
        %4281 = vmatprep.subr.bf16.mxu0 0
        %4282 = vmatpush1.bf16.msra.mxu0 0
        %4283 = vmatprep.subr.bf16.mxu0 0
        %4284 = vmatpush1.bf16.msra.mxu0 0
        %4285 = vmatprep.subr.bf16.mxu0 0
        %4286 = vmatpush1.bf16.msra.mxu0 0
        %4287 = vmatprep.mubr.bf16.mxu0 0
        %4288 = vmatmul.mubr.bf16.gmra.mrb[0].mxu0 %v4253
        %v4289 = vpop.f32.mrb[0].mxu0
        %v4290 = vadd.f32 %v4241, %v4289
        %v4291 = vpop.f32.mrb[0].mxu0
        %v4292 = vpop.f32.mrb[0].mxu0
        %v4293 = vpop.f32.mrb[0].mxu0
        %4294 = vdwg.mxu0
        %v4295 = vld [vmem:[#allocation2 + $0xa1] sm:$0x7f]
        %v4296 = vpack.c.bf16 %v4295, %v4295
        %s4297 = scalar_lea.vmem %s8, 184
        %v4298 = vld [vmem:[%s4297] sm:$0xf]
        %v4299 = vld [vmem:[%s4297 + $0x4] sm:$0xf]
        %v4302 = vunpack.c.l.b16 %v4298
        %v4303 = vunpack.c.l.b16 %v4299
        %v4304 = vpack.c.b16 %v4303, %v4302
        %v4307 = vsel %vm2895, %v4296, 0
        %4309 = vmatprep.subr.bf16.mxu0 0
        %4310 = vmatpush1.bf16.msra.mxu0 %v4304
        %4311 = vmatprep.subr.bf16.mxu0 0
        %4312 = vmatpush1.bf16.msra.mxu0 0
        %4313 = vmatprep.subr.bf16.mxu0 0
        %4314 = vmatpush1.bf16.msra.mxu0 0
        %4315 = vmatprep.subr.bf16.mxu0 0
        %4316 = vmatpush1.bf16.msra.mxu0 0
        %4317 = vmatprep.subr.bf16.mxu0 0
        %4318 = vmatpush1.bf16.msra.mxu0 0
        %4319 = vmatprep.subr.bf16.mxu0 0
        %4320 = vmatpush1.bf16.msra.mxu0 0
        %4321 = vmatprep.subr.bf16.mxu0 0
        %4322 = vmatpush1.bf16.msra.mxu0 0
        %4323 = vmatprep.subr.bf16.mxu0 0
        %4324 = vmatpush1.bf16.msra.mxu0 0
        %4325 = vmatprep.subr.bf16.mxu0 0
        %4326 = vmatpush1.bf16.msra.mxu0 0
        %4327 = vmatprep.subr.bf16.mxu0 0
        %4328 = vmatpush1.bf16.msra.mxu0 0
        %4329 = vmatprep.subr.bf16.mxu0 0
        %4330 = vmatpush1.bf16.msra.mxu0 0
        %4331 = vmatprep.subr.bf16.mxu0 0
        %4332 = vmatpush1.bf16.msra.mxu0 0
        %4333 = vmatprep.subr.bf16.mxu0 0
        %4334 = vmatpush1.bf16.msra.mxu0 0
        %4335 = vmatprep.subr.bf16.mxu0 0
        %4336 = vmatpush1.bf16.msra.mxu0 0
        %4337 = vmatprep.subr.bf16.mxu0 0
        %4338 = vmatpush1.bf16.msra.mxu0 0
        %4339 = vmatprep.subr.bf16.mxu0 0
        %4340 = vmatpush1.bf16.msra.mxu0 0
        %4341 = vmatprep.mubr.bf16.mxu0 0
        %4342 = vmatmul.mubr.bf16.gmra.mrb[0].mxu0 %v4307
        %v4343 = vpop.f32.mrb[0].mxu0
        %v4344 = vadd.f32 0.0, %v4343
        %v4345 = vpop.f32.mrb[0].mxu0
        %v4346 = vpop.f32.mrb[0].mxu0
        %v4347 = vpop.f32.mrb[0].mxu0
        %4348 = vdwg.mxu0
        %v4349 = vadd.f32 %v4290, %v4344
        %v4350 = vld [vmem:[#allocation2 + $0xa8] sm:$0x7f]
        %v4351 = vpack.c.bf16 %v4350, %v4350
        %s4352 = scalar_lea.vmem %s8, 192
        %v4353 = vld [vmem:[%s4352] sm:$0xf]
        %v4354 = vld [vmem:[%s4352 + $0x4] sm:$0xf]
        %v4357 = vunpack.c.l.b16 %v4353
        %v4358 = vunpack.c.l.b16 %v4354
        %v4359 = vpack.c.b16 %v4358, %v4357
        %v4362 = vsel %vm2895, %v4351, 0
        %4364 = vmatprep.subr.bf16.mxu0 0
        %4365 = vmatpush1.bf16.msra.mxu0 %v4359
        %4366 = vmatprep.subr.bf16.mxu0 0
        %4367 = vmatpush1.bf16.msra.mxu0 0
        %4368 = vmatprep.subr.bf16.mxu0 0
        %4369 = vmatpush1.bf16.msra.mxu0 0
        %4370 = vmatprep.subr.bf16.mxu0 0
        %4371 = vmatpush1.bf16.msra.mxu0 0
        %4372 = vmatprep.subr.bf16.mxu0 0
        %4373 = vmatpush1.bf16.msra.mxu0 0
        %4374 = vmatprep.subr.bf16.mxu0 0
        %4375 = vmatpush1.bf16.msra.mxu0 0
        %4376 = vmatprep.subr.bf16.mxu0 0
        %4377 = vmatpush1.bf16.msra.mxu0 0
        %4378 = vmatprep.subr.bf16.mxu0 0
        %4379 = vmatpush1.bf16.msra.mxu0 0
        %4380 = vmatprep.subr.bf16.mxu0 0
        %4381 = vmatpush1.bf16.msra.mxu0 0
        %4382 = vmatprep.subr.bf16.mxu0 0
        %4383 = vmatpush1.bf16.msra.mxu0 0
        %4384 = vmatprep.subr.bf16.mxu0 0
        %4385 = vmatpush1.bf16.msra.mxu0 0
        %4386 = vmatprep.subr.bf16.mxu0 0
        %4387 = vmatpush1.bf16.msra.mxu0 0
        %4388 = vmatprep.subr.bf16.mxu0 0
        %4389 = vmatpush1.bf16.msra.mxu0 0
        %4390 = vmatprep.subr.bf16.mxu0 0
        %4391 = vmatpush1.bf16.msra.mxu0 0
        %4392 = vmatprep.subr.bf16.mxu0 0
        %4393 = vmatpush1.bf16.msra.mxu0 0
        %4394 = vmatprep.subr.bf16.mxu0 0
        %4395 = vmatpush1.bf16.msra.mxu0 0
        %4396 = vmatprep.mubr.bf16.mxu0 0
        %4397 = vmatmul.mubr.bf16.gmra.mrb[0].mxu0 %v4362
        %v4398 = vpop.f32.mrb[0].mxu0
        %v4399 = vadd.f32 0.0, %v4398
        %v4400 = vpop.f32.mrb[0].mxu0
        %v4401 = vpop.f32.mrb[0].mxu0
        %v4402 = vpop.f32.mrb[0].mxu0
        %4403 = vdwg.mxu0
        %v4404 = vadd.f32 %v4349, %v4399
        %v4405 = vld [vmem:[#allocation2 + $0xaf] sm:$0x7f]
        %v4406 = vpack.c.bf16 %v4405, %v4405
        %s4407 = scalar_lea.vmem %s8, 200
        %v4408 = vld [vmem:[%s4407] sm:$0xf]
        %v4409 = vld [vmem:[%s4407 + $0x4] sm:$0xf]
        %v4412 = vunpack.c.l.b16 %v4408
        %v4413 = vunpack.c.l.b16 %v4409
        %v4414 = vpack.c.b16 %v4413, %v4412
        %v4417 = vsel %vm2895, %v4406, 0
        %4419 = vmatprep.subr.bf16.mxu0 0
        %4420 = vmatpush1.bf16.msra.mxu0 %v4414
        %4421 = vmatprep.subr.bf16.mxu0 0
        %4422 = vmatpush1.bf16.msra.mxu0 0
        %4423 = vmatprep.subr.bf16.mxu0 0
        %4424 = vmatpush1.bf16.msra.mxu0 0
        %4425 = vmatprep.subr.bf16.mxu0 0
        %4426 = vmatpush1.bf16.msra.mxu0 0
        %4427 = vmatprep.subr.bf16.mxu0 0
        %4428 = vmatpush1.bf16.msra.mxu0 0
        %4429 = vmatprep.subr.bf16.mxu0 0
        %4430 = vmatpush1.bf16.msra.mxu0 0
        %4431 = vmatprep.subr.bf16.mxu0 0
        %4432 = vmatpush1.bf16.msra.mxu0 0
        %4433 = vmatprep.subr.bf16.mxu0 0
        %4434 = vmatpush1.bf16.msra.mxu0 0
        %4435 = vmatprep.subr.bf16.mxu0 0
        %4436 = vmatpush1.bf16.msra.mxu0 0
        %4437 = vmatprep.subr.bf16.mxu0 0
        %4438 = vmatpush1.bf16.msra.mxu0 0
        %4439 = vmatprep.subr.bf16.mxu0 0
        %4440 = vmatpush1.bf16.msra.mxu0 0
        %4441 = vmatprep.subr.bf16.mxu0 0
        %4442 = vmatpush1.bf16.msra.mxu0 0
        %4443 = vmatprep.subr.bf16.mxu0 0
        %4444 = vmatpush1.bf16.msra.mxu0 0
        %4445 = vmatprep.subr.bf16.mxu0 0
        %4446 = vmatpush1.bf16.msra.mxu0 0
        %4447 = vmatprep.subr.bf16.mxu0 0
        %4448 = vmatpush1.bf16.msra.mxu0 0
        %4449 = vmatprep.subr.bf16.mxu0 0
        %4450 = vmatpush1.bf16.msra.mxu0 0
        %4451 = vmatprep.mubr.bf16.mxu0 0
        %4452 = vmatmul.mubr.bf16.gmra.mrb[0].mxu0 %v4417
        %v4453 = vpop.f32.mrb[0].mxu0
        %v4454 = vadd.f32 0.0, %v4453
        %v4455 = vpop.f32.mrb[0].mxu0
        %v4456 = vpop.f32.mrb[0].mxu0
        %v4457 = vpop.f32.mrb[0].mxu0
        %4458 = vdwg.mxu0
        %v4459 = vadd.f32 %v4404, %v4454
        %v4460 = vld [vmem:[#allocation2 + $0xb6] sm:$0x7f]
        %v4461 = vpack.c.bf16 %v4460, %v4460
        %s4462 = scalar_lea.vmem %s8, 208
        %v4463 = vld [vmem:[%s4462] sm:$0xf]
        %v4464 = vld [vmem:[%s4462 + $0x4] sm:$0xf]
        %v4467 = vunpack.c.l.b16 %v4463
        %v4468 = vunpack.c.l.b16 %v4464
        %v4469 = vpack.c.b16 %v4468, %v4467
        %v4472 = vsel %vm2895, %v4461, 0
        %4474 = vmatprep.subr.bf16.mxu0 0
        %4475 = vmatpush1.bf16.msra.mxu0 %v4469
        %4476 = vmatprep.subr.bf16.mxu0 0
        %4477 = vmatpush1.bf16.msra.mxu0 0
        %4478 = vmatprep.subr.bf16.mxu0 0
        %4479 = vmatpush1.bf16.msra.mxu0 0
        %4480 = vmatprep.subr.bf16.mxu0 0
        %4481 = vmatpush1.bf16.msra.mxu0 0
        %4482 = vmatprep.subr.bf16.mxu0 0
        %4483 = vmatpush1.bf16.msra.mxu0 0
        %4484 = vmatprep.subr.bf16.mxu0 0
        %4485 = vmatpush1.bf16.msra.mxu0 0
        %4486 = vmatprep.subr.bf16.mxu0 0
        %4487 = vmatpush1.bf16.msra.mxu0 0
        %4488 = vmatprep.subr.bf16.mxu0 0
        %4489 = vmatpush1.bf16.msra.mxu0 0
        %4490 = vmatprep.subr.bf16.mxu0 0
        %4491 = vmatpush1.bf16.msra.mxu0 0
        %4492 = vmatprep.subr.bf16.mxu0 0
        %4493 = vmatpush1.bf16.msra.mxu0 0
        %4494 = vmatprep.subr.bf16.mxu0 0
        %4495 = vmatpush1.bf16.msra.mxu0 0
        %4496 = vmatprep.subr.bf16.mxu0 0
        %4497 = vmatpush1.bf16.msra.mxu0 0
        %4498 = vmatprep.subr.bf16.mxu0 0
        %4499 = vmatpush1.bf16.msra.mxu0 0
        %4500 = vmatprep.subr.bf16.mxu0 0
        %4501 = vmatpush1.bf16.msra.mxu0 0
        %4502 = vmatprep.subr.bf16.mxu0 0
        %4503 = vmatpush1.bf16.msra.mxu0 0
        %4504 = vmatprep.subr.bf16.mxu0 0
        %4505 = vmatpush1.bf16.msra.mxu0 0
        %4506 = vmatprep.mubr.bf16.mxu0 0
        %4507 = vmatmul.mubr.bf16.gmra.mrb[0].mxu0 %v4472
        %v4508 = vpop.f32.mrb[0].mxu0
        %v4509 = vadd.f32 0.0, %v4508
        %v4510 = vpop.f32.mrb[0].mxu0
        %v4511 = vpop.f32.mrb[0].mxu0
        %v4512 = vpop.f32.mrb[0].mxu0
        %4513 = vdwg.mxu0
        %v4514 = vadd.f32 %v4459, %v4509
        %v4515 = vld [vmem:[#allocation2 + $0xbd] sm:$0x7f]
        %v4516 = vpack.c.bf16 %v4515, %v4515
        %s4517 = scalar_lea.vmem %s8, 216
        %v4518 = vld [vmem:[%s4517] sm:$0xf]
        %v4519 = vld [vmem:[%s4517 + $0x4] sm:$0xf]
        %v4522 = vunpack.c.l.b16 %v4518
        %v4523 = vunpack.c.l.b16 %v4519
        %v4524 = vpack.c.b16 %v4523, %v4522
        %v4527 = vsel %vm2895, %v4516, 0
        %4529 = vmatprep.subr.bf16.mxu0 0
        %4530 = vmatpush1.bf16.msra.mxu0 %v4524
        %4531 = vmatprep.subr.bf16.mxu0 0
        %4532 = vmatpush1.bf16.msra.mxu0 0
        %4533 = vmatprep.subr.bf16.mxu0 0
        %4534 = vmatpush1.bf16.msra.mxu0 0
        %4535 = vmatprep.subr.bf16.mxu0 0
        %4536 = vmatpush1.bf16.msra.mxu0 0
        %4537 = vmatprep.subr.bf16.mxu0 0
        %4538 = vmatpush1.bf16.msra.mxu0 0
        %4539 = vmatprep.subr.bf16.mxu0 0
        %4540 = vmatpush1.bf16.msra.mxu0 0
        %4541 = vmatprep.subr.bf16.mxu0 0
        %4542 = vmatpush1.bf16.msra.mxu0 0
        %4543 = vmatprep.subr.bf16.mxu0 0
        %4544 = vmatpush1.bf16.msra.mxu0 0
        %4545 = vmatprep.subr.bf16.mxu0 0
        %4546 = vmatpush1.bf16.msra.mxu0 0
        %4547 = vmatprep.subr.bf16.mxu0 0
        %4548 = vmatpush1.bf16.msra.mxu0 0
        %4549 = vmatprep.subr.bf16.mxu0 0
        %4550 = vmatpush1.bf16.msra.mxu0 0
        %4551 = vmatprep.subr.bf16.mxu0 0
        %4552 = vmatpush1.bf16.msra.mxu0 0
        %4553 = vmatprep.subr.bf16.mxu0 0
        %4554 = vmatpush1.bf16.msra.mxu0 0
        %4555 = vmatprep.subr.bf16.mxu0 0
        %4556 = vmatpush1.bf16.msra.mxu0 0
        %4557 = vmatprep.subr.bf16.mxu0 0
        %4558 = vmatpush1.bf16.msra.mxu0 0
        %4559 = vmatprep.subr.bf16.mxu0 0
        %4560 = vmatpush1.bf16.msra.mxu0 0
        %4561 = vmatprep.mubr.bf16.mxu0 0
        %4562 = vmatmul.mubr.bf16.gmra.mrb[0].mxu0 %v4527
        %v4563 = vpop.f32.mrb[0].mxu0
        %v4564 = vadd.f32 0.0, %v4563
        %v4565 = vpop.f32.mrb[0].mxu0
        %v4566 = vpop.f32.mrb[0].mxu0
        %v4567 = vpop.f32.mrb[0].mxu0
        %4568 = vdwg.mxu0
        %v4569 = vadd.f32 %v4514, %v4564
        %4570 = vst.msk [vmem:[#allocation3] sm:$0x7f] %vm1129, %v4569
        %v4571 = vld [vmem:[#allocation3] sm:$0x7f]
        %4572 = vst.msk [vmem:[#allocation4 + $0x93] sm:$0x7f] %vm1132, %v4571
        %v4573 = vld [vmem:[#allocation3] sm:$0x7f]
        %4575 = vrot.lane.b32.xlu0 %v4573, 112
        %v4576 = vpop.permute.xlu0 %4575
        %4578 = vst.msk [vmem:[#allocation4 + $0x9a] sm:$0x7f] %vm1132, %v4576
        %v4579 = vld [vmem:[#allocation3] sm:$0x7f]
        %4581 = vrot.lane.b32.xlu0 %v4579, 96
        %v4582 = vpop.permute.xlu0 %4581
        %4584 = vst.msk [vmem:[#allocation4 + $0xa1] sm:$0x7f] %vm1132, %v4582
        %v4585 = vld [vmem:[#allocation3] sm:$0x7f]
        %4587 = vrot.lane.b32.xlu0 %v4585, 80
        %v4588 = vpop.permute.xlu0 %4587
        %4590 = vst.msk [vmem:[#allocation4 + $0xa8] sm:$0x7f] %vm1132, %v4588
        %v4591 = vld [vmem:[#allocation3] sm:$0x7f]
        %4593 = vrot.lane.b32.xlu0 %v4591, 64
        %v4594 = vpop.permute.xlu0 %4593
        %4596 = vst.msk [vmem:[#allocation4 + $0xaf] sm:$0x7f] %vm1132, %v4594
        %v4597 = vld [vmem:[#allocation3] sm:$0x7f]
        %4599 = vrot.lane.b32.xlu0 %v4597, 48
        %v4600 = vpop.permute.xlu0 %4599
        %4602 = vst.msk [vmem:[#allocation4 + $0xb6] sm:$0x7f] %vm1132, %v4600
        %v4603 = vld [vmem:[#allocation3] sm:$0x7f]
        %4605 = vrot.lane.b32.xlu0 %v4603, 32
        %v4606 = vpop.permute.xlu0 %4605
        %4608 = vst.msk [vmem:[#allocation4 + $0xbd] sm:$0x7f] %vm1132, %v4606
        %v4609 = vld [vmem:[#allocation4] sm:$0xff]
        %v4610 = vld [vmem:[#allocation4 + $0x8] sm:$0xff]
        %v4611 = vld [vmem:[#allocation4 + $0x10] sm:$0xff]
        %v4612 = vld [vmem:[#allocation4 + $0x18] sm:$0xff]
        %v4613 = vld [vmem:[#allocation4 + $0x20] sm:$0xff]
        %v4614 = vld [vmem:[#allocation4 + $0x28] sm:$0xff]
        %v4615 = vld [vmem:[#allocation4 + $0x30] sm:$0xff]
        %v4616 = vld [vmem:[#allocation4 + $0x38] sm:$0xff]
        %v4617 = vld [vmem:[#allocation4 + $0x40] sm:$0xff]
        %v4618 = vld [vmem:[#allocation4 + $0x48] sm:$0xff]
        %v4619 = vld [vmem:[#allocation4 + $0x50] sm:$0xff]
        %v4620 = vld [vmem:[#allocation4 + $0x58] sm:$0xff]
        %v4621 = vld [vmem:[#allocation4 + $0x60] sm:$0xff]
        %v4622 = vld [vmem:[#allocation4 + $0x68] sm:$0xff]
        %v4623 = vld [vmem:[#allocation4 + $0x70] sm:$0xff]
        %v4624 = vld [vmem:[#allocation4 + $0x78] sm:$0xff]
        %v4625 = vld [vmem:[#allocation4 + $0x80] sm:$0xff]
        %v4626 = vld [vmem:[#allocation4 + $0x88] sm:$0xff]
        %v4627 = vld [vmem:[#allocation4 + $0x90] sm:$0xff]
        %v4628 = vld [vmem:[#allocation4 + $0x98] sm:$0xff]
        %v4629 = vld [vmem:[#allocation4 + $0xa0] sm:$0xff]
        %v4630 = vld [vmem:[#allocation4 + $0xa8] sm:$0xff]
        %v4631 = vld [vmem:[#allocation4 + $0xb0] sm:$0xff]
        %v4632 = vld [vmem:[#allocation4 + $0xb8] sm:$0xff]
        %v4633 = vld [vmem:[#allocation4 + $0xc0] sm:$0xf]
        %v4634 = vpack.c.bf16 %v4610, %v4609
        %v4635 = vpack.c.bf16 %v4612, %v4611
        %v4636 = vpack.c.bf16 %v4614, %v4613
        %v4637 = vpack.c.bf16 %v4616, %v4615
        %v4638 = vpack.c.bf16 %v4618, %v4617
        %v4639 = vpack.c.bf16 %v4620, %v4619
        %v4640 = vpack.c.bf16 %v4622, %v4621
        %v4641 = vpack.c.bf16 %v4624, %v4623
        %v4642 = vpack.c.bf16 %v4626, %v4625
        %v4643 = vpack.c.bf16 %v4628, %v4627
        %v4644 = vpack.c.bf16 %v4630, %v4629
        %v4645 = vpack.c.bf16 %v4632, %v4631
        %v4646 = vpack.c.bf16 %v4633, %v4633
        %v4647 = vld [vmem:[%s9] sm:$0xff]
        %v4648 = vld [vmem:[%s9 + $0x8] sm:$0xff]
        %v4649 = vld [vmem:[%s9 + $0x10] sm:$0xff]
        %v4650 = vld [vmem:[%s9 + $0x18] sm:$0xff]
        %v4651 = vld [vmem:[%s9 + $0x20] sm:$0xff]
        %v4652 = vld [vmem:[%s9 + $0x28] sm:$0xff]
        %v4653 = vld [vmem:[%s9 + $0x30] sm:$0xff]
        %v4654 = vld [vmem:[%s9 + $0x38] sm:$0xff]
        %v4655 = vld [vmem:[%s9 + $0x40] sm:$0xff]
        %v4656 = vld [vmem:[%s9 + $0x48] sm:$0xff]
        %v4657 = vld [vmem:[%s9 + $0x50] sm:$0xff]
        %v4658 = vld [vmem:[%s9 + $0x58] sm:$0xff]
        %v4659 = vld [vmem:[%s9 + $0x60] sm:$0xff]
        %v4660 = vld [vmem:[%s9 + $0x68] sm:$0xff]
        %v4661 = vld [vmem:[%s9 + $0x70] sm:$0xff]
        %v4662 = vld [vmem:[%s9 + $0x78] sm:$0xff]
        %v4663 = vld [vmem:[%s9 + $0x80] sm:$0xff]
        %v4664 = vld [vmem:[%s9 + $0x88] sm:$0xff]
        %v4665 = vld [vmem:[%s9 + $0x90] sm:$0xff]
        %v4666 = vld [vmem:[%s9 + $0x98] sm:$0xff]
        %v4667 = vld [vmem:[%s9 + $0xa0] sm:$0xff]
        %v4668 = vld [vmem:[%s9 + $0xa8] sm:$0xff]
        %v4669 = vld [vmem:[%s9 + $0xb0] sm:$0xff]
        %v4670 = vld [vmem:[%s9 + $0xb8] sm:$0xff]
        %v4671 = vld [vmem:[%s9 + $0xc0] sm:$0xff]
        %v4672 = vld [vmem:[%s9 + $0xc8] sm:$0xff]
        %v4673 = vld [vmem:[%s9 + $0xd0] sm:$0xff]
        %v4674 = vld [vmem:[%s9 + $0xd8] sm:$0xff]
        %v4675 = vld [vmem:[%s9 + $0xe0] sm:$0xff]
        %v4676 = vld [vmem:[%s9 + $0xe8] sm:$0xff]
        %v4677 = vld [vmem:[%s9 + $0xf0] sm:$0xff]
        %v4678 = vld [vmem:[%s9 + $0xf8] sm:$0xff]
        %v4679 = vld [vmem:[%s9 + $0x100] sm:$0xff]
        %v4680 = vld [vmem:[%s9 + $0x108] sm:$0xff]
        %v4681 = vld [vmem:[%s9 + $0x110] sm:$0xff]
        %v4682 = vld [vmem:[%s9 + $0x118] sm:$0xff]
        %v4683 = vld [vmem:[%s9 + $0x120] sm:$0xff]
        %v4684 = vld [vmem:[%s9 + $0x128] sm:$0xff]
        %v4685 = vld [vmem:[%s9 + $0x130] sm:$0xff]
        %v4686 = vld [vmem:[%s9 + $0x138] sm:$0xff]
        %v4687 = vld [vmem:[%s9 + $0x140] sm:$0xff]
        %v4688 = vld [vmem:[%s9 + $0x148] sm:$0xff]
        %v4689 = vld [vmem:[%s9 + $0x150] sm:$0xff]
        %v4690 = vld [vmem:[%s9 + $0x158] sm:$0xff]
        %v4691 = vld [vmem:[%s9 + $0x160] sm:$0xff]
        %v4692 = vld [vmem:[%s9 + $0x168] sm:$0xff]
        %v4693 = vld [vmem:[%s9 + $0x170] sm:$0xff]
        %v4694 = vld [vmem:[%s9 + $0x178] sm:$0xff]
        %v4695 = vld [vmem:[%s9 + $0x180] sm:$0xff]
        %v4696 = vld [vmem:[%s9 + $0x188] sm:$0xff]
        %v4697 = vld [vmem:[%s9 + $0x190] sm:$0xff]
        %v4698 = vld [vmem:[%s9 + $0x198] sm:$0xff]
        %v4699 = vld [vmem:[%s9 + $0x1a0] sm:$0xff]
        %v4700 = vld [vmem:[%s9 + $0x1a8] sm:$0xff]
        %v4701 = vld [vmem:[%s9 + $0x1b0] sm:$0xff]
        %v4702 = vld [vmem:[%s9 + $0x1b8] sm:$0xff]
        %v4703 = vld [vmem:[%s9 + $0x1c0] sm:$0xff]
        %v4704 = vld [vmem:[%s9 + $0x1c8] sm:$0xff]
        %v4705 = vld [vmem:[%s9 + $0x1d0] sm:$0xff]
        %v4706 = vld [vmem:[%s9 + $0x1d8] sm:$0xff]
        %v4707 = vld [vmem:[%s9 + $0x1e0] sm:$0xff]
        %v4708 = vld [vmem:[%s9 + $0x1e8] sm:$0xff]
        %v4709 = vld [vmem:[%s9 + $0x1f0] sm:$0xff]
        %v4710 = vld [vmem:[%s9 + $0x1f8] sm:$0xff]
        %v4711 = vld [vmem:[%s10] sm:$0x1]
        %v4713 = vlaneseq
        %v4714 = vshrl.u32 %v4713, 7
        %v4715 = vsub.s32 0, %v4714
        %v4716 = vrot.slane %v4711, %v4715
        %v4782 = vunpack.c.l.b16 %v4647
        %v4783 = vunpack.c.h.b16 %v4647
        %v4784 = vunpack.c.l.b16 %v4648
        %v4785 = vunpack.c.h.b16 %v4648
        %v4786 = vunpack.c.l.b16 %v4649
        %v4787 = vunpack.c.h.b16 %v4649
        %v4788 = vunpack.c.l.b16 %v4650
        %v4789 = vunpack.c.h.b16 %v4650
        %v4790 = vunpack.c.l.b16 %v4651
        %v4791 = vunpack.c.h.b16 %v4651
        %v4792 = vunpack.c.l.b16 %v4652
        %v4793 = vunpack.c.h.b16 %v4652
        %v4794 = vunpack.c.l.b16 %v4653
        %v4795 = vunpack.c.h.b16 %v4653
        %v4796 = vunpack.c.l.b16 %v4654
        %v4797 = vunpack.c.h.b16 %v4654
        %v4798 = vunpack.c.l.b16 %v4655
        %v4799 = vunpack.c.h.b16 %v4655
        %v4800 = vunpack.c.l.b16 %v4656
        %v4801 = vunpack.c.h.b16 %v4656
        %v4802 = vunpack.c.l.b16 %v4657
        %v4803 = vunpack.c.h.b16 %v4657
        %v4804 = vunpack.c.l.b16 %v4658
        %v4805 = vunpack.c.h.b16 %v4658
        %v4806 = vunpack.c.l.b16 %v4659
        %v4807 = vunpack.c.h.b16 %v4659
        %v4808 = vunpack.c.l.b16 %v4660
        %v4809 = vunpack.c.h.b16 %v4660
        %v4810 = vunpack.c.l.b16 %v4661
        %v4811 = vunpack.c.h.b16 %v4661
        %v4812 = vunpack.c.l.b16 %v4662
        %v4813 = vunpack.c.h.b16 %v4662
        %v4814 = vunpack.c.l.b16 %v4663
        %v4815 = vunpack.c.h.b16 %v4663
        %v4816 = vunpack.c.l.b16 %v4664
        %v4817 = vunpack.c.h.b16 %v4664
        %v4818 = vunpack.c.l.b16 %v4665
        %v4819 = vunpack.c.h.b16 %v4665
        %v4820 = vunpack.c.l.b16 %v4666
        %v4821 = vunpack.c.h.b16 %v4666
        %v4822 = vunpack.c.l.b16 %v4667
        %v4823 = vunpack.c.h.b16 %v4667
        %v4824 = vunpack.c.l.b16 %v4668
        %v4825 = vunpack.c.h.b16 %v4668
        %v4826 = vunpack.c.l.b16 %v4669
        %v4827 = vunpack.c.h.b16 %v4669
        %v4828 = vunpack.c.l.b16 %v4670
        %v4829 = vunpack.c.h.b16 %v4670
        %v4830 = vunpack.c.l.b16 %v4671
        %v4831 = vunpack.c.h.b16 %v4671
        %v4832 = vunpack.c.l.b16 %v4672
        %v4833 = vunpack.c.h.b16 %v4672
        %v4834 = vunpack.c.l.b16 %v4673
        %v4835 = vunpack.c.h.b16 %v4673
        %v4836 = vunpack.c.l.b16 %v4674
        %v4837 = vunpack.c.h.b16 %v4674
        %v4838 = vunpack.c.l.b16 %v4675
        %v4839 = vunpack.c.h.b16 %v4675
        %v4840 = vunpack.c.l.b16 %v4676
        %v4841 = vunpack.c.h.b16 %v4676
        %v4842 = vunpack.c.l.b16 %v4677
        %v4843 = vunpack.c.h.b16 %v4677
        %v4844 = vunpack.c.l.b16 %v4678
        %v4845 = vunpack.c.h.b16 %v4678
        %v4846 = vunpack.c.l.b16 %v4679
        %v4847 = vunpack.c.h.b16 %v4679
        %v4848 = vunpack.c.l.b16 %v4680
        %v4849 = vunpack.c.h.b16 %v4680
        %v4850 = vunpack.c.l.b16 %v4681
        %v4851 = vunpack.c.h.b16 %v4681
        %v4852 = vunpack.c.l.b16 %v4682
        %v4853 = vunpack.c.h.b16 %v4682
        %v4854 = vunpack.c.l.b16 %v4683
        %v4855 = vunpack.c.h.b16 %v4683
        %v4856 = vunpack.c.l.b16 %v4684
        %v4857 = vunpack.c.h.b16 %v4684
        %v4858 = vunpack.c.l.b16 %v4685
        %v4859 = vunpack.c.h.b16 %v4685
        %v4860 = vunpack.c.l.b16 %v4686
        %v4861 = vunpack.c.h.b16 %v4686
        %v4862 = vunpack.c.l.b16 %v4687
        %v4863 = vunpack.c.h.b16 %v4687
        %v4864 = vunpack.c.l.b16 %v4688
        %v4865 = vunpack.c.h.b16 %v4688
        %v4866 = vunpack.c.l.b16 %v4689
        %v4867 = vunpack.c.h.b16 %v4689
        %v4868 = vunpack.c.l.b16 %v4690
        %v4869 = vunpack.c.h.b16 %v4690
        %v4870 = vunpack.c.l.b16 %v4691
        %v4871 = vunpack.c.h.b16 %v4691
        %v4872 = vunpack.c.l.b16 %v4692
        %v4873 = vunpack.c.h.b16 %v4692
        %v4874 = vunpack.c.l.b16 %v4693
        %v4875 = vunpack.c.h.b16 %v4693
        %v4876 = vunpack.c.l.b16 %v4694
        %v4877 = vunpack.c.h.b16 %v4694
        %v4878 = vunpack.c.l.b16 %v4695
        %v4879 = vunpack.c.h.b16 %v4695
        %v4880 = vunpack.c.l.b16 %v4696
        %v4881 = vunpack.c.h.b16 %v4696
        %v4882 = vunpack.c.l.b16 %v4697
        %v4883 = vunpack.c.h.b16 %v4697
        %v4884 = vunpack.c.l.b16 %v4698
        %v4885 = vunpack.c.h.b16 %v4698
        %v4886 = vunpack.c.l.b16 %v4699
        %v4887 = vunpack.c.h.b16 %v4699
        %v4888 = vunpack.c.l.b16 %v4700
        %v4889 = vunpack.c.h.b16 %v4700
        %v4890 = vunpack.c.l.b16 %v4701
        %v4891 = vunpack.c.h.b16 %v4701
        %v4892 = vunpack.c.l.b16 %v4702
        %v4893 = vunpack.c.h.b16 %v4702
        %v4894 = vunpack.c.l.b16 %v4703
        %v4895 = vunpack.c.h.b16 %v4703
        %v4896 = vunpack.c.l.b16 %v4704
        %v4897 = vunpack.c.h.b16 %v4704
        %v4898 = vunpack.c.l.b16 %v4705
        %v4899 = vunpack.c.h.b16 %v4705
        %v4900 = vunpack.c.l.b16 %v4706
        %v4901 = vunpack.c.h.b16 %v4706
        %v4902 = vunpack.c.l.b16 %v4707
        %v4903 = vunpack.c.h.b16 %v4707
        %v4904 = vunpack.c.l.b16 %v4708
        %v4905 = vunpack.c.h.b16 %v4708
        %v4906 = vunpack.c.l.b16 %v4709
        %v4907 = vunpack.c.h.b16 %v4709
        %v4908 = vunpack.c.l.b16 %v4710
        %v4909 = vunpack.c.h.b16 %v4710
        %v4910 = vpack.c.b16 %v4784, %v4782
        %v4911 = vpack.c.b16 %v4785, %v4783
        %v4912 = vpack.c.b16 %v4788, %v4786
        %v4913 = vpack.c.b16 %v4789, %v4787
        %v4914 = vpack.c.b16 %v4792, %v4790
        %v4915 = vpack.c.b16 %v4793, %v4791
        %v4916 = vpack.c.b16 %v4796, %v4794
        %v4917 = vpack.c.b16 %v4797, %v4795
        %v4918 = vpack.c.b16 %v4800, %v4798
        %v4919 = vpack.c.b16 %v4801, %v4799
        %v4920 = vpack.c.b16 %v4804, %v4802
        %v4921 = vpack.c.b16 %v4805, %v4803
        %v4922 = vpack.c.b16 %v4808, %v4806
        %v4923 = vpack.c.b16 %v4809, %v4807
        %v4924 = vpack.c.b16 %v4812, %v4810
        %v4925 = vpack.c.b16 %v4813, %v4811
        %v4926 = vpack.c.b16 %v4816, %v4814
        %v4927 = vpack.c.b16 %v4817, %v4815
        %v4928 = vpack.c.b16 %v4820, %v4818
        %v4929 = vpack.c.b16 %v4821, %v4819
        %v4930 = vpack.c.b16 %v4824, %v4822
        %v4931 = vpack.c.b16 %v4825, %v4823
        %v4932 = vpack.c.b16 %v4828, %v4826
        %v4933 = vpack.c.b16 %v4829, %v4827
        %v4934 = vpack.c.b16 %v4832, %v4830
        %v4935 = vpack.c.b16 %v4833, %v4831
        %v4936 = vpack.c.b16 %v4836, %v4834
        %v4937 = vpack.c.b16 %v4837, %v4835
        %v4938 = vpack.c.b16 %v4840, %v4838
        %v4939 = vpack.c.b16 %v4841, %v4839
        %v4940 = vpack.c.b16 %v4844, %v4842
        %v4941 = vpack.c.b16 %v4845, %v4843
        %v4942 = vpack.c.b16 %v4848, %v4846
        %v4943 = vpack.c.b16 %v4849, %v4847
        %v4944 = vpack.c.b16 %v4852, %v4850
        %v4945 = vpack.c.b16 %v4853, %v4851
        %v4946 = vpack.c.b16 %v4856, %v4854
        %v4947 = vpack.c.b16 %v4857, %v4855
        %v4948 = vpack.c.b16 %v4860, %v4858
        %v4949 = vpack.c.b16 %v4861, %v4859
        %v4950 = vpack.c.b16 %v4864, %v4862
        %v4951 = vpack.c.b16 %v4865, %v4863
        %v4952 = vpack.c.b16 %v4868, %v4866
        %v4953 = vpack.c.b16 %v4869, %v4867
        %v4954 = vpack.c.b16 %v4872, %v4870
        %v4955 = vpack.c.b16 %v4873, %v4871
        %v4956 = vpack.c.b16 %v4876, %v4874
        %v4957 = vpack.c.b16 %v4877, %v4875
        %v4958 = vpack.c.b16 %v4880, %v4878
        %v4959 = vpack.c.b16 %v4881, %v4879
        %v4960 = vpack.c.b16 %v4884, %v4882
        %v4961 = vpack.c.b16 %v4885, %v4883
        %v4962 = vpack.c.b16 %v4888, %v4886
        %v4963 = vpack.c.b16 %v4889, %v4887
        %v4964 = vpack.c.b16 %v4892, %v4890
        %v4965 = vpack.c.b16 %v4893, %v4891
        %v4966 = vpack.c.b16 %v4896, %v4894
        %v4967 = vpack.c.b16 %v4897, %v4895
        %v4968 = vpack.c.b16 %v4900, %v4898
        %v4969 = vpack.c.b16 %v4901, %v4899
        %v4970 = vpack.c.b16 %v4904, %v4902
        %v4971 = vpack.c.b16 %v4905, %v4903
        %v4972 = vpack.c.b16 %v4908, %v4906
        %v4973 = vpack.c.b16 %v4909, %v4907
        %v5007 = vsel %vm1834, %v4911, 0
        %v5010 = vsel %vm1834, %v4913, 0
        %v5013 = vsel %vm1834, %v4915, 0
        %v5016 = vsel %vm1834, %v4917, 0
        %v5019 = vsel %vm1834, %v4919, 0
        %v5022 = vsel %vm1834, %v4921, 0
        %v5025 = vsel %vm1834, %v4923, 0
        %v5028 = vsel %vm1834, %v4925, 0
        %v5031 = vsel %vm1834, %v4927, 0
        %v5034 = vsel %vm1834, %v4929, 0
        %v5037 = vsel %vm1834, %v4931, 0
        %v5040 = vsel %vm1834, %v4933, 0
        %v5043 = vsel %vm1834, %v4935, 0
        %v5046 = vsel %vm1834, %v4937, 0
        %v5049 = vsel %vm1834, %v4939, 0
        %v5052 = vsel %vm1834, %v4941, 0
        %v5055 = vsel %vm1834, %v4943, 0
        %v5058 = vsel %vm1834, %v4945, 0
        %v5061 = vsel %vm1834, %v4947, 0
        %v5064 = vsel %vm1834, %v4949, 0
        %v5067 = vsel %vm1834, %v4951, 0
        %v5070 = vsel %vm1834, %v4953, 0
        %v5073 = vsel %vm1834, %v4955, 0
        %v5076 = vsel %vm1834, %v4957, 0
        %v5079 = vsel %vm1834, %v4959, 0
        %v5082 = vsel %vm1834, %v4961, 0
        %v5085 = vsel %vm1834, %v4963, 0
        %v5088 = vsel %vm1834, %v4965, 0
        %v5091 = vsel %vm1834, %v4967, 0
        %v5094 = vsel %vm1834, %v4969, 0
        %v5097 = vsel %vm1834, %v4971, 0
        %v5100 = vsel %vm1834, %v4973, 0
        %v5103 = vsel %vm787, %v4646, 0
        %5105 = vmatprep.subr.bf16.mxu0 0
        %5106 = vmatpush1.bf16.msra.mxu0 %v4634
        %5107 = vmatprep.subr.bf16.mxu0 0
        %5108 = vmatpush1.bf16.msra.mxu0 %v4635
        %5109 = vmatprep.subr.bf16.mxu0 0
        %5110 = vmatpush1.bf16.msra.mxu0 %v4636
        %5111 = vmatprep.subr.bf16.mxu0 0
        %5112 = vmatpush1.bf16.msra.mxu0 %v4637
        %5113 = vmatprep.subr.bf16.mxu0 0
        %5114 = vmatpush1.bf16.msra.mxu0 %v4638
        %5115 = vmatprep.subr.bf16.mxu0 0
        %5116 = vmatpush1.bf16.msra.mxu0 %v4639
        %5117 = vmatprep.subr.bf16.mxu0 0
        %5118 = vmatpush1.bf16.msra.mxu0 %v4640
        %5119 = vmatprep.subr.bf16.mxu0 0
        %5120 = vmatpush1.bf16.msra.mxu0 %v4641
        %5121 = vmatprep.subr.bf16.mxu0 0
        %5122 = vmatpush1.bf16.msra.mxu0 %v4642
        %5123 = vmatprep.subr.bf16.mxu0 0
        %5124 = vmatpush1.bf16.msra.mxu0 %v4643
        %5125 = vmatprep.subr.bf16.mxu0 0
        %5126 = vmatpush1.bf16.msra.mxu0 %v4644
        %5127 = vmatprep.subr.bf16.mxu0 0
        %5128 = vmatpush1.bf16.msra.mxu0 %v4645
        %5129 = vmatprep.subr.bf16.mxu0 0
        %5130 = vmatpush1.bf16.msra.mxu0 %v5103
        %5131 = vmatprep.subr.bf16.mxu0 0
        %5132 = vmatpush1.bf16.msra.mxu0 0
        %5133 = vmatprep.subr.bf16.mxu0 0
        %5134 = vmatpush1.bf16.msra.mxu0 0
        %5135 = vmatprep.subr.bf16.mxu0 0
        %5136 = vmatpush1.bf16.msra.mxu0 0
        %5137 = vmatprep.mubr.bf16.mxu0 %v5007
        %5138 = vmatmul.mubr.bf16.gmra.mrb[0].mxu0 %v4910
        %v5139 = vpop.f32.mrb[0].mxu0
        %v5140 = vadd.f32 %v4716, %v5139
        %v5141 = vpop.f32.mrb[0].mxu0
        %v5142 = vpop.f32.mrb[0].mxu0
        %v5143 = vadd.f32 %v4716, %v5142
        %v5144 = vpop.f32.mrb[0].mxu0
        %5145 = vmatprep.mubr.bf16.mxu0 %v5010
        %5146 = vmatmul.mubr.bf16.gmra.mrb[0].mxu0 %v4912
        %v5147 = vpop.f32.mrb[0].mxu0
        %v5148 = vadd.f32 %v4716, %v5147
        %v5149 = vpop.f32.mrb[0].mxu0
        %v5150 = vpop.f32.mrb[0].mxu0
        %v5151 = vadd.f32 %v4716, %v5150
        %v5152 = vpop.f32.mrb[0].mxu0
        %5153 = vmatprep.mubr.bf16.mxu0 %v5013
        %5154 = vmatmul.mubr.bf16.gmra.mrb[0].mxu0 %v4914
        %v5155 = vpop.f32.mrb[0].mxu0
        %v5156 = vadd.f32 %v4716, %v5155
        %v5157 = vpop.f32.mrb[0].mxu0
        %v5158 = vpop.f32.mrb[0].mxu0
        %v5159 = vadd.f32 %v4716, %v5158
        %v5160 = vpop.f32.mrb[0].mxu0
        %5161 = vmatprep.mubr.bf16.mxu0 %v5016
        %5162 = vmatmul.mubr.bf16.gmra.mrb[0].mxu0 %v4916
        %v5163 = vpop.f32.mrb[0].mxu0
        %v5164 = vadd.f32 %v4716, %v5163
        %v5165 = vpop.f32.mrb[0].mxu0
        %v5166 = vpop.f32.mrb[0].mxu0
        %v5167 = vadd.f32 %v4716, %v5166
        %v5168 = vpop.f32.mrb[0].mxu0
        %5169 = vmatprep.mubr.bf16.mxu0 %v5019
        %5170 = vmatmul.mubr.bf16.gmra.mrb[0].mxu0 %v4918
        %v5171 = vpop.f32.mrb[0].mxu0
        %v5172 = vadd.f32 %v4716, %v5171
        %v5173 = vpop.f32.mrb[0].mxu0
        %v5174 = vpop.f32.mrb[0].mxu0
        %v5175 = vadd.f32 %v4716, %v5174
        %v5176 = vpop.f32.mrb[0].mxu0
        %5177 = vmatprep.mubr.bf16.mxu0 %v5022
        %5178 = vmatmul.mubr.bf16.gmra.mrb[0].mxu0 %v4920
        %v5179 = vpop.f32.mrb[0].mxu0
        %v5180 = vadd.f32 %v4716, %v5179
        %v5181 = vpop.f32.mrb[0].mxu0
        %v5182 = vpop.f32.mrb[0].mxu0
        %v5183 = vadd.f32 %v4716, %v5182
        %v5184 = vpop.f32.mrb[0].mxu0
        %5185 = vmatprep.mubr.bf16.mxu0 %v5025
        %5186 = vmatmul.mubr.bf16.gmra.mrb[0].mxu0 %v4922
        %v5187 = vpop.f32.mrb[0].mxu0
        %v5188 = vadd.f32 %v4716, %v5187
        %v5189 = vpop.f32.mrb[0].mxu0
        %v5190 = vpop.f32.mrb[0].mxu0
        %v5191 = vadd.f32 %v4716, %v5190
        %v5192 = vpop.f32.mrb[0].mxu0
        %5193 = vmatprep.mubr.bf16.mxu0 %v5028
        %5194 = vmatmul.mubr.bf16.gmra.mrb[0].mxu0 %v4924
        %v5195 = vpop.f32.mrb[0].mxu0
        %v5196 = vadd.f32 %v4716, %v5195
        %v5197 = vpop.f32.mrb[0].mxu0
        %v5198 = vpop.f32.mrb[0].mxu0
        %v5199 = vadd.f32 %v4716, %v5198
        %v5200 = vpop.f32.mrb[0].mxu0
        %5201 = vmatprep.mubr.bf16.mxu0 %v5031
        %5202 = vmatmul.mubr.bf16.gmra.mrb[0].mxu0 %v4926
        %v5203 = vpop.f32.mrb[0].mxu0
        %v5204 = vadd.f32 %v4716, %v5203
        %v5205 = vpop.f32.mrb[0].mxu0
        %v5206 = vpop.f32.mrb[0].mxu0
        %v5207 = vadd.f32 %v4716, %v5206
        %v5208 = vpop.f32.mrb[0].mxu0
        %5209 = vmatprep.mubr.bf16.mxu0 %v5034
        %5210 = vmatmul.mubr.bf16.gmra.mrb[0].mxu0 %v4928
        %v5211 = vpop.f32.mrb[0].mxu0
        %v5212 = vadd.f32 %v4716, %v5211
        %v5213 = vpop.f32.mrb[0].mxu0
        %v5214 = vpop.f32.mrb[0].mxu0
        %v5215 = vadd.f32 %v4716, %v5214
        %v5216 = vpop.f32.mrb[0].mxu0
        %5217 = vmatprep.mubr.bf16.mxu0 %v5037
        %5218 = vmatmul.mubr.bf16.gmra.mrb[0].mxu0 %v4930
        %v5219 = vpop.f32.mrb[0].mxu0
        %v5220 = vadd.f32 %v4716, %v5219
        %v5221 = vpop.f32.mrb[0].mxu0
        %v5222 = vpop.f32.mrb[0].mxu0
        %v5223 = vadd.f32 %v4716, %v5222
        %v5224 = vpop.f32.mrb[0].mxu0
        %5225 = vmatprep.mubr.bf16.mxu0 %v5040
        %5226 = vmatmul.mubr.bf16.gmra.mrb[0].mxu0 %v4932
        %v5227 = vpop.f32.mrb[0].mxu0
        %v5228 = vadd.f32 %v4716, %v5227
        %v5229 = vpop.f32.mrb[0].mxu0
        %v5230 = vpop.f32.mrb[0].mxu0
        %v5231 = vadd.f32 %v4716, %v5230
        %v5232 = vpop.f32.mrb[0].mxu0
        %5233 = vmatprep.mubr.bf16.mxu0 %v5043
        %5234 = vmatmul.mubr.bf16.gmra.mrb[0].mxu0 %v4934
        %v5235 = vpop.f32.mrb[0].mxu0
        %v5236 = vadd.f32 %v4716, %v5235
        %v5237 = vpop.f32.mrb[0].mxu0
        %v5238 = vpop.f32.mrb[0].mxu0
        %v5239 = vadd.f32 %v4716, %v5238
        %v5240 = vpop.f32.mrb[0].mxu0
        %5241 = vmatprep.mubr.bf16.mxu0 %v5046
        %5242 = vmatmul.mubr.bf16.gmra.mrb[0].mxu0 %v4936
        %v5243 = vpop.f32.mrb[0].mxu0
        %v5244 = vadd.f32 %v4716, %v5243
        %v5245 = vpop.f32.mrb[0].mxu0
        %v5246 = vpop.f32.mrb[0].mxu0
        %v5247 = vadd.f32 %v4716, %v5246
        %v5248 = vpop.f32.mrb[0].mxu0
        %5249 = vmatprep.mubr.bf16.mxu0 %v5049
        %5250 = vmatmul.mubr.bf16.gmra.mrb[0].mxu0 %v4938
        %v5251 = vpop.f32.mrb[0].mxu0
        %v5252 = vadd.f32 %v4716, %v5251
        %v5253 = vpop.f32.mrb[0].mxu0
        %v5254 = vpop.f32.mrb[0].mxu0
        %v5255 = vadd.f32 %v4716, %v5254
        %v5256 = vpop.f32.mrb[0].mxu0
        %5257 = vmatprep.mubr.bf16.mxu0 %v5052
        %5258 = vmatmul.mubr.bf16.gmra.mrb[0].mxu0 %v4940
        %v5259 = vpop.f32.mrb[0].mxu0
        %v5260 = vadd.f32 %v4716, %v5259
        %v5261 = vpop.f32.mrb[0].mxu0
        %v5262 = vpop.f32.mrb[0].mxu0
        %v5263 = vadd.f32 %v4716, %v5262
        %v5264 = vpop.f32.mrb[0].mxu0
        %5265 = vmatprep.mubr.bf16.mxu0 %v5055
        %5266 = vmatmul.mubr.bf16.gmra.mrb[0].mxu0 %v4942
        %v5267 = vpop.f32.mrb[0].mxu0
        %v5268 = vadd.f32 %v4716, %v5267
        %v5269 = vpop.f32.mrb[0].mxu0
        %v5270 = vpop.f32.mrb[0].mxu0
        %v5271 = vadd.f32 %v4716, %v5270
        %v5272 = vpop.f32.mrb[0].mxu0
        %5273 = vmatprep.mubr.bf16.mxu0 %v5058
        %5274 = vmatmul.mubr.bf16.gmra.mrb[0].mxu0 %v4944
        %v5275 = vpop.f32.mrb[0].mxu0
        %v5276 = vadd.f32 %v4716, %v5275
        %v5277 = vpop.f32.mrb[0].mxu0
        %v5278 = vpop.f32.mrb[0].mxu0
        %v5279 = vadd.f32 %v4716, %v5278
        %v5280 = vpop.f32.mrb[0].mxu0
        %5281 = vmatprep.mubr.bf16.mxu0 %v5061
        %5282 = vmatmul.mubr.bf16.gmra.mrb[0].mxu0 %v4946
        %v5283 = vpop.f32.mrb[0].mxu0
        %v5284 = vadd.f32 %v4716, %v5283
        %v5285 = vpop.f32.mrb[0].mxu0
        %v5286 = vpop.f32.mrb[0].mxu0
        %v5287 = vadd.f32 %v4716, %v5286
        %v5288 = vpop.f32.mrb[0].mxu0
        %5289 = vmatprep.mubr.bf16.mxu0 %v5064
        %5290 = vmatmul.mubr.bf16.gmra.mrb[0].mxu0 %v4948
        %v5291 = vpop.f32.mrb[0].mxu0
        %v5292 = vadd.f32 %v4716, %v5291
        %v5293 = vpop.f32.mrb[0].mxu0
        %v5294 = vpop.f32.mrb[0].mxu0
        %v5295 = vadd.f32 %v4716, %v5294
        %v5296 = vpop.f32.mrb[0].mxu0
        %5297 = vmatprep.mubr.bf16.mxu0 %v5067
        %5298 = vmatmul.mubr.bf16.gmra.mrb[0].mxu0 %v4950
        %v5299 = vpop.f32.mrb[0].mxu0
        %v5300 = vadd.f32 %v4716, %v5299
        %v5301 = vpop.f32.mrb[0].mxu0
        %v5302 = vpop.f32.mrb[0].mxu0
        %v5303 = vadd.f32 %v4716, %v5302
        %v5304 = vpop.f32.mrb[0].mxu0
        %5305 = vmatprep.mubr.bf16.mxu0 %v5070
        %5306 = vmatmul.mubr.bf16.gmra.mrb[0].mxu0 %v4952
        %v5307 = vpop.f32.mrb[0].mxu0
        %v5308 = vadd.f32 %v4716, %v5307
        %v5309 = vpop.f32.mrb[0].mxu0
        %v5310 = vpop.f32.mrb[0].mxu0
        %v5311 = vadd.f32 %v4716, %v5310
        %v5312 = vpop.f32.mrb[0].mxu0
        %5313 = vmatprep.mubr.bf16.mxu0 %v5073
        %5314 = vmatmul.mubr.bf16.gmra.mrb[0].mxu0 %v4954
        %v5315 = vpop.f32.mrb[0].mxu0
        %v5316 = vadd.f32 %v4716, %v5315
        %v5317 = vpop.f32.mrb[0].mxu0
        %v5318 = vpop.f32.mrb[0].mxu0
        %v5319 = vadd.f32 %v4716, %v5318
        %v5320 = vpop.f32.mrb[0].mxu0
        %5321 = vmatprep.mubr.bf16.mxu0 %v5076
        %5322 = vmatmul.mubr.bf16.gmra.mrb[0].mxu0 %v4956
        %v5323 = vpop.f32.mrb[0].mxu0
        %v5324 = vadd.f32 %v4716, %v5323
        %v5325 = vpop.f32.mrb[0].mxu0
        %v5326 = vpop.f32.mrb[0].mxu0
        %v5327 = vadd.f32 %v4716, %v5326
        %v5328 = vpop.f32.mrb[0].mxu0
        %5329 = vmatprep.mubr.bf16.mxu0 %v5079
        %5330 = vmatmul.mubr.bf16.gmra.mrb[0].mxu0 %v4958
        %v5331 = vpop.f32.mrb[0].mxu0
        %v5332 = vadd.f32 %v4716, %v5331
        %v5333 = vpop.f32.mrb[0].mxu0
        %v5334 = vpop.f32.mrb[0].mxu0
        %v5335 = vadd.f32 %v4716, %v5334
        %v5336 = vpop.f32.mrb[0].mxu0
        %5337 = vmatprep.mubr.bf16.mxu0 %v5082
        %5338 = vmatmul.mubr.bf16.gmra.mrb[0].mxu0 %v4960
        %v5339 = vpop.f32.mrb[0].mxu0
        %v5340 = vadd.f32 %v4716, %v5339
        %v5341 = vpop.f32.mrb[0].mxu0
        %v5342 = vpop.f32.mrb[0].mxu0
        %v5343 = vadd.f32 %v4716, %v5342
        %v5344 = vpop.f32.mrb[0].mxu0
        %5345 = vmatprep.mubr.bf16.mxu0 %v5085
        %5346 = vmatmul.mubr.bf16.gmra.mrb[0].mxu0 %v4962
        %v5347 = vpop.f32.mrb[0].mxu0
        %v5348 = vadd.f32 %v4716, %v5347
        %v5349 = vpop.f32.mrb[0].mxu0
        %v5350 = vpop.f32.mrb[0].mxu0
        %v5351 = vadd.f32 %v4716, %v5350
        %v5352 = vpop.f32.mrb[0].mxu0
        %5353 = vmatprep.mubr.bf16.mxu0 %v5088
        %5354 = vmatmul.mubr.bf16.gmra.mrb[0].mxu0 %v4964
        %v5355 = vpop.f32.mrb[0].mxu0
        %v5356 = vadd.f32 %v4716, %v5355
        %v5357 = vpop.f32.mrb[0].mxu0
        %v5358 = vpop.f32.mrb[0].mxu0
        %v5359 = vadd.f32 %v4716, %v5358
        %v5360 = vpop.f32.mrb[0].mxu0
        %5361 = vmatprep.mubr.bf16.mxu0 %v5091
        %5362 = vmatmul.mubr.bf16.gmra.mrb[0].mxu0 %v4966
        %v5363 = vpop.f32.mrb[0].mxu0
        %v5364 = vadd.f32 %v4716, %v5363
        %v5365 = vpop.f32.mrb[0].mxu0
        %v5366 = vpop.f32.mrb[0].mxu0
        %v5367 = vadd.f32 %v4716, %v5366
        %v5368 = vpop.f32.mrb[0].mxu0
        %5369 = vmatprep.mubr.bf16.mxu0 %v5094
        %5370 = vmatmul.mubr.bf16.gmra.mrb[0].mxu0 %v4968
        %v5371 = vpop.f32.mrb[0].mxu0
        %v5372 = vadd.f32 %v4716, %v5371
        %v5373 = vpop.f32.mrb[0].mxu0
        %v5374 = vpop.f32.mrb[0].mxu0
        %v5375 = vadd.f32 %v4716, %v5374
        %v5376 = vpop.f32.mrb[0].mxu0
        %5377 = vmatprep.mubr.bf16.mxu0 %v5097
        %5378 = vmatmul.mubr.bf16.gmra.mrb[0].mxu0 %v4970
        %v5379 = vpop.f32.mrb[0].mxu0
        %v5380 = vadd.f32 %v4716, %v5379
        %v5381 = vpop.f32.mrb[0].mxu0
        %v5382 = vpop.f32.mrb[0].mxu0
        %v5383 = vadd.f32 %v4716, %v5382
        %v5384 = vpop.f32.mrb[0].mxu0
        %5385 = vmatprep.mubr.bf16.mxu0 %v5100
        %5386 = vmatmul.mubr.bf16.gmra.mrb[0].mxu0 %v4972
        %v5387 = vpop.f32.mrb[0].mxu0
        %v5388 = vadd.f32 %v4716, %v5387
        %v5389 = vpop.f32.mrb[0].mxu0
        %v5390 = vpop.f32.mrb[0].mxu0
        %v5391 = vadd.f32 %v4716, %v5390
        %v5392 = vpop.f32.mrb[0].mxu0
        %5393 = vdwg.mxu0
        %v5394 = vmax.f32 %v5140, 0.0
        %v5395 = vmax.f32 %v5143, 0.0
        %v5396 = vmax.f32 %v5148, 0.0
        %v5397 = vmax.f32 %v5151, 0.0
        %v5398 = vmax.f32 %v5156, 0.0
        %v5399 = vmax.f32 %v5159, 0.0
        %v5400 = vmax.f32 %v5164, 0.0
        %v5401 = vmax.f32 %v5167, 0.0
        %v5402 = vmax.f32 %v5172, 0.0
        %v5403 = vmax.f32 %v5175, 0.0
        %v5404 = vmax.f32 %v5180, 0.0
        %v5405 = vmax.f32 %v5183, 0.0
        %v5406 = vmax.f32 %v5188, 0.0
        %v5407 = vmax.f32 %v5191, 0.0
        %v5408 = vmax.f32 %v5196, 0.0
        %v5409 = vmax.f32 %v5199, 0.0
        %v5410 = vmax.f32 %v5204, 0.0
        %v5411 = vmax.f32 %v5207, 0.0
        %v5412 = vmax.f32 %v5212, 0.0
        %v5413 = vmax.f32 %v5215, 0.0
        %v5414 = vmax.f32 %v5220, 0.0
        %v5415 = vmax.f32 %v5223, 0.0
        %v5416 = vmax.f32 %v5228, 0.0
        %v5417 = vmax.f32 %v5231, 0.0
        %v5418 = vmax.f32 %v5236, 0.0
        %v5419 = vmax.f32 %v5239, 0.0
        %v5420 = vmax.f32 %v5244, 0.0
        %v5421 = vmax.f32 %v5247, 0.0
        %v5422 = vmax.f32 %v5252, 0.0
        %v5423 = vmax.f32 %v5255, 0.0
        %v5424 = vmax.f32 %v5260, 0.0
        %v5425 = vmax.f32 %v5263, 0.0
        %v5426 = vmax.f32 %v5268, 0.0
        %v5427 = vmax.f32 %v5271, 0.0
        %v5428 = vmax.f32 %v5276, 0.0
        %v5429 = vmax.f32 %v5279, 0.0
        %v5430 = vmax.f32 %v5284, 0.0
        %v5431 = vmax.f32 %v5287, 0.0
        %v5432 = vmax.f32 %v5292, 0.0
        %v5433 = vmax.f32 %v5295, 0.0
        %v5434 = vmax.f32 %v5300, 0.0
        %v5435 = vmax.f32 %v5303, 0.0
        %v5436 = vmax.f32 %v5308, 0.0
        %v5437 = vmax.f32 %v5311, 0.0
        %v5438 = vmax.f32 %v5316, 0.0
        %v5439 = vmax.f32 %v5319, 0.0
        %v5440 = vmax.f32 %v5324, 0.0
        %v5441 = vmax.f32 %v5327, 0.0
        %v5442 = vmax.f32 %v5332, 0.0
        %v5443 = vmax.f32 %v5335, 0.0
        %v5444 = vmax.f32 %v5340, 0.0
        %v5445 = vmax.f32 %v5343, 0.0
        %v5446 = vmax.f32 %v5348, 0.0
        %v5447 = vmax.f32 %v5351, 0.0
        %v5448 = vmax.f32 %v5356, 0.0
        %v5449 = vmax.f32 %v5359, 0.0
        %v5450 = vmax.f32 %v5364, 0.0
        %v5451 = vmax.f32 %v5367, 0.0
        %v5452 = vmax.f32 %v5372, 0.0
        %v5453 = vmax.f32 %v5375, 0.0
        %v5454 = vmax.f32 %v5380, 0.0
        %v5455 = vmax.f32 %v5383, 0.0
        %v5456 = vmax.f32 %v5388, 0.0
        %v5457 = vmax.f32 %v5391, 0.0
        %v5458 = vld [vmem:[%s11] sm:$0xff]
        %v5459 = vld [vmem:[%s11 + $0x8] sm:$0xff]
        %v5460 = vld [vmem:[%s11 + $0x10] sm:$0xff]
        %v5461 = vld [vmem:[%s11 + $0x18] sm:$0xff]
        %v5462 = vld [vmem:[%s11 + $0x20] sm:$0x11]
        %v5463 = vld [vmem:[%s11 + $0x28] sm:$0x11]
        %v5464 = vpack.c.bf16 %v5395, %v5394
        %v5465 = vpack.c.bf16 %v5397, %v5396
        %v5466 = vpack.c.bf16 %v5399, %v5398
        %v5467 = vpack.c.bf16 %v5401, %v5400
        %v5468 = vpack.c.bf16 %v5403, %v5402
        %v5469 = vpack.c.bf16 %v5405, %v5404
        %v5470 = vpack.c.bf16 %v5407, %v5406
        %v5471 = vpack.c.bf16 %v5409, %v5408
        %v5472 = vpack.c.bf16 %v5411, %v5410
        %v5473 = vpack.c.bf16 %v5413, %v5412
        %v5474 = vpack.c.bf16 %v5415, %v5414
        %v5475 = vpack.c.bf16 %v5417, %v5416
        %v5476 = vpack.c.bf16 %v5419, %v5418
        %v5477 = vpack.c.bf16 %v5421, %v5420
        %v5478 = vpack.c.bf16 %v5423, %v5422
        %v5479 = vpack.c.bf16 %v5425, %v5424
        %v5480 = vpack.c.bf16 %v5427, %v5426
        %v5481 = vpack.c.bf16 %v5429, %v5428
        %v5482 = vpack.c.bf16 %v5431, %v5430
        %v5483 = vpack.c.bf16 %v5433, %v5432
        %v5484 = vpack.c.bf16 %v5435, %v5434
        %v5485 = vpack.c.bf16 %v5437, %v5436
        %v5486 = vpack.c.bf16 %v5439, %v5438
        %v5487 = vpack.c.bf16 %v5441, %v5440
        %v5488 = vpack.c.bf16 %v5443, %v5442
        %v5489 = vpack.c.bf16 %v5445, %v5444
        %v5490 = vpack.c.bf16 %v5447, %v5446
        %v5491 = vpack.c.bf16 %v5449, %v5448
        %v5492 = vpack.c.bf16 %v5451, %v5450
        %v5493 = vpack.c.bf16 %v5453, %v5452
        %v5494 = vpack.c.bf16 %v5455, %v5454
        %v5495 = vpack.c.bf16 %v5457, %v5456
        %v5502 = vunpack.c.l.b16 %v5458
        %v5503 = vunpack.c.h.b16 %v5458
        %v5504 = vunpack.c.l.b16 %v5459
        %v5505 = vunpack.c.h.b16 %v5459
        %v5506 = vunpack.c.l.b16 %v5460
        %v5507 = vunpack.c.h.b16 %v5460
        %v5508 = vunpack.c.l.b16 %v5461
        %v5509 = vunpack.c.h.b16 %v5461
        %v5510 = vunpack.c.l.b16 %v5462
        %v5511 = vunpack.c.h.b16 %v5462
        %v5512 = vunpack.c.l.b16 %v5463
        %v5513 = vunpack.c.h.b16 %v5463
        %v5514 = vpack.c.b16 %v5506, %v5502
        %v5515 = vpack.c.b16 %v5507, %v5503
        %v5516 = vpack.c.b16 %v5508, %v5504
        %v5517 = vpack.c.b16 %v5509, %v5505
        %v5518 = vpack.c.b16 %v5510, %v5510
        %v5519 = vpack.c.b16 %v5511, %v5511
        %v5520 = vpack.c.b16 %v5512, %v5512
        %v5521 = vpack.c.b16 %v5513, %v5513
        %5530 = vmatprep.subr.bf16.mxu0 0
        %5531 = vmatpush1.bf16.msra.mxu0 %v5464
        %5532 = vmatprep.subr.bf16.mxu0 0
        %5533 = vmatpush1.bf16.msra.mxu0 %v5465
        %5534 = vmatprep.subr.bf16.mxu0 0
        %5535 = vmatpush1.bf16.msra.mxu0 %v5466
        %5536 = vmatprep.subr.bf16.mxu0 0
        %5537 = vmatpush1.bf16.msra.mxu0 %v5467
        %5538 = vmatprep.subr.bf16.mxu0 0
        %5539 = vmatpush1.bf16.msra.mxu0 %v5468
        %5540 = vmatprep.subr.bf16.mxu0 0
        %5541 = vmatpush1.bf16.msra.mxu0 %v5469
        %5542 = vmatprep.subr.bf16.mxu0 0
        %5543 = vmatpush1.bf16.msra.mxu0 %v5470
        %5544 = vmatprep.subr.bf16.mxu0 0
        %5545 = vmatpush1.bf16.msra.mxu0 %v5471
        %5546 = vmatprep.subr.bf16.mxu0 0
        %5547 = vmatpush1.bf16.msra.mxu0 %v5472
        %5548 = vmatprep.subr.bf16.mxu0 0
        %5549 = vmatpush1.bf16.msra.mxu0 %v5473
        %5550 = vmatprep.subr.bf16.mxu0 0
        %5551 = vmatpush1.bf16.msra.mxu0 %v5474
        %5552 = vmatprep.subr.bf16.mxu0 0
        %5553 = vmatpush1.bf16.msra.mxu0 %v5475
        %5554 = vmatprep.subr.bf16.mxu0 0
        %5555 = vmatpush1.bf16.msra.mxu0 %v5476
        %5556 = vmatprep.subr.bf16.mxu0 0
        %5557 = vmatpush1.bf16.msra.mxu0 %v5477
        %5558 = vmatprep.subr.bf16.mxu0 0
        %5559 = vmatpush1.bf16.msra.mxu0 %v5478
        %5560 = vmatprep.subr.bf16.mxu0 0
        %5561 = vmatpush1.bf16.msra.mxu0 %v5479
        %5562 = vmatprep.mubr.bf16.mxu0 %v5515
        %5563 = vmatmul.mubr.bf16.gmra.mrb[0].mxu0 %v5514
        %v5564 = vpop.f32.mrb[0].mxu0
        %v5565 = vadd.f32 0.0, %v5564
        %v5566 = vpop.f32.mrb[0].mxu0
        %v5567 = vpop.f32.mrb[0].mxu0
        %v5568 = vadd.f32 0.0, %v5567
        %v5569 = vpop.f32.mrb[0].mxu0
        %5570 = vmatprep.mubr.bf16.mxu0 %v5519
        %5571 = vmatmul.mubr.bf16.gmra.mrb[0].mxu0 %v5518
        %v5572 = vpop.f32.mrb[0].mxu0
        %v5573 = vadd.f32 0.0, %v5572
        %v5574 = vpop.f32.mrb[0].mxu0
        %v5575 = vpop.f32.mrb[0].mxu0
        %v5576 = vpop.f32.mrb[0].mxu0
        %5577 = vdwg.mxu0
        %5578 = vmatprep.subr.bf16.mxu0 0
        %5579 = vmatpush1.bf16.msra.mxu0 %v5480
        %5580 = vmatprep.subr.bf16.mxu0 0
        %5581 = vmatpush1.bf16.msra.mxu0 %v5481
        %5582 = vmatprep.subr.bf16.mxu0 0
        %5583 = vmatpush1.bf16.msra.mxu0 %v5482
        %5584 = vmatprep.subr.bf16.mxu0 0
        %5585 = vmatpush1.bf16.msra.mxu0 %v5483
        %5586 = vmatprep.subr.bf16.mxu0 0
        %5587 = vmatpush1.bf16.msra.mxu0 %v5484
        %5588 = vmatprep.subr.bf16.mxu0 0
        %5589 = vmatpush1.bf16.msra.mxu0 %v5485
        %5590 = vmatprep.subr.bf16.mxu0 0
        %5591 = vmatpush1.bf16.msra.mxu0 %v5486
        %5592 = vmatprep.subr.bf16.mxu0 0
        %5593 = vmatpush1.bf16.msra.mxu0 %v5487
        %5594 = vmatprep.subr.bf16.mxu0 0
        %5595 = vmatpush1.bf16.msra.mxu0 %v5488
        %5596 = vmatprep.subr.bf16.mxu0 0
        %5597 = vmatpush1.bf16.msra.mxu0 %v5489
        %5598 = vmatprep.subr.bf16.mxu0 0
        %5599 = vmatpush1.bf16.msra.mxu0 %v5490
        %5600 = vmatprep.subr.bf16.mxu0 0
        %5601 = vmatpush1.bf16.msra.mxu0 %v5491
        %5602 = vmatprep.subr.bf16.mxu0 0
        %5603 = vmatpush1.bf16.msra.mxu0 %v5492
        %5604 = vmatprep.subr.bf16.mxu0 0
        %5605 = vmatpush1.bf16.msra.mxu0 %v5493
        %5606 = vmatprep.subr.bf16.mxu0 0
        %5607 = vmatpush1.bf16.msra.mxu0 %v5494
        %5608 = vmatprep.subr.bf16.mxu0 0
        %5609 = vmatpush1.bf16.msra.mxu0 %v5495
        %5610 = vmatprep.mubr.bf16.mxu0 %v5517
        %5611 = vmatmul.mubr.bf16.gmra.mrb[0].mxu0 %v5516
        %v5612 = vpop.f32.mrb[0].mxu0
        %v5613 = vadd.f32 %v5565, %v5612
        %v5614 = vpop.f32.mrb[0].mxu0
        %v5615 = vpop.f32.mrb[0].mxu0
        %v5616 = vadd.f32 %v5568, %v5615
        %v5617 = vpop.f32.mrb[0].mxu0
        %5618 = vmatprep.mubr.bf16.mxu0 %v5521
        %5619 = vmatmul.mubr.bf16.gmra.mrb[0].mxu0 %v5520
        %v5620 = vpop.f32.mrb[0].mxu0
        %v5621 = vadd.f32 %v5573, %v5620
        %v5622 = vpop.f32.mrb[0].mxu0
        %v5623 = vpop.f32.mrb[0].mxu0
        %v5624 = vpop.f32.mrb[0].mxu0
        %5625 = vdwg.mxu0
        %5626 = vst.msk [vmem:[#allocation2] sm:$0xff] %vm2895, %v5613
        %5627 = vst.msk [vmem:[#allocation2 + $0x8] sm:$0xff] %vm2895, %v5616
        %vm5628 = vcmask 123904
        %5629 = vst.msk [vmem:[#allocation2 + $0x10] sm:$0x3] %vm5628, %v5621
        %v5630 = vld [vmem:[#allocation2] sm:$0x7]
        %v5631 = vpack.c.bf16 %v5630, %v5630
        %v5632 = vld [vmem:[%s12] sm:$0xf]
        %v5633 = vld [vmem:[%s12 + $0x4] sm:$0xf]
        %v5634 = vld [vmem:[#allocation2 + $0x3] sm:$0x7]
        %v5635 = vpack.c.bf16 %v5634, %v5634
        %s5636 = scalar_lea.vmem %s12, 8
        %v5637 = vld [vmem:[%s5636] sm:$0xf]
        %v5638 = vld [vmem:[%s5636 + $0x4] sm:$0xf]
        %v5641 = vunpack.c.l.b16 %v5637
        %v5642 = vunpack.c.l.b16 %v5638
        %v5643 = vpack.c.b16 %v5642, %v5641
        %v5646 = vsel %vm2895, %v5635, 0
        %5648 = vmatprep.subr.bf16.mxu0 0
        %5649 = vmatpush1.bf16.msra.mxu0 %v5643
        %5650 = vmatprep.subr.bf16.mxu0 0
        %5651 = vmatpush1.bf16.msra.mxu0 0
        %5652 = vmatprep.subr.bf16.mxu0 0
        %5653 = vmatpush1.bf16.msra.mxu0 0
        %5654 = vmatprep.subr.bf16.mxu0 0
        %5655 = vmatpush1.bf16.msra.mxu0 0
        %5656 = vmatprep.subr.bf16.mxu0 0
        %5657 = vmatpush1.bf16.msra.mxu0 0
        %5658 = vmatprep.subr.bf16.mxu0 0
        %5659 = vmatpush1.bf16.msra.mxu0 0
        %5660 = vmatprep.subr.bf16.mxu0 0
        %5661 = vmatpush1.bf16.msra.mxu0 0
        %5662 = vmatprep.subr.bf16.mxu0 0
        %5663 = vmatpush1.bf16.msra.mxu0 0
        %5664 = vmatprep.subr.bf16.mxu0 0
        %5665 = vmatpush1.bf16.msra.mxu0 0
        %5666 = vmatprep.subr.bf16.mxu0 0
        %5667 = vmatpush1.bf16.msra.mxu0 0
        %5668 = vmatprep.subr.bf16.mxu0 0
        %5669 = vmatpush1.bf16.msra.mxu0 0
        %5670 = vmatprep.subr.bf16.mxu0 0
        %5671 = vmatpush1.bf16.msra.mxu0 0
        %5672 = vmatprep.subr.bf16.mxu0 0
        %5673 = vmatpush1.bf16.msra.mxu0 0
        %5674 = vmatprep.subr.bf16.mxu0 0
        %5675 = vmatpush1.bf16.msra.mxu0 0
        %5676 = vmatprep.subr.bf16.mxu0 0
        %5677 = vmatpush1.bf16.msra.mxu0 0
        %5678 = vmatprep.subr.bf16.mxu0 0
        %5679 = vmatpush1.bf16.msra.mxu0 0
        %5680 = vmatprep.mubr.bf16.mxu0 0
        %5681 = vmatmul.mubr.bf16.gmra.mrb[0].mxu0 %v5646
        %v5682 = vpop.f32.mrb[0].mxu0
        %v5683 = vadd.f32 0.0, %v5682
        %v5684 = vpop.f32.mrb[0].mxu0
        %v5685 = vpop.f32.mrb[0].mxu0
        %v5686 = vpop.f32.mrb[0].mxu0
        %5687 = vdwg.mxu0
        %v5690 = vunpack.c.l.b16 %v5632
        %v5691 = vunpack.c.l.b16 %v5633
        %v5692 = vpack.c.b16 %v5691, %v5690
        %v5695 = vsel %vm2895, %v5631, 0
        %5697 = vmatprep.subr.bf16.mxu0 0
        %5698 = vmatpush1.bf16.msra.mxu0 %v5692
        %5699 = vmatprep.subr.bf16.mxu0 0
        %5700 = vmatpush1.bf16.msra.mxu0 0
        %5701 = vmatprep.subr.bf16.mxu0 0
        %5702 = vmatpush1.bf16.msra.mxu0 0
        %5703 = vmatprep.subr.bf16.mxu0 0
        %5704 = vmatpush1.bf16.msra.mxu0 0
        %5705 = vmatprep.subr.bf16.mxu0 0
        %5706 = vmatpush1.bf16.msra.mxu0 0
        %5707 = vmatprep.subr.bf16.mxu0 0
        %5708 = vmatpush1.bf16.msra.mxu0 0
        %5709 = vmatprep.subr.bf16.mxu0 0
        %5710 = vmatpush1.bf16.msra.mxu0 0
        %5711 = vmatprep.subr.bf16.mxu0 0
        %5712 = vmatpush1.bf16.msra.mxu0 0
        %5713 = vmatprep.subr.bf16.mxu0 0
        %5714 = vmatpush1.bf16.msra.mxu0 0
        %5715 = vmatprep.subr.bf16.mxu0 0
        %5716 = vmatpush1.bf16.msra.mxu0 0
        %5717 = vmatprep.subr.bf16.mxu0 0
        %5718 = vmatpush1.bf16.msra.mxu0 0
        %5719 = vmatprep.subr.bf16.mxu0 0
        %5720 = vmatpush1.bf16.msra.mxu0 0
        %5721 = vmatprep.subr.bf16.mxu0 0
        %5722 = vmatpush1.bf16.msra.mxu0 0
        %5723 = vmatprep.subr.bf16.mxu0 0
        %5724 = vmatpush1.bf16.msra.mxu0 0
        %5725 = vmatprep.subr.bf16.mxu0 0
        %5726 = vmatpush1.bf16.msra.mxu0 0
        %5727 = vmatprep.subr.bf16.mxu0 0
        %5728 = vmatpush1.bf16.msra.mxu0 0
        %5729 = vmatprep.mubr.bf16.mxu0 0
        %5730 = vmatmul.mubr.bf16.gmra.mrb[0].mxu0 %v5695
        %v5731 = vpop.f32.mrb[0].mxu0
        %v5732 = vadd.f32 %v5683, %v5731
        %v5733 = vpop.f32.mrb[0].mxu0
        %v5734 = vpop.f32.mrb[0].mxu0
        %v5735 = vpop.f32.mrb[0].mxu0
        %5736 = vdwg.mxu0
        %v5737 = vld [vmem:[#allocation2 + $0x6] sm:$0x7]
        %v5738 = vpack.c.bf16 %v5737, %v5737
        %s5739 = scalar_lea.vmem %s12, 16
        %v5740 = vld [vmem:[%s5739] sm:$0xf]
        %v5741 = vld [vmem:[%s5739 + $0x4] sm:$0xf]
        %v5744 = vunpack.c.l.b16 %v5740
        %v5745 = vunpack.c.l.b16 %v5741
        %v5746 = vpack.c.b16 %v5745, %v5744
        %v5749 = vsel %vm2895, %v5738, 0
        %5751 = vmatprep.subr.bf16.mxu0 0
        %5752 = vmatpush1.bf16.msra.mxu0 %v5746
        %5753 = vmatprep.subr.bf16.mxu0 0
        %5754 = vmatpush1.bf16.msra.mxu0 0
        %5755 = vmatprep.subr.bf16.mxu0 0
        %5756 = vmatpush1.bf16.msra.mxu0 0
        %5757 = vmatprep.subr.bf16.mxu0 0
        %5758 = vmatpush1.bf16.msra.mxu0 0
        %5759 = vmatprep.subr.bf16.mxu0 0
        %5760 = vmatpush1.bf16.msra.mxu0 0
        %5761 = vmatprep.subr.bf16.mxu0 0
        %5762 = vmatpush1.bf16.msra.mxu0 0
        %5763 = vmatprep.subr.bf16.mxu0 0
        %5764 = vmatpush1.bf16.msra.mxu0 0
        %5765 = vmatprep.subr.bf16.mxu0 0
        %5766 = vmatpush1.bf16.msra.mxu0 0
        %5767 = vmatprep.subr.bf16.mxu0 0
        %5768 = vmatpush1.bf16.msra.mxu0 0
        %5769 = vmatprep.subr.bf16.mxu0 0
        %5770 = vmatpush1.bf16.msra.mxu0 0
        %5771 = vmatprep.subr.bf16.mxu0 0
        %5772 = vmatpush1.bf16.msra.mxu0 0
        %5773 = vmatprep.subr.bf16.mxu0 0
        %5774 = vmatpush1.bf16.msra.mxu0 0
        %5775 = vmatprep.subr.bf16.mxu0 0
        %5776 = vmatpush1.bf16.msra.mxu0 0
        %5777 = vmatprep.subr.bf16.mxu0 0
        %5778 = vmatpush1.bf16.msra.mxu0 0
        %5779 = vmatprep.subr.bf16.mxu0 0
        %5780 = vmatpush1.bf16.msra.mxu0 0
        %5781 = vmatprep.subr.bf16.mxu0 0
        %5782 = vmatpush1.bf16.msra.mxu0 0
        %5783 = vmatprep.mubr.bf16.mxu0 0
        %5784 = vmatmul.mubr.bf16.gmra.mrb[0].mxu0 %v5749
        %v5785 = vpop.f32.mrb[0].mxu0
        %v5786 = vadd.f32 0.0, %v5785
        %v5787 = vpop.f32.mrb[0].mxu0
        %v5788 = vpop.f32.mrb[0].mxu0
        %v5789 = vpop.f32.mrb[0].mxu0
        %5790 = vdwg.mxu0
        %v5791 = vadd.f32 %v5732, %v5786
        %vm5792 = vcmask 583680
        %5793 = vst.msk [vmem:[#allocation3] sm:$0x7] %vm5792, %v5791
        %v5794 = vld [vmem:[#allocation3] sm:$0x7]
        %vm5795 = vcmask 190464
        %5796 = vst.msk [vmem:[#allocation4] sm:$0x7] %vm5795, %v5794
        %v5797 = vld [vmem:[#allocation3] sm:$0x7]
        %5799 = vrot.lane.b32.xlu0 %v5797, 104
        %v5800 = vpop.permute.xlu0 %5799
        %5802 = vst.msk [vmem:[#allocation4 + $0x3] sm:$0x7] %vm5795, %v5800
        %v5803 = vld [vmem:[#allocation3] sm:$0x7]
        %5805 = vrot.lane.b32.xlu0 %v5803, 80
        %v5806 = vpop.permute.xlu0 %5805
        %5808 = vst.msk [vmem:[#allocation4 + $0x6] sm:$0x7] %vm5795, %v5806
        %v5809 = vld [vmem:[#allocation2 + $0x9] sm:$0x7]
        %v5810 = vpack.c.bf16 %v5809, %v5809
        %s5811 = scalar_lea.vmem %s12, 24
        %v5812 = vld [vmem:[%s5811] sm:$0xf]
        %v5813 = vld [vmem:[%s5811 + $0x4] sm:$0xf]
        %v5814 = vld [vmem:[#allocation2 + $0xc] sm:$0x7]
        %v5815 = vpack.c.bf16 %v5814, %v5814
        %s5816 = scalar_lea.vmem %s12, 32
        %v5817 = vld [vmem:[%s5816] sm:$0xf]
        %v5818 = vld [vmem:[%s5816 + $0x4] sm:$0xf]
        %v5821 = vunpack.c.l.b16 %v5817
        %v5822 = vunpack.c.l.b16 %v5818
        %v5823 = vpack.c.b16 %v5822, %v5821
        %v5826 = vsel %vm2895, %v5815, 0
        %5828 = vmatprep.subr.bf16.mxu0 0
        %5829 = vmatpush1.bf16.msra.mxu0 %v5823
        %5830 = vmatprep.subr.bf16.mxu0 0
        %5831 = vmatpush1.bf16.msra.mxu0 0
        %5832 = vmatprep.subr.bf16.mxu0 0
        %5833 = vmatpush1.bf16.msra.mxu0 0
        %5834 = vmatprep.subr.bf16.mxu0 0
        %5835 = vmatpush1.bf16.msra.mxu0 0
        %5836 = vmatprep.subr.bf16.mxu0 0
        %5837 = vmatpush1.bf16.msra.mxu0 0
        %5838 = vmatprep.subr.bf16.mxu0 0
        %5839 = vmatpush1.bf16.msra.mxu0 0
        %5840 = vmatprep.subr.bf16.mxu0 0
        %5841 = vmatpush1.bf16.msra.mxu0 0
        %5842 = vmatprep.subr.bf16.mxu0 0
        %5843 = vmatpush1.bf16.msra.mxu0 0
        %5844 = vmatprep.subr.bf16.mxu0 0
        %5845 = vmatpush1.bf16.msra.mxu0 0
        %5846 = vmatprep.subr.bf16.mxu0 0
        %5847 = vmatpush1.bf16.msra.mxu0 0
        %5848 = vmatprep.subr.bf16.mxu0 0
        %5849 = vmatpush1.bf16.msra.mxu0 0
        %5850 = vmatprep.subr.bf16.mxu0 0
        %5851 = vmatpush1.bf16.msra.mxu0 0
        %5852 = vmatprep.subr.bf16.mxu0 0
        %5853 = vmatpush1.bf16.msra.mxu0 0
        %5854 = vmatprep.subr.bf16.mxu0 0
        %5855 = vmatpush1.bf16.msra.mxu0 0
        %5856 = vmatprep.subr.bf16.mxu0 0
        %5857 = vmatpush1.bf16.msra.mxu0 0
        %5858 = vmatprep.subr.bf16.mxu0 0
        %5859 = vmatpush1.bf16.msra.mxu0 0
        %5860 = vmatprep.mubr.bf16.mxu0 0
        %5861 = vmatmul.mubr.bf16.gmra.mrb[0].mxu0 %v5826
        %v5862 = vpop.f32.mrb[0].mxu0
        %v5863 = vadd.f32 0.0, %v5862
        %v5864 = vpop.f32.mrb[0].mxu0
        %v5865 = vpop.f32.mrb[0].mxu0
        %v5866 = vpop.f32.mrb[0].mxu0
        %5867 = vdwg.mxu0
        %v5870 = vunpack.c.l.b16 %v5812
        %v5871 = vunpack.c.l.b16 %v5813
        %v5872 = vpack.c.b16 %v5871, %v5870
        %v5875 = vsel %vm2895, %v5810, 0
        %5877 = vmatprep.subr.bf16.mxu0 0
        %5878 = vmatpush1.bf16.msra.mxu0 %v5872
        %5879 = vmatprep.subr.bf16.mxu0 0
        %5880 = vmatpush1.bf16.msra.mxu0 0
        %5881 = vmatprep.subr.bf16.mxu0 0
        %5882 = vmatpush1.bf16.msra.mxu0 0
        %5883 = vmatprep.subr.bf16.mxu0 0
        %5884 = vmatpush1.bf16.msra.mxu0 0
        %5885 = vmatprep.subr.bf16.mxu0 0
        %5886 = vmatpush1.bf16.msra.mxu0 0
        %5887 = vmatprep.subr.bf16.mxu0 0
        %5888 = vmatpush1.bf16.msra.mxu0 0
        %5889 = vmatprep.subr.bf16.mxu0 0
        %5890 = vmatpush1.bf16.msra.mxu0 0
        %5891 = vmatprep.subr.bf16.mxu0 0
        %5892 = vmatpush1.bf16.msra.mxu0 0
        %5893 = vmatprep.subr.bf16.mxu0 0
        %5894 = vmatpush1.bf16.msra.mxu0 0
        %5895 = vmatprep.subr.bf16.mxu0 0
        %5896 = vmatpush1.bf16.msra.mxu0 0
        %5897 = vmatprep.subr.bf16.mxu0 0
        %5898 = vmatpush1.bf16.msra.mxu0 0
        %5899 = vmatprep.subr.bf16.mxu0 0
        %5900 = vmatpush1.bf16.msra.mxu0 0
        %5901 = vmatprep.subr.bf16.mxu0 0
        %5902 = vmatpush1.bf16.msra.mxu0 0
        %5903 = vmatprep.subr.bf16.mxu0 0
        %5904 = vmatpush1.bf16.msra.mxu0 0
        %5905 = vmatprep.subr.bf16.mxu0 0
        %5906 = vmatpush1.bf16.msra.mxu0 0
        %5907 = vmatprep.subr.bf16.mxu0 0
        %5908 = vmatpush1.bf16.msra.mxu0 0
        %5909 = vmatprep.mubr.bf16.mxu0 0
        %5910 = vmatmul.mubr.bf16.gmra.mrb[0].mxu0 %v5875
        %v5911 = vpop.f32.mrb[0].mxu0
        %v5912 = vadd.f32 %v5863, %v5911
        %v5913 = vpop.f32.mrb[0].mxu0
        %v5914 = vpop.f32.mrb[0].mxu0
        %v5915 = vpop.f32.mrb[0].mxu0
        %5916 = vdwg.mxu0
        %v5917 = vld [vmem:[#allocation2 + $0xf] sm:$0x7]
        %v5918 = vpack.c.bf16 %v5917, %v5917
        %s5919 = scalar_lea.vmem %s12, 40
        %v5920 = vld [vmem:[%s5919] sm:$0xf]
        %v5921 = vld [vmem:[%s5919 + $0x4] sm:$0xf]
        %v5924 = vunpack.c.l.b16 %v5920
        %v5925 = vunpack.c.l.b16 %v5921
        %v5926 = vpack.c.b16 %v5925, %v5924
        %v5929 = vsel %vm2895, %v5918, 0
        %5931 = vmatprep.subr.bf16.mxu0 0
        %5932 = vmatpush1.bf16.msra.mxu0 %v5926
        %5933 = vmatprep.subr.bf16.mxu0 0
        %5934 = vmatpush1.bf16.msra.mxu0 0
        %5935 = vmatprep.subr.bf16.mxu0 0
        %5936 = vmatpush1.bf16.msra.mxu0 0
        %5937 = vmatprep.subr.bf16.mxu0 0
        %5938 = vmatpush1.bf16.msra.mxu0 0
        %5939 = vmatprep.subr.bf16.mxu0 0
        %5940 = vmatpush1.bf16.msra.mxu0 0
        %5941 = vmatprep.subr.bf16.mxu0 0
        %5942 = vmatpush1.bf16.msra.mxu0 0
        %5943 = vmatprep.subr.bf16.mxu0 0
        %5944 = vmatpush1.bf16.msra.mxu0 0
        %5945 = vmatprep.subr.bf16.mxu0 0
        %5946 = vmatpush1.bf16.msra.mxu0 0
        %5947 = vmatprep.subr.bf16.mxu0 0
        %5948 = vmatpush1.bf16.msra.mxu0 0
        %5949 = vmatprep.subr.bf16.mxu0 0
        %5950 = vmatpush1.bf16.msra.mxu0 0
        %5951 = vmatprep.subr.bf16.mxu0 0
        %5952 = vmatpush1.bf16.msra.mxu0 0
        %5953 = vmatprep.subr.bf16.mxu0 0
        %5954 = vmatpush1.bf16.msra.mxu0 0
        %5955 = vmatprep.subr.bf16.mxu0 0
        %5956 = vmatpush1.bf16.msra.mxu0 0
        %5957 = vmatprep.subr.bf16.mxu0 0
        %5958 = vmatpush1.bf16.msra.mxu0 0
        %5959 = vmatprep.subr.bf16.mxu0 0
        %5960 = vmatpush1.bf16.msra.mxu0 0
        %5961 = vmatprep.subr.bf16.mxu0 0
        %5962 = vmatpush1.bf16.msra.mxu0 0
        %5963 = vmatprep.mubr.bf16.mxu0 0
        %5964 = vmatmul.mubr.bf16.gmra.mrb[0].mxu0 %v5929
        %v5965 = vpop.f32.mrb[0].mxu0
        %v5966 = vadd.f32 0.0, %v5965
        %v5967 = vpop.f32.mrb[0].mxu0
        %v5968 = vpop.f32.mrb[0].mxu0
        %v5969 = vpop.f32.mrb[0].mxu0
        %5970 = vdwg.mxu0
        %v5971 = vadd.f32 %v5912, %v5966
        %5972 = vst.msk [vmem:[#allocation3] sm:$0x7] %vm5792, %v5971
        %v5973 = vld [vmem:[#allocation3] sm:$0x7]
        %5974 = vst.msk [vmem:[#allocation4 + $0x9] sm:$0x7] %vm5795, %v5973
        %v5975 = vld [vmem:[#allocation3] sm:$0x7]
        %5977 = vrot.lane.b32.xlu0 %v5975, 104
        %v5978 = vpop.permute.xlu0 %5977
        %5980 = vst.msk [vmem:[#allocation4 + $0xc] sm:$0x7] %vm5795, %v5978
        %v5981 = vld [vmem:[#allocation3] sm:$0x7]
        %5983 = vrot.lane.b32.xlu0 %v5981, 80
        %v5984 = vpop.permute.xlu0 %5983
        %5986 = vst.msk [vmem:[#allocation4 + $0xf] sm:$0x7] %vm5795, %v5984
        %v5987 = vld [vmem:[#allocation4] sm:$0xff]
        %v5988 = vld [vmem:[#allocation4 + $0x8] sm:$0xff]
        %v5989 = vld [vmem:[#allocation4 + $0x10] sm:$0x3]
        %v5990 = vpack.c.bf16 %v5988, %v5987
        %v5991 = vpack.c.bf16 %v5989, %v5989
        %v5992 = vld [vmem:[%s13] sm:$0xf]
        %v5993 = vld [vmem:[%s13 + $0x4] sm:$0xf]
        %v5994 = vld [vmem:[%s13 + $0x8] sm:$0xf]
        %v5995 = vld [vmem:[%s13 + $0xc] sm:$0xf]
        %v5996 = vld [vmem:[%s13 + $0x10] sm:$0xf]
        %v5997 = vld [vmem:[%s13 + $0x14] sm:$0xf]
        %v5998 = vld [vmem:[%s13 + $0x18] sm:$0xf]
        %v5999 = vld [vmem:[%s13 + $0x1c] sm:$0xf]
        %v6000 = vld [vmem:[%s14] sm:$0x1]
        %v6002 = vlaneseq
        %v6003 = vshrl.u32 %v6002, 7
        %v6004 = vsub.s32 0, %v6003
        %v6005 = vrot.slane %v6000, %v6004
        %v6015 = vunpack.c.l.b16 %v5992
        %v6016 = vunpack.c.l.b16 %v5993
        %v6017 = vunpack.c.l.b16 %v5994
        %v6018 = vunpack.c.l.b16 %v5995
        %v6019 = vunpack.c.l.b16 %v5996
        %v6020 = vunpack.c.l.b16 %v5997
        %v6021 = vunpack.c.l.b16 %v5998
        %v6022 = vunpack.c.l.b16 %v5999
        %v6023 = vpack.c.b16 %v6016, %v6015
        %v6024 = vpack.c.b16 %v6018, %v6017
        %v6025 = vpack.c.b16 %v6020, %v6019
        %v6026 = vpack.c.b16 %v6022, %v6021
        %vm6027 = vcmask 146432
        %v6029 = vsel %vm6027, %v6023, 0
        %v6032 = vsel %vm6027, %v6024, 0
        %v6035 = vsel %vm6027, %v6025, 0
        %v6038 = vsel %vm6027, %v6026, 0
        %vm6040 = vcmask 1040384
        %v6042 = vsel %vm6040, %v5991, 0
        %6044 = vmatprep.subr.bf16.mxu0 0
        %6045 = vmatpush1.bf16.msra.mxu0 %v5990
        %6046 = vmatprep.subr.bf16.mxu0 0
        %6047 = vmatpush1.bf16.msra.mxu0 %v6042
        %6048 = vmatprep.subr.bf16.mxu0 0
        %6049 = vmatpush1.bf16.msra.mxu0 0
        %6050 = vmatprep.subr.bf16.mxu0 0
        %6051 = vmatpush1.bf16.msra.mxu0 0
        %6052 = vmatprep.subr.bf16.mxu0 0
        %6053 = vmatpush1.bf16.msra.mxu0 0
        %6054 = vmatprep.subr.bf16.mxu0 0
        %6055 = vmatpush1.bf16.msra.mxu0 0
        %6056 = vmatprep.subr.bf16.mxu0 0
        %6057 = vmatpush1.bf16.msra.mxu0 0
        %6058 = vmatprep.subr.bf16.mxu0 0
        %6059 = vmatpush1.bf16.msra.mxu0 0
        %6060 = vmatprep.subr.bf16.mxu0 0
        %6061 = vmatpush1.bf16.msra.mxu0 0
        %6062 = vmatprep.subr.bf16.mxu0 0
        %6063 = vmatpush1.bf16.msra.mxu0 0
        %6064 = vmatprep.subr.bf16.mxu0 0
        %6065 = vmatpush1.bf16.msra.mxu0 0
        %6066 = vmatprep.subr.bf16.mxu0 0
        %6067 = vmatpush1.bf16.msra.mxu0 0
        %6068 = vmatprep.subr.bf16.mxu0 0
        %6069 = vmatpush1.bf16.msra.mxu0 0
        %6070 = vmatprep.subr.bf16.mxu0 0
        %6071 = vmatpush1.bf16.msra.mxu0 0
        %6072 = vmatprep.subr.bf16.mxu0 0
        %6073 = vmatpush1.bf16.msra.mxu0 0
        %6074 = vmatprep.subr.bf16.mxu0 0
        %6075 = vmatpush1.bf16.msra.mxu0 0
        %6076 = vmatprep.mubr.bf16.mxu0 0
        %6077 = vmatmul.mubr.bf16.gmra.mrb[0].mxu0 %v6029
        %v6078 = vpop.f32.mrb[0].mxu0
        %v6079 = vadd.f32 %v6005, %v6078
        %v6080 = vpop.f32.mrb[0].mxu0
        %v6081 = vpop.f32.mrb[0].mxu0
        %v6082 = vadd.f32 %v6005, %v6081
        %v6083 = vpop.f32.mrb[0].mxu0
        %6084 = vmatprep.mubr.bf16.mxu0 0
        %6085 = vmatmul.mubr.bf16.gmra.mrb[0].mxu0 %v6032
        %v6086 = vpop.f32.mrb[0].mxu0
        %v6087 = vadd.f32 %v6005, %v6086
        %v6088 = vpop.f32.mrb[0].mxu0
        %v6089 = vpop.f32.mrb[0].mxu0
        %v6090 = vadd.f32 %v6005, %v6089
        %v6091 = vpop.f32.mrb[0].mxu0
        %6092 = vmatprep.mubr.bf16.mxu0 0
        %6093 = vmatmul.mubr.bf16.gmra.mrb[0].mxu0 %v6035
        %v6094 = vpop.f32.mrb[0].mxu0
        %v6095 = vadd.f32 %v6005, %v6094
        %v6096 = vpop.f32.mrb[0].mxu0
        %v6097 = vpop.f32.mrb[0].mxu0
        %v6098 = vadd.f32 %v6005, %v6097
        %v6099 = vpop.f32.mrb[0].mxu0
        %6100 = vmatprep.mubr.bf16.mxu0 0
        %6101 = vmatmul.mubr.bf16.gmra.mrb[0].mxu0 %v6038
        %v6102 = vpop.f32.mrb[0].mxu0
        %v6103 = vadd.f32 %v6005, %v6102
        %v6104 = vpop.f32.mrb[0].mxu0
        %v6105 = vpop.f32.mrb[0].mxu0
        %v6106 = vadd.f32 %v6005, %v6105
        %v6107 = vpop.f32.mrb[0].mxu0
        %6108 = vdwg.mxu0
        %v6109 = vmax.f32 %v6079, 0.0
        %v6110 = vmax.f32 %v6082, 0.0
        %v6111 = vmax.f32 %v6087, 0.0
        %v6112 = vmax.f32 %v6090, 0.0
        %v6113 = vmax.f32 %v6095, 0.0
        %v6114 = vmax.f32 %v6098, 0.0
        %v6115 = vmax.f32 %v6103, 0.0
        %v6116 = vmax.f32 %v6106, 0.0
        %v6117 = vld [vmem:[%s15] sm:$0xf]
        %v6118 = vld [vmem:[%s15 + $0x4] sm:$0xf]
        %v6119 = vld [vmem:[%s15 + $0x8] sm:$0x1]
        %v6120 = vpack.c.bf16 %v6110, %v6109
        %v6121 = vpack.c.bf16 %v6112, %v6111
        %v6122 = vpack.c.bf16 %v6114, %v6113
        %v6123 = vpack.c.bf16 %v6116, %v6115
        %v6127 = vunpack.c.l.b16 %v6117
        %v6128 = vunpack.c.l.b16 %v6118
        %v6129 = vunpack.c.l.b16 %v6119
        %v6130 = vpack.c.b16 %v6128, %v6127
        %v6131 = vpack.c.b16 %v6129, %v6129
        %vm6132 = vcmask 523264
        %v6134 = vsel %vm6132, %v6130, 0
        %v6137 = vsel %vm6132, %v6131, 0
        %6139 = vmatprep.subr.bf16.mxu0 0
        %6140 = vmatpush1.bf16.msra.mxu0 %v6120
        %6141 = vmatprep.subr.bf16.mxu0 0
        %6142 = vmatpush1.bf16.msra.mxu0 %v6121
        %6143 = vmatprep.subr.bf16.mxu0 0
        %6144 = vmatpush1.bf16.msra.mxu0 %v6122
        %6145 = vmatprep.subr.bf16.mxu0 0
        %6146 = vmatpush1.bf16.msra.mxu0 %v6123
        %6147 = vmatprep.subr.bf16.mxu0 0
        %6148 = vmatpush1.bf16.msra.mxu0 0
        %6149 = vmatprep.subr.bf16.mxu0 0
        %6150 = vmatpush1.bf16.msra.mxu0 0
        %6151 = vmatprep.subr.bf16.mxu0 0
        %6152 = vmatpush1.bf16.msra.mxu0 0
        %6153 = vmatprep.subr.bf16.mxu0 0
        %6154 = vmatpush1.bf16.msra.mxu0 0
        %6155 = vmatprep.subr.bf16.mxu0 0
        %6156 = vmatpush1.bf16.msra.mxu0 0
        %6157 = vmatprep.subr.bf16.mxu0 0
        %6158 = vmatpush1.bf16.msra.mxu0 0
        %6159 = vmatprep.subr.bf16.mxu0 0
        %6160 = vmatpush1.bf16.msra.mxu0 0
        %6161 = vmatprep.subr.bf16.mxu0 0
        %6162 = vmatpush1.bf16.msra.mxu0 0
        %6163 = vmatprep.subr.bf16.mxu0 0
        %6164 = vmatpush1.bf16.msra.mxu0 0
        %6165 = vmatprep.subr.bf16.mxu0 0
        %6166 = vmatpush1.bf16.msra.mxu0 0
        %6167 = vmatprep.subr.bf16.mxu0 0
        %6168 = vmatpush1.bf16.msra.mxu0 0
        %6169 = vmatprep.subr.bf16.mxu0 0
        %6170 = vmatpush1.bf16.msra.mxu0 0
        %6171 = vmatprep.mubr.bf16.mxu0 0
        %6172 = vmatmul.mubr.bf16.gmra.mrb[0].mxu0 %v6134
        %v6173 = vpop.f32.mrb[0].mxu0
        %v6174 = vadd.f32 0.0, %v6173
        %v6175 = vpop.f32.mrb[0].mxu0
        %v6176 = vpop.f32.mrb[0].mxu0
        %v6177 = vadd.f32 0.0, %v6176
        %v6178 = vpop.f32.mrb[0].mxu0
        %6179 = vmatprep.mubr.bf16.mxu0 0
        %6180 = vmatmul.mubr.bf16.gmra.mrb[0].mxu0 %v6137
        %v6181 = vpop.f32.mrb[0].mxu0
        %v6182 = vadd.f32 0.0, %v6181
        %v6183 = vpop.f32.mrb[0].mxu0
        %v6184 = vpop.f32.mrb[0].mxu0
        %v6185 = vpop.f32.mrb[0].mxu0
        %6186 = vdwg.mxu0
        %vm6187 = vcmask 195584
        %6188 = vst.msk [vmem:[#allocation2] sm:$0xff] %vm6187, %v6174
        %6189 = vst.msk [vmem:[#allocation2 + $0x8] sm:$0xff] %vm6187, %v6177
        %vm6190 = vcmask 189440
        %6191 = vst.msk [vmem:[#allocation2 + $0x10] sm:$0x3] %vm6190, %v6182
        %v6192 = vld [vmem:[#allocation2] sm:$0x7]
        %v6193 = vpack.c.bf16 %v6192, %v6192
        %v6194 = vld [vmem:[%s16] sm:$0xf]
        %v6195 = vld [vmem:[%s16 + $0x4] sm:$0xf]
        %v6196 = vld [vmem:[%s16 + $0x8] sm:$0xf]
        %v6197 = vld [vmem:[#allocation2 + $0x3] sm:$0x7]
        %v6198 = vpack.c.bf16 %v6197, %v6197
        %s6199 = scalar_lea.vmem %s16, 12
        %v6200 = vld [vmem:[%s6199] sm:$0xf]
        %v6201 = vld [vmem:[%s6199 + $0x4] sm:$0xf]
        %v6202 = vld [vmem:[%s6199 + $0x8] sm:$0xf]
        %v6206 = vunpack.c.l.b16 %v6200
        %v6207 = vunpack.c.l.b16 %v6201
        %v6208 = vunpack.c.l.b16 %v6202
        %v6209 = vpack.c.b16 %v6207, %v6206
        %v6210 = vpack.c.b16 %v6208, %v6208
        %v6213 = vsel %vm6187, %v6198, 0
        %v6216 = vsel %vm1085, %v6210, 0
        %6218 = vmatprep.subr.bf16.mxu0 0
        %6219 = vmatpush1.bf16.msra.mxu0 %v6209
        %6220 = vmatprep.subr.bf16.mxu0 0
        %6221 = vmatpush1.bf16.msra.mxu0 %v6216
        %6222 = vmatprep.subr.bf16.mxu0 0
        %6223 = vmatpush1.bf16.msra.mxu0 0
        %6224 = vmatprep.subr.bf16.mxu0 0
        %6225 = vmatpush1.bf16.msra.mxu0 0
        %6226 = vmatprep.subr.bf16.mxu0 0
        %6227 = vmatpush1.bf16.msra.mxu0 0
        %6228 = vmatprep.subr.bf16.mxu0 0
        %6229 = vmatpush1.bf16.msra.mxu0 0
        %6230 = vmatprep.subr.bf16.mxu0 0
        %6231 = vmatpush1.bf16.msra.mxu0 0
        %6232 = vmatprep.subr.bf16.mxu0 0
        %6233 = vmatpush1.bf16.msra.mxu0 0
        %6234 = vmatprep.subr.bf16.mxu0 0
        %6235 = vmatpush1.bf16.msra.mxu0 0
        %6236 = vmatprep.subr.bf16.mxu0 0
        %6237 = vmatpush1.bf16.msra.mxu0 0
        %6238 = vmatprep.subr.bf16.mxu0 0
        %6239 = vmatpush1.bf16.msra.mxu0 0
        %6240 = vmatprep.subr.bf16.mxu0 0
        %6241 = vmatpush1.bf16.msra.mxu0 0
        %6242 = vmatprep.subr.bf16.mxu0 0
        %6243 = vmatpush1.bf16.msra.mxu0 0
        %6244 = vmatprep.subr.bf16.mxu0 0
        %6245 = vmatpush1.bf16.msra.mxu0 0
        %6246 = vmatprep.subr.bf16.mxu0 0
        %6247 = vmatpush1.bf16.msra.mxu0 0
        %6248 = vmatprep.subr.bf16.mxu0 0
        %6249 = vmatpush1.bf16.msra.mxu0 0
        %6250 = vmatprep.mubr.bf16.mxu0 0
        %6251 = vmatmul.mubr.bf16.gmra.mrb[0].mxu0 %v6213
        %v6252 = vpop.f32.mrb[0].mxu0
        %v6253 = vadd.f32 0.0, %v6252
        %v6254 = vpop.f32.mrb[0].mxu0
        %v6255 = vpop.f32.mrb[0].mxu0
        %v6256 = vpop.f32.mrb[0].mxu0
        %6257 = vdwg.mxu0
        %v6261 = vunpack.c.l.b16 %v6194
        %v6262 = vunpack.c.l.b16 %v6195
        %v6263 = vunpack.c.l.b16 %v6196
        %v6264 = vpack.c.b16 %v6262, %v6261
        %v6265 = vpack.c.b16 %v6263, %v6263
        %v6268 = vsel %vm6187, %v6193, 0
        %v6271 = vsel %vm1085, %v6265, 0
        %6273 = vmatprep.subr.bf16.mxu0 0
        %6274 = vmatpush1.bf16.msra.mxu0 %v6264
        %6275 = vmatprep.subr.bf16.mxu0 0
        %6276 = vmatpush1.bf16.msra.mxu0 %v6271
        %6277 = vmatprep.subr.bf16.mxu0 0
        %6278 = vmatpush1.bf16.msra.mxu0 0
        %6279 = vmatprep.subr.bf16.mxu0 0
        %6280 = vmatpush1.bf16.msra.mxu0 0
        %6281 = vmatprep.subr.bf16.mxu0 0
        %6282 = vmatpush1.bf16.msra.mxu0 0
        %6283 = vmatprep.subr.bf16.mxu0 0
        %6284 = vmatpush1.bf16.msra.mxu0 0
        %6285 = vmatprep.subr.bf16.mxu0 0
        %6286 = vmatpush1.bf16.msra.mxu0 0
        %6287 = vmatprep.subr.bf16.mxu0 0
        %6288 = vmatpush1.bf16.msra.mxu0 0
        %6289 = vmatprep.subr.bf16.mxu0 0
        %6290 = vmatpush1.bf16.msra.mxu0 0
        %6291 = vmatprep.subr.bf16.mxu0 0
        %6292 = vmatpush1.bf16.msra.mxu0 0
        %6293 = vmatprep.subr.bf16.mxu0 0
        %6294 = vmatpush1.bf16.msra.mxu0 0
        %6295 = vmatprep.subr.bf16.mxu0 0
        %6296 = vmatpush1.bf16.msra.mxu0 0
        %6297 = vmatprep.subr.bf16.mxu0 0
        %6298 = vmatpush1.bf16.msra.mxu0 0
        %6299 = vmatprep.subr.bf16.mxu0 0
        %6300 = vmatpush1.bf16.msra.mxu0 0
        %6301 = vmatprep.subr.bf16.mxu0 0
        %6302 = vmatpush1.bf16.msra.mxu0 0
        %6303 = vmatprep.subr.bf16.mxu0 0
        %6304 = vmatpush1.bf16.msra.mxu0 0
        %6305 = vmatprep.mubr.bf16.mxu0 0
        %6306 = vmatmul.mubr.bf16.gmra.mrb[0].mxu0 %v6268
        %v6307 = vpop.f32.mrb[0].mxu0
        %v6308 = vadd.f32 %v6253, %v6307
        %v6309 = vpop.f32.mrb[0].mxu0
        %v6310 = vpop.f32.mrb[0].mxu0
        %v6311 = vpop.f32.mrb[0].mxu0
        %6312 = vdwg.mxu0
        %v6313 = vld [vmem:[#allocation2 + $0x6] sm:$0x7]
        %v6314 = vpack.c.bf16 %v6313, %v6313
        %s6315 = scalar_lea.vmem %s16, 24
        %v6316 = vld [vmem:[%s6315] sm:$0xf]
        %v6317 = vld [vmem:[%s6315 + $0x4] sm:$0xf]
        %v6318 = vld [vmem:[%s6315 + $0x8] sm:$0xf]
        %v6322 = vunpack.c.l.b16 %v6316
        %v6323 = vunpack.c.l.b16 %v6317
        %v6324 = vunpack.c.l.b16 %v6318
        %v6325 = vpack.c.b16 %v6323, %v6322
        %v6326 = vpack.c.b16 %v6324, %v6324
        %v6329 = vsel %vm6187, %v6314, 0
        %v6332 = vsel %vm1085, %v6326, 0
        %6334 = vmatprep.subr.bf16.mxu0 0
        %6335 = vmatpush1.bf16.msra.mxu0 %v6325
        %6336 = vmatprep.subr.bf16.mxu0 0
        %6337 = vmatpush1.bf16.msra.mxu0 %v6332
        %6338 = vmatprep.subr.bf16.mxu0 0
        %6339 = vmatpush1.bf16.msra.mxu0 0
        %6340 = vmatprep.subr.bf16.mxu0 0
        %6341 = vmatpush1.bf16.msra.mxu0 0
        %6342 = vmatprep.subr.bf16.mxu0 0
        %6343 = vmatpush1.bf16.msra.mxu0 0
        %6344 = vmatprep.subr.bf16.mxu0 0
        %6345 = vmatpush1.bf16.msra.mxu0 0
        %6346 = vmatprep.subr.bf16.mxu0 0
        %6347 = vmatpush1.bf16.msra.mxu0 0
        %6348 = vmatprep.subr.bf16.mxu0 0
        %6349 = vmatpush1.bf16.msra.mxu0 0
        %6350 = vmatprep.subr.bf16.mxu0 0
        %6351 = vmatpush1.bf16.msra.mxu0 0
        %6352 = vmatprep.subr.bf16.mxu0 0
        %6353 = vmatpush1.bf16.msra.mxu0 0
        %6354 = vmatprep.subr.bf16.mxu0 0
        %6355 = vmatpush1.bf16.msra.mxu0 0
        %6356 = vmatprep.subr.bf16.mxu0 0
        %6357 = vmatpush1.bf16.msra.mxu0 0
        %6358 = vmatprep.subr.bf16.mxu0 0
        %6359 = vmatpush1.bf16.msra.mxu0 0
        %6360 = vmatprep.subr.bf16.mxu0 0
        %6361 = vmatpush1.bf16.msra.mxu0 0
        %6362 = vmatprep.subr.bf16.mxu0 0
        %6363 = vmatpush1.bf16.msra.mxu0 0
        %6364 = vmatprep.subr.bf16.mxu0 0
        %6365 = vmatpush1.bf16.msra.mxu0 0
        %6366 = vmatprep.mubr.bf16.mxu0 0
        %6367 = vmatmul.mubr.bf16.gmra.mrb[0].mxu0 %v6329
        %v6368 = vpop.f32.mrb[0].mxu0
        %v6369 = vadd.f32 0.0, %v6368
        %v6370 = vpop.f32.mrb[0].mxu0
        %v6371 = vpop.f32.mrb[0].mxu0
        %v6372 = vpop.f32.mrb[0].mxu0
        %6373 = vdwg.mxu0
        %v6374 = vadd.f32 %v6308, %v6369
        %vm6375 = vcmask 780288
        %6376 = vst.msk [vmem:[#allocation3] sm:$0x7] %vm6375, %v6374
        %v6377 = vld [vmem:[#allocation3] sm:$0x7]
        %vm6378 = vcmask 256000
        %6379 = vst.msk [vmem:[#allocation4] sm:$0x7] %vm6378, %v6377
        %v6380 = vld [vmem:[#allocation3] sm:$0x7]
        %6382 = vrot.lane.b32.xlu0 %v6380, 96
        %v6383 = vpop.permute.xlu0 %6382
        %6385 = vst.msk [vmem:[#allocation4 + $0x3] sm:$0x7] %vm6378, %v6383
        %v6386 = vld [vmem:[#allocation3] sm:$0x7]
        %6388 = vrot.lane.b32.xlu0 %v6386, 64
        %v6389 = vpop.permute.xlu0 %6388
        %6391 = vst.msk [vmem:[#allocation4 + $0x6] sm:$0x7] %vm6378, %v6389
        %v6392 = vld [vmem:[#allocation2 + $0x9] sm:$0x7]
        %v6393 = vpack.c.bf16 %v6392, %v6392
        %s6394 = scalar_lea.vmem %s16, 36
        %v6395 = vld [vmem:[%s6394] sm:$0xf]
        %v6396 = vld [vmem:[%s6394 + $0x4] sm:$0xf]
        %v6397 = vld [vmem:[%s6394 + $0x8] sm:$0xf]
        %v6398 = vld [vmem:[#allocation2 + $0xc] sm:$0x7]
        %v6399 = vpack.c.bf16 %v6398, %v6398
        %s6400 = scalar_lea.vmem %s16, 48
        %v6401 = vld [vmem:[%s6400] sm:$0xf]
        %v6402 = vld [vmem:[%s6400 + $0x4] sm:$0xf]
        %v6403 = vld [vmem:[%s6400 + $0x8] sm:$0xf]
        %v6407 = vunpack.c.l.b16 %v6401
        %v6408 = vunpack.c.l.b16 %v6402
        %v6409 = vunpack.c.l.b16 %v6403
        %v6410 = vpack.c.b16 %v6408, %v6407
        %v6411 = vpack.c.b16 %v6409, %v6409
        %v6414 = vsel %vm6187, %v6399, 0
        %v6417 = vsel %vm1085, %v6411, 0
        %6419 = vmatprep.subr.bf16.mxu0 0
        %6420 = vmatpush1.bf16.msra.mxu0 %v6410
        %6421 = vmatprep.subr.bf16.mxu0 0
        %6422 = vmatpush1.bf16.msra.mxu0 %v6417
        %6423 = vmatprep.subr.bf16.mxu0 0
        %6424 = vmatpush1.bf16.msra.mxu0 0
        %6425 = vmatprep.subr.bf16.mxu0 0
        %6426 = vmatpush1.bf16.msra.mxu0 0
        %6427 = vmatprep.subr.bf16.mxu0 0
        %6428 = vmatpush1.bf16.msra.mxu0 0
        %6429 = vmatprep.subr.bf16.mxu0 0
        %6430 = vmatpush1.bf16.msra.mxu0 0
        %6431 = vmatprep.subr.bf16.mxu0 0
        %6432 = vmatpush1.bf16.msra.mxu0 0
        %6433 = vmatprep.subr.bf16.mxu0 0
        %6434 = vmatpush1.bf16.msra.mxu0 0
        %6435 = vmatprep.subr.bf16.mxu0 0
        %6436 = vmatpush1.bf16.msra.mxu0 0
        %6437 = vmatprep.subr.bf16.mxu0 0
        %6438 = vmatpush1.bf16.msra.mxu0 0
        %6439 = vmatprep.subr.bf16.mxu0 0
        %6440 = vmatpush1.bf16.msra.mxu0 0
        %6441 = vmatprep.subr.bf16.mxu0 0
        %6442 = vmatpush1.bf16.msra.mxu0 0
        %6443 = vmatprep.subr.bf16.mxu0 0
        %6444 = vmatpush1.bf16.msra.mxu0 0
        %6445 = vmatprep.subr.bf16.mxu0 0
        %6446 = vmatpush1.bf16.msra.mxu0 0
        %6447 = vmatprep.subr.bf16.mxu0 0
        %6448 = vmatpush1.bf16.msra.mxu0 0
        %6449 = vmatprep.subr.bf16.mxu0 0
        %6450 = vmatpush1.bf16.msra.mxu0 0
        %6451 = vmatprep.mubr.bf16.mxu0 0
        %6452 = vmatmul.mubr.bf16.gmra.mrb[0].mxu0 %v6414
        %v6453 = vpop.f32.mrb[0].mxu0
        %v6454 = vadd.f32 0.0, %v6453
        %v6455 = vpop.f32.mrb[0].mxu0
        %v6456 = vpop.f32.mrb[0].mxu0
        %v6457 = vpop.f32.mrb[0].mxu0
        %6458 = vdwg.mxu0
        %v6462 = vunpack.c.l.b16 %v6395
        %v6463 = vunpack.c.l.b16 %v6396
        %v6464 = vunpack.c.l.b16 %v6397
        %v6465 = vpack.c.b16 %v6463, %v6462
        %v6466 = vpack.c.b16 %v6464, %v6464
        %v6469 = vsel %vm6187, %v6393, 0
        %v6472 = vsel %vm1085, %v6466, 0
        %6474 = vmatprep.subr.bf16.mxu0 0
        %6475 = vmatpush1.bf16.msra.mxu0 %v6465
        %6476 = vmatprep.subr.bf16.mxu0 0
        %6477 = vmatpush1.bf16.msra.mxu0 %v6472
        %6478 = vmatprep.subr.bf16.mxu0 0
        %6479 = vmatpush1.bf16.msra.mxu0 0
        %6480 = vmatprep.subr.bf16.mxu0 0
        %6481 = vmatpush1.bf16.msra.mxu0 0
        %6482 = vmatprep.subr.bf16.mxu0 0
        %6483 = vmatpush1.bf16.msra.mxu0 0
        %6484 = vmatprep.subr.bf16.mxu0 0
        %6485 = vmatpush1.bf16.msra.mxu0 0
        %6486 = vmatprep.subr.bf16.mxu0 0
        %6487 = vmatpush1.bf16.msra.mxu0 0
        %6488 = vmatprep.subr.bf16.mxu0 0
        %6489 = vmatpush1.bf16.msra.mxu0 0
        %6490 = vmatprep.subr.bf16.mxu0 0
        %6491 = vmatpush1.bf16.msra.mxu0 0
        %6492 = vmatprep.subr.bf16.mxu0 0
        %6493 = vmatpush1.bf16.msra.mxu0 0
        %6494 = vmatprep.subr.bf16.mxu0 0
        %6495 = vmatpush1.bf16.msra.mxu0 0
        %6496 = vmatprep.subr.bf16.mxu0 0
        %6497 = vmatpush1.bf16.msra.mxu0 0
        %6498 = vmatprep.subr.bf16.mxu0 0
        %6499 = vmatpush1.bf16.msra.mxu0 0
        %6500 = vmatprep.subr.bf16.mxu0 0
        %6501 = vmatpush1.bf16.msra.mxu0 0
        %6502 = vmatprep.subr.bf16.mxu0 0
        %6503 = vmatpush1.bf16.msra.mxu0 0
        %6504 = vmatprep.subr.bf16.mxu0 0
        %6505 = vmatpush1.bf16.msra.mxu0 0
        %6506 = vmatprep.mubr.bf16.mxu0 0
        %6507 = vmatmul.mubr.bf16.gmra.mrb[0].mxu0 %v6469
        %v6508 = vpop.f32.mrb[0].mxu0
        %v6509 = vadd.f32 %v6454, %v6508
        %v6510 = vpop.f32.mrb[0].mxu0
        %v6511 = vpop.f32.mrb[0].mxu0
        %v6512 = vpop.f32.mrb[0].mxu0
        %6513 = vdwg.mxu0
        %v6514 = vld [vmem:[#allocation2 + $0xf] sm:$0x7]
        %v6515 = vpack.c.bf16 %v6514, %v6514
        %s6516 = scalar_lea.vmem %s16, 60
        %v6517 = vld [vmem:[%s6516] sm:$0xf]
        %v6518 = vld [vmem:[%s6516 + $0x4] sm:$0xf]
        %v6519 = vld [vmem:[%s6516 + $0x8] sm:$0xf]
        %v6523 = vunpack.c.l.b16 %v6517
        %v6524 = vunpack.c.l.b16 %v6518
        %v6525 = vunpack.c.l.b16 %v6519
        %v6526 = vpack.c.b16 %v6524, %v6523
        %v6527 = vpack.c.b16 %v6525, %v6525
        %v6530 = vsel %vm6187, %v6515, 0
        %v6533 = vsel %vm1085, %v6527, 0
        %6535 = vmatprep.subr.bf16.mxu0 0
        %6536 = vmatpush1.bf16.msra.mxu0 %v6526
        %6537 = vmatprep.subr.bf16.mxu0 0
        %6538 = vmatpush1.bf16.msra.mxu0 %v6533
        %6539 = vmatprep.subr.bf16.mxu0 0
        %6540 = vmatpush1.bf16.msra.mxu0 0
        %6541 = vmatprep.subr.bf16.mxu0 0
        %6542 = vmatpush1.bf16.msra.mxu0 0
        %6543 = vmatprep.subr.bf16.mxu0 0
        %6544 = vmatpush1.bf16.msra.mxu0 0
        %6545 = vmatprep.subr.bf16.mxu0 0
        %6546 = vmatpush1.bf16.msra.mxu0 0
        %6547 = vmatprep.subr.bf16.mxu0 0
        %6548 = vmatpush1.bf16.msra.mxu0 0
        %6549 = vmatprep.subr.bf16.mxu0 0
        %6550 = vmatpush1.bf16.msra.mxu0 0
        %6551 = vmatprep.subr.bf16.mxu0 0
        %6552 = vmatpush1.bf16.msra.mxu0 0
        %6553 = vmatprep.subr.bf16.mxu0 0
        %6554 = vmatpush1.bf16.msra.mxu0 0
        %6555 = vmatprep.subr.bf16.mxu0 0
        %6556 = vmatpush1.bf16.msra.mxu0 0
        %6557 = vmatprep.subr.bf16.mxu0 0
        %6558 = vmatpush1.bf16.msra.mxu0 0
        %6559 = vmatprep.subr.bf16.mxu0 0
        %6560 = vmatpush1.bf16.msra.mxu0 0
        %6561 = vmatprep.subr.bf16.mxu0 0
        %6562 = vmatpush1.bf16.msra.mxu0 0
        %6563 = vmatprep.subr.bf16.mxu0 0
        %6564 = vmatpush1.bf16.msra.mxu0 0
        %6565 = vmatprep.subr.bf16.mxu0 0
        %6566 = vmatpush1.bf16.msra.mxu0 0
        %6567 = vmatprep.mubr.bf16.mxu0 0
        %6568 = vmatmul.mubr.bf16.gmra.mrb[0].mxu0 %v6530
        %v6569 = vpop.f32.mrb[0].mxu0
        %v6570 = vadd.f32 0.0, %v6569
        %v6571 = vpop.f32.mrb[0].mxu0
        %v6572 = vpop.f32.mrb[0].mxu0
        %v6573 = vpop.f32.mrb[0].mxu0
        %6574 = vdwg.mxu0
        %v6575 = vadd.f32 %v6509, %v6570
        %6576 = vst.msk [vmem:[#allocation3] sm:$0x7] %vm6375, %v6575
        %v6577 = vld [vmem:[#allocation3] sm:$0x7]
        %6578 = vst.msk [vmem:[#allocation4 + $0x9] sm:$0x7] %vm6378, %v6577
        %v6579 = vld [vmem:[#allocation3] sm:$0x7]
        %6581 = vrot.lane.b32.xlu0 %v6579, 96
        %v6582 = vpop.permute.xlu0 %6581
        %6584 = vst.msk [vmem:[#allocation4 + $0xc] sm:$0x7] %vm6378, %v6582
        %v6585 = vld [vmem:[#allocation3] sm:$0x7]
        %6587 = vrot.lane.b32.xlu0 %v6585, 64
        %v6588 = vpop.permute.xlu0 %6587
        %6590 = vst.msk [vmem:[#allocation4 + $0xf] sm:$0x7] %vm6378, %v6588
        %v6591 = vld [vmem:[#allocation4] sm:$0xff]
        %v6592 = vld [vmem:[#allocation4 + $0x8] sm:$0xff]
        %v6593 = vld [vmem:[#allocation4 + $0x10] sm:$0x3]
        %v6594 = vpack.c.bf16 %v6592, %v6591
        %v6595 = vpack.c.bf16 %v6593, %v6593
        %v6596 = vld [vmem:[%s17] sm:$0xf]
        %v6597 = vld [vmem:[%s17 + $0x4] sm:$0xf]
        %v6598 = vld [vmem:[%s17 + $0x8] sm:$0xf]
        %v6599 = vld [vmem:[%s17 + $0xc] sm:$0xf]
        %v6600 = vld [vmem:[%s17 + $0x10] sm:$0xf]
        %v6601 = vld [vmem:[%s17 + $0x14] sm:$0xf]
        %v6602 = vld [vmem:[%s17 + $0x18] sm:$0xf]
        %v6603 = vld [vmem:[%s17 + $0x1c] sm:$0xf]
        %v6604 = vld [vmem:[%s18] sm:$0x1]
        %v6606 = vlaneseq
        %v6607 = vshrl.u32 %v6606, 7
        %v6608 = vsub.s32 0, %v6607
        %v6609 = vrot.slane %v6604, %v6608
        %v6619 = vunpack.c.l.b16 %v6596
        %v6620 = vunpack.c.l.b16 %v6597
        %v6621 = vunpack.c.l.b16 %v6598
        %v6622 = vunpack.c.l.b16 %v6599
        %v6623 = vunpack.c.l.b16 %v6600
        %v6624 = vunpack.c.l.b16 %v6601
        %v6625 = vunpack.c.l.b16 %v6602
        %v6626 = vunpack.c.l.b16 %v6603
        %v6627 = vpack.c.b16 %v6620, %v6619
        %v6628 = vpack.c.b16 %v6622, %v6621
        %v6629 = vpack.c.b16 %v6624, %v6623
        %v6630 = vpack.c.b16 %v6626, %v6625
        %v6632 = vsel %vm6027, %v6627, 0
        %v6635 = vsel %vm6027, %v6628, 0
        %v6638 = vsel %vm6027, %v6629, 0
        %v6641 = vsel %vm6027, %v6630, 0
        %v6644 = vsel %vm6040, %v6595, 0
        %6646 = vmatprep.subr.bf16.mxu0 0
        %6647 = vmatpush1.bf16.msra.mxu0 %v6594
        %6648 = vmatprep.subr.bf16.mxu0 0
        %6649 = vmatpush1.bf16.msra.mxu0 %v6644
        %6650 = vmatprep.subr.bf16.mxu0 0
        %6651 = vmatpush1.bf16.msra.mxu0 0
        %6652 = vmatprep.subr.bf16.mxu0 0
        %6653 = vmatpush1.bf16.msra.mxu0 0
        %6654 = vmatprep.subr.bf16.mxu0 0
        %6655 = vmatpush1.bf16.msra.mxu0 0
        %6656 = vmatprep.subr.bf16.mxu0 0
        %6657 = vmatpush1.bf16.msra.mxu0 0
        %6658 = vmatprep.subr.bf16.mxu0 0
        %6659 = vmatpush1.bf16.msra.mxu0 0
        %6660 = vmatprep.subr.bf16.mxu0 0
        %6661 = vmatpush1.bf16.msra.mxu0 0
        %6662 = vmatprep.subr.bf16.mxu0 0
        %6663 = vmatpush1.bf16.msra.mxu0 0
        %6664 = vmatprep.subr.bf16.mxu0 0
        %6665 = vmatpush1.bf16.msra.mxu0 0
        %6666 = vmatprep.subr.bf16.mxu0 0
        %6667 = vmatpush1.bf16.msra.mxu0 0
        %6668 = vmatprep.subr.bf16.mxu0 0
        %6669 = vmatpush1.bf16.msra.mxu0 0
        %6670 = vmatprep.subr.bf16.mxu0 0
        %6671 = vmatpush1.bf16.msra.mxu0 0
        %6672 = vmatprep.subr.bf16.mxu0 0
        %6673 = vmatpush1.bf16.msra.mxu0 0
        %6674 = vmatprep.subr.bf16.mxu0 0
        %6675 = vmatpush1.bf16.msra.mxu0 0
        %6676 = vmatprep.subr.bf16.mxu0 0
        %6677 = vmatpush1.bf16.msra.mxu0 0
        %6678 = vmatprep.mubr.bf16.mxu0 0
        %6679 = vmatmul.mubr.bf16.gmra.mrb[0].mxu0 %v6632
        %v6680 = vpop.f32.mrb[0].mxu0
        %v6681 = vadd.f32 %v6609, %v6680
        %v6682 = vpop.f32.mrb[0].mxu0
        %v6683 = vpop.f32.mrb[0].mxu0
        %v6684 = vadd.f32 %v6609, %v6683
        %v6685 = vpop.f32.mrb[0].mxu0
        %6686 = vmatprep.mubr.bf16.mxu0 0
        %6687 = vmatmul.mubr.bf16.gmra.mrb[0].mxu0 %v6635
        %v6688 = vpop.f32.mrb[0].mxu0
        %v6689 = vadd.f32 %v6609, %v6688
        %v6690 = vpop.f32.mrb[0].mxu0
        %v6691 = vpop.f32.mrb[0].mxu0
        %v6692 = vadd.f32 %v6609, %v6691
        %v6693 = vpop.f32.mrb[0].mxu0
        %6694 = vmatprep.mubr.bf16.mxu0 0
        %6695 = vmatmul.mubr.bf16.gmra.mrb[0].mxu0 %v6638
        %v6696 = vpop.f32.mrb[0].mxu0
        %v6697 = vadd.f32 %v6609, %v6696
        %v6698 = vpop.f32.mrb[0].mxu0
        %v6699 = vpop.f32.mrb[0].mxu0
        %v6700 = vadd.f32 %v6609, %v6699
        %v6701 = vpop.f32.mrb[0].mxu0
        %6702 = vmatprep.mubr.bf16.mxu0 0
        %6703 = vmatmul.mubr.bf16.gmra.mrb[0].mxu0 %v6641
        %v6704 = vpop.f32.mrb[0].mxu0
        %v6705 = vadd.f32 %v6609, %v6704
        %v6706 = vpop.f32.mrb[0].mxu0
        %v6707 = vpop.f32.mrb[0].mxu0
        %v6708 = vadd.f32 %v6609, %v6707
        %v6709 = vpop.f32.mrb[0].mxu0
        %6710 = vdwg.mxu0
        %v6711 = vmax.f32 %v6681, 0.0
        %v6712 = vmax.f32 %v6684, 0.0
        %v6713 = vmax.f32 %v6689, 0.0
        %v6714 = vmax.f32 %v6692, 0.0
        %v6715 = vmax.f32 %v6697, 0.0
        %v6716 = vmax.f32 %v6700, 0.0
        %v6717 = vmax.f32 %v6705, 0.0
        %v6718 = vmax.f32 %v6708, 0.0
        %v6719 = vld [vmem:[%s20] sm:$0xff]
        %v6720 = vld [vmem:[%s20 + $0x8] sm:$0xff]
        %v6721 = vld [vmem:[%s20 + $0x10] sm:$0xff]
        %v6722 = vld [vmem:[%s20 + $0x18] sm:$0xff]
        %vm6723 = vcmask 261120
        %v6725 = vsel %vm6723, %v6711, 0
        %v6728 = vsel %vm6723, %v6712, 0
        %v6731 = vsel %vm6723, %v6713, 0
        %v6734 = vsel %vm6723, %v6714, 0
        %v6737 = vsel %vm6723, %v6715, 0
        %v6740 = vsel %vm6723, %v6716, 0
        %v6743 = vsel %vm6723, %v6717, 0
        %v6746 = vsel %vm6723, %v6718, 0
        %6748 = vmatprep.subr.mxu0 0.0
        %6749 = vmatpush1.msra.mxu0 %v6719
        %6750 = vmatprep.subr.mxu0 0.0
        %6751 = vmatpush1.msra.mxu0 %v6720
        %6752 = vmatprep.subr.mxu0 0.0
        %6753 = vmatpush1.msra.mxu0 %v6721
        %6754 = vmatprep.subr.mxu0 0.0
        %6755 = vmatpush1.msra.mxu0 %v6722
        %6756 = vmatprep.subr.mxu0 0.0
        %6757 = vmatpush1.msra.mxu0 0.0
        %6758 = vmatprep.subr.mxu0 0.0
        %6759 = vmatpush1.msra.mxu0 0.0
        %6760 = vmatprep.subr.mxu0 0.0
        %6761 = vmatpush1.msra.mxu0 0.0
        %6762 = vmatprep.subr.mxu0 0.0
        %6763 = vmatpush1.msra.mxu0 0.0
        %6764 = vmatprep.subr.mxu0 0.0
        %6765 = vmatpush1.msra.mxu0 0.0
        %6766 = vmatprep.subr.mxu0 0.0
        %6767 = vmatpush1.msra.mxu0 0.0
        %6768 = vmatprep.subr.mxu0 0.0
        %6769 = vmatpush1.msra.mxu0 0.0
        %6770 = vmatprep.subr.mxu0 0.0
        %6771 = vmatpush1.msra.mxu0 0.0
        %6772 = vmatprep.subr.mxu0 0.0
        %6773 = vmatpush1.msra.mxu0 0.0
        %6774 = vmatprep.subr.mxu0 0.0
        %6775 = vmatpush1.msra.mxu0 0.0
        %6776 = vmatprep.subr.mxu0 0.0
        %6777 = vmatpush1.msra.mxu0 0.0
        %6778 = vmatprep.subr.mxu0 0.0
        %6779 = vmatpush1.msra.mxu0 0.0
        %6780 = vmatprep.subr.mxu0 0.0
        %6781 = vmatpush1.msra.mxu0 0.0
        %6782 = vmatprep.subr.mxu0 0.0
        %6783 = vmatpush1.msra.mxu0 0.0
        %6784 = vmatprep.subr.mxu0 0.0
        %6785 = vmatpush1.msra.mxu0 0.0
        %6786 = vmatprep.subr.mxu0 0.0
        %6787 = vmatpush1.msra.mxu0 0.0
        %6788 = vmatprep.subr.mxu0 0.0
        %6789 = vmatpush1.msra.mxu0 0.0
        %6790 = vmatprep.subr.mxu0 0.0
        %6791 = vmatpush1.msra.mxu0 0.0
        %6792 = vmatprep.subr.mxu0 0.0
        %6793 = vmatpush1.msra.mxu0 0.0
        %6794 = vmatprep.subr.mxu0 0.0
        %6795 = vmatpush1.msra.mxu0 0.0
        %6796 = vmatprep.subr.mxu0 0.0
        %6797 = vmatpush1.msra.mxu0 0.0
        %6798 = vmatprep.subr.mxu0 0.0
        %6799 = vmatpush1.msra.mxu0 0.0
        %6800 = vmatprep.subr.mxu0 0.0
        %6801 = vmatpush1.msra.mxu0 0.0
        %6802 = vmatprep.subr.mxu0 0.0
        %6803 = vmatpush1.msra.mxu0 0.0
        %6804 = vmatprep.subr.mxu0 0.0
        %6805 = vmatpush1.msra.mxu0 0.0
        %6806 = vmatprep.subr.mxu0 0.0
        %6807 = vmatpush1.msra.mxu0 0.0
        %6808 = vmatprep.subr.mxu0 0.0
        %6809 = vmatpush1.msra.mxu0 0.0
        %6810 = vmatprep.subr.mxu0 0.0
        %6811 = vmatpush1.msra.mxu0 0.0
        %6812 = vmatprep.mubr.f32.mxu0 0.0
        %6813 = vmatmul.mubr.f32.gmra.mrb[0].mxu0 %v6725
        %v6814 = vpop.f32.mrb[0].mxu0
        %v6815 = vadd.f32 0.0, %v6814
        %v6816 = vpop.f32.mrb[0].mxu0
        %6817 = vmatprep.mubr.f32.mxu0 0.0
        %6818 = vmatmul.mubr.f32.gmra.mrb[0].mxu0 %v6728
        %v6819 = vpop.f32.mrb[0].mxu0
        %v6820 = vadd.f32 0.0, %v6819
        %v6821 = vpop.f32.mrb[0].mxu0
        %6822 = vmatprep.mubr.f32.mxu0 0.0
        %6823 = vmatmul.mubr.f32.gmra.mrb[0].mxu0 %v6731
        %v6824 = vpop.f32.mrb[0].mxu0
        %v6825 = vadd.f32 0.0, %v6824
        %v6826 = vpop.f32.mrb[0].mxu0
        %6827 = vmatprep.mubr.f32.mxu0 0.0
        %6828 = vmatmul.mubr.f32.gmra.mrb[0].mxu0 %v6734
        %v6829 = vpop.f32.mrb[0].mxu0
        %v6830 = vadd.f32 0.0, %v6829
        %v6831 = vpop.f32.mrb[0].mxu0
        %6832 = vmatprep.mubr.f32.mxu0 0.0
        %6833 = vmatmul.mubr.f32.gmra.mrb[0].mxu0 %v6737
        %v6834 = vpop.f32.mrb[0].mxu0
        %v6835 = vadd.f32 0.0, %v6834
        %v6836 = vpop.f32.mrb[0].mxu0
        %6837 = vmatprep.mubr.f32.mxu0 0.0
        %6838 = vmatmul.mubr.f32.gmra.mrb[0].mxu0 %v6740
        %v6839 = vpop.f32.mrb[0].mxu0
        %v6840 = vadd.f32 0.0, %v6839
        %v6841 = vpop.f32.mrb[0].mxu0
        %6842 = vmatprep.mubr.f32.mxu0 0.0
        %6843 = vmatmul.mubr.f32.gmra.mrb[0].mxu0 %v6743
        %v6844 = vpop.f32.mrb[0].mxu0
        %v6845 = vadd.f32 0.0, %v6844
        %v6846 = vpop.f32.mrb[0].mxu0
        %6847 = vmatprep.mubr.f32.mxu0 0.0
        %6848 = vmatmul.mubr.f32.gmra.mrb[0].mxu0 %v6746
        %v6849 = vpop.f32.mrb[0].mxu0
        %v6850 = vadd.f32 0.0, %v6849
        %v6851 = vpop.f32.mrb[0].mxu0
        %6852 = vdwg.mxu0
        %v6853 = vld [vmem:[%s19] sm:$0xff]
        %v6854 = vld [vmem:[%s19 + $0x8] sm:$0xff]
        %v6855 = vld [vmem:[%s19 + $0x10] sm:$0xff]
        %v6856 = vld [vmem:[%s19 + $0x18] sm:$0xff]
        %v6857 = vld [vmem:[%s19 + $0x20] sm:$0xff]
        %v6858 = vld [vmem:[%s19 + $0x28] sm:$0xff]
        %v6859 = vld [vmem:[%s19 + $0x30] sm:$0xff]
        %v6860 = vld [vmem:[%s19 + $0x38] sm:$0xff]
        %6862 = vset.pattern.permute.xlu0 0
        %6863 = vperm.xlu0 %6862, %v6853
        %v6864 = vpop.permute.xlu0 %6863
        %6867 = vset.pattern.permute.xlu0 0
        %6868 = vperm.xlu0 %6867, %v6854
        %v6869 = vpop.permute.xlu0 %6868
        %6872 = vset.pattern.permute.xlu0 0
        %6873 = vperm.xlu0 %6872, %v6855
        %v6874 = vpop.permute.xlu0 %6873
        %6877 = vset.pattern.permute.xlu0 0
        %6878 = vperm.xlu0 %6877, %v6856
        %v6879 = vpop.permute.xlu0 %6878
        %6882 = vset.pattern.permute.xlu0 0
        %6883 = vperm.xlu0 %6882, %v6857
        %v6884 = vpop.permute.xlu0 %6883
        %6887 = vset.pattern.permute.xlu0 0
        %6888 = vperm.xlu0 %6887, %v6858
        %v6889 = vpop.permute.xlu0 %6888
        %6892 = vset.pattern.permute.xlu0 0
        %6893 = vperm.xlu0 %6892, %v6859
        %v6894 = vpop.permute.xlu0 %6893
        %6897 = vset.pattern.permute.xlu0 0
        %6898 = vperm.xlu0 %6897, %v6860
        %v6899 = vpop.permute.xlu0 %6898
        %v6901 = vmul.f32 %v6815, %v6864
        %v6902 = vmul.f32 %v6820, %v6869
        %v6903 = vmul.f32 %v6825, %v6874
        %v6904 = vmul.f32 %v6830, %v6879
        %v6905 = vmul.f32 %v6835, %v6884
        %v6906 = vmul.f32 %v6840, %v6889
        %v6907 = vmul.f32 %v6845, %v6894
        %v6908 = vmul.f32 %v6850, %v6899
        %vm6909 = vcmask 15360
        %v6910 = vsel %vm6909, %v6901, 0.0
        %v6911 = vsel %vm6909, %v6902, 0.0
        %v6912 = vadd.f32 %v6910, %v6911
        %v6913 = vsel %vm6909, %v6903, 0.0
        %v6914 = vadd.f32 %v6912, %v6913
        %v6915 = vsel %vm6909, %v6904, 0.0
        %v6916 = vadd.f32 %v6914, %v6915
        %v6917 = vsel %vm6909, %v6905, 0.0
        %v6918 = vadd.f32 %v6916, %v6917
        %v6919 = vsel %vm6909, %v6906, 0.0
        %v6920 = vadd.f32 %v6918, %v6919
        %v6921 = vsel %vm6909, %v6907, 0.0
        %v6922 = vadd.f32 %v6920, %v6921
        %v6923 = vsel %vm6909, %v6908, 0.0
        %v6924 = vadd.f32 %v6922, %v6923
        %v6925 = vrot.slane %v6924, 4
        %v6926 = vadd.f32 %v6924, %v6925
        %v6927 = vrot.slane %v6926, 2
        %v6928 = vadd.f32 %v6926, %v6927
        %v6929 = vrot.slane %v6928, 1
        %v6930 = vadd.f32 %v6928, %v6929
        %v6931 = vld [vmem:[%s21] sm:$0x1]
        %v6932 = vadd.f32 %v6930, %v6931
        %vm6933 = vcmask 8192
        %v6934 = vsel %vm6933, %v6932, -inf
        %6935 = vmax.xlane.f32.xlu0 %v6934
        %v6936 = vpop.xlane.xlu0 %6935
        %v6937 = vsub.f32 %v6932, %v6936
        %v6938 = vmul.f32 %v6937, 1.442695
        %v6939 = vpow.pop %v6938
        %v6940 = vsel %vm6933, %v6939, 0.0
        %6941 = vadd.xlane.f32.xlu0 %v6940
        %v6942 = vpop.xlane.xlu0 %6941
        %v6943 = vlog2.pop %v6942
        %v6944 = vmul.f32 %v6943, 0.6931472
        %v6945 = vsub.f32 %v6937, %v6944
        %6946 = vst.msk [vmem:[%s675] sm:$0x1] %vm6933, %v6945
        %s6947 = sand.u32 %s511, 1
        %s6948 = scalar_lea.sflag [#allocation6], %s6947
        %s6949 = sand.u32 %s511, 1
        %s6950 = scalar_lea.vmem [#allocation5], %s6949
        // Predicated region
        $region109: #{forward.3} parent=107 // pred_check
          %p6951 = pneg %p521
        $region110: #{forward.3} parent=107 // pred_check_branch
          %6953 = sbr.rel (%p6951) target = $region112
        $region111: #{forward.3} parent=107 // pred_region
          %s6955 = ssub.s32 16, 16
          %6956 = vsyncadd %s6948, %s6955
          %s6957 = smul.addr %s36, 16
          %s6958 = scalar_lea.hbm %s22, %s6957
          %s6960 = sshll.u32 %s6950, 4
          %s6961 = int_to_ptr.vmem [resolvable:$true] %s6960
          %6963 = dma.vmem_to_hbm [thread:$0]  %s6961, 16, %s6958, %s6948
        $region112: #{forward.3} parent=107 // pred_fallthru
          _
      $region108: #{forward.3} parent=5 // pred_fallthru
        _
      %p6964 = scmp.le.s32.totalorder 2, %s31
      // Predicated region
      $region113: #{forward.3} parent=5 // pred_check
        %p6965 = pneg %p6964
      $region114: #{forward.3} parent=5 // pred_check_branch
        %6967 = sbr.rel (%p6965) target = $region116
      $region115: #{forward.3} parent=5 // pred_region
        %s6968 = ssub.s32 %s31, 2
        // Predicated region
        $region117: #{forward.3} parent=115 // pred_check
          %p6969 = pneg %p527
        $region118: #{forward.3} parent=115 // pred_check_branch
          %6971 = sbr.rel (%p6969) target = $region120
        $region119: #{forward.3} parent=115 // pred_region
          %s6972 = sand.u32 %s512, 1
          %s6973 = scalar_lea.sflag [#allocation6], %s6972
          %s6974 = sand.u32 %s512, 1
          %s6975 = scalar_lea.vmem [#allocation5], %s6974
          %6976 = dma.done %s6973, 16
        $region120: #{forward.3} parent=115 // pred_fallthru
          _
      $region116: #{forward.3} parent=5 // pred_fallthru
        _
    $region6: #{forward.3} parent=1 // loop_footer
      %s35 = sadd.s32 1, %s31
    $region7: #{forward.3} parent=1 // loop_footer_branch
      %30 = sbr.rel target = $region3
    $region8: #{forward.3} parent=1 // loop_exit
      _
    %6977 = vsyncpa [#allocation6], 1
    %s6978 = scalar_lea.sflag [#allocation6], 1
    %6979 = vsyncpa %s6978, 1

</llo_original>
